<compile_context>
chip_gen: v5e
topology: v5e:2x2
jax: 0.10.0
libtpu: 0.0.40
codegen_flags: <defaults>
</compile_context>

<pallas_src>
import jax
import jax.numpy as jnp
from jax.experimental import pallas as pl
from jax.experimental.pallas import tpu as pltpu


def _round_up(a, m):
    return ((a + m - 1) // m) * m


def _make_fused_kernel(*, H, W, Wp, TH, K0, C1, C2, RB):
    """conv1(im2col)+relu -> conv2+relu -> conv3+sigmoid, one row-tile."""
    R1 = TH + 4   # conv1 rows held per tile: global [r0-2, r0+TH+2)
    R2 = TH + 2   # conv2 rows held per tile: global [r0-1, r0+TH+1)
    n1 = -(-R1 // RB)
    n2 = -(-R2 // RB)

    def kernel(x_ref, w1_ref, b1_ref, w2_ref, b2_ref, w3_ref, b3_ref,
               o_ref, a1_ref, a2_ref):
        # x_ref : (TH+4, W, 9*C0) bf16  im2col'd conv1 patches
        # w1_ref: (9*C0, C1)      bf16
        # w2_ref: (9, C1, C1)     bf16 ;  w3_ref: (9, C1, C2) bf16
        # b*_ref: (1, Cout)       f32
        # o_ref : (C2, TH*W)      f32   lane-dense NCHW output tile
        # a1_ref: (R1, Wp, C1)    bf16  conv1 activations (zero col borders)
        # a2_ref: (R2, Wp, C1)    bf16  conv2 activations (zero col borders)
        t = pl.program_id(1)
        last_t = pl.num_programs(1) - 1

        # Zero the 1-column "same"-padding borders (cols 0 and W+1).
        # Columns >= W+2 of the padded scratch are never read.
        a1_ref[:, 0:1, :] = jnp.zeros((R1, 1, C1), a1_ref.dtype)
        a1_ref[:, W + 1:W + 2, :] = jnp.zeros((R1, 1, C1), a1_ref.dtype)
        a2_ref[:, 0:1, :] = jnp.zeros((R2, 1, C1), a2_ref.dtype)
        a2_ref[:, W + 1:W + 2, :] = jnp.zeros((R2, 1, C1), a2_ref.dtype)

        # ----- conv1 (single K=9*C0 matmul per chunk) + relu -> a1 ----------
        b1 = b1_ref[...]                                   # (1, C1) f32
        @pl.loop(0, n1)
        def _(i):
            r = jnp.minimum(i * RB, R1 - RB)               # clamp: stay in-bounds
            patch = x_ref[pl.ds(r, RB), :, :].reshape(RB * W, K0)
            acc = jnp.dot(patch, w1_ref[...],
                          preferred_element_type=jnp.float32) + b1
            y = jnp.maximum(acc, 0.0).reshape(RB, W, C1)
            a1_ref[pl.ds(r, RB), 1:W + 1, :] = y.astype(a1_ref.dtype)

        # conv2's "same" row padding: conv1 activations at global rows -1 / H
        # must be exactly zero.  Only the first / last row-tile contains them,
        # so interior tiles skip the masking entirely.
        @pl.when(t == 0)
        def _():
            a1_ref[1:2, :, :] = jnp.zeros((1, Wp, C1), a1_ref.dtype)

        @pl.when(t == last_t)
        def _():
            a1_ref[TH + 2:TH + 3, :, :] = jnp.zeros((1, Wp, C1), a1_ref.dtype)

        # ----- conv2 (9 taps) + relu -> a2 ----------------------------------
        b2 = b2_ref[...]
        @pl.loop(0, n2)
        def _(i):
            r = jnp.minimum(i * RB, R2 - RB)
            acc = jnp.broadcast_to(b2, (RB * W, C1))
            for kh in range(3):
                for kw in range(3):
                    p = a1_ref[pl.ds(r + kh, RB), kw:kw + W, :]
                    acc = acc + jnp.dot(p.reshape(RB * W, C1),
                                        w2_ref[kh * 3 + kw],
                                        preferred_element_type=jnp.float32)
            y = jnp.maximum(acc, 0.0).reshape(RB, W, C1)
            a2_ref[pl.ds(r, RB), 1:W + 1, :] = y.astype(a2_ref.dtype)

        @pl.when(t == 0)
        def _():
            a2_ref[0:1, :, :] = jnp.zeros((1, Wp, C1), a2_ref.dtype)

        @pl.when(t == last_t)
        def _():
            a2_ref[TH + 1:TH + 2, :, :] = jnp.zeros((1, Wp, C1), a2_ref.dtype)

        # ----- conv3 (9 taps) + sigmoid -> lane-dense (C2, TH*W) ------------
        # Static Python chunk loop: output-column offsets stay static and
        # 128-aligned; the C2-wide accumulator is tiny so unrolling is cheap.
        b3 = b3_ref[...]
        r = 0
        while r < TH:
            rows = min(RB, TH - r)
            acc = jnp.broadcast_to(b3, (rows * W, C2))
            for kh in range(3):
                for kw in range(3):
                    p = a2_ref[r + kh:r + kh + rows, kw:kw + W, :]
                    acc = acc + jnp.dot(p.reshape(rows * W, C1),
                                        w3_ref[kh * 3 + kw],
                                        preferred_element_type=jnp.float32)
            y = jax.nn.sigmoid(jnp.transpose(acc))         # (C2, rows*W)
            o_ref[:, r * W:(r + rows) * W] = y.astype(o_ref.dtype)
            r += rows

    return kernel


def generator_forward(x_nchw, y_nchw, w1, b1, w2, b2, w3, b3, *, th=None):
    """Fused conv1+relu -> conv2+relu -> conv3+sigmoid forward pass."""
    N, C_in, H, W = x_nchw.shape
    Kc = y_nchw.shape[1]
    C0 = C_in + Kc
    C1 = w1.shape[0]
    C2 = w3.shape[0]

    C1p = _round_up(C1, 128)          # lane-dense channel dim (exact: zero pad)
    K0 = 9 * C0                       # im2col'd conv1 contraction dim
    Wp = _round_up(W + 2, 16)         # bf16 sublane-aligned scratch width

    # Hardware-aware VMEM policy (64 MiB/TC on v7x, 128 MiB on v5e/v6e).
    try:
        vmem_cap = int(pltpu.get_tpu_info().vmem_capacity_bytes)
    except Exception:
        vmem_cap = 64 * 1024 * 1024   # conservative fallback (v7x per-core)
    budget = int(vmem_cap * 0.7)      # scratch + pipelined blocks
    vmem_limit = int(min(int(vmem_cap * 0.85), vmem_cap - (4 << 20)))

    def vmem_use(t_rows):
        scr = (2 * t_rows + 6) * Wp * C1p * 2                        # bf16 a1+a2
        xin = 2 * (t_rows + 4) * W * _round_up(K0, 128) * 2          # 2x bf16 input
        out = 2 * _round_up(C2, 8) * t_rows * W * 4                  # 2x f32 output
        wts = 2 * (_round_up(K0, 16) * C1p + 9 * C1p * C1p
                   + 9 * C1p * _round_up(C2, 128)) * 2               # 2x bf16 weights
        return scr + xin + out + wts + 3 * 8 * 128 * 4 * 2           # biases

    rb_for = lambda d: min(max(1, 128 // W), d)

    if th is None:
        cands = [d for d in range(2, H + 1)
                 if H % d == 0
                 and (d == H or (d * W) % 128 == 0)       # lane-dense out block
                 and -(-d // rb_for(d)) <= 32]            # bound conv3 unroll
        if not cands:
            raise ValueError(
                f"No valid row tile for H={H}, W={W}: need a divisor th of H "
                f"with th*W a multiple of 128 (or th == H).")
        fits = [d for d in cands if vmem_use(d) <= budget]
        pool = fits if fits else cands[:1]
        th = max(pool)
        # Prefer >= 2 grid steps so both TensorCores of a v7x chip get work.
        if N * (H // th) < 2:
            smaller = [d for d in pool if H // d >= 2]
            if smaller:
                th = max(smaller)
    if th < 2 or H % th != 0 or not (th == H or (th * W) % 128 == 0):
        raise ValueError(f"Invalid row tile th={th} for H={H}, W={W}.")

    nH = H // th
    RB = rb_for(th)

    # im2col'd conv1 input: fuses the x/y channel concat and the 3x3 patch
    # extraction, so conv1 is ONE K=9*C0 matmul per row chunk.  bf16 halves
    # the HBM->VMEM stream (the dot runs in bf16 anyway).
    h = jnp.concatenate([jnp.transpose(x_nchw, (0, 2, 3, 1)),
                         jnp.transpose(y_nchw, (0, 2, 3, 1))],
                        axis=-1).astype(jnp.bfloat16)                # (N,H,W,C0)
    hp = jnp.pad(h, ((0, 0), (3, 3), (1, 1), (0, 0)))                # (N,H+6,W+2,C0)
    patches = jnp.concatenate(
        [hp[:, kh:kh + H + 4, kw:kw + W, :]
         for kh in range(3) for kw in range(3)], axis=-1)            # (N,H+4,W,9C0)
    tiles = jnp.stack([patches[:, t * th:t * th + th + 4]
                       for t in range(nH)], axis=1)                  # (N,nH,th+4,W,9C0)

    def taps(w):   # (Cout, Cin, 3, 3) -> (9, Cin, Cout)
        return jnp.transpose(w, (2, 3, 1, 0)).reshape(9, w.shape[1], w.shape[0])

    pad1 = C1p - C1
    w1t = jnp.transpose(w1, (2, 3, 1, 0)).reshape(K0, C1)
    w1t = jnp.pad(w1t, ((0, 0), (0, pad1))).astype(jnp.bfloat16)         # (9C0,C1p)
    w2t = jnp.pad(taps(w2), ((0, 0), (0, pad1), (0, pad1))).astype(jnp.bfloat16)
    w3t = jnp.pad(taps(w3), ((0, 0), (0, pad1), (0, 0))).astype(jnp.bfloat16)
    b1r = jnp.pad(b1, (0, pad1)).reshape(1, C1p).astype(jnp.float32)
    b2r = jnp.pad(b2, (0, pad1)).reshape(1, C1p).astype(jnp.float32)
    b3r = b3.reshape(1, C2).astype(jnp.float32)

    kernel = _make_fused_kernel(H=H, W=W, Wp=Wp, TH=th, K0=K0,
                                C1=C1p, C2=C2, RB=RB)

    flops = 2 * 9 * N * H * W * (C0 * C1 + C1 * C1 + C1 * C2)
    bytes_accessed = (tiles.size * 2
                      + (w1t.size + w2t.size + w3t.size) * 2
                      + N * C2 * H * W * 4)
    cost = pl.CostEstimate(flops=flops, transcendentals=N * H * W * C2,
                           bytes_accessed=bytes_accessed)

    out_flat = pl.pallas_call(
        kernel,
        out_shape=jax.ShapeDtypeStruct((N, C2, H * W), jnp.float32),
        grid_spec=pltpu.PrefetchScalarGridSpec(
            num_scalar_prefetch=0,
            grid=(N, nH),
            in_specs=[
                pl.BlockSpec((None, None, th + 4, W, K0),
                             lambda n, t: (n, t, 0, 0, 0)),
                pl.BlockSpec((K0, C1p), lambda n, t: (0, 0)),
                pl.BlockSpec((1, C1p), lambda n, t: (0, 0)),
                pl.BlockSpec((9, C1p, C1p), lambda n, t: (0, 0, 0)),
                pl.BlockSpec((1, C1p), lambda n, t: (0, 0)),
                pl.BlockSpec((9, C1p, C2), lambda n, t: (0, 0, 0)),
                pl.BlockSpec((1, C2), lambda n, t: (0, 0)),
            ],
            out_specs=pl.BlockSpec((None, C2, th * W), lambda n, t: (n, 0, t)),
            scratch_shapes=[
                pltpu.VMEM((th + 4, Wp, C1p), jnp.bfloat16),
                pltpu.VMEM((th + 2, Wp, C1p), jnp.bfloat16),
            ],
        ),
        compiler_params=pltpu.CompilerParams(
            dimension_semantics=("parallel", "parallel"),
            vmem_limit_bytes=vmem_limit),
        cost_estimate=cost,
    )(tiles, w1t, b1r, w2t, b2r, w3t, b3r)

    # Output is already channel-major: a free reshape gives NCHW.
    return out_flat.reshape(N, C2, H, W)


class GeneratorPallas:
    """JAX/Pallas port of the PyTorch Generator module (fully fused forward)."""

    def __init__(self, in_channels, k_channels, num_features=256, key=None):
        if key is None:
            key = jax.random.PRNGKey(0)
        keys = jax.random.split(key, 6)

        def init_conv(kw_, kb_, cin, cout):
            # Deterministic init mimicking PyTorch's kaiming-uniform bound.
            fan_in = cin * 3 * 3
            bound = 1.0 / jnp.sqrt(fan_in)
            w = jax.random.uniform(kw_, (cout, cin, 3, 3), jnp.float32,
                                   -bound, bound)
            b = jax.random.uniform(kb_, (cout,), jnp.float32, -bound, bound)
            return w, b

        c_in = in_channels + k_channels
        self.w1, self.b1 = init_conv(keys[0], keys[1], c_in, num_features)
        self.w2, self.b2 = init_conv(keys[2], keys[3], num_features, num_features)
        self.w3, self.b3 = init_conv(keys[4], keys[5], num_features, in_channels)
        self._forward = jax.jit(generator_forward, static_argnames=("th",))

    def __call__(self, x_nchw, y_nchw):
        return self._forward(x_nchw, y_nchw, self.w1, self.b1,
                             self.w2, self.b2, self.w3, self.b3)


def _reference_forward(x_nchw, y_nchw, w1, b1, w2, b2, w3, b3):
    """Pure-XLA f32 reference of the PyTorch module."""
    def conv(x, w, b):
        out = jax.lax.conv_general_dilated(
            x, w, window_strides=(1, 1), padding=((1, 1), (1, 1)),
            dimension_numbers=("NCHW", "OIHW", "NCHW"))
        return out + b.reshape(1, -1, 1, 1)

    h = jnp.concatenate([x_nchw, y_nchw], axis=1)
    h = jax.nn.relu(conv(h, w1, b1))
    h = jax.nn.relu(conv(h, w2, b2))
    return jax.nn.sigmoid(conv(h, w3, b3))


if __name__ == "__main__":
    key = jax.random.PRNGKey(0)
    k_x, k_y, k_params = jax.random.split(key, 3)

    N, C_IN, C_K, H, W = 2, 4, 2, 16, 16
    NUM_FEATURES = 32

    x = jax.random.normal(k_x, (N, C_IN, H, W), jnp.float32)   # NCHW
    y = jax.random.normal(k_y, (N, C_K, H, W), jnp.float32)    # NCHW

    gen = GeneratorPallas(C_IN, C_K, num_features=NUM_FEATURES, key=k_params)
    out = jax.block_until_ready(gen(x, y))

    assert out.shape == (N, C_IN, H, W), out.shape
    assert bool(jnp.all(jnp.isfinite(out)))
    assert bool(jnp.all((out >= 0.0) & (out <= 1.0)))          # sigmoid range

    ref = _reference_forward(x, y, gen.w1, gen.b1, gen.w2, gen.b2,
                             gen.w3, gen.b3)
    max_err = float(jnp.max(jnp.abs(out - ref)))
    assert max_err < 5e-2, f"max abs error vs reference: {max_err}"

    print("KERNEL_OK")
</pallas_src>

<mosaic_0001>
module attributes {stable_mosaic.version = 11 : i64} {
  func.func @kernel(%arg0: i32, %arg1: i32, %arg2: memref<1x1x20x16x54xbf16, #tpu.memory_space<vmem>>, %arg3: memref<54x128xbf16, #tpu.memory_space<vmem>>, %arg4: memref<1x128xf32, #tpu.memory_space<vmem>>, %arg5: memref<9x128x128xbf16, #tpu.memory_space<vmem>>, %arg6: memref<1x128xf32, #tpu.memory_space<vmem>>, %arg7: memref<9x128x4xbf16, #tpu.memory_space<vmem>>, %arg8: memref<1x4xf32, #tpu.memory_space<vmem>>, %arg9: memref<1x4x256xf32, #tpu.memory_space<vmem>>, %arg10: memref<20x32x128xbf16, #tpu.memory_space<vmem>>, %arg11: memref<18x32x128xbf16, #tpu.memory_space<vmem>>) attributes {dimension_semantics = [#tpu.dimension_semantics<parallel>, #tpu.dimension_semantics<parallel>], iteration_bounds = array<i64: 2, 1>, scalar_prefetch = 0 : i64, scratch_operands = 2 : i64, tpu.core_type = #tpu.core_type<tc>, window_params = [{transform_indices = @transform_0, window_bounds = array<i64: 1, 1, 20, 16, 54>}, {pipeline_mode = #tpu.pipeline_mode<synchronous>, transform_indices = @transform_1, window_bounds = array<i64: 54, 128>}, {pipeline_mode = #tpu.pipeline_mode<synchronous>, transform_indices = @transform_2, window_bounds = array<i64: 1, 128>}, {pipeline_mode = #tpu.pipeline_mode<synchronous>, transform_indices = @transform_3, window_bounds = array<i64: 9, 128, 128>}, {pipeline_mode = #tpu.pipeline_mode<synchronous>, transform_indices = @transform_4, window_bounds = array<i64: 1, 128>}, {pipeline_mode = #tpu.pipeline_mode<synchronous>, transform_indices = @transform_5, window_bounds = array<i64: 9, 128, 4>}, {pipeline_mode = #tpu.pipeline_mode<synchronous>, transform_indices = @transform_6, window_bounds = array<i64: 1, 4>}, {transform_indices = @transform_7, window_bounds = array<i64: 1, 4, 256>}]} {
    %cst = arith.constant 0.000000e+00 : bf16
    %0 = vector.broadcast %cst : bf16 to vector<20x1x128xbf16>
    %c0 = arith.constant 0 : index
    %c0_0 = arith.constant 0 : index
    %c0_1 = arith.constant 0 : index
    %1 = vector.load %arg10[%c0, %c0_0, %c0_1] : memref<20x32x128xbf16, #tpu.memory_space<vmem>>, vector<20x1x128xbf16>
    tpu.vector_store %arg10[%c0, %c0_0, %c0_1], %0 {strides = array<i32>} : memref<20x32x128xbf16, #tpu.memory_space<vmem>>, vector<20x1x128xbf16>,
    %cst_2 = arith.constant 0.000000e+00 : bf16
    %2 = vector.broadcast %cst_2 : bf16 to vector<20x1x128xbf16>
    %c0_3 = arith.constant 0 : index
    %c17 = arith.constant 17 : index
    %c0_4 = arith.constant 0 : index
    %3 = vector.load %arg10[%c0_3, %c17, %c0_4] : memref<20x32x128xbf16, #tpu.memory_space<vmem>>, vector<20x1x128xbf16>
    tpu.vector_store %arg10[%c0_3, %c17, %c0_4], %2 {strides = array<i32>} : memref<20x32x128xbf16, #tpu.memory_space<vmem>>, vector<20x1x128xbf16>,
    %cst_5 = arith.constant 0.000000e+00 : bf16
    %4 = vector.broadcast %cst_5 : bf16 to vector<18x1x128xbf16>
    %c0_6 = arith.constant 0 : index
    %c0_7 = arith.constant 0 : index
    %c0_8 = arith.constant 0 : index
    %5 = vector.load %arg11[%c0_6, %c0_7, %c0_8] : memref<18x32x128xbf16, #tpu.memory_space<vmem>>, vector<18x1x128xbf16>
    tpu.vector_store %arg11[%c0_6, %c0_7, %c0_8], %4 {strides = array<i32>} : memref<18x32x128xbf16, #tpu.memory_space<vmem>>, vector<18x1x128xbf16>,
    %cst_9 = arith.constant 0.000000e+00 : bf16
    %6 = vector.broadcast %cst_9 : bf16 to vector<18x1x128xbf16>
    %c0_10 = arith.constant 0 : index
    %c17_11 = arith.constant 17 : index
    %c0_12 = arith.constant 0 : index
    %7 = vector.load %arg11[%c0_10, %c17_11, %c0_12] : memref<18x32x128xbf16, #tpu.memory_space<vmem>>, vector<18x1x128xbf16>
    tpu.vector_store %arg11[%c0_10, %c17_11, %c0_12], %6 {strides = array<i32>} : memref<18x32x128xbf16, #tpu.memory_space<vmem>>, vector<18x1x128xbf16>,
    %c0_13 = arith.constant 0 : index
    %c0_14 = arith.constant 0 : index
    %8 = vector.load %arg4[%c0_13, %c0_14] : memref<1x128xf32, #tpu.memory_space<vmem>>, vector<1x128xf32>
    %c0_i32 = arith.constant 0 : i32
    %c3_i32 = arith.constant 3 : i32
    %9 = arith.addi %c0_i32, %c3_i32 : i32
    %c1_i32 = arith.constant 1 : i32
    scf.for %arg12 = %c0_i32 to %9 step %c1_i32  : i32 {
      %c1_i32_155 = arith.constant 1 : i32
      %155 = arith.muli %arg12, %c1_i32_155 : i32
      %c0_i32_156 = arith.constant 0 : i32
      %156 = arith.addi %c0_i32_156, %155 : i32
      %c8_i32 = arith.constant 8 : i32
      %157 = arith.muli %156, %c8_i32 : i32
      %c12_i32 = arith.constant 12 : i32
      %158 = arith.minsi %157, %c12_i32 : i32
      %c0_157 = arith.constant 0 : index
      %c0_158 = arith.constant 0 : index
      %159 = arith.index_cast %158 : i32 to index
      %c0_159 = arith.constant 0 : index
      %c0_160 = arith.constant 0 : index
      %160 = vector.load %arg2[%c0_157, %c0_158, %159, %c0_159, %c0_160] : memref<1x1x20x16x54xbf16, #tpu.memory_space<vmem>>, vector<1x1x8x16x54xbf16>
      %161 = vector.shape_cast %160 : vector<1x1x8x16x54xbf16> to vector<8x16x54xbf16>
      %162 = vector.shape_cast %161 : vector<8x16x54xbf16> to vector<128x54xbf16>
      %c0_161 = arith.constant 0 : index
      %c0_162 = arith.constant 0 : index
      %163 = vector.load %arg3[%c0_161, %c0_162] : memref<54x128xbf16, #tpu.memory_space<vmem>>, vector<54x128xbf16>
      %cst_163 = arith.constant dense<0.000000e+00> : vector<128x128xf32>
      %164 = tpu.matmul %162, %163, %cst_163 {dimension_numbers = #tpu.dot_dimension_numbers<[1], [0], [0], [1], [0, 0, 1, 1], [], []>} : vector<128x54xbf16>, vector<54x128xbf16>, vector<128x128xf32> -> vector<128x128xf32>
      %165 = vector.broadcast %8 : vector<1x128xf32> to vector<128x128xf32>
      %166 = arith.addf %164, %165 : vector<128x128xf32>
      %cst_164 = arith.constant 0.000000e+00 : f32
      %167 = vector.broadcast %cst_164 : f32 to vector<128x128xf32>
      %168 = arith.maximumf %166, %167 : vector<128x128xf32>
      %169 = vector.shape_cast %168 : vector<128x128xf32> to vector<8x16x128xf32>
      %170 = arith.truncf %169 : vector<8x16x128xf32> to vector<8x16x128xbf16>
      %171 = arith.index_cast %158 : i32 to index
      %c1_165 = arith.constant 1 : index
      %c0_166 = arith.constant 0 : index
      %172 = vector.load %arg10[%171, %c1_165, %c0_166] : memref<20x32x128xbf16, #tpu.memory_space<vmem>>, vector<8x16x128xbf16>
      tpu.vector_store %arg10[%171, %c1_165, %c0_166], %170 {strides = array<i32>} : memref<20x32x128xbf16, #tpu.memory_space<vmem>>, vector<8x16x128xbf16>,
    }
    %c3_i32_15 = arith.constant 3 : i32
    %c0_i32_16 = arith.constant 0 : i32
    %10 = arith.cmpi eq, %arg1, %c0_i32_16 : i32
    %11 = arith.extui %10 : i1 to i32
    %c0_i32_17 = arith.constant 0 : i32
    %12 = arith.cmpi ne, %11, %c0_i32_17 : i32
    scf.if %12 {
      %cst_155 = arith.constant 0.000000e+00 : bf16
      %155 = vector.broadcast %cst_155 : bf16 to vector<1x32x128xbf16>
      %c1_156 = arith.constant 1 : index
      %c0_157 = arith.constant 0 : index
      %c0_158 = arith.constant 0 : index
      %156 = vector.load %arg10[%c1_156, %c0_157, %c0_158] : memref<20x32x128xbf16, #tpu.memory_space<vmem>>, vector<1x32x128xbf16>
      tpu.vector_store %arg10[%c1_156, %c0_157, %c0_158], %155 {strides = array<i32>} : memref<20x32x128xbf16, #tpu.memory_space<vmem>>, vector<1x32x128xbf16>,
    } else {
    }
    %c0_i32_18 = arith.constant 0 : i32
    %13 = arith.cmpi eq, %arg1, %c0_i32_18 : i32
    %14 = arith.extui %13 : i1 to i32
    %c0_i32_19 = arith.constant 0 : i32
    %15 = arith.cmpi ne, %14, %c0_i32_19 : i32
    scf.if %15 {
      %cst_155 = arith.constant 0.000000e+00 : bf16
      %155 = vector.broadcast %cst_155 : bf16 to vector<1x32x128xbf16>
      %c18 = arith.constant 18 : index
      %c0_156 = arith.constant 0 : index
      %c0_157 = arith.constant 0 : index
      %156 = vector.load %arg10[%c18, %c0_156, %c0_157] : memref<20x32x128xbf16, #tpu.memory_space<vmem>>, vector<1x32x128xbf16>
      tpu.vector_store %arg10[%c18, %c0_156, %c0_157], %155 {strides = array<i32>} : memref<20x32x128xbf16, #tpu.memory_space<vmem>>, vector<1x32x128xbf16>,
    } else {
    }
    %c0_20 = arith.constant 0 : index
    %c0_21 = arith.constant 0 : index
    %16 = vector.load %arg6[%c0_20, %c0_21] : memref<1x128xf32, #tpu.memory_space<vmem>>, vector<1x128xf32>
    %c0_i32_22 = arith.constant 0 : i32
    %c3_i32_23 = arith.constant 3 : i32
    %17 = arith.addi %c0_i32_22, %c3_i32_23 : i32
    %c1_i32_24 = arith.constant 1 : i32
    scf.for %arg12 = %c0_i32_22 to %17 step %c1_i32_24  : i32 {
      %c1_i32_155 = arith.constant 1 : i32
      %155 = arith.muli %arg12, %c1_i32_155 : i32
      %c0_i32_156 = arith.constant 0 : i32
      %156 = arith.addi %c0_i32_156, %155 : i32
      %c8_i32 = arith.constant 8 : i32
      %157 = arith.muli %156, %c8_i32 : i32
      %c10_i32 = arith.constant 10 : i32
      %158 = arith.minsi %157, %c10_i32 : i32
      %159 = vector.shape_cast %16 : vector<1x128xf32> to vector<1x128xf32>
      %160 = vector.broadcast %159 : vector<1x128xf32> to vector<128x128xf32>
      %c0_i32_157 = arith.constant 0 : i32
      %161 = arith.addi %158, %c0_i32_157 : i32
      %162 = arith.index_cast %161 : i32 to index
      %c0_158 = arith.constant 0 : index
      %c0_159 = arith.constant 0 : index
      %163 = vector.load %arg10[%162, %c0_158, %c0_159] : memref<20x32x128xbf16, #tpu.memory_space<vmem>>, vector<8x16x128xbf16>
      %164 = vector.shape_cast %163 : vector<8x16x128xbf16> to vector<128x128xbf16>
      %c0_160 = arith.constant 0 : index
      %c0_161 = arith.constant 0 : index
      %c0_162 = arith.constant 0 : index
      %165 = vector.load %arg5[%c0_160, %c0_161, %c0_162] : memref<9x128x128xbf16, #tpu.memory_space<vmem>>, vector<1x128x128xbf16>
      %166 = vector.shape_cast %165 : vector<1x128x128xbf16> to vector<128x128xbf16>
      %cst_163 = arith.constant dense<0.000000e+00> : vector<128x128xf32>
      %167 = tpu.matmul %164, %166, %cst_163 {dimension_numbers = #tpu.dot_dimension_numbers<[1], [0], [0], [1], [0, 0, 1, 1], [], []>} : vector<128x128xbf16>, vector<128x128xbf16>, vector<128x128xf32> -> vector<128x128xf32>
      %168 = arith.addf %160, %167 : vector<128x128xf32>
      %c0_i32_164 = arith.constant 0 : i32
      %169 = arith.addi %158, %c0_i32_164 : i32
      %170 = arith.index_cast %169 : i32 to index
      %c1_165 = arith.constant 1 : index
      %c0_166 = arith.constant 0 : index
      %171 = vector.load %arg10[%170, %c1_165, %c0_166] : memref<20x32x128xbf16, #tpu.memory_space<vmem>>, vector<8x16x128xbf16>
      %172 = vector.shape_cast %171 : vector<8x16x128xbf16> to vector<128x128xbf16>
      %c1_167 = arith.constant 1 : index
      %c0_168 = arith.constant 0 : index
      %c0_169 = arith.constant 0 : index
      %173 = vector.load %arg5[%c1_167, %c0_168, %c0_169] : memref<9x128x128xbf16, #tpu.memory_space<vmem>>, vector<1x128x128xbf16>
      %174 = vector.shape_cast %173 : vector<1x128x128xbf16> to vector<128x128xbf16>
      %cst_170 = arith.constant dense<0.000000e+00> : vector<128x128xf32>
      %175 = tpu.matmul %172, %174, %cst_170 {dimension_numbers = #tpu.dot_dimension_numbers<[1], [0], [0], [1], [0, 0, 1, 1], [], []>} : vector<128x128xbf16>, vector<128x128xbf16>, vector<128x128xf32> -> vector<128x128xf32>
      %176 = arith.addf %168, %175 : vector<128x128xf32>
      %c0_i32_171 = arith.constant 0 : i32
      %177 = arith.addi %158, %c0_i32_171 : i32
      %178 = arith.index_cast %177 : i32 to index
      %c2_172 = arith.constant 2 : index
      %c0_173 = arith.constant 0 : index
      %179 = vector.load %arg10[%178, %c2_172, %c0_173] : memref<20x32x128xbf16, #tpu.memory_space<vmem>>, vector<8x16x128xbf16>
      %180 = vector.shape_cast %179 : vector<8x16x128xbf16> to vector<128x128xbf16>
      %c2_174 = arith.constant 2 : index
      %c0_175 = arith.constant 0 : index
      %c0_176 = arith.constant 0 : index
      %181 = vector.load %arg5[%c2_174, %c0_175, %c0_176] : memref<9x128x128xbf16, #tpu.memory_space<vmem>>, vector<1x128x128xbf16>
      %182 = vector.shape_cast %181 : vector<1x128x128xbf16> to vector<128x128xbf16>
      %cst_177 = arith.constant dense<0.000000e+00> : vector<128x128xf32>
      %183 = tpu.matmul %180, %182, %cst_177 {dimension_numbers = #tpu.dot_dimension_numbers<[1], [0], [0], [1], [0, 0, 1, 1], [], []>} : vector<128x128xbf16>, vector<128x128xbf16>, vector<128x128xf32> -> vector<128x128xf32>
      %184 = arith.addf %176, %183 : vector<128x128xf32>
      %c1_i32_178 = arith.constant 1 : i32
      %185 = arith.addi %158, %c1_i32_178 : i32
      %186 = arith.index_cast %185 : i32 to index
      %c0_179 = arith.constant 0 : index
      %c0_180 = arith.constant 0 : index
      %187 = vector.load %arg10[%186, %c0_179, %c0_180] : memref<20x32x128xbf16, #tpu.memory_space<vmem>>, vector<8x16x128xbf16>
      %188 = vector.shape_cast %187 : vector<8x16x128xbf16> to vector<128x128xbf16>
      %c3_181 = arith.constant 3 : index
      %c0_182 = arith.constant 0 : index
      %c0_183 = arith.constant 0 : index
      %189 = vector.load %arg5[%c3_181, %c0_182, %c0_183] : memref<9x128x128xbf16, #tpu.memory_space<vmem>>, vector<1x128x128xbf16>
      %190 = vector.shape_cast %189 : vector<1x128x128xbf16> to vector<128x128xbf16>
      %cst_184 = arith.constant dense<0.000000e+00> : vector<128x128xf32>
      %191 = tpu.matmul %188, %190, %cst_184 {dimension_numbers = #tpu.dot_dimension_numbers<[1], [0], [0], [1], [0, 0, 1, 1], [], []>} : vector<128x128xbf16>, vector<128x128xbf16>, vector<128x128xf32> -> vector<128x128xf32>
      %192 = arith.addf %184, %191 : vector<128x128xf32>
      %c1_i32_185 = arith.constant 1 : i32
      %193 = arith.addi %158, %c1_i32_185 : i32
      %194 = arith.index_cast %193 : i32 to index
      %c1_186 = arith.constant 1 : index
      %c0_187 = arith.constant 0 : index
      %195 = vector.load %arg10[%194, %c1_186, %c0_187] : memref<20x32x128xbf16, #tpu.memory_space<vmem>>, vector<8x16x128xbf16>
      %196 = vector.shape_cast %195 : vector<8x16x128xbf16> to vector<128x128xbf16>
      %c4_188 = arith.constant 4 : index
      %c0_189 = arith.constant 0 : index
      %c0_190 = arith.constant 0 : index
      %197 = vector.load %arg5[%c4_188, %c0_189, %c0_190] : memref<9x128x128xbf16, #tpu.memory_space<vmem>>, vector<1x128x128xbf16>
      %198 = vector.shape_cast %197 : vector<1x128x128xbf16> to vector<128x128xbf16>
      %cst_191 = arith.constant dense<0.000000e+00> : vector<128x128xf32>
      %199 = tpu.matmul %196, %198, %cst_191 {dimension_numbers = #tpu.dot_dimension_numbers<[1], [0], [0], [1], [0, 0, 1, 1], [], []>} : vector<128x128xbf16>, vector<128x128xbf16>, vector<128x128xf32> -> vector<128x128xf32>
      %200 = arith.addf %192, %199 : vector<128x128xf32>
      %c1_i32_192 = arith.constant 1 : i32
      %201 = arith.addi %158, %c1_i32_192 : i32
      %202 = arith.index_cast %201 : i32 to index
      %c2_193 = arith.constant 2 : index
      %c0_194 = arith.constant 0 : index
      %203 = vector.load %arg10[%202, %c2_193, %c0_194] : memref<20x32x128xbf16, #tpu.memory_space<vmem>>, vector<8x16x128xbf16>
      %204 = vector.shape_cast %203 : vector<8x16x128xbf16> to vector<128x128xbf16>
      %c5_195 = arith.constant 5 : index
      %c0_196 = arith.constant 0 : index
      %c0_197 = arith.constant 0 : index
      %205 = vector.load %arg5[%c5_195, %c0_196, %c0_197] : memref<9x128x128xbf16, #tpu.memory_space<vmem>>, vector<1x128x128xbf16>
      %206 = vector.shape_cast %205 : vector<1x128x128xbf16> to vector<128x128xbf16>
      %cst_198 = arith.constant dense<0.000000e+00> : vector<128x128xf32>
      %207 = tpu.matmul %204, %206, %cst_198 {dimension_numbers = #tpu.dot_dimension_numbers<[1], [0], [0], [1], [0, 0, 1, 1], [], []>} : vector<128x128xbf16>, vector<128x128xbf16>, vector<128x128xf32> -> vector<128x128xf32>
      %208 = arith.addf %200, %207 : vector<128x128xf32>
      %c2_i32 = arith.constant 2 : i32
      %209 = arith.addi %158, %c2_i32 : i32
      %210 = arith.index_cast %209 : i32 to index
      %c0_199 = arith.constant 0 : index
      %c0_200 = arith.constant 0 : index
      %211 = vector.load %arg10[%210, %c0_199, %c0_200] : memref<20x32x128xbf16, #tpu.memory_space<vmem>>, vector<8x16x128xbf16>
      %212 = vector.shape_cast %211 : vector<8x16x128xbf16> to vector<128x128xbf16>
      %c6_201 = arith.constant 6 : index
      %c0_202 = arith.constant 0 : index
      %c0_203 = arith.constant 0 : index
      %213 = vector.load %arg5[%c6_201, %c0_202, %c0_203] : memref<9x128x128xbf16, #tpu.memory_space<vmem>>, vector<1x128x128xbf16>
      %214 = vector.shape_cast %213 : vector<1x128x128xbf16> to vector<128x128xbf16>
      %cst_204 = arith.constant dense<0.000000e+00> : vector<128x128xf32>
      %215 = tpu.matmul %212, %214, %cst_204 {dimension_numbers = #tpu.dot_dimension_numbers<[1], [0], [0], [1], [0, 0, 1, 1], [], []>} : vector<128x128xbf16>, vector<128x128xbf16>, vector<128x128xf32> -> vector<128x128xf32>
      %216 = arith.addf %208, %215 : vector<128x128xf32>
      %c2_i32_205 = arith.constant 2 : i32
      %217 = arith.addi %158, %c2_i32_205 : i32
      %218 = arith.index_cast %217 : i32 to index
      %c1_206 = arith.constant 1 : index
      %c0_207 = arith.constant 0 : index
      %219 = vector.load %arg10[%218, %c1_206, %c0_207] : memref<20x32x128xbf16, #tpu.memory_space<vmem>>, vector<8x16x128xbf16>
      %220 = vector.shape_cast %219 : vector<8x16x128xbf16> to vector<128x128xbf16>
      %c7_208 = arith.constant 7 : index
      %c0_209 = arith.constant 0 : index
      %c0_210 = arith.constant 0 : index
      %221 = vector.load %arg5[%c7_208, %c0_209, %c0_210] : memref<9x128x128xbf16, #tpu.memory_space<vmem>>, vector<1x128x128xbf16>
      %222 = vector.shape_cast %221 : vector<1x128x128xbf16> to vector<128x128xbf16>
      %cst_211 = arith.constant dense<0.000000e+00> : vector<128x128xf32>
      %223 = tpu.matmul %220, %222, %cst_211 {dimension_numbers = #tpu.dot_dimension_numbers<[1], [0], [0], [1], [0, 0, 1, 1], [], []>} : vector<128x128xbf16>, vector<128x128xbf16>, vector<128x128xf32> -> vector<128x128xf32>
      %224 = arith.addf %216, %223 : vector<128x128xf32>
      %c2_i32_212 = arith.constant 2 : i32
      %225 = arith.addi %158, %c2_i32_212 : i32
      %226 = arith.index_cast %225 : i32 to index
      %c2_213 = arith.constant 2 : index
      %c0_214 = arith.constant 0 : index
      %227 = vector.load %arg10[%226, %c2_213, %c0_214] : memref<20x32x128xbf16, #tpu.memory_space<vmem>>, vector<8x16x128xbf16>
      %228 = vector.shape_cast %227 : vector<8x16x128xbf16> to vector<128x128xbf16>
      %c8_215 = arith.constant 8 : index
      %c0_216 = arith.constant 0 : index
      %c0_217 = arith.constant 0 : index
      %229 = vector.load %arg5[%c8_215, %c0_216, %c0_217] : memref<9x128x128xbf16, #tpu.memory_space<vmem>>, vector<1x128x128xbf16>
      %230 = vector.shape_cast %229 : vector<1x128x128xbf16> to vector<128x128xbf16>
      %cst_218 = arith.constant dense<0.000000e+00> : vector<128x128xf32>
      %231 = tpu.matmul %228, %230, %cst_218 {dimension_numbers = #tpu.dot_dimension_numbers<[1], [0], [0], [1], [0, 0, 1, 1], [], []>} : vector<128x128xbf16>, vector<128x128xbf16>, vector<128x128xf32> -> vector<128x128xf32>
      %232 = arith.addf %224, %231 : vector<128x128xf32>
      %cst_219 = arith.constant 0.000000e+00 : f32
      %233 = vector.broadcast %cst_219 : f32 to vector<128x128xf32>
      %234 = arith.maximumf %232, %233 : vector<128x128xf32>
      %235 = vector.shape_cast %234 : vector<128x128xf32> to vector<8x16x128xf32>
      %236 = arith.truncf %235 : vector<8x16x128xf32> to vector<8x16x128xbf16>
      %237 = arith.index_cast %158 : i32 to index
      %c1_220 = arith.constant 1 : index
      %c0_221 = arith.constant 0 : index
      %238 = vector.load %arg11[%237, %c1_220, %c0_221] : memref<18x32x128xbf16, #tpu.memory_space<vmem>>, vector<8x16x128xbf16>
      tpu.vector_store %arg11[%237, %c1_220, %c0_221], %236 {strides = array<i32>} : memref<18x32x128xbf16, #tpu.memory_space<vmem>>, vector<8x16x128xbf16>,
    }
    %c3_i32_25 = arith.constant 3 : i32
    %c0_i32_26 = arith.constant 0 : i32
    %18 = arith.cmpi eq, %arg1, %c0_i32_26 : i32
    %19 = arith.extui %18 : i1 to i32
    %c0_i32_27 = arith.constant 0 : i32
    %20 = arith.cmpi ne, %19, %c0_i32_27 : i32
    scf.if %20 {
      %cst_155 = arith.constant 0.000000e+00 : bf16
      %155 = vector.broadcast %cst_155 : bf16 to vector<1x32x128xbf16>
      %c0_156 = arith.constant 0 : index
      %c0_157 = arith.constant 0 : index
      %c0_158 = arith.constant 0 : index
      %156 = vector.load %arg11[%c0_156, %c0_157, %c0_158] : memref<18x32x128xbf16, #tpu.memory_space<vmem>>, vector<1x32x128xbf16>
      tpu.vector_store %arg11[%c0_156, %c0_157, %c0_158], %155 {strides = array<i32>} : memref<18x32x128xbf16, #tpu.memory_space<vmem>>, vector<1x32x128xbf16>,
    } else {
    }
    %c0_i32_28 = arith.constant 0 : i32
    %21 = arith.cmpi eq, %arg1, %c0_i32_28 : i32
    %22 = arith.extui %21 : i1 to i32
    %c0_i32_29 = arith.constant 0 : i32
    %23 = arith.cmpi ne, %22, %c0_i32_29 : i32
    scf.if %23 {
      %cst_155 = arith.constant 0.000000e+00 : bf16
      %155 = vector.broadcast %cst_155 : bf16 to vector<1x32x128xbf16>
      %c17_156 = arith.constant 17 : index
      %c0_157 = arith.constant 0 : index
      %c0_158 = arith.constant 0 : index
      %156 = vector.load %arg11[%c17_156, %c0_157, %c0_158] : memref<18x32x128xbf16, #tpu.memory_space<vmem>>, vector<1x32x128xbf16>
      tpu.vector_store %arg11[%c17_156, %c0_157, %c0_158], %155 {strides = array<i32>} : memref<18x32x128xbf16, #tpu.memory_space<vmem>>, vector<1x32x128xbf16>,
    } else {
    }
    %c0_30 = arith.constant 0 : index
    %c0_31 = arith.constant 0 : index
    %24 = vector.load %arg8[%c0_30, %c0_31] : memref<1x4xf32, #tpu.memory_space<vmem>>, vector<1x4xf32>
    %25 = vector.shape_cast %24 : vector<1x4xf32> to vector<1x4xf32>
    %26 = vector.broadcast %25 : vector<1x4xf32> to vector<128x4xf32>
    %c0_32 = arith.constant 0 : index
    %c0_33 = arith.constant 0 : index
    %c0_34 = arith.constant 0 : index
    %27 = vector.load %arg11[%c0_32, %c0_33, %c0_34] : memref<18x32x128xbf16, #tpu.memory_space<vmem>>, vector<8x16x128xbf16>
    %28 = vector.shape_cast %27 : vector<8x16x128xbf16> to vector<128x128xbf16>
    %c0_35 = arith.constant 0 : index
    %c0_36 = arith.constant 0 : index
    %c0_37 = arith.constant 0 : index
    %29 = vector.load %arg7[%c0_35, %c0_36, %c0_37] : memref<9x128x4xbf16, #tpu.memory_space<vmem>>, vector<1x128x4xbf16>
    %30 = vector.shape_cast %29 : vector<1x128x4xbf16> to vector<128x4xbf16>
    %cst_38 = arith.constant dense<0.000000e+00> : vector<128x4xf32>
    %31 = tpu.matmul %28, %30, %cst_38 {dimension_numbers = #tpu.dot_dimension_numbers<[1], [0], [0], [1], [0, 0, 1, 1], [], []>} : vector<128x128xbf16>, vector<128x4xbf16>, vector<128x4xf32> -> vector<128x4xf32>
    %32 = arith.addf %26, %31 : vector<128x4xf32>
    %c0_39 = arith.constant 0 : index
    %c1 = arith.constant 1 : index
    %c0_40 = arith.constant 0 : index
    %33 = vector.load %arg11[%c0_39, %c1, %c0_40] : memref<18x32x128xbf16, #tpu.memory_space<vmem>>, vector<8x16x128xbf16>
    %34 = vector.shape_cast %33 : vector<8x16x128xbf16> to vector<128x128xbf16>
    %c1_41 = arith.constant 1 : index
    %c0_42 = arith.constant 0 : index
    %c0_43 = arith.constant 0 : index
    %35 = vector.load %arg7[%c1_41, %c0_42, %c0_43] : memref<9x128x4xbf16, #tpu.memory_space<vmem>>, vector<1x128x4xbf16>
    %36 = vector.shape_cast %35 : vector<1x128x4xbf16> to vector<128x4xbf16>
    %cst_44 = arith.constant dense<0.000000e+00> : vector<128x4xf32>
    %37 = tpu.matmul %34, %36, %cst_44 {dimension_numbers = #tpu.dot_dimension_numbers<[1], [0], [0], [1], [0, 0, 1, 1], [], []>} : vector<128x128xbf16>, vector<128x4xbf16>, vector<128x4xf32> -> vector<128x4xf32>
    %38 = arith.addf %32, %37 : vector<128x4xf32>
    %c0_45 = arith.constant 0 : index
    %c2 = arith.constant 2 : index
    %c0_46 = arith.constant 0 : index
    %39 = vector.load %arg11[%c0_45, %c2, %c0_46] : memref<18x32x128xbf16, #tpu.memory_space<vmem>>, vector<8x16x128xbf16>
    %40 = vector.shape_cast %39 : vector<8x16x128xbf16> to vector<128x128xbf16>
    %c2_47 = arith.constant 2 : index
    %c0_48 = arith.constant 0 : index
    %c0_49 = arith.constant 0 : index
    %41 = vector.load %arg7[%c2_47, %c0_48, %c0_49] : memref<9x128x4xbf16, #tpu.memory_space<vmem>>, vector<1x128x4xbf16>
    %42 = vector.shape_cast %41 : vector<1x128x4xbf16> to vector<128x4xbf16>
    %cst_50 = arith.constant dense<0.000000e+00> : vector<128x4xf32>
    %43 = tpu.matmul %40, %42, %cst_50 {dimension_numbers = #tpu.dot_dimension_numbers<[1], [0], [0], [1], [0, 0, 1, 1], [], []>} : vector<128x128xbf16>, vector<128x4xbf16>, vector<128x4xf32> -> vector<128x4xf32>
    %44 = arith.addf %38, %43 : vector<128x4xf32>
    %c1_51 = arith.constant 1 : index
    %c0_52 = arith.constant 0 : index
    %c0_53 = arith.constant 0 : index
    %45 = vector.load %arg11[%c1_51, %c0_52, %c0_53] : memref<18x32x128xbf16, #tpu.memory_space<vmem>>, vector<8x16x128xbf16>
    %46 = vector.shape_cast %45 : vector<8x16x128xbf16> to vector<128x128xbf16>
    %c3 = arith.constant 3 : index
    %c0_54 = arith.constant 0 : index
    %c0_55 = arith.constant 0 : index
    %47 = vector.load %arg7[%c3, %c0_54, %c0_55] : memref<9x128x4xbf16, #tpu.memory_space<vmem>>, vector<1x128x4xbf16>
    %48 = vector.shape_cast %47 : vector<1x128x4xbf16> to vector<128x4xbf16>
    %cst_56 = arith.constant dense<0.000000e+00> : vector<128x4xf32>
    %49 = tpu.matmul %46, %48, %cst_56 {dimension_numbers = #tpu.dot_dimension_numbers<[1], [0], [0], [1], [0, 0, 1, 1], [], []>} : vector<128x128xbf16>, vector<128x4xbf16>, vector<128x4xf32> -> vector<128x4xf32>
    %50 = arith.addf %44, %49 : vector<128x4xf32>
    %c1_57 = arith.constant 1 : index
    %c1_58 = arith.constant 1 : index
    %c0_59 = arith.constant 0 : index
    %51 = vector.load %arg11[%c1_57, %c1_58, %c0_59] : memref<18x32x128xbf16, #tpu.memory_space<vmem>>, vector<8x16x128xbf16>
    %52 = vector.shape_cast %51 : vector<8x16x128xbf16> to vector<128x128xbf16>
    %c4 = arith.constant 4 : index
    %c0_60 = arith.constant 0 : index
    %c0_61 = arith.constant 0 : index
    %53 = vector.load %arg7[%c4, %c0_60, %c0_61] : memref<9x128x4xbf16, #tpu.memory_space<vmem>>, vector<1x128x4xbf16>
    %54 = vector.shape_cast %53 : vector<1x128x4xbf16> to vector<128x4xbf16>
    %cst_62 = arith.constant dense<0.000000e+00> : vector<128x4xf32>
    %55 = tpu.matmul %52, %54, %cst_62 {dimension_numbers = #tpu.dot_dimension_numbers<[1], [0], [0], [1], [0, 0, 1, 1], [], []>} : vector<128x128xbf16>, vector<128x4xbf16>, vector<128x4xf32> -> vector<128x4xf32>
    %56 = arith.addf %50, %55 : vector<128x4xf32>
    %c1_63 = arith.constant 1 : index
    %c2_64 = arith.constant 2 : index
    %c0_65 = arith.constant 0 : index
    %57 = vector.load %arg11[%c1_63, %c2_64, %c0_65] : memref<18x32x128xbf16, #tpu.memory_space<vmem>>, vector<8x16x128xbf16>
    %58 = vector.shape_cast %57 : vector<8x16x128xbf16> to vector<128x128xbf16>
    %c5 = arith.constant 5 : index
    %c0_66 = arith.constant 0 : index
    %c0_67 = arith.constant 0 : index
    %59 = vector.load %arg7[%c5, %c0_66, %c0_67] : memref<9x128x4xbf16, #tpu.memory_space<vmem>>, vector<1x128x4xbf16>
    %60 = vector.shape_cast %59 : vector<1x128x4xbf16> to vector<128x4xbf16>
    %cst_68 = arith.constant dense<0.000000e+00> : vector<128x4xf32>
    %61 = tpu.matmul %58, %60, %cst_68 {dimension_numbers = #tpu.dot_dimension_numbers<[1], [0], [0], [1], [0, 0, 1, 1], [], []>} : vector<128x128xbf16>, vector<128x4xbf16>, vector<128x4xf32> -> vector<128x4xf32>
    %62 = arith.addf %56, %61 : vector<128x4xf32>
    %c2_69 = arith.constant 2 : index
    %c0_70 = arith.constant 0 : index
    %c0_71 = arith.constant 0 : index
    %63 = vector.load %arg11[%c2_69, %c0_70, %c0_71] : memref<18x32x128xbf16, #tpu.memory_space<vmem>>, vector<8x16x128xbf16>
    %64 = vector.shape_cast %63 : vector<8x16x128xbf16> to vector<128x128xbf16>
    %c6 = arith.constant 6 : index
    %c0_72 = arith.constant 0 : index
    %c0_73 = arith.constant 0 : index
    %65 = vector.load %arg7[%c6, %c0_72, %c0_73] : memref<9x128x4xbf16, #tpu.memory_space<vmem>>, vector<1x128x4xbf16>
    %66 = vector.shape_cast %65 : vector<1x128x4xbf16> to vector<128x4xbf16>
    %cst_74 = arith.constant dense<0.000000e+00> : vector<128x4xf32>
    %67 = tpu.matmul %64, %66, %cst_74 {dimension_numbers = #tpu.dot_dimension_numbers<[1], [0], [0], [1], [0, 0, 1, 1], [], []>} : vector<128x128xbf16>, vector<128x4xbf16>, vector<128x4xf32> -> vector<128x4xf32>
    %68 = arith.addf %62, %67 : vector<128x4xf32>
    %c2_75 = arith.constant 2 : index
    %c1_76 = arith.constant 1 : index
    %c0_77 = arith.constant 0 : index
    %69 = vector.load %arg11[%c2_75, %c1_76, %c0_77] : memref<18x32x128xbf16, #tpu.memory_space<vmem>>, vector<8x16x128xbf16>
    %70 = vector.shape_cast %69 : vector<8x16x128xbf16> to vector<128x128xbf16>
    %c7 = arith.constant 7 : index
    %c0_78 = arith.constant 0 : index
    %c0_79 = arith.constant 0 : index
    %71 = vector.load %arg7[%c7, %c0_78, %c0_79] : memref<9x128x4xbf16, #tpu.memory_space<vmem>>, vector<1x128x4xbf16>
    %72 = vector.shape_cast %71 : vector<1x128x4xbf16> to vector<128x4xbf16>
    %cst_80 = arith.constant dense<0.000000e+00> : vector<128x4xf32>
    %73 = tpu.matmul %70, %72, %cst_80 {dimension_numbers = #tpu.dot_dimension_numbers<[1], [0], [0], [1], [0, 0, 1, 1], [], []>} : vector<128x128xbf16>, vector<128x4xbf16>, vector<128x4xf32> -> vector<128x4xf32>
    %74 = arith.addf %68, %73 : vector<128x4xf32>
    %c2_81 = arith.constant 2 : index
    %c2_82 = arith.constant 2 : index
    %c0_83 = arith.constant 0 : index
    %75 = vector.load %arg11[%c2_81, %c2_82, %c0_83] : memref<18x32x128xbf16, #tpu.memory_space<vmem>>, vector<8x16x128xbf16>
    %76 = vector.shape_cast %75 : vector<8x16x128xbf16> to vector<128x128xbf16>
    %c8 = arith.constant 8 : index
    %c0_84 = arith.constant 0 : index
    %c0_85 = arith.constant 0 : index
    %77 = vector.load %arg7[%c8, %c0_84, %c0_85] : memref<9x128x4xbf16, #tpu.memory_space<vmem>>, vector<1x128x4xbf16>
    %78 = vector.shape_cast %77 : vector<1x128x4xbf16> to vector<128x4xbf16>
    %cst_86 = arith.constant dense<0.000000e+00> : vector<128x4xf32>
    %79 = tpu.matmul %76, %78, %cst_86 {dimension_numbers = #tpu.dot_dimension_numbers<[1], [0], [0], [1], [0, 0, 1, 1], [], []>} : vector<128x128xbf16>, vector<128x4xbf16>, vector<128x4xf32> -> vector<128x4xf32>
    %80 = arith.addf %74, %79 : vector<128x4xf32>
    %81 = tpu.transpose %80, [1, 0] : vector<128x4xf32> -> vector<4x128xf32>
    %82 = arith.negf %81 : vector<4x128xf32>
    %83 = math.exp %82 : vector<4x128xf32>
    %cst_87 = arith.constant 1.000000e+00 : f32
    %84 = vector.broadcast %cst_87 : f32 to vector<4x128xf32>
    %85 = arith.addf %84, %83 : vector<4x128xf32>
    %86 = arith.divf %84, %85 : vector<4x128xf32>
    %c0_88 = arith.constant 0 : index
    %c0_89 = arith.constant 0 : index
    %c0_90 = arith.constant 0 : index
    %87 = vector.load %arg9[%c0_88, %c0_89, %c0_90] : memref<1x4x256xf32, #tpu.memory_space<vmem>>, vector<1x4x128xf32>
    %88 = vector.shape_cast %87 : vector<1x4x128xf32> to vector<4x128xf32>
    %89 = vector.shape_cast %86 : vector<4x128xf32> to vector<1x4x128xf32>
    tpu.vector_store %arg9[%c0_88, %c0_89, %c0_90], %89 {strides = array<i32>} : memref<1x4x256xf32, #tpu.memory_space<vmem>>, vector<1x4x128xf32>,
    %90 = vector.shape_cast %24 : vector<1x4xf32> to vector<1x4xf32>
    %91 = vector.broadcast %90 : vector<1x4xf32> to vector<128x4xf32>
    %c8_91 = arith.constant 8 : index
    %c0_92 = arith.constant 0 : index
    %c0_93 = arith.constant 0 : index
    %92 = vector.load %arg11[%c8_91, %c0_92, %c0_93] : memref<18x32x128xbf16, #tpu.memory_space<vmem>>, vector<8x16x128xbf16>
    %93 = vector.shape_cast %92 : vector<8x16x128xbf16> to vector<128x128xbf16>
    %c0_94 = arith.constant 0 : index
    %c0_95 = arith.constant 0 : index
    %c0_96 = arith.constant 0 : index
    %94 = vector.load %arg7[%c0_94, %c0_95, %c0_96] : memref<9x128x4xbf16, #tpu.memory_space<vmem>>, vector<1x128x4xbf16>
    %95 = vector.shape_cast %94 : vector<1x128x4xbf16> to vector<128x4xbf16>
    %cst_97 = arith.constant dense<0.000000e+00> : vector<128x4xf32>
    %96 = tpu.matmul %93, %95, %cst_97 {dimension_numbers = #tpu.dot_dimension_numbers<[1], [0], [0], [1], [0, 0, 1, 1], [], []>} : vector<128x128xbf16>, vector<128x4xbf16>, vector<128x4xf32> -> vector<128x4xf32>
    %97 = arith.addf %91, %96 : vector<128x4xf32>
    %c8_98 = arith.constant 8 : index
    %c1_99 = arith.constant 1 : index
    %c0_100 = arith.constant 0 : index
    %98 = vector.load %arg11[%c8_98, %c1_99, %c0_100] : memref<18x32x128xbf16, #tpu.memory_space<vmem>>, vector<8x16x128xbf16>
    %99 = vector.shape_cast %98 : vector<8x16x128xbf16> to vector<128x128xbf16>
    %c1_101 = arith.constant 1 : index
    %c0_102 = arith.constant 0 : index
    %c0_103 = arith.constant 0 : index
    %100 = vector.load %arg7[%c1_101, %c0_102, %c0_103] : memref<9x128x4xbf16, #tpu.memory_space<vmem>>, vector<1x128x4xbf16>
    %101 = vector.shape_cast %100 : vector<1x128x4xbf16> to vector<128x4xbf16>
    %cst_104 = arith.constant dense<0.000000e+00> : vector<128x4xf32>
    %102 = tpu.matmul %99, %101, %cst_104 {dimension_numbers = #tpu.dot_dimension_numbers<[1], [0], [0], [1], [0, 0, 1, 1], [], []>} : vector<128x128xbf16>, vector<128x4xbf16>, vector<128x4xf32> -> vector<128x4xf32>
    %103 = arith.addf %97, %102 : vector<128x4xf32>
    %c8_105 = arith.constant 8 : index
    %c2_106 = arith.constant 2 : index
    %c0_107 = arith.constant 0 : index
    %104 = vector.load %arg11[%c8_105, %c2_106, %c0_107] : memref<18x32x128xbf16, #tpu.memory_space<vmem>>, vector<8x16x128xbf16>
    %105 = vector.shape_cast %104 : vector<8x16x128xbf16> to vector<128x128xbf16>
    %c2_108 = arith.constant 2 : index
    %c0_109 = arith.constant 0 : index
    %c0_110 = arith.constant 0 : index
    %106 = vector.load %arg7[%c2_108, %c0_109, %c0_110] : memref<9x128x4xbf16, #tpu.memory_space<vmem>>, vector<1x128x4xbf16>
    %107 = vector.shape_cast %106 : vector<1x128x4xbf16> to vector<128x4xbf16>
    %cst_111 = arith.constant dense<0.000000e+00> : vector<128x4xf32>
    %108 = tpu.matmul %105, %107, %cst_111 {dimension_numbers = #tpu.dot_dimension_numbers<[1], [0], [0], [1], [0, 0, 1, 1], [], []>} : vector<128x128xbf16>, vector<128x4xbf16>, vector<128x4xf32> -> vector<128x4xf32>
    %109 = arith.addf %103, %108 : vector<128x4xf32>
    %c9 = arith.constant 9 : index
    %c0_112 = arith.constant 0 : index
    %c0_113 = arith.constant 0 : index
    %110 = vector.load %arg11[%c9, %c0_112, %c0_113] : memref<18x32x128xbf16, #tpu.memory_space<vmem>>, vector<8x16x128xbf16>
    %111 = vector.shape_cast %110 : vector<8x16x128xbf16> to vector<128x128xbf16>
    %c3_114 = arith.constant 3 : index
    %c0_115 = arith.constant 0 : index
    %c0_116 = arith.constant 0 : index
    %112 = vector.load %arg7[%c3_114, %c0_115, %c0_116] : memref<9x128x4xbf16, #tpu.memory_space<vmem>>, vector<1x128x4xbf16>
    %113 = vector.shape_cast %112 : vector<1x128x4xbf16> to vector<128x4xbf16>
    %cst_117 = arith.constant dense<0.000000e+00> : vector<128x4xf32>
    %114 = tpu.matmul %111, %113, %cst_117 {dimension_numbers = #tpu.dot_dimension_numbers<[1], [0], [0], [1], [0, 0, 1, 1], [], []>} : vector<128x128xbf16>, vector<128x4xbf16>, vector<128x4xf32> -> vector<128x4xf32>
    %115 = arith.addf %109, %114 : vector<128x4xf32>
    %c9_118 = arith.constant 9 : index
    %c1_119 = arith.constant 1 : index
    %c0_120 = arith.constant 0 : index
    %116 = vector.load %arg11[%c9_118, %c1_119, %c0_120] : memref<18x32x128xbf16, #tpu.memory_space<vmem>>, vector<8x16x128xbf16>
    %117 = vector.shape_cast %116 : vector<8x16x128xbf16> to vector<128x128xbf16>
    %c4_121 = arith.constant 4 : index
    %c0_122 = arith.constant 0 : index
    %c0_123 = arith.constant 0 : index
    %118 = vector.load %arg7[%c4_121, %c0_122, %c0_123] : memref<9x128x4xbf16, #tpu.memory_space<vmem>>, vector<1x128x4xbf16>
    %119 = vector.shape_cast %118 : vector<1x128x4xbf16> to vector<128x4xbf16>
    %cst_124 = arith.constant dense<0.000000e+00> : vector<128x4xf32>
    %120 = tpu.matmul %117, %119, %cst_124 {dimension_numbers = #tpu.dot_dimension_numbers<[1], [0], [0], [1], [0, 0, 1, 1], [], []>} : vector<128x128xbf16>, vector<128x4xbf16>, vector<128x4xf32> -> vector<128x4xf32>
    %121 = arith.addf %115, %120 : vector<128x4xf32>
    %c9_125 = arith.constant 9 : index
    %c2_126 = arith.constant 2 : index
    %c0_127 = arith.constant 0 : index
    %122 = vector.load %arg11[%c9_125, %c2_126, %c0_127] : memref<18x32x128xbf16, #tpu.memory_space<vmem>>, vector<8x16x128xbf16>
    %123 = vector.shape_cast %122 : vector<8x16x128xbf16> to vector<128x128xbf16>
    %c5_128 = arith.constant 5 : index
    %c0_129 = arith.constant 0 : index
    %c0_130 = arith.constant 0 : index
    %124 = vector.load %arg7[%c5_128, %c0_129, %c0_130] : memref<9x128x4xbf16, #tpu.memory_space<vmem>>, vector<1x128x4xbf16>
    %125 = vector.shape_cast %124 : vector<1x128x4xbf16> to vector<128x4xbf16>
    %cst_131 = arith.constant dense<0.000000e+00> : vector<128x4xf32>
    %126 = tpu.matmul %123, %125, %cst_131 {dimension_numbers = #tpu.dot_dimension_numbers<[1], [0], [0], [1], [0, 0, 1, 1], [], []>} : vector<128x128xbf16>, vector<128x4xbf16>, vector<128x4xf32> -> vector<128x4xf32>
    %127 = arith.addf %121, %126 : vector<128x4xf32>
    %c10 = arith.constant 10 : index
    %c0_132 = arith.constant 0 : index
    %c0_133 = arith.constant 0 : index
    %128 = vector.load %arg11[%c10, %c0_132, %c0_133] : memref<18x32x128xbf16, #tpu.memory_space<vmem>>, vector<8x16x128xbf16>
    %129 = vector.shape_cast %128 : vector<8x16x128xbf16> to vector<128x128xbf16>
    %c6_134 = arith.constant 6 : index
    %c0_135 = arith.constant 0 : index
    %c0_136 = arith.constant 0 : index
    %130 = vector.load %arg7[%c6_134, %c0_135, %c0_136] : memref<9x128x4xbf16, #tpu.memory_space<vmem>>, vector<1x128x4xbf16>
    %131 = vector.shape_cast %130 : vector<1x128x4xbf16> to vector<128x4xbf16>
    %cst_137 = arith.constant dense<0.000000e+00> : vector<128x4xf32>
    %132 = tpu.matmul %129, %131, %cst_137 {dimension_numbers = #tpu.dot_dimension_numbers<[1], [0], [0], [1], [0, 0, 1, 1], [], []>} : vector<128x128xbf16>, vector<128x4xbf16>, vector<128x4xf32> -> vector<128x4xf32>
    %133 = arith.addf %127, %132 : vector<128x4xf32>
    %c10_138 = arith.constant 10 : index
    %c1_139 = arith.constant 1 : index
    %c0_140 = arith.constant 0 : index
    %134 = vector.load %arg11[%c10_138, %c1_139, %c0_140] : memref<18x32x128xbf16, #tpu.memory_space<vmem>>, vector<8x16x128xbf16>
    %135 = vector.shape_cast %134 : vector<8x16x128xbf16> to vector<128x128xbf16>
    %c7_141 = arith.constant 7 : index
    %c0_142 = arith.constant 0 : index
    %c0_143 = arith.constant 0 : index
    %136 = vector.load %arg7[%c7_141, %c0_142, %c0_143] : memref<9x128x4xbf16, #tpu.memory_space<vmem>>, vector<1x128x4xbf16>
    %137 = vector.shape_cast %136 : vector<1x128x4xbf16> to vector<128x4xbf16>
    %cst_144 = arith.constant dense<0.000000e+00> : vector<128x4xf32>
    %138 = tpu.matmul %135, %137, %cst_144 {dimension_numbers = #tpu.dot_dimension_numbers<[1], [0], [0], [1], [0, 0, 1, 1], [], []>} : vector<128x128xbf16>, vector<128x4xbf16>, vector<128x4xf32> -> vector<128x4xf32>
    %139 = arith.addf %133, %138 : vector<128x4xf32>
    %c10_145 = arith.constant 10 : index
    %c2_146 = arith.constant 2 : index
    %c0_147 = arith.constant 0 : index
    %140 = vector.load %arg11[%c10_145, %c2_146, %c0_147] : memref<18x32x128xbf16, #tpu.memory_space<vmem>>, vector<8x16x128xbf16>
    %141 = vector.shape_cast %140 : vector<8x16x128xbf16> to vector<128x128xbf16>
    %c8_148 = arith.constant 8 : index
    %c0_149 = arith.constant 0 : index
    %c0_150 = arith.constant 0 : index
    %142 = vector.load %arg7[%c8_148, %c0_149, %c0_150] : memref<9x128x4xbf16, #tpu.memory_space<vmem>>, vector<1x128x4xbf16>
    %143 = vector.shape_cast %142 : vector<1x128x4xbf16> to vector<128x4xbf16>
    %cst_151 = arith.constant dense<0.000000e+00> : vector<128x4xf32>
    %144 = tpu.matmul %141, %143, %cst_151 {dimension_numbers = #tpu.dot_dimension_numbers<[1], [0], [0], [1], [0, 0, 1, 1], [], []>} : vector<128x128xbf16>, vector<128x4xbf16>, vector<128x4xf32> -> vector<128x4xf32>
    %145 = arith.addf %139, %144 : vector<128x4xf32>
    %146 = tpu.transpose %145, [1, 0] : vector<128x4xf32> -> vector<4x128xf32>
    %147 = arith.negf %146 : vector<4x128xf32>
    %148 = math.exp %147 : vector<4x128xf32>
    %cst_152 = arith.constant 1.000000e+00 : f32
    %149 = vector.broadcast %cst_152 : f32 to vector<4x128xf32>
    %150 = arith.addf %149, %148 : vector<4x128xf32>
    %151 = arith.divf %149, %150 : vector<4x128xf32>
    %c0_153 = arith.constant 0 : index
    %c0_154 = arith.constant 0 : index
    %c128 = arith.constant 128 : index
    %152 = vector.load %arg9[%c0_153, %c0_154, %c128] : memref<1x4x256xf32, #tpu.memory_space<vmem>>, vector<1x4x128xf32>
    %153 = vector.shape_cast %152 : vector<1x4x128xf32> to vector<4x128xf32>
    %154 = vector.shape_cast %151 : vector<4x128xf32> to vector<1x4x128xf32>
    tpu.vector_store %arg9[%c0_153, %c0_154, %c128], %154 {strides = array<i32>} : memref<1x4x256xf32, #tpu.memory_space<vmem>>, vector<1x4x128xf32>,
    return
  }
  func.func @transform_0(%arg0: i32, %arg1: i32) -> (i32, i32, i32, i32, i32) {
    %c0_i32 = arith.constant 0 : i32
    %c0_i32_0 = arith.constant 0 : i32
    %c0_i32_1 = arith.constant 0 : i32
    %c0_i32_2 = arith.constant 0 : i32
    return %arg0, %arg1, %c0_i32, %c0_i32_0, %c0_i32_1 : i32, i32, i32, i32, i32
  }
  func.func @transform_1(%arg0: i32, %arg1: i32) -> (i32, i32) {
    %c0_i32 = arith.constant 0 : i32
    %c0_i32_0 = arith.constant 0 : i32
    %c0_i32_1 = arith.constant 0 : i32
    return %c0_i32, %c0_i32_0 : i32, i32
  }
  func.func @transform_2(%arg0: i32, %arg1: i32) -> (i32, i32) {
    %c0_i32 = arith.constant 0 : i32
    %c0_i32_0 = arith.constant 0 : i32
    %c0_i32_1 = arith.constant 0 : i32
    return %c0_i32, %c0_i32_0 : i32, i32
  }
  func.func @transform_3(%arg0: i32, %arg1: i32) -> (i32, i32, i32) {
    %c0_i32 = arith.constant 0 : i32
    %c0_i32_0 = arith.constant 0 : i32
    %c0_i32_1 = arith.constant 0 : i32
    %c0_i32_2 = arith.constant 0 : i32
    return %c0_i32, %c0_i32_0, %c0_i32_1 : i32, i32, i32
  }
  func.func @transform_4(%arg0: i32, %arg1: i32) -> (i32, i32) {
    %c0_i32 = arith.constant 0 : i32
    %c0_i32_0 = arith.constant 0 : i32
    %c0_i32_1 = arith.constant 0 : i32
    return %c0_i32, %c0_i32_0 : i32, i32
  }
  func.func @transform_5(%arg0: i32, %arg1: i32) -> (i32, i32, i32) {
    %c0_i32 = arith.constant 0 : i32
    %c0_i32_0 = arith.constant 0 : i32
    %c0_i32_1 = arith.constant 0 : i32
    %c0_i32_2 = arith.constant 0 : i32
    return %c0_i32, %c0_i32_0, %c0_i32_1 : i32, i32, i32
  }
  func.func @transform_6(%arg0: i32, %arg1: i32) -> (i32, i32) {
    %c0_i32 = arith.constant 0 : i32
    %c0_i32_0 = arith.constant 0 : i32
    %c0_i32_1 = arith.constant 0 : i32
    return %c0_i32, %c0_i32_0 : i32, i32
  }
  func.func @transform_7(%arg0: i32, %arg1: i32) -> (i32, i32, i32) {
    %c0_i32 = arith.constant 0 : i32
    %c0_i32_0 = arith.constant 0 : i32
    return %arg0, %c0_i32, %arg1 : i32, i32, i32
  }
}

</mosaic_0001>

<llo_original>
// kernel: generator_forward.1
$region0: #{generator_forward.1}
  #allocation0 [shape = 'u32[]', space=smem, size = 0x4, offset = 0x4, fixed_abs, tag = 'smem constant byte address 0x4 - core index']
  #allocation1 [shape = 'u32[72,128]{1,0:T(1,128)}', space=vmem, size = 0x9000, scoped, tag = 'internal scratch']
  #allocation2 [shape = 'bf16[20,32,128]{2,1,0:T(8,128)(2,1)}', space=vmem, size = 0x28000, scoped, tag = 'scratch operand']
  #allocation3 [shape = 'bf16[18,32,128]{2,1,0:T(8,128)(2,1)}', space=vmem, size = 0x24000, scoped, tag = 'scratch operand']
  %s0 = inlined_call_operand.vmem [shape: bf16[2,1,20,16,54], index: 0, kind: input, shape index: {}]
  %s1 = inlined_call_operand.vmem [shape: bf16[54,128], index: 1, kind: input, shape index: {}]
  %s2 = inlined_call_operand.vmem [shape: f32[1,128], index: 2, kind: input, shape index: {}]
  %s3 = inlined_call_operand.vmem [shape: bf16[9,128,128], index: 3, kind: input, shape index: {}]
  %s4 = inlined_call_operand.vmem [shape: f32[1,128], index: 4, kind: input, shape index: {}]
  %s5 = inlined_call_operand.vmem [shape: bf16[9,128,4], index: 5, kind: input, shape index: {}]
  %s6 = inlined_call_operand.vmem [shape: f32[1,4], index: 6, kind: input, shape index: {}]
  %s7 = inlined_call_operand.vmem [shape: f32[2,4,256], index: 7, kind: output, shape index: {}]
  %s8 = sld [smem:[#allocation0]]
  $region83: #{generator_forward.1} parent=0
    _
  %s10 = ssub.s32 1, %s8
  %s11 = scalar_select 0, %s10, %s8
  loop: start=0, step=1, limit=4
  $region2: #{generator_forward.1} parent=0 // loop_pre_header
    _
  $region3: #{generator_forward.1} parent=0 // loop_header
    %s13 = sphi 0, %s17
    %p14 = scmp.ge.s32.totalorder %s13, 4
    %s20 = sphi 0, %s32
    %s21 = sphi 0, %s28
    %s22 = sphi 0, %s20
    %s23 = sphi 0, %s21
    %s24 = sphi 0, %s22
    %s25 = sphi 0, %s23
    %s37 = sphi 0, %s39
    %s40 = sphi 0, %s37
    %s41 = sphi 0, %s40
    %s57 = sphi 0, %s41
    %s61 = sphi 0, %s61
    %s63 = sphi 0, %s61
    %s64 = sphi 0, %s63
    %s78 = sphi 0, %s64
    %s82 = sphi 0, %s82
    %s84 = sphi 0, %s82
    %s85 = sphi 0, %s84
    %s99 = sphi 0, %s85
    %s103 = sphi 0, %s103
    %s105 = sphi 0, %s103
    %s106 = sphi 0, %s105
    %s120 = sphi 0, %s106
    %s124 = sphi 0, %s124
    %s126 = sphi 0, %s124
    %s127 = sphi 0, %s126
    %s141 = sphi 0, %s127
    %s145 = sphi 0, %s145
    %s147 = sphi 0, %s145
    %s148 = sphi 0, %s147
    %s162 = sphi 0, %s148
    %s166 = sphi 0, %s166
    %s168 = sphi 0, %s166
    %s169 = sphi 0, %s168
    %s183 = sphi 0, %s169
    %s191 = sphi 0, %s193
    %s194 = sphi 0, %s191
    %s195 = sphi 0, %s194
    %s211 = sphi 0, %s195
  $region4: #{generator_forward.1} parent=0 // loop_header_branch
    %16 = sbr.rel (%p14) target = $region8
  $region5: #{generator_forward.1} parent=0 // loop_body
    %s18 = ssub.s32 %s13, 1
    %s19 = ssub.s32 %s13, 2
    %s26 = sadd.s32 1, %s21
    %p27 = scmp.ge.s32.totalorder %s26, 1
    %s28 = scalar_select %p27, 0, %s26
    %s29 = sadd.s32 1, %s20
    %s30 = scalar_select %p27, %s29, %s20
    %p31 = scmp.ge.s32.totalorder %s30, 2
    %s32 = scalar_select %p31, 0, %s30
    %s33 = ssub.s32 %s20, %s32
    %s34 = ssub.s32 %s21, %s28
    %s35 = sor.u32 %s33, %s34
    %p36 = scmp.eq.s32.totalorder %s35, 0
    %s38 = sadd.s32 %s37, 1
    %s39 = scalar_select %p36, %s37, %s38
    %p42 = pneg %p36
    %p43 = scmp.eq.s32.totalorder %s13, 1
    %p44 = por %p42, %p43
    %p45 = scmp.ne.s32.totalorder %s37, %s40
    %p46 = scmp.eq.s32.totalorder %s13, 0
    %p47 = por %p45, %p46
    %p48 = scmp.ne.s32.totalorder %s37, %s40
    %p49 = scmp.eq.s32.totalorder %s18, 1
    %p50 = por %p48, %p49
    %p51 = scmp.ne.s32.totalorder %s40, %s41
    %p52 = scmp.eq.s32.totalorder %s18, 0
    %p53 = por %p51, %p52
    %p54 = scmp.ne.s32.totalorder %s40, %s41
    %p55 = scmp.eq.s32.totalorder %s19, 1
    %p56 = por %p54, %p55
    %p58 = scmp.ne.s32.totalorder %s41, %s57
    %p59 = scmp.eq.s32.totalorder %s19, 0
    %p60 = por %p58, %p59
    %s62 = sadd.s32 %s61, 1
    %p65 = scmp.eq.s32.totalorder %s13, 1
    %p66 = scmp.ne.s32.totalorder %s61, %s63
    %p67 = scmp.eq.s32.totalorder %s13, 0
    %p68 = por %p66, %p67
    %p69 = scmp.ne.s32.totalorder %s61, %s63
    %p70 = scmp.eq.s32.totalorder %s18, 1
    %p71 = por %p69, %p70
    %p72 = scmp.ne.s32.totalorder %s63, %s64
    %p73 = scmp.eq.s32.totalorder %s18, 0
    %p74 = por %p72, %p73
    %p75 = scmp.ne.s32.totalorder %s63, %s64
    %p76 = scmp.eq.s32.totalorder %s19, 1
    %p77 = por %p75, %p76
    %p79 = scmp.ne.s32.totalorder %s64, %s78
    %p80 = scmp.eq.s32.totalorder %s19, 0
    %p81 = por %p79, %p80
    %s83 = sadd.s32 %s82, 1
    %p86 = scmp.eq.s32.totalorder %s13, 1
    %p87 = scmp.ne.s32.totalorder %s82, %s84
    %p88 = scmp.eq.s32.totalorder %s13, 0
    %p89 = por %p87, %p88
    %p90 = scmp.ne.s32.totalorder %s82, %s84
    %p91 = scmp.eq.s32.totalorder %s18, 1
    %p92 = por %p90, %p91
    %p93 = scmp.ne.s32.totalorder %s84, %s85
    %p94 = scmp.eq.s32.totalorder %s18, 0
    %p95 = por %p93, %p94
    %p96 = scmp.ne.s32.totalorder %s84, %s85
    %p97 = scmp.eq.s32.totalorder %s19, 1
    %p98 = por %p96, %p97
    %p100 = scmp.ne.s32.totalorder %s85, %s99
    %p101 = scmp.eq.s32.totalorder %s19, 0
    %p102 = por %p100, %p101
    %s104 = sadd.s32 %s103, 1
    %p107 = scmp.eq.s32.totalorder %s13, 1
    %p108 = scmp.ne.s32.totalorder %s103, %s105
    %p109 = scmp.eq.s32.totalorder %s13, 0
    %p110 = por %p108, %p109
    %p111 = scmp.ne.s32.totalorder %s103, %s105
    %p112 = scmp.eq.s32.totalorder %s18, 1
    %p113 = por %p111, %p112
    %p114 = scmp.ne.s32.totalorder %s105, %s106
    %p115 = scmp.eq.s32.totalorder %s18, 0
    %p116 = por %p114, %p115
    %p117 = scmp.ne.s32.totalorder %s105, %s106
    %p118 = scmp.eq.s32.totalorder %s19, 1
    %p119 = por %p117, %p118
    %p121 = scmp.ne.s32.totalorder %s106, %s120
    %p122 = scmp.eq.s32.totalorder %s19, 0
    %p123 = por %p121, %p122
    %s125 = sadd.s32 %s124, 1
    %p128 = scmp.eq.s32.totalorder %s13, 1
    %p129 = scmp.ne.s32.totalorder %s124, %s126
    %p130 = scmp.eq.s32.totalorder %s13, 0
    %p131 = por %p129, %p130
    %p132 = scmp.ne.s32.totalorder %s124, %s126
    %p133 = scmp.eq.s32.totalorder %s18, 1
    %p134 = por %p132, %p133
    %p135 = scmp.ne.s32.totalorder %s126, %s127
    %p136 = scmp.eq.s32.totalorder %s18, 0
    %p137 = por %p135, %p136
    %p138 = scmp.ne.s32.totalorder %s126, %s127
    %p139 = scmp.eq.s32.totalorder %s19, 1
    %p140 = por %p138, %p139
    %p142 = scmp.ne.s32.totalorder %s127, %s141
    %p143 = scmp.eq.s32.totalorder %s19, 0
    %p144 = por %p142, %p143
    %s146 = sadd.s32 %s145, 1
    %p149 = scmp.eq.s32.totalorder %s13, 1
    %p150 = scmp.ne.s32.totalorder %s145, %s147
    %p151 = scmp.eq.s32.totalorder %s13, 0
    %p152 = por %p150, %p151
    %p153 = scmp.ne.s32.totalorder %s145, %s147
    %p154 = scmp.eq.s32.totalorder %s18, 1
    %p155 = por %p153, %p154
    %p156 = scmp.ne.s32.totalorder %s147, %s148
    %p157 = scmp.eq.s32.totalorder %s18, 0
    %p158 = por %p156, %p157
    %p159 = scmp.ne.s32.totalorder %s147, %s148
    %p160 = scmp.eq.s32.totalorder %s19, 1
    %p161 = por %p159, %p160
    %p163 = scmp.ne.s32.totalorder %s148, %s162
    %p164 = scmp.eq.s32.totalorder %s19, 0
    %p165 = por %p163, %p164
    %s167 = sadd.s32 %s166, 1
    %p170 = scmp.eq.s32.totalorder %s13, 1
    %p171 = scmp.ne.s32.totalorder %s166, %s168
    %p172 = scmp.eq.s32.totalorder %s13, 0
    %p173 = por %p171, %p172
    %p174 = scmp.ne.s32.totalorder %s166, %s168
    %p175 = scmp.eq.s32.totalorder %s18, 1
    %p176 = por %p174, %p175
    %p177 = scmp.ne.s32.totalorder %s168, %s169
    %p178 = scmp.eq.s32.totalorder %s18, 0
    %p179 = por %p177, %p178
    %p180 = scmp.ne.s32.totalorder %s168, %s169
    %p181 = scmp.eq.s32.totalorder %s19, 1
    %p182 = por %p180, %p181
    %p184 = scmp.ne.s32.totalorder %s169, %s183
    %p185 = scmp.eq.s32.totalorder %s19, 0
    %p186 = por %p184, %p185
    %s187 = ssub.s32 %s20, %s32
    %s188 = ssub.s32 %s21, %s28
    %s189 = sor.u32 %s187, %s188
    %p190 = scmp.eq.s32.totalorder %s189, 0
    %s192 = sadd.s32 %s191, 1
    %s193 = scalar_select %p190, %s191, %s192
    %p196 = pneg %p190
    %p197 = scmp.eq.s32.totalorder %s13, 1
    %p198 = por %p196, %p197
    %p199 = scmp.ne.s32.totalorder %s191, %s194
    %p200 = scmp.eq.s32.totalorder %s13, 0
    %p201 = por %p199, %p200
    %p202 = scmp.ne.s32.totalorder %s191, %s194
    %p203 = scmp.eq.s32.totalorder %s18, 1
    %p204 = por %p202, %p203
    %p205 = scmp.ne.s32.totalorder %s194, %s195
    %p206 = scmp.eq.s32.totalorder %s18, 0
    %p207 = por %p205, %p206
    %p208 = scmp.ne.s32.totalorder %s194, %s195
    %p209 = scmp.eq.s32.totalorder %s19, 1
    %p210 = por %p208, %p209
    %p212 = scmp.ne.s32.totalorder %s195, %s211
    %p213 = scmp.eq.s32.totalorder %s19, 0
    %p214 = por %p212, %p213
    %p215 = scmp.le.s32.totalorder 1, %s13
    %p216 = scmp.lt.s32.totalorder %s13, 3
    %p217 = pnand %p215, %p216
    %p218 = pneg %p217
    // Predicated region
    $region9: #{generator_forward.1} parent=5 // pred_check
      _
    $region10: #{generator_forward.1} parent=5 // pred_check_branch
      %220 = sbr.rel (%p217) target = $region12
    $region11: #{generator_forward.1} parent=5 // pred_region
      %s221 = ssub.s32 %s13, 1
      // Predicated region
      $region13: #{generator_forward.1} parent=11 // pred_check
        %p222 = pneg %p74
      $region14: #{generator_forward.1} parent=11 // pred_check_branch
        %224 = sbr.rel (%p222) target = $region16
      $region15: #{generator_forward.1} parent=11 // pred_region
        _
      $region16: #{generator_forward.1} parent=11 // pred_fallthru
        _
      // Predicated region
      $region17: #{generator_forward.1} parent=11 // pred_check
        %p225 = pneg %p95
      $region18: #{generator_forward.1} parent=11 // pred_check_branch
        %227 = sbr.rel (%p225) target = $region20
      $region19: #{generator_forward.1} parent=11 // pred_region
        _
      $region20: #{generator_forward.1} parent=11 // pred_fallthru
        _
      // Predicated region
      $region21: #{generator_forward.1} parent=11 // pred_check
        %p228 = pneg %p116
      $region22: #{generator_forward.1} parent=11 // pred_check_branch
        %230 = sbr.rel (%p228) target = $region24
      $region23: #{generator_forward.1} parent=11 // pred_region
        _
      $region24: #{generator_forward.1} parent=11 // pred_fallthru
        _
      // Predicated region
      $region25: #{generator_forward.1} parent=11 // pred_check
        %p231 = pneg %p137
      $region26: #{generator_forward.1} parent=11 // pred_check_branch
        %233 = sbr.rel (%p231) target = $region28
      $region27: #{generator_forward.1} parent=11 // pred_region
        _
      $region28: #{generator_forward.1} parent=11 // pred_fallthru
        _
      // Predicated region
      $region29: #{generator_forward.1} parent=11 // pred_check
        %p234 = pneg %p158
      $region30: #{generator_forward.1} parent=11 // pred_check_branch
        %236 = sbr.rel (%p234) target = $region32
      $region31: #{generator_forward.1} parent=11 // pred_region
        _
      $region32: #{generator_forward.1} parent=11 // pred_fallthru
        _
      // Predicated region
      $region33: #{generator_forward.1} parent=11 // pred_check
        %p237 = pneg %p179
      $region34: #{generator_forward.1} parent=11 // pred_check_branch
        %239 = sbr.rel (%p237) target = $region36
      $region35: #{generator_forward.1} parent=11 // pred_region
        _
      $region36: #{generator_forward.1} parent=11 // pred_fallthru
        _
    $region12: #{generator_forward.1} parent=5 // pred_fallthru
      _
    %p240 = scmp.lt.s32.totalorder %s13, 2
    // Predicated region
    $region37: #{generator_forward.1} parent=5 // pred_check
      %p241 = pneg %p240
    $region38: #{generator_forward.1} parent=5 // pred_check_branch
      %243 = sbr.rel (%p241) target = $region40
    $region39: #{generator_forward.1} parent=5 // pred_region
      // Predicated region
      $region41: #{generator_forward.1} parent=39 // pred_check
        %p244 = pneg %p47
      $region42: #{generator_forward.1} parent=39 // pred_check_branch
        %246 = sbr.rel (%p244) target = $region44
      $region43: #{generator_forward.1} parent=39 // pred_region
        %p247 = scmp.lt.s32.totalorder %s20, 1
        %s248 = scalar_select %p247, %s20, 1
        %p249 = scmp.lt.s32.totalorder %s21, 0
        %s250 = scalar_select %p249, %s21, 0
        %s251 = smul.addr %s250, 40
        %s252 = smul.addr %s248, 40
        %s253 = sadd.s32 %s251, %s252
        %s254 = smul.addr %s253, 4
        %s255 = scalar_lea.vmem %s0, %s254
      $region44: #{generator_forward.1} parent=39 // pred_fallthru
        _
    $region40: #{generator_forward.1} parent=5 // pred_fallthru
      _
    %p256 = scmp.le.s32.totalorder 1, %s13
    %p257 = scmp.lt.s32.totalorder %s13, 3
    %p258 = pnand %p256, %p257
    %p259 = pneg %p258
    // Predicated region
    $region45: #{generator_forward.1} parent=5 // pred_check
      _
    $region46: #{generator_forward.1} parent=5 // pred_check_branch
      %261 = sbr.rel (%p258) target = $region48
    $region47: #{generator_forward.1} parent=5 // pred_region
      %s262 = ssub.s32 %s13, 1
      %p263 = scmp.lt.s32.totalorder %s22, 1
      %s264 = scalar_select %p263, %s22, 1
      %p265 = scmp.lt.s32.totalorder %s23, 0
      %s266 = scalar_select %p265, %s23, 0
      %s267 = smul.addr %s266, 40
      %s268 = smul.addr %s264, 40
      %s269 = sadd.s32 %s267, %s268
      %s270 = smul.addr %s269, 4
      %s271 = scalar_lea.vmem %s0, %s270
      %p272 = pneg %p53
      %p273 = pneg %p50
      %p274 = pneg %p74
      %p275 = pneg %p71
      %p276 = pneg %p95
      %p277 = pneg %p92
      %p278 = pneg %p116
      %p279 = pneg %p113
      %p280 = pneg %p137
      %p281 = pneg %p134
      %p282 = pneg %p158
      %p283 = pneg %p155
      %p284 = pneg %p179
      %p285 = pneg %p176
      %p286 = pneg %p207
      %p287 = pneg %p204
      %s288 = smul.u32 2, %s23
      %p289 = scmp.lt.s32.totalorder %s22, 1
      %s290 = scalar_select %p289, %s22, 1
      %p291 = scmp.lt.s32.totalorder %s288, 1
      %s292 = scalar_select %p291, %s288, 1
      %s293 = smul.addr %s290, 2
      %s294 = sadd.s32 %s292, %s293
      %s295 = smul.addr %s294, 4
      %s296 = scalar_lea.vmem %s7, %s295
      %p297 = scmp.lt.s32.totalorder %s22, 1
      %s298 = scalar_select %p297, %s22, 1
      %p299 = scmp.lt.s32.totalorder %s23, 0
      %s300 = scalar_select %p299, %s23, 0
      %s301 = smul.addr %s300, 40
      %s302 = smul.addr %s298, 40
      %s303 = sadd.s32 %s301, %s302
      %s304 = smul.addr %s303, 4
      %s305 = scalar_lea.vmem %s0, %s304
      %s306 = smul.u32 2, %s23
      %p307 = scmp.lt.s32.totalorder %s22, 1
      %s308 = scalar_select %p307, %s22, 1
      %p309 = scmp.lt.s32.totalorder %s306, 1
      %s310 = scalar_select %p309, %s306, 1
      %s311 = smul.addr %s308, 2
      %s312 = sadd.s32 %s310, %s311
      %s313 = smul.addr %s312, 4
      %s314 = scalar_lea.vmem %s7, %s313
      %s315 = smul.u32 2, %s23
      %vm317 = vcmask 1040384
      %vm318 = vsmask.f32 256
      %vm319 = vmand %vm317, %vm318
      %v320 = vld [vmem:[#allocation2] sm:$0x1]
      %v321 = vsel %vm319, 0, %v320
      %322 = vst [vmem:[#allocation2] sm:$0x1] %v321
      %v323 = vld [vmem:[#allocation2 + $0x10] sm:$0x1]
      %v324 = vsel %vm319, 0, %v323
      %325 = vst [vmem:[#allocation2 + $0x10] sm:$0x1] %v324
      %v326 = vld [vmem:[#allocation2 + $0x20] sm:$0x1]
      %v327 = vsel %vm319, 0, %v326
      %328 = vst [vmem:[#allocation2 + $0x20] sm:$0x1] %v327
      %v329 = vld [vmem:[#allocation2 + $0x30] sm:$0x1]
      %v330 = vsel %vm319, 0, %v329
      %331 = vst [vmem:[#allocation2 + $0x30] sm:$0x1] %v330
      %v332 = vld [vmem:[#allocation2 + $0x40] sm:$0x1]
      %v333 = vsel %vm319, 0, %v332
      %334 = vst [vmem:[#allocation2 + $0x40] sm:$0x1] %v333
      %v335 = vld [vmem:[#allocation2 + $0x50] sm:$0x1]
      %v336 = vsel %vm319, 0, %v335
      %337 = vst [vmem:[#allocation2 + $0x50] sm:$0x1] %v336
      %v338 = vld [vmem:[#allocation2 + $0x60] sm:$0x1]
      %v339 = vsel %vm319, 0, %v338
      %340 = vst [vmem:[#allocation2 + $0x60] sm:$0x1] %v339
      %v341 = vld [vmem:[#allocation2 + $0x70] sm:$0x1]
      %v342 = vsel %vm319, 0, %v341
      %343 = vst [vmem:[#allocation2 + $0x70] sm:$0x1] %v342
      %v344 = vld [vmem:[#allocation2 + $0x80] sm:$0x1]
      %v345 = vsel %vm319, 0, %v344
      %346 = vst [vmem:[#allocation2 + $0x80] sm:$0x1] %v345
      %v347 = vld [vmem:[#allocation2 + $0x90] sm:$0x1]
      %v348 = vsel %vm319, 0, %v347
      %349 = vst [vmem:[#allocation2 + $0x90] sm:$0x1] %v348
      %v350 = vld [vmem:[#allocation2 + $0xa0] sm:$0x1]
      %v351 = vsel %vm319, 0, %v350
      %352 = vst [vmem:[#allocation2 + $0xa0] sm:$0x1] %v351
      %v353 = vld [vmem:[#allocation2 + $0xb0] sm:$0x1]
      %v354 = vsel %vm319, 0, %v353
      %355 = vst [vmem:[#allocation2 + $0xb0] sm:$0x1] %v354
      %v356 = vld [vmem:[#allocation2 + $0xc0] sm:$0x1]
      %v357 = vsel %vm319, 0, %v356
      %358 = vst [vmem:[#allocation2 + $0xc0] sm:$0x1] %v357
      %v359 = vld [vmem:[#allocation2 + $0xd0] sm:$0x1]
      %v360 = vsel %vm319, 0, %v359
      %361 = vst [vmem:[#allocation2 + $0xd0] sm:$0x1] %v360
      %v362 = vld [vmem:[#allocation2 + $0xe0] sm:$0x1]
      %v363 = vsel %vm319, 0, %v362
      %364 = vst [vmem:[#allocation2 + $0xe0] sm:$0x1] %v363
      %v365 = vld [vmem:[#allocation2 + $0xf0] sm:$0x1]
      %v366 = vsel %vm319, 0, %v365
      %367 = vst [vmem:[#allocation2 + $0xf0] sm:$0x1] %v366
      %v368 = vld [vmem:[#allocation2 + $0x100] sm:$0x1]
      %v369 = vsel %vm319, 0, %v368
      %370 = vst [vmem:[#allocation2 + $0x100] sm:$0x1] %v369
      %v371 = vld [vmem:[#allocation2 + $0x110] sm:$0x1]
      %v372 = vsel %vm319, 0, %v371
      %373 = vst [vmem:[#allocation2 + $0x110] sm:$0x1] %v372
      %v374 = vld [vmem:[#allocation2 + $0x120] sm:$0x1]
      %v375 = vsel %vm319, 0, %v374
      %376 = vst [vmem:[#allocation2 + $0x120] sm:$0x1] %v375
      %v377 = vld [vmem:[#allocation2 + $0x130] sm:$0x1]
      %v378 = vsel %vm319, 0, %v377
      %379 = vst [vmem:[#allocation2 + $0x130] sm:$0x1] %v378
      %vm380 = vsmask.f32 7938
      %vm381 = vmand %vm317, %vm380
      %v382 = vld [vmem:[#allocation2 + $0x8] sm:$0x1]
      %v383 = vsel %vm381, 0, %v382
      %384 = vst [vmem:[#allocation2 + $0x8] sm:$0x1] %v383
      %v385 = vld [vmem:[#allocation2 + $0x18] sm:$0x1]
      %v386 = vsel %vm381, 0, %v385
      %387 = vst [vmem:[#allocation2 + $0x18] sm:$0x1] %v386
      %v388 = vld [vmem:[#allocation2 + $0x28] sm:$0x1]
      %v389 = vsel %vm381, 0, %v388
      %390 = vst [vmem:[#allocation2 + $0x28] sm:$0x1] %v389
      %v391 = vld [vmem:[#allocation2 + $0x38] sm:$0x1]
      %v392 = vsel %vm381, 0, %v391
      %393 = vst [vmem:[#allocation2 + $0x38] sm:$0x1] %v392
      %v394 = vld [vmem:[#allocation2 + $0x48] sm:$0x1]
      %v395 = vsel %vm381, 0, %v394
      %396 = vst [vmem:[#allocation2 + $0x48] sm:$0x1] %v395
      %v397 = vld [vmem:[#allocation2 + $0x58] sm:$0x1]
      %v398 = vsel %vm381, 0, %v397
      %399 = vst [vmem:[#allocation2 + $0x58] sm:$0x1] %v398
      %v400 = vld [vmem:[#allocation2 + $0x68] sm:$0x1]
      %v401 = vsel %vm381, 0, %v400
      %402 = vst [vmem:[#allocation2 + $0x68] sm:$0x1] %v401
      %v403 = vld [vmem:[#allocation2 + $0x78] sm:$0x1]
      %v404 = vsel %vm381, 0, %v403
      %405 = vst [vmem:[#allocation2 + $0x78] sm:$0x1] %v404
      %v406 = vld [vmem:[#allocation2 + $0x88] sm:$0x1]
      %v407 = vsel %vm381, 0, %v406
      %408 = vst [vmem:[#allocation2 + $0x88] sm:$0x1] %v407
      %v409 = vld [vmem:[#allocation2 + $0x98] sm:$0x1]
      %v410 = vsel %vm381, 0, %v409
      %411 = vst [vmem:[#allocation2 + $0x98] sm:$0x1] %v410
      %v412 = vld [vmem:[#allocation2 + $0xa8] sm:$0x1]
      %v413 = vsel %vm381, 0, %v412
      %414 = vst [vmem:[#allocation2 + $0xa8] sm:$0x1] %v413
      %v415 = vld [vmem:[#allocation2 + $0xb8] sm:$0x1]
      %v416 = vsel %vm381, 0, %v415
      %417 = vst [vmem:[#allocation2 + $0xb8] sm:$0x1] %v416
      %v418 = vld [vmem:[#allocation2 + $0xc8] sm:$0x1]
      %v419 = vsel %vm381, 0, %v418
      %420 = vst [vmem:[#allocation2 + $0xc8] sm:$0x1] %v419
      %v421 = vld [vmem:[#allocation2 + $0xd8] sm:$0x1]
      %v422 = vsel %vm381, 0, %v421
      %423 = vst [vmem:[#allocation2 + $0xd8] sm:$0x1] %v422
      %v424 = vld [vmem:[#allocation2 + $0xe8] sm:$0x1]
      %v425 = vsel %vm381, 0, %v424
      %426 = vst [vmem:[#allocation2 + $0xe8] sm:$0x1] %v425
      %v427 = vld [vmem:[#allocation2 + $0xf8] sm:$0x1]
      %v428 = vsel %vm381, 0, %v427
      %429 = vst [vmem:[#allocation2 + $0xf8] sm:$0x1] %v428
      %v430 = vld [vmem:[#allocation2 + $0x108] sm:$0x1]
      %v431 = vsel %vm381, 0, %v430
      %432 = vst [vmem:[#allocation2 + $0x108] sm:$0x1] %v431
      %v433 = vld [vmem:[#allocation2 + $0x118] sm:$0x1]
      %v434 = vsel %vm381, 0, %v433
      %435 = vst [vmem:[#allocation2 + $0x118] sm:$0x1] %v434
      %v436 = vld [vmem:[#allocation2 + $0x128] sm:$0x1]
      %v437 = vsel %vm381, 0, %v436
      %438 = vst [vmem:[#allocation2 + $0x128] sm:$0x1] %v437
      %v439 = vld [vmem:[#allocation2 + $0x138] sm:$0x1]
      %v440 = vsel %vm381, 0, %v439
      %441 = vst [vmem:[#allocation2 + $0x138] sm:$0x1] %v440
      %v442 = vld [vmem:[#allocation3] sm:$0x1]
      %v443 = vsel %vm319, 0, %v442
      %444 = vst [vmem:[#allocation3] sm:$0x1] %v443
      %v445 = vld [vmem:[#allocation3 + $0x10] sm:$0x1]
      %v446 = vsel %vm319, 0, %v445
      %447 = vst [vmem:[#allocation3 + $0x10] sm:$0x1] %v446
      %v448 = vld [vmem:[#allocation3 + $0x20] sm:$0x1]
      %v449 = vsel %vm319, 0, %v448
      %450 = vst [vmem:[#allocation3 + $0x20] sm:$0x1] %v449
      %v451 = vld [vmem:[#allocation3 + $0x30] sm:$0x1]
      %v452 = vsel %vm319, 0, %v451
      %453 = vst [vmem:[#allocation3 + $0x30] sm:$0x1] %v452
      %v454 = vld [vmem:[#allocation3 + $0x40] sm:$0x1]
      %v455 = vsel %vm319, 0, %v454
      %456 = vst [vmem:[#allocation3 + $0x40] sm:$0x1] %v455
      %v457 = vld [vmem:[#allocation3 + $0x50] sm:$0x1]
      %v458 = vsel %vm319, 0, %v457
      %459 = vst [vmem:[#allocation3 + $0x50] sm:$0x1] %v458
      %v460 = vld [vmem:[#allocation3 + $0x60] sm:$0x1]
      %v461 = vsel %vm319, 0, %v460
      %462 = vst [vmem:[#allocation3 + $0x60] sm:$0x1] %v461
      %v463 = vld [vmem:[#allocation3 + $0x70] sm:$0x1]
      %v464 = vsel %vm319, 0, %v463
      %465 = vst [vmem:[#allocation3 + $0x70] sm:$0x1] %v464
      %v466 = vld [vmem:[#allocation3 + $0x80] sm:$0x1]
      %v467 = vsel %vm319, 0, %v466
      %468 = vst [vmem:[#allocation3 + $0x80] sm:$0x1] %v467
      %v469 = vld [vmem:[#allocation3 + $0x90] sm:$0x1]
      %v470 = vsel %vm319, 0, %v469
      %471 = vst [vmem:[#allocation3 + $0x90] sm:$0x1] %v470
      %v472 = vld [vmem:[#allocation3 + $0xa0] sm:$0x1]
      %v473 = vsel %vm319, 0, %v472
      %474 = vst [vmem:[#allocation3 + $0xa0] sm:$0x1] %v473
      %v475 = vld [vmem:[#allocation3 + $0xb0] sm:$0x1]
      %v476 = vsel %vm319, 0, %v475
      %477 = vst [vmem:[#allocation3 + $0xb0] sm:$0x1] %v476
      %v478 = vld [vmem:[#allocation3 + $0xc0] sm:$0x1]
      %v479 = vsel %vm319, 0, %v478
      %480 = vst [vmem:[#allocation3 + $0xc0] sm:$0x1] %v479
      %v481 = vld [vmem:[#allocation3 + $0xd0] sm:$0x1]
      %v482 = vsel %vm319, 0, %v481
      %483 = vst [vmem:[#allocation3 + $0xd0] sm:$0x1] %v482
      %v484 = vld [vmem:[#allocation3 + $0xe0] sm:$0x1]
      %v485 = vsel %vm319, 0, %v484
      %486 = vst [vmem:[#allocation3 + $0xe0] sm:$0x1] %v485
      %v487 = vld [vmem:[#allocation3 + $0xf0] sm:$0x1]
      %v488 = vsel %vm319, 0, %v487
      %489 = vst [vmem:[#allocation3 + $0xf0] sm:$0x1] %v488
      %v490 = vld [vmem:[#allocation3 + $0x100] sm:$0x1]
      %v491 = vsel %vm319, 0, %v490
      %492 = vst [vmem:[#allocation3 + $0x100] sm:$0x1] %v491
      %v493 = vld [vmem:[#allocation3 + $0x110] sm:$0x1]
      %v494 = vsel %vm319, 0, %v493
      %495 = vst [vmem:[#allocation3 + $0x110] sm:$0x1] %v494
      %v496 = vld [vmem:[#allocation3 + $0x8] sm:$0x1]
      %v497 = vsel %vm381, 0, %v496
      %498 = vst [vmem:[#allocation3 + $0x8] sm:$0x1] %v497
      %v499 = vld [vmem:[#allocation3 + $0x18] sm:$0x1]
      %v500 = vsel %vm381, 0, %v499
      %501 = vst [vmem:[#allocation3 + $0x18] sm:$0x1] %v500
      %v502 = vld [vmem:[#allocation3 + $0x28] sm:$0x1]
      %v503 = vsel %vm381, 0, %v502
      %504 = vst [vmem:[#allocation3 + $0x28] sm:$0x1] %v503
      %v505 = vld [vmem:[#allocation3 + $0x38] sm:$0x1]
      %v506 = vsel %vm381, 0, %v505
      %507 = vst [vmem:[#allocation3 + $0x38] sm:$0x1] %v506
      %v508 = vld [vmem:[#allocation3 + $0x48] sm:$0x1]
      %v509 = vsel %vm381, 0, %v508
      %510 = vst [vmem:[#allocation3 + $0x48] sm:$0x1] %v509
      %v511 = vld [vmem:[#allocation3 + $0x58] sm:$0x1]
      %v512 = vsel %vm381, 0, %v511
      %513 = vst [vmem:[#allocation3 + $0x58] sm:$0x1] %v512
      %v514 = vld [vmem:[#allocation3 + $0x68] sm:$0x1]
      %v515 = vsel %vm381, 0, %v514
      %516 = vst [vmem:[#allocation3 + $0x68] sm:$0x1] %v515
      %v517 = vld [vmem:[#allocation3 + $0x78] sm:$0x1]
      %v518 = vsel %vm381, 0, %v517
      %519 = vst [vmem:[#allocation3 + $0x78] sm:$0x1] %v518
      %v520 = vld [vmem:[#allocation3 + $0x88] sm:$0x1]
      %v521 = vsel %vm381, 0, %v520
      %522 = vst [vmem:[#allocation3 + $0x88] sm:$0x1] %v521
      %v523 = vld [vmem:[#allocation3 + $0x98] sm:$0x1]
      %v524 = vsel %vm381, 0, %v523
      %525 = vst [vmem:[#allocation3 + $0x98] sm:$0x1] %v524
      %v526 = vld [vmem:[#allocation3 + $0xa8] sm:$0x1]
      %v527 = vsel %vm381, 0, %v526
      %528 = vst [vmem:[#allocation3 + $0xa8] sm:$0x1] %v527
      %v529 = vld [vmem:[#allocation3 + $0xb8] sm:$0x1]
      %v530 = vsel %vm381, 0, %v529
      %531 = vst [vmem:[#allocation3 + $0xb8] sm:$0x1] %v530
      %v532 = vld [vmem:[#allocation3 + $0xc8] sm:$0x1]
      %v533 = vsel %vm381, 0, %v532
      %534 = vst [vmem:[#allocation3 + $0xc8] sm:$0x1] %v533
      %v535 = vld [vmem:[#allocation3 + $0xd8] sm:$0x1]
      %v536 = vsel %vm381, 0, %v535
      %537 = vst [vmem:[#allocation3 + $0xd8] sm:$0x1] %v536
      %v538 = vld [vmem:[#allocation3 + $0xe8] sm:$0x1]
      %v539 = vsel %vm381, 0, %v538
      %540 = vst [vmem:[#allocation3 + $0xe8] sm:$0x1] %v539
      %v541 = vld [vmem:[#allocation3 + $0xf8] sm:$0x1]
      %v542 = vsel %vm381, 0, %v541
      %543 = vst [vmem:[#allocation3 + $0xf8] sm:$0x1] %v542
      %v544 = vld [vmem:[#allocation3 + $0x108] sm:$0x1]
      %v545 = vsel %vm381, 0, %v544
      %546 = vst [vmem:[#allocation3 + $0x108] sm:$0x1] %v545
      %v547 = vld [vmem:[#allocation3 + $0x118] sm:$0x1]
      %v548 = vsel %vm381, 0, %v547
      %549 = vst [vmem:[#allocation3 + $0x118] sm:$0x1] %v548
      %v550 = vld [vmem:[%s2] sm:$0x1]
      loop: start=0, step=1, limit=3
      $region49: #{generator_forward.1} parent=47 // loop_pre_header
        _
      $region50: #{generator_forward.1} parent=47 // loop_header
        %s552 = sphi 0, %s556
        %p553 = scmp.ge.s32.totalorder %s552, 3
      $region51: #{generator_forward.1} parent=47 // loop_header_branch
        %555 = sbr.rel (%p553) target = $region55
      $region52: #{generator_forward.1} parent=47 // loop_body
        %s557 = smul.u32 %s552, 8
        %p558 = scmp.lt.s32.totalorder %s557, 12
        %s559 = scalar_select %p558, %s557, 12
        %s560 = smul.u32 %s559, 2
        %s561 = smul.addr %s560, 4
        %s562 = scalar_lea.vmem %s305, %s561
        %v563 = vld [vmem:[%s562] sm:$0xf]
        %v564 = vld [vmem:[%s562 + $0x4] sm:$0xf]
        %v565 = vld [vmem:[%s562 + $0x8] sm:$0xf]
        %v566 = vld [vmem:[%s562 + $0xc] sm:$0xf]
        %v567 = vld [vmem:[%s562 + $0x10] sm:$0xf]
        %v568 = vld [vmem:[%s562 + $0x14] sm:$0xf]
        %v569 = vld [vmem:[%s562 + $0x18] sm:$0xf]
        %v570 = vld [vmem:[%s562 + $0x1c] sm:$0xf]
        %v571 = vld [vmem:[%s562 + $0x20] sm:$0xf]
        %v572 = vld [vmem:[%s562 + $0x24] sm:$0xf]
        %v573 = vld [vmem:[%s562 + $0x28] sm:$0xf]
        %v574 = vld [vmem:[%s562 + $0x2c] sm:$0xf]
        %v575 = vld [vmem:[%s562 + $0x30] sm:$0xf]
        %v576 = vld [vmem:[%s562 + $0x34] sm:$0xf]
        %v577 = vld [vmem:[%s562 + $0x38] sm:$0xf]
        %v578 = vld [vmem:[%s562 + $0x3c] sm:$0xf]
        %v579 = vld [vmem:[%s1] sm:$0xf]
        %v580 = vld [vmem:[%s1 + $0x4] sm:$0xf]
        %v581 = vld [vmem:[%s1 + $0x8] sm:$0xf]
        %v582 = vld [vmem:[%s1 + $0xc] sm:$0xf]
        %v583 = vld [vmem:[%s1 + $0x10] sm:$0xf]
        %v584 = vld [vmem:[%s1 + $0x14] sm:$0xf]
        %v585 = vld [vmem:[%s1 + $0x18] sm:$0x7]
        %v587 = vperm.slane %v550, 0
        %v605 = vunpack.c.l.b16 %v563
        %v606 = vunpack.c.l.b16 %v564
        %v607 = vunpack.c.l.b16 %v565
        %v608 = vunpack.c.l.b16 %v566
        %v609 = vunpack.c.l.b16 %v567
        %v610 = vunpack.c.l.b16 %v568
        %v611 = vunpack.c.l.b16 %v569
        %v612 = vunpack.c.l.b16 %v570
        %v613 = vunpack.c.l.b16 %v571
        %v614 = vunpack.c.l.b16 %v572
        %v615 = vunpack.c.l.b16 %v573
        %v616 = vunpack.c.l.b16 %v574
        %v617 = vunpack.c.l.b16 %v575
        %v618 = vunpack.c.l.b16 %v576
        %v619 = vunpack.c.l.b16 %v577
        %v620 = vunpack.c.l.b16 %v578
        %v621 = vpack.c.b16 %v606, %v605
        %v622 = vpack.c.b16 %v608, %v607
        %v623 = vpack.c.b16 %v610, %v609
        %v624 = vpack.c.b16 %v612, %v611
        %v625 = vpack.c.b16 %v614, %v613
        %v626 = vpack.c.b16 %v616, %v615
        %v627 = vpack.c.b16 %v618, %v617
        %v628 = vpack.c.b16 %v620, %v619
        %v636 = vunpack.c.l.b16 %v579
        %v637 = vunpack.c.l.b16 %v580
        %v638 = vunpack.c.l.b16 %v581
        %v639 = vunpack.c.l.b16 %v582
        %v640 = vunpack.c.l.b16 %v583
        %v641 = vunpack.c.l.b16 %v584
        %v642 = vunpack.c.l.b16 %v585
        %v643 = vpack.c.b16 %v637, %v636
        %v644 = vpack.c.b16 %v639, %v638
        %v645 = vpack.c.b16 %v641, %v640
        %v646 = vpack.c.b16 %v642, %v642
        %vm650 = vcmask 441344
        %v652 = vsel %vm650, %v621, 0
        %v655 = vsel %vm650, %v622, 0
        %v658 = vsel %vm650, %v623, 0
        %v661 = vsel %vm650, %v624, 0
        %v664 = vsel %vm650, %v625, 0
        %v667 = vsel %vm650, %v626, 0
        %v670 = vsel %vm650, %v627, 0
        %v673 = vsel %vm650, %v628, 0
        %vm675 = vcmask 1042432
        %v677 = vsel %vm675, %v646, 0
        %679 = vmatpush.bf16.msra.mxu0 0
        %680 = vmatpush.bf16.msra.mxu0 0
        %681 = vmatpush.bf16.msra.mxu0 0
        %682 = vmatpush.bf16.msra.mxu0 0
        %683 = vmatpush.bf16.msra.mxu0 %v677
        %684 = vmatpush.bf16.msra.mxu0 %v645
        %685 = vmatpush.bf16.msra.mxu0 %v644
        %686 = vmatpush.bf16.msra.mxu0 %v643
        %687 = vmatmul.bf16.gmra.mxu0 %v652
        %v688 = vpop.f32.mrf.mxu0
        %v689 = vadd.f32 %v587, %v688
        %v690 = vpop.f32.mrf.mxu0
        %v691 = vadd.f32 %v587, %v690
        %692 = vmatmul.bf16.gmra.mxu0 %v655
        %v693 = vpop.f32.mrf.mxu0
        %v694 = vadd.f32 %v587, %v693
        %v695 = vpop.f32.mrf.mxu0
        %v696 = vadd.f32 %v587, %v695
        %697 = vmatmul.bf16.gmra.mxu0 %v658
        %v698 = vpop.f32.mrf.mxu0
        %v699 = vadd.f32 %v587, %v698
        %v700 = vpop.f32.mrf.mxu0
        %v701 = vadd.f32 %v587, %v700
        %702 = vmatmul.bf16.gmra.mxu0 %v661
        %v703 = vpop.f32.mrf.mxu0
        %v704 = vadd.f32 %v587, %v703
        %v705 = vpop.f32.mrf.mxu0
        %v706 = vadd.f32 %v587, %v705
        %707 = vmatmul.bf16.gmra.mxu0 %v664
        %v708 = vpop.f32.mrf.mxu0
        %v709 = vadd.f32 %v587, %v708
        %v710 = vpop.f32.mrf.mxu0
        %v711 = vadd.f32 %v587, %v710
        %712 = vmatmul.bf16.gmra.mxu0 %v667
        %v713 = vpop.f32.mrf.mxu0
        %v714 = vadd.f32 %v587, %v713
        %v715 = vpop.f32.mrf.mxu0
        %v716 = vadd.f32 %v587, %v715
        %717 = vmatmul.bf16.gmra.mxu0 %v670
        %v718 = vpop.f32.mrf.mxu0
        %v719 = vadd.f32 %v587, %v718
        %v720 = vpop.f32.mrf.mxu0
        %v721 = vadd.f32 %v587, %v720
        %722 = vmatmul.bf16.gmra.mxu0 %v673
        %v723 = vpop.f32.mrf.mxu0
        %v724 = vadd.f32 %v587, %v723
        %v725 = vpop.f32.mrf.mxu0
        %v726 = vadd.f32 %v587, %v725
        %727 = vdwg.mxu0
        %v728 = vmax.f32 %v689, 0.0
        %v729 = vmax.f32 %v691, 0.0
        %v730 = vmax.f32 %v694, 0.0
        %v731 = vmax.f32 %v696, 0.0
        %v732 = vmax.f32 %v699, 0.0
        %v733 = vmax.f32 %v701, 0.0
        %v734 = vmax.f32 %v704, 0.0
        %v735 = vmax.f32 %v706, 0.0
        %v736 = vmax.f32 %v709, 0.0
        %v737 = vmax.f32 %v711, 0.0
        %v738 = vmax.f32 %v714, 0.0
        %v739 = vmax.f32 %v716, 0.0
        %v740 = vmax.f32 %v719, 0.0
        %v741 = vmax.f32 %v721, 0.0
        %v742 = vmax.f32 %v724, 0.0
        %v743 = vmax.f32 %v726, 0.0
        %v744 = vpack.c.bf16 %v728, %v728
        %v745 = vpack.c.bf16 %v729, %v729
        %v746 = vpack.c.bf16 %v730, %v730
        %v747 = vpack.c.bf16 %v731, %v731
        %v748 = vpack.c.bf16 %v732, %v732
        %v749 = vpack.c.bf16 %v733, %v733
        %v750 = vpack.c.bf16 %v734, %v734
        %v751 = vpack.c.bf16 %v735, %v735
        %v752 = vpack.c.bf16 %v736, %v736
        %v753 = vpack.c.bf16 %v737, %v737
        %v754 = vpack.c.bf16 %v738, %v738
        %v755 = vpack.c.bf16 %v739, %v739
        %v756 = vpack.c.bf16 %v740, %v740
        %v757 = vpack.c.bf16 %v741, %v741
        %v758 = vpack.c.bf16 %v742, %v742
        %v759 = vpack.c.bf16 %v743, %v743
        %vm760 = vsmask.f32 4368
        %vm761 = vmor %vm318, %vm760
        %v763 = vshrl.u32 %v744, 16
        %v765 = vrot.slane %v763, 7
        %v766 = vshll.u32 %v744, 16
        %v768 = vor.u32 %v765, %v766
        %v769 = vrot.slane %v765, 4
        %v771 = vshrl.u32 %v745, 16
        %v773 = vrot.slane %v771, 7
        %v774 = vshll.u32 %v745, 16
        %v776 = vor.u32 %v773, %v774
        %v777 = vsel %vm761, %v769, %v776
        %v778 = vrot.slane %v773, 4
        %v780 = vshrl.u32 %v746, 16
        %v782 = vrot.slane %v780, 7
        %v783 = vshll.u32 %v746, 16
        %v785 = vor.u32 %v782, %v783
        %v786 = vrot.slane %v782, 4
        %v788 = vshrl.u32 %v747, 16
        %v790 = vrot.slane %v788, 7
        %v791 = vshll.u32 %v747, 16
        %v793 = vor.u32 %v790, %v791
        %v794 = vsel %vm761, %v786, %v793
        %v795 = vrot.slane %v790, 4
        %v797 = vshrl.u32 %v748, 16
        %v799 = vrot.slane %v797, 7
        %v800 = vshll.u32 %v748, 16
        %v802 = vor.u32 %v799, %v800
        %v803 = vrot.slane %v799, 4
        %v805 = vshrl.u32 %v749, 16
        %v807 = vrot.slane %v805, 7
        %v808 = vshll.u32 %v749, 16
        %v810 = vor.u32 %v807, %v808
        %v811 = vsel %vm761, %v803, %v810
        %v812 = vrot.slane %v807, 4
        %v814 = vshrl.u32 %v750, 16
        %v816 = vrot.slane %v814, 7
        %v817 = vshll.u32 %v750, 16
        %v819 = vor.u32 %v816, %v817
        %v820 = vrot.slane %v816, 4
        %v822 = vshrl.u32 %v751, 16
        %v824 = vrot.slane %v822, 7
        %v825 = vshll.u32 %v751, 16
        %v827 = vor.u32 %v824, %v825
        %v828 = vsel %vm761, %v820, %v827
        %v829 = vrot.slane %v824, 4
        %v831 = vshrl.u32 %v752, 16
        %v833 = vrot.slane %v831, 7
        %v834 = vshll.u32 %v752, 16
        %v836 = vor.u32 %v833, %v834
        %v837 = vrot.slane %v833, 4
        %v839 = vshrl.u32 %v753, 16
        %v841 = vrot.slane %v839, 7
        %v842 = vshll.u32 %v753, 16
        %v844 = vor.u32 %v841, %v842
        %v845 = vsel %vm761, %v837, %v844
        %v846 = vrot.slane %v841, 4
        %v848 = vshrl.u32 %v754, 16
        %v850 = vrot.slane %v848, 7
        %v851 = vshll.u32 %v754, 16
        %v853 = vor.u32 %v850, %v851
        %v854 = vrot.slane %v850, 4
        %v856 = vshrl.u32 %v755, 16
        %v858 = vrot.slane %v856, 7
        %v859 = vshll.u32 %v755, 16
        %v861 = vor.u32 %v858, %v859
        %v862 = vsel %vm761, %v854, %v861
        %v863 = vrot.slane %v858, 4
        %v865 = vshrl.u32 %v756, 16
        %v867 = vrot.slane %v865, 7
        %v868 = vshll.u32 %v756, 16
        %v870 = vor.u32 %v867, %v868
        %v871 = vrot.slane %v867, 4
        %v873 = vshrl.u32 %v757, 16
        %v875 = vrot.slane %v873, 7
        %v876 = vshll.u32 %v757, 16
        %v878 = vor.u32 %v875, %v876
        %v879 = vsel %vm761, %v871, %v878
        %v880 = vrot.slane %v875, 4
        %v882 = vshrl.u32 %v758, 16
        %v884 = vrot.slane %v882, 7
        %v885 = vshll.u32 %v758, 16
        %v887 = vor.u32 %v884, %v885
        %v888 = vrot.slane %v884, 4
        %v890 = vshrl.u32 %v759, 16
        %v892 = vrot.slane %v890, 7
        %v893 = vshll.u32 %v759, 16
        %v895 = vor.u32 %v892, %v893
        %v896 = vsel %vm761, %v888, %v895
        %v897 = vrot.slane %v892, 4
        %s922 = smul.u32 %s559, 4
        %s923 = smul.addr %s922, 4
        %s924 = scalar_lea.vmem [#allocation2], %s923
        %vm925 = vcmask 1043456
        %vm926 = vmand %vm925, %vm380
        %v927 = vld [vmem:[%s924] sm:$0xf]
        %v928 = vsel %vm926, %v768, %v927
        %929 = vst [vmem:[%s924] sm:$0xf] %v928
        %930 = vst [vmem:[%s924 + $0x4] sm:$0xf] %v777
        %v931 = vld [vmem:[%s924 + $0x8] sm:$0x1]
        %v932 = vsel %vm319, %v778, %v931
        %933 = vst [vmem:[%s924 + $0x8] sm:$0x1] %v932
        %v934 = vld [vmem:[%s924 + $0x10] sm:$0xf]
        %v935 = vsel %vm926, %v785, %v934
        %936 = vst [vmem:[%s924 + $0x10] sm:$0xf] %v935
        %937 = vst [vmem:[%s924 + $0x14] sm:$0xf] %v794
        %v938 = vld [vmem:[%s924 + $0x18] sm:$0x1]
        %v939 = vsel %vm319, %v795, %v938
        %940 = vst [vmem:[%s924 + $0x18] sm:$0x1] %v939
        %v941 = vld [vmem:[%s924 + $0x20] sm:$0xf]
        %v942 = vsel %vm926, %v802, %v941
        %943 = vst [vmem:[%s924 + $0x20] sm:$0xf] %v942
        %944 = vst [vmem:[%s924 + $0x24] sm:$0xf] %v811
        %v945 = vld [vmem:[%s924 + $0x28] sm:$0x1]
        %v946 = vsel %vm319, %v812, %v945
        %947 = vst [vmem:[%s924 + $0x28] sm:$0x1] %v946
        %v948 = vld [vmem:[%s924 + $0x30] sm:$0xf]
        %v949 = vsel %vm926, %v819, %v948
        %950 = vst [vmem:[%s924 + $0x30] sm:$0xf] %v949
        %951 = vst [vmem:[%s924 + $0x34] sm:$0xf] %v828
        %v952 = vld [vmem:[%s924 + $0x38] sm:$0x1]
        %v953 = vsel %vm319, %v829, %v952
        %954 = vst [vmem:[%s924 + $0x38] sm:$0x1] %v953
        %v955 = vld [vmem:[%s924 + $0x40] sm:$0xf]
        %v956 = vsel %vm926, %v836, %v955
        %957 = vst [vmem:[%s924 + $0x40] sm:$0xf] %v956
        %958 = vst [vmem:[%s924 + $0x44] sm:$0xf] %v845
        %v959 = vld [vmem:[%s924 + $0x48] sm:$0x1]
        %v960 = vsel %vm319, %v846, %v959
        %961 = vst [vmem:[%s924 + $0x48] sm:$0x1] %v960
        %v962 = vld [vmem:[%s924 + $0x50] sm:$0xf]
        %v963 = vsel %vm926, %v853, %v962
        %964 = vst [vmem:[%s924 + $0x50] sm:$0xf] %v963
        %965 = vst [vmem:[%s924 + $0x54] sm:$0xf] %v862
        %v966 = vld [vmem:[%s924 + $0x58] sm:$0x1]
        %v967 = vsel %vm319, %v863, %v966
        %968 = vst [vmem:[%s924 + $0x58] sm:$0x1] %v967
        %v969 = vld [vmem:[%s924 + $0x60] sm:$0xf]
        %v970 = vsel %vm926, %v870, %v969
        %971 = vst [vmem:[%s924 + $0x60] sm:$0xf] %v970
        %972 = vst [vmem:[%s924 + $0x64] sm:$0xf] %v879
        %v973 = vld [vmem:[%s924 + $0x68] sm:$0x1]
        %v974 = vsel %vm319, %v880, %v973
        %975 = vst [vmem:[%s924 + $0x68] sm:$0x1] %v974
        %v976 = vld [vmem:[%s924 + $0x70] sm:$0xf]
        %v977 = vsel %vm926, %v887, %v976
        %978 = vst [vmem:[%s924 + $0x70] sm:$0xf] %v977
        %979 = vst [vmem:[%s924 + $0x74] sm:$0xf] %v896
        %v980 = vld [vmem:[%s924 + $0x78] sm:$0x1]
        %v981 = vsel %vm319, %v897, %v980
        %982 = vst [vmem:[%s924 + $0x78] sm:$0x1] %v981
      $region53: #{generator_forward.1} parent=47 // loop_footer
        %s556 = sadd.s32 1, %s552
      $region54: #{generator_forward.1} parent=47 // loop_footer_branch
        %551 = sbr.rel target = $region50
      $region55: #{generator_forward.1} parent=47 // loop_exit
        _
      %p983 = scmp.eq.s32.totalorder %s23, 0
      // Predicated region
      $region56: #{generator_forward.1} parent=47 // pred_check
        %p984 = pneg %p983
      $region57: #{generator_forward.1} parent=47 // pred_check_branch
        %986 = sbr.rel (%p984) target = $region59
      $region58: #{generator_forward.1} parent=47 // pred_region
        %s987 = scalar_lea.vmem [#allocation2], 16
        %988 = vst [vmem:[%s987] sm:$0xf] 0
        %989 = vst [vmem:[%s987 + $0x4] sm:$0xf] 0
        %990 = vst [vmem:[%s987 + $0x8] sm:$0xf] 0
        %991 = vst [vmem:[%s987 + $0xc] sm:$0xf] 0
        %s992 = scalar_lea.vmem [#allocation2], 288
        %993 = vst [vmem:[%s992] sm:$0xf] 0
        %994 = vst [vmem:[%s992 + $0x4] sm:$0xf] 0
        %995 = vst [vmem:[%s992 + $0x8] sm:$0xf] 0
        %996 = vst [vmem:[%s992 + $0xc] sm:$0xf] 0
      $region59: #{generator_forward.1} parent=47 // pred_fallthru
        _
      %v997 = vld [vmem:[%s4] sm:$0x1]
      loop: start=0, step=1, limit=3
      $region60: #{generator_forward.1} parent=47 // loop_pre_header
        _
      $region61: #{generator_forward.1} parent=47 // loop_header
        %s999 = sphi 0, %s1003
        %p1000 = scmp.ge.s32.totalorder %s999, 3
      $region62: #{generator_forward.1} parent=47 // loop_header_branch
        %1002 = sbr.rel (%p1000) target = $region66
      $region63: #{generator_forward.1} parent=47 // loop_body
        %s1004 = smul.u32 %s999, 8
        %p1005 = scmp.lt.s32.totalorder %s1004, 10
        %s1006 = scalar_select %p1005, %s1004, 10
        %v1008 = vperm.slane %v997, 0
        %s1010 = smul.u32 %s1006, 4
        %s1011 = smul.addr %s1010, 4
        %s1012 = scalar_lea.vmem [#allocation2], %s1011
        %v1013 = vld [vmem:[%s1012] sm:$0xf]
        %v1014 = vld [vmem:[%s1012 + $0x4] sm:$0xf]
        %v1015 = vld [vmem:[%s1012 + $0x10] sm:$0xf]
        %v1016 = vld [vmem:[%s1012 + $0x14] sm:$0xf]
        %v1017 = vld [vmem:[%s1012 + $0x20] sm:$0xf]
        %v1018 = vld [vmem:[%s1012 + $0x24] sm:$0xf]
        %v1019 = vld [vmem:[%s1012 + $0x30] sm:$0xf]
        %v1020 = vld [vmem:[%s1012 + $0x34] sm:$0xf]
        %v1021 = vld [vmem:[%s1012 + $0x40] sm:$0xf]
        %v1022 = vld [vmem:[%s1012 + $0x44] sm:$0xf]
        %v1023 = vld [vmem:[%s1012 + $0x50] sm:$0xf]
        %v1024 = vld [vmem:[%s1012 + $0x54] sm:$0xf]
        %v1025 = vld [vmem:[%s1012 + $0x60] sm:$0xf]
        %v1026 = vld [vmem:[%s1012 + $0x64] sm:$0xf]
        %v1027 = vld [vmem:[%s1012 + $0x70] sm:$0xf]
        %v1028 = vld [vmem:[%s1012 + $0x74] sm:$0xf]
        %v1029 = vld [vmem:[%s3] sm:$0xf]
        %v1030 = vld [vmem:[%s3 + $0x4] sm:$0xf]
        %v1031 = vld [vmem:[%s3 + $0x8] sm:$0xf]
        %v1032 = vld [vmem:[%s3 + $0xc] sm:$0xf]
        %v1033 = vld [vmem:[%s3 + $0x10] sm:$0xf]
        %v1034 = vld [vmem:[%s3 + $0x14] sm:$0xf]
        %v1035 = vld [vmem:[%s3 + $0x18] sm:$0xf]
        %v1036 = vld [vmem:[%s3 + $0x1c] sm:$0xf]
        %v1037 = vld [vmem:[%s3 + $0x20] sm:$0xf]
        %v1038 = vld [vmem:[%s3 + $0x24] sm:$0xf]
        %v1039 = vld [vmem:[%s3 + $0x28] sm:$0xf]
        %v1040 = vld [vmem:[%s3 + $0x2c] sm:$0xf]
        %v1041 = vld [vmem:[%s3 + $0x30] sm:$0xf]
        %v1042 = vld [vmem:[%s3 + $0x34] sm:$0xf]
        %v1043 = vld [vmem:[%s3 + $0x38] sm:$0xf]
        %v1044 = vld [vmem:[%s3 + $0x3c] sm:$0xf]
        %v1061 = vunpack.c.l.b16 %v1013
        %v1062 = vunpack.c.l.b16 %v1014
        %v1063 = vunpack.c.l.b16 %v1015
        %v1064 = vunpack.c.l.b16 %v1016
        %v1065 = vunpack.c.l.b16 %v1017
        %v1066 = vunpack.c.l.b16 %v1018
        %v1067 = vunpack.c.l.b16 %v1019
        %v1068 = vunpack.c.l.b16 %v1020
        %v1069 = vunpack.c.l.b16 %v1021
        %v1070 = vunpack.c.l.b16 %v1022
        %v1071 = vunpack.c.l.b16 %v1023
        %v1072 = vunpack.c.l.b16 %v1024
        %v1073 = vunpack.c.l.b16 %v1025
        %v1074 = vunpack.c.l.b16 %v1026
        %v1075 = vunpack.c.l.b16 %v1027
        %v1076 = vunpack.c.l.b16 %v1028
        %v1077 = vpack.c.b16 %v1062, %v1061
        %v1078 = vpack.c.b16 %v1064, %v1063
        %v1079 = vpack.c.b16 %v1066, %v1065
        %v1080 = vpack.c.b16 %v1068, %v1067
        %v1081 = vpack.c.b16 %v1070, %v1069
        %v1082 = vpack.c.b16 %v1072, %v1071
        %v1083 = vpack.c.b16 %v1074, %v1073
        %v1084 = vpack.c.b16 %v1076, %v1075
        %v1109 = vunpack.c.l.b16 %v1029
        %v1110 = vunpack.c.l.b16 %v1030
        %v1111 = vunpack.c.l.b16 %v1031
        %v1112 = vunpack.c.l.b16 %v1032
        %v1113 = vunpack.c.l.b16 %v1033
        %v1114 = vunpack.c.l.b16 %v1034
        %v1115 = vunpack.c.l.b16 %v1035
        %v1116 = vunpack.c.l.b16 %v1036
        %v1117 = vunpack.c.l.b16 %v1037
        %v1118 = vunpack.c.l.b16 %v1038
        %v1119 = vunpack.c.l.b16 %v1039
        %v1120 = vunpack.c.l.b16 %v1040
        %v1121 = vunpack.c.l.b16 %v1041
        %v1122 = vunpack.c.l.b16 %v1042
        %v1123 = vunpack.c.l.b16 %v1043
        %v1124 = vunpack.c.l.b16 %v1044
        %v1125 = vpack.c.b16 %v1110, %v1109
        %v1126 = vpack.c.b16 %v1112, %v1111
        %v1127 = vpack.c.b16 %v1114, %v1113
        %v1128 = vpack.c.b16 %v1116, %v1115
        %v1129 = vpack.c.b16 %v1118, %v1117
        %v1130 = vpack.c.b16 %v1120, %v1119
        %v1131 = vpack.c.b16 %v1122, %v1121
        %v1132 = vpack.c.b16 %v1124, %v1123
        %1141 = vmatpush.bf16.msra.mxu0 %v1132
        %1142 = vmatpush.bf16.msra.mxu0 %v1131
        %1143 = vmatpush.bf16.msra.mxu0 %v1130
        %1144 = vmatpush.bf16.msra.mxu0 %v1129
        %1145 = vmatpush.bf16.msra.mxu0 %v1128
        %1146 = vmatpush.bf16.msra.mxu0 %v1127
        %1147 = vmatpush.bf16.msra.mxu0 %v1126
        %1148 = vmatpush.bf16.msra.mxu0 %v1125
        %1149 = vmatmul.bf16.gmra.mxu0 %v1077
        %v1150 = vpop.f32.mrf.mxu0
        %v1151 = vadd.f32 0.0, %v1150
        %v1152 = vpop.f32.mrf.mxu0
        %v1153 = vadd.f32 0.0, %v1152
        %1154 = vmatmul.bf16.gmra.mxu0 %v1078
        %v1155 = vpop.f32.mrf.mxu0
        %v1156 = vadd.f32 0.0, %v1155
        %v1157 = vpop.f32.mrf.mxu0
        %v1158 = vadd.f32 0.0, %v1157
        %1159 = vmatmul.bf16.gmra.mxu0 %v1079
        %v1160 = vpop.f32.mrf.mxu0
        %v1161 = vadd.f32 0.0, %v1160
        %v1162 = vpop.f32.mrf.mxu0
        %v1163 = vadd.f32 0.0, %v1162
        %1164 = vmatmul.bf16.gmra.mxu0 %v1080
        %v1165 = vpop.f32.mrf.mxu0
        %v1166 = vadd.f32 0.0, %v1165
        %v1167 = vpop.f32.mrf.mxu0
        %v1168 = vadd.f32 0.0, %v1167
        %1169 = vmatmul.bf16.gmra.mxu0 %v1081
        %v1170 = vpop.f32.mrf.mxu0
        %v1171 = vadd.f32 0.0, %v1170
        %v1172 = vpop.f32.mrf.mxu0
        %v1173 = vadd.f32 0.0, %v1172
        %1174 = vmatmul.bf16.gmra.mxu0 %v1082
        %v1175 = vpop.f32.mrf.mxu0
        %v1176 = vadd.f32 0.0, %v1175
        %v1177 = vpop.f32.mrf.mxu0
        %v1178 = vadd.f32 0.0, %v1177
        %1179 = vmatmul.bf16.gmra.mxu0 %v1083
        %v1180 = vpop.f32.mrf.mxu0
        %v1181 = vadd.f32 0.0, %v1180
        %v1182 = vpop.f32.mrf.mxu0
        %v1183 = vadd.f32 0.0, %v1182
        %1184 = vmatmul.bf16.gmra.mxu0 %v1084
        %v1185 = vpop.f32.mrf.mxu0
        %v1186 = vadd.f32 0.0, %v1185
        %v1187 = vpop.f32.mrf.mxu0
        %v1188 = vadd.f32 0.0, %v1187
        %1189 = vdwg.mxu0
        %v1190 = vadd.f32 %v1008, %v1151
        %v1191 = vadd.f32 %v1008, %v1153
        %v1192 = vadd.f32 %v1008, %v1156
        %v1193 = vadd.f32 %v1008, %v1158
        %v1194 = vadd.f32 %v1008, %v1161
        %v1195 = vadd.f32 %v1008, %v1163
        %v1196 = vadd.f32 %v1008, %v1166
        %v1197 = vadd.f32 %v1008, %v1168
        %v1198 = vadd.f32 %v1008, %v1171
        %v1199 = vadd.f32 %v1008, %v1173
        %v1200 = vadd.f32 %v1008, %v1176
        %v1201 = vadd.f32 %v1008, %v1178
        %v1202 = vadd.f32 %v1008, %v1181
        %v1203 = vadd.f32 %v1008, %v1183
        %v1204 = vadd.f32 %v1008, %v1186
        %v1205 = vadd.f32 %v1008, %v1188
        %v1206 = vld [vmem:[%s1012] sm:$0xf]
        %v1207 = vld [vmem:[%s1012 + $0x4] sm:$0xf]
        %v1208 = vld [vmem:[%s1012 + $0x8] sm:$0x1]
        %v1209 = vld [vmem:[%s1012 + $0x10] sm:$0xf]
        %v1210 = vld [vmem:[%s1012 + $0x14] sm:$0xf]
        %v1211 = vld [vmem:[%s1012 + $0x18] sm:$0x1]
        %v1212 = vld [vmem:[%s1012 + $0x20] sm:$0xf]
        %v1213 = vld [vmem:[%s1012 + $0x24] sm:$0xf]
        %v1214 = vld [vmem:[%s1012 + $0x28] sm:$0x1]
        %v1215 = vld [vmem:[%s1012 + $0x30] sm:$0xf]
        %v1216 = vld [vmem:[%s1012 + $0x34] sm:$0xf]
        %v1217 = vld [vmem:[%s1012 + $0x38] sm:$0x1]
        %v1218 = vld [vmem:[%s1012 + $0x40] sm:$0xf]
        %v1219 = vld [vmem:[%s1012 + $0x44] sm:$0xf]
        %v1220 = vld [vmem:[%s1012 + $0x48] sm:$0x1]
        %v1221 = vld [vmem:[%s1012 + $0x50] sm:$0xf]
        %v1222 = vld [vmem:[%s1012 + $0x54] sm:$0xf]
        %v1223 = vld [vmem:[%s1012 + $0x58] sm:$0x1]
        %v1224 = vld [vmem:[%s1012 + $0x60] sm:$0xf]
        %v1225 = vld [vmem:[%s1012 + $0x64] sm:$0xf]
        %v1226 = vld [vmem:[%s1012 + $0x68] sm:$0x1]
        %v1227 = vld [vmem:[%s1012 + $0x70] sm:$0xf]
        %v1228 = vld [vmem:[%s1012 + $0x74] sm:$0xf]
        %v1229 = vld [vmem:[%s1012 + $0x78] sm:$0x1]
        %vm1230 = vsmask.f32 3328
        %vm1231 = vsmask.f32 7440
        %vm1232 = vmor %vm1230, %vm1231
        %v1234 = vshrl.u32 %v1206, 16
        %v1236 = vrot.slane %v1234, 4
        %v1237 = vshll.u32 %v1206, 16
        %v1239 = vrot.slane %v1237, 5
        %v1240 = vor.u32 %v1236, %v1239
        %v1241 = vrot.slane %v1240, 4
        %v1243 = vshll.u32 %v1207, 16
        %v1245 = vrot.slane %v1243, 5
        %v1246 = vsel %vm1232, %v1241, %v1245
        %v1247 = vshrl.u32 %v1207, 16
        %v1249 = vrot.slane %v1247, 4
        %v1250 = vor.u32 %v1249, %v1245
        %v1251 = vrot.slane %v1250, 4
        %v1253 = vshll.u32 %v1208, 16
        %v1255 = vrot.slane %v1253, 5
        %v1256 = vsel %vm1232, %v1251, %v1255
        %v1258 = vshrl.u32 %v1209, 16
        %v1260 = vrot.slane %v1258, 4
        %v1261 = vshll.u32 %v1209, 16
        %v1263 = vrot.slane %v1261, 5
        %v1264 = vor.u32 %v1260, %v1263
        %v1265 = vrot.slane %v1264, 4
        %v1267 = vshll.u32 %v1210, 16
        %v1269 = vrot.slane %v1267, 5
        %v1270 = vsel %vm1232, %v1265, %v1269
        %v1271 = vshrl.u32 %v1210, 16
        %v1273 = vrot.slane %v1271, 4
        %v1274 = vor.u32 %v1273, %v1269
        %v1275 = vrot.slane %v1274, 4
        %v1277 = vshll.u32 %v1211, 16
        %v1279 = vrot.slane %v1277, 5
        %v1280 = vsel %vm1232, %v1275, %v1279
        %v1282 = vshrl.u32 %v1212, 16
        %v1284 = vrot.slane %v1282, 4
        %v1285 = vshll.u32 %v1212, 16
        %v1287 = vrot.slane %v1285, 5
        %v1288 = vor.u32 %v1284, %v1287
        %v1289 = vrot.slane %v1288, 4
        %v1291 = vshll.u32 %v1213, 16
        %v1293 = vrot.slane %v1291, 5
        %v1294 = vsel %vm1232, %v1289, %v1293
        %v1295 = vshrl.u32 %v1213, 16
        %v1297 = vrot.slane %v1295, 4
        %v1298 = vor.u32 %v1297, %v1293
        %v1299 = vrot.slane %v1298, 4
        %v1301 = vshll.u32 %v1214, 16
        %v1303 = vrot.slane %v1301, 5
        %v1304 = vsel %vm1232, %v1299, %v1303
        %v1306 = vshrl.u32 %v1215, 16
        %v1308 = vrot.slane %v1306, 4
        %v1309 = vshll.u32 %v1215, 16
        %v1311 = vrot.slane %v1309, 5
        %v1312 = vor.u32 %v1308, %v1311
        %v1313 = vrot.slane %v1312, 4
        %v1315 = vshll.u32 %v1216, 16
        %v1317 = vrot.slane %v1315, 5
        %v1318 = vsel %vm1232, %v1313, %v1317
        %v1319 = vshrl.u32 %v1216, 16
        %v1321 = vrot.slane %v1319, 4
        %v1322 = vor.u32 %v1321, %v1317
        %v1323 = vrot.slane %v1322, 4
        %v1325 = vshll.u32 %v1217, 16
        %v1327 = vrot.slane %v1325, 5
        %v1328 = vsel %vm1232, %v1323, %v1327
        %v1330 = vshrl.u32 %v1218, 16
        %v1332 = vrot.slane %v1330, 4
        %v1333 = vshll.u32 %v1218, 16
        %v1335 = vrot.slane %v1333, 5
        %v1336 = vor.u32 %v1332, %v1335
        %v1337 = vrot.slane %v1336, 4
        %v1339 = vshll.u32 %v1219, 16
        %v1341 = vrot.slane %v1339, 5
        %v1342 = vsel %vm1232, %v1337, %v1341
        %v1343 = vshrl.u32 %v1219, 16
        %v1345 = vrot.slane %v1343, 4
        %v1346 = vor.u32 %v1345, %v1341
        %v1347 = vrot.slane %v1346, 4
        %v1349 = vshll.u32 %v1220, 16
        %v1351 = vrot.slane %v1349, 5
        %v1352 = vsel %vm1232, %v1347, %v1351
        %v1354 = vshrl.u32 %v1221, 16
        %v1356 = vrot.slane %v1354, 4
        %v1357 = vshll.u32 %v1221, 16
        %v1359 = vrot.slane %v1357, 5
        %v1360 = vor.u32 %v1356, %v1359
        %v1361 = vrot.slane %v1360, 4
        %v1363 = vshll.u32 %v1222, 16
        %v1365 = vrot.slane %v1363, 5
        %v1366 = vsel %vm1232, %v1361, %v1365
        %v1367 = vshrl.u32 %v1222, 16
        %v1369 = vrot.slane %v1367, 4
        %v1370 = vor.u32 %v1369, %v1365
        %v1371 = vrot.slane %v1370, 4
        %v1373 = vshll.u32 %v1223, 16
        %v1375 = vrot.slane %v1373, 5
        %v1376 = vsel %vm1232, %v1371, %v1375
        %v1378 = vshrl.u32 %v1224, 16
        %v1380 = vrot.slane %v1378, 4
        %v1381 = vshll.u32 %v1224, 16
        %v1383 = vrot.slane %v1381, 5
        %v1384 = vor.u32 %v1380, %v1383
        %v1385 = vrot.slane %v1384, 4
        %v1387 = vshll.u32 %v1225, 16
        %v1389 = vrot.slane %v1387, 5
        %v1390 = vsel %vm1232, %v1385, %v1389
        %v1391 = vshrl.u32 %v1225, 16
        %v1393 = vrot.slane %v1391, 4
        %v1394 = vor.u32 %v1393, %v1389
        %v1395 = vrot.slane %v1394, 4
        %v1397 = vshll.u32 %v1226, 16
        %v1399 = vrot.slane %v1397, 5
        %v1400 = vsel %vm1232, %v1395, %v1399
        %v1402 = vshrl.u32 %v1227, 16
        %v1404 = vrot.slane %v1402, 4
        %v1405 = vshll.u32 %v1227, 16
        %v1407 = vrot.slane %v1405, 5
        %v1408 = vor.u32 %v1404, %v1407
        %v1409 = vrot.slane %v1408, 4
        %v1411 = vshll.u32 %v1228, 16
        %v1413 = vrot.slane %v1411, 5
        %v1414 = vsel %vm1232, %v1409, %v1413
        %v1415 = vshrl.u32 %v1228, 16
        %v1417 = vrot.slane %v1415, 4
        %v1418 = vor.u32 %v1417, %v1413
        %v1419 = vrot.slane %v1418, 4
        %v1421 = vshll.u32 %v1229, 16
        %v1423 = vrot.slane %v1421, 5
        %v1424 = vsel %vm1232, %v1419, %v1423
        %s1425 = scalar_lea.vmem %s3, 64
        %v1426 = vld [vmem:[%s1425] sm:$0xf]
        %v1427 = vld [vmem:[%s1425 + $0x4] sm:$0xf]
        %v1428 = vld [vmem:[%s1425 + $0x8] sm:$0xf]
        %v1429 = vld [vmem:[%s1425 + $0xc] sm:$0xf]
        %v1430 = vld [vmem:[%s1425 + $0x10] sm:$0xf]
        %v1431 = vld [vmem:[%s1425 + $0x14] sm:$0xf]
        %v1432 = vld [vmem:[%s1425 + $0x18] sm:$0xf]
        %v1433 = vld [vmem:[%s1425 + $0x1c] sm:$0xf]
        %v1434 = vld [vmem:[%s1425 + $0x20] sm:$0xf]
        %v1435 = vld [vmem:[%s1425 + $0x24] sm:$0xf]
        %v1436 = vld [vmem:[%s1425 + $0x28] sm:$0xf]
        %v1437 = vld [vmem:[%s1425 + $0x2c] sm:$0xf]
        %v1438 = vld [vmem:[%s1425 + $0x30] sm:$0xf]
        %v1439 = vld [vmem:[%s1425 + $0x34] sm:$0xf]
        %v1440 = vld [vmem:[%s1425 + $0x38] sm:$0xf]
        %v1441 = vld [vmem:[%s1425 + $0x3c] sm:$0xf]
        %v1442 = vunpack.c.l.b16 %v1246
        %v1443 = vunpack.c.l.b16 %v1256
        %v1444 = vunpack.c.l.b16 %v1270
        %v1445 = vunpack.c.l.b16 %v1280
        %v1446 = vunpack.c.l.b16 %v1294
        %v1447 = vunpack.c.l.b16 %v1304
        %v1448 = vunpack.c.l.b16 %v1318
        %v1449 = vunpack.c.l.b16 %v1328
        %v1450 = vunpack.c.l.b16 %v1342
        %v1451 = vunpack.c.l.b16 %v1352
        %v1452 = vunpack.c.l.b16 %v1366
        %v1453 = vunpack.c.l.b16 %v1376
        %v1454 = vunpack.c.l.b16 %v1390
        %v1455 = vunpack.c.l.b16 %v1400
        %v1456 = vunpack.c.l.b16 %v1414
        %v1457 = vunpack.c.l.b16 %v1424
        %v1458 = vpack.c.b16 %v1443, %v1442
        %v1459 = vpack.c.b16 %v1445, %v1444
        %v1460 = vpack.c.b16 %v1447, %v1446
        %v1461 = vpack.c.b16 %v1449, %v1448
        %v1462 = vpack.c.b16 %v1451, %v1450
        %v1463 = vpack.c.b16 %v1453, %v1452
        %v1464 = vpack.c.b16 %v1455, %v1454
        %v1465 = vpack.c.b16 %v1457, %v1456
        %v1490 = vunpack.c.l.b16 %v1426
        %v1491 = vunpack.c.l.b16 %v1427
        %v1492 = vunpack.c.l.b16 %v1428
        %v1493 = vunpack.c.l.b16 %v1429
        %v1494 = vunpack.c.l.b16 %v1430
        %v1495 = vunpack.c.l.b16 %v1431
        %v1496 = vunpack.c.l.b16 %v1432
        %v1497 = vunpack.c.l.b16 %v1433
        %v1498 = vunpack.c.l.b16 %v1434
        %v1499 = vunpack.c.l.b16 %v1435
        %v1500 = vunpack.c.l.b16 %v1436
        %v1501 = vunpack.c.l.b16 %v1437
        %v1502 = vunpack.c.l.b16 %v1438
        %v1503 = vunpack.c.l.b16 %v1439
        %v1504 = vunpack.c.l.b16 %v1440
        %v1505 = vunpack.c.l.b16 %v1441
        %v1506 = vpack.c.b16 %v1491, %v1490
        %v1507 = vpack.c.b16 %v1493, %v1492
        %v1508 = vpack.c.b16 %v1495, %v1494
        %v1509 = vpack.c.b16 %v1497, %v1496
        %v1510 = vpack.c.b16 %v1499, %v1498
        %v1511 = vpack.c.b16 %v1501, %v1500
        %v1512 = vpack.c.b16 %v1503, %v1502
        %v1513 = vpack.c.b16 %v1505, %v1504
        %1522 = vmatpush.bf16.msra.mxu0 %v1513
        %1523 = vmatpush.bf16.msra.mxu0 %v1512
        %1524 = vmatpush.bf16.msra.mxu0 %v1511
        %1525 = vmatpush.bf16.msra.mxu0 %v1510
        %1526 = vmatpush.bf16.msra.mxu0 %v1509
        %1527 = vmatpush.bf16.msra.mxu0 %v1508
        %1528 = vmatpush.bf16.msra.mxu0 %v1507
        %1529 = vmatpush.bf16.msra.mxu0 %v1506
        %1530 = vmatmul.bf16.gmra.mxu0 %v1458
        %v1531 = vpop.f32.mrf.mxu0
        %v1532 = vadd.f32 0.0, %v1531
        %v1533 = vpop.f32.mrf.mxu0
        %v1534 = vadd.f32 0.0, %v1533
        %1535 = vmatmul.bf16.gmra.mxu0 %v1459
        %v1536 = vpop.f32.mrf.mxu0
        %v1537 = vadd.f32 0.0, %v1536
        %v1538 = vpop.f32.mrf.mxu0
        %v1539 = vadd.f32 0.0, %v1538
        %1540 = vmatmul.bf16.gmra.mxu0 %v1460
        %v1541 = vpop.f32.mrf.mxu0
        %v1542 = vadd.f32 0.0, %v1541
        %v1543 = vpop.f32.mrf.mxu0
        %v1544 = vadd.f32 0.0, %v1543
        %1545 = vmatmul.bf16.gmra.mxu0 %v1461
        %v1546 = vpop.f32.mrf.mxu0
        %v1547 = vadd.f32 0.0, %v1546
        %v1548 = vpop.f32.mrf.mxu0
        %v1549 = vadd.f32 0.0, %v1548
        %1550 = vmatmul.bf16.gmra.mxu0 %v1462
        %v1551 = vpop.f32.mrf.mxu0
        %v1552 = vadd.f32 0.0, %v1551
        %v1553 = vpop.f32.mrf.mxu0
        %v1554 = vadd.f32 0.0, %v1553
        %1555 = vmatmul.bf16.gmra.mxu0 %v1463
        %v1556 = vpop.f32.mrf.mxu0
        %v1557 = vadd.f32 0.0, %v1556
        %v1558 = vpop.f32.mrf.mxu0
        %v1559 = vadd.f32 0.0, %v1558
        %1560 = vmatmul.bf16.gmra.mxu0 %v1464
        %v1561 = vpop.f32.mrf.mxu0
        %v1562 = vadd.f32 0.0, %v1561
        %v1563 = vpop.f32.mrf.mxu0
        %v1564 = vadd.f32 0.0, %v1563
        %1565 = vmatmul.bf16.gmra.mxu0 %v1465
        %v1566 = vpop.f32.mrf.mxu0
        %v1567 = vadd.f32 0.0, %v1566
        %v1568 = vpop.f32.mrf.mxu0
        %v1569 = vadd.f32 0.0, %v1568
        %1570 = vdwg.mxu0
        %v1571 = vadd.f32 %v1190, %v1532
        %v1572 = vadd.f32 %v1191, %v1534
        %v1573 = vadd.f32 %v1192, %v1537
        %v1574 = vadd.f32 %v1193, %v1539
        %v1575 = vadd.f32 %v1194, %v1542
        %v1576 = vadd.f32 %v1195, %v1544
        %v1577 = vadd.f32 %v1196, %v1547
        %v1578 = vadd.f32 %v1197, %v1549
        %v1579 = vadd.f32 %v1198, %v1552
        %v1580 = vadd.f32 %v1199, %v1554
        %v1581 = vadd.f32 %v1200, %v1557
        %v1582 = vadd.f32 %v1201, %v1559
        %v1583 = vadd.f32 %v1202, %v1562
        %v1584 = vadd.f32 %v1203, %v1564
        %v1585 = vadd.f32 %v1204, %v1567
        %v1586 = vadd.f32 %v1205, %v1569
        %v1587 = vld [vmem:[%s1012] sm:$0xe]
        %v1588 = vld [vmem:[%s1012 + $0x10] sm:$0xe]
        %v1589 = vld [vmem:[%s1012 + $0x20] sm:$0xe]
        %v1590 = vld [vmem:[%s1012 + $0x30] sm:$0xe]
        %v1591 = vld [vmem:[%s1012 + $0x40] sm:$0xe]
        %v1592 = vld [vmem:[%s1012 + $0x50] sm:$0xe]
        %v1593 = vld [vmem:[%s1012 + $0x60] sm:$0xe]
        %v1594 = vld [vmem:[%s1012 + $0x70] sm:$0xe]
        %vm1619 = vcmask 1042432
        %vm1620 = vcmask 1046532
        %vm1621 = vmor %vm1619, %vm1620
        %v1622 = vrot.slane %v1587, 5
        %v1623 = vrot.slane %v1622, 4
        %v1624 = vrot.slane %v1207, 5
        %v1625 = vsel %vm1621, %v1623, %v1624
        %v1626 = vrot.slane %v1624, 4
        %v1627 = vrot.slane %v1208, 5
        %v1628 = vsel %vm1621, %v1626, %v1627
        %v1629 = vrot.slane %v1588, 5
        %v1630 = vrot.slane %v1629, 4
        %v1631 = vrot.slane %v1210, 5
        %v1632 = vsel %vm1621, %v1630, %v1631
        %v1633 = vrot.slane %v1631, 4
        %v1634 = vrot.slane %v1211, 5
        %v1635 = vsel %vm1621, %v1633, %v1634
        %v1636 = vrot.slane %v1589, 5
        %v1637 = vrot.slane %v1636, 4
        %v1638 = vrot.slane %v1213, 5
        %v1639 = vsel %vm1621, %v1637, %v1638
        %v1640 = vrot.slane %v1638, 4
        %v1641 = vrot.slane %v1214, 5
        %v1642 = vsel %vm1621, %v1640, %v1641
        %v1643 = vrot.slane %v1590, 5
        %v1644 = vrot.slane %v1643, 4
        %v1645 = vrot.slane %v1216, 5
        %v1646 = vsel %vm1621, %v1644, %v1645
        %v1647 = vrot.slane %v1645, 4
        %v1648 = vrot.slane %v1217, 5
        %v1649 = vsel %vm1621, %v1647, %v1648
        %v1650 = vrot.slane %v1591, 5
        %v1651 = vrot.slane %v1650, 4
        %v1652 = vrot.slane %v1219, 5
        %v1653 = vsel %vm1621, %v1651, %v1652
        %v1654 = vrot.slane %v1652, 4
        %v1655 = vrot.slane %v1220, 5
        %v1656 = vsel %vm1621, %v1654, %v1655
        %v1657 = vrot.slane %v1592, 5
        %v1658 = vrot.slane %v1657, 4
        %v1659 = vrot.slane %v1222, 5
        %v1660 = vsel %vm1621, %v1658, %v1659
        %v1661 = vrot.slane %v1659, 4
        %v1662 = vrot.slane %v1223, 5
        %v1663 = vsel %vm1621, %v1661, %v1662
        %v1664 = vrot.slane %v1593, 5
        %v1665 = vrot.slane %v1664, 4
        %v1666 = vrot.slane %v1225, 5
        %v1667 = vsel %vm1621, %v1665, %v1666
        %v1668 = vrot.slane %v1666, 4
        %v1669 = vrot.slane %v1226, 5
        %v1670 = vsel %vm1621, %v1668, %v1669
        %v1671 = vrot.slane %v1594, 5
        %v1672 = vrot.slane %v1671, 4
        %v1673 = vrot.slane %v1228, 5
        %v1674 = vsel %vm1621, %v1672, %v1673
        %v1675 = vrot.slane %v1673, 4
        %v1676 = vrot.slane %v1229, 5
        %v1677 = vsel %vm1621, %v1675, %v1676
        %s1678 = scalar_lea.vmem %s3, 128
        %v1679 = vld [vmem:[%s1678] sm:$0xf]
        %v1680 = vld [vmem:[%s1678 + $0x4] sm:$0xf]
        %v1681 = vld [vmem:[%s1678 + $0x8] sm:$0xf]
        %v1682 = vld [vmem:[%s1678 + $0xc] sm:$0xf]
        %v1683 = vld [vmem:[%s1678 + $0x10] sm:$0xf]
        %v1684 = vld [vmem:[%s1678 + $0x14] sm:$0xf]
        %v1685 = vld [vmem:[%s1678 + $0x18] sm:$0xf]
        %v1686 = vld [vmem:[%s1678 + $0x1c] sm:$0xf]
        %v1687 = vld [vmem:[%s1678 + $0x20] sm:$0xf]
        %v1688 = vld [vmem:[%s1678 + $0x24] sm:$0xf]
        %v1689 = vld [vmem:[%s1678 + $0x28] sm:$0xf]
        %v1690 = vld [vmem:[%s1678 + $0x2c] sm:$0xf]
        %v1691 = vld [vmem:[%s1678 + $0x30] sm:$0xf]
        %v1692 = vld [vmem:[%s1678 + $0x34] sm:$0xf]
        %v1693 = vld [vmem:[%s1678 + $0x38] sm:$0xf]
        %v1694 = vld [vmem:[%s1678 + $0x3c] sm:$0xf]
        %v1695 = vunpack.c.l.b16 %v1625
        %v1696 = vunpack.c.l.b16 %v1628
        %v1697 = vunpack.c.l.b16 %v1632
        %v1698 = vunpack.c.l.b16 %v1635
        %v1699 = vunpack.c.l.b16 %v1639
        %v1700 = vunpack.c.l.b16 %v1642
        %v1701 = vunpack.c.l.b16 %v1646
        %v1702 = vunpack.c.l.b16 %v1649
        %v1703 = vunpack.c.l.b16 %v1653
        %v1704 = vunpack.c.l.b16 %v1656
        %v1705 = vunpack.c.l.b16 %v1660
        %v1706 = vunpack.c.l.b16 %v1663
        %v1707 = vunpack.c.l.b16 %v1667
        %v1708 = vunpack.c.l.b16 %v1670
        %v1709 = vunpack.c.l.b16 %v1674
        %v1710 = vunpack.c.l.b16 %v1677
        %v1711 = vpack.c.b16 %v1696, %v1695
        %v1712 = vpack.c.b16 %v1698, %v1697
        %v1713 = vpack.c.b16 %v1700, %v1699
        %v1714 = vpack.c.b16 %v1702, %v1701
        %v1715 = vpack.c.b16 %v1704, %v1703
        %v1716 = vpack.c.b16 %v1706, %v1705
        %v1717 = vpack.c.b16 %v1708, %v1707
        %v1718 = vpack.c.b16 %v1710, %v1709
        %v1743 = vunpack.c.l.b16 %v1679
        %v1744 = vunpack.c.l.b16 %v1680
        %v1745 = vunpack.c.l.b16 %v1681
        %v1746 = vunpack.c.l.b16 %v1682
        %v1747 = vunpack.c.l.b16 %v1683
        %v1748 = vunpack.c.l.b16 %v1684
        %v1749 = vunpack.c.l.b16 %v1685
        %v1750 = vunpack.c.l.b16 %v1686
        %v1751 = vunpack.c.l.b16 %v1687
        %v1752 = vunpack.c.l.b16 %v1688
        %v1753 = vunpack.c.l.b16 %v1689
        %v1754 = vunpack.c.l.b16 %v1690
        %v1755 = vunpack.c.l.b16 %v1691
        %v1756 = vunpack.c.l.b16 %v1692
        %v1757 = vunpack.c.l.b16 %v1693
        %v1758 = vunpack.c.l.b16 %v1694
        %v1759 = vpack.c.b16 %v1744, %v1743
        %v1760 = vpack.c.b16 %v1746, %v1745
        %v1761 = vpack.c.b16 %v1748, %v1747
        %v1762 = vpack.c.b16 %v1750, %v1749
        %v1763 = vpack.c.b16 %v1752, %v1751
        %v1764 = vpack.c.b16 %v1754, %v1753
        %v1765 = vpack.c.b16 %v1756, %v1755
        %v1766 = vpack.c.b16 %v1758, %v1757
        %1775 = vmatpush.bf16.msra.mxu0 %v1766
        %1776 = vmatpush.bf16.msra.mxu0 %v1765
        %1777 = vmatpush.bf16.msra.mxu0 %v1764
        %1778 = vmatpush.bf16.msra.mxu0 %v1763
        %1779 = vmatpush.bf16.msra.mxu0 %v1762
        %1780 = vmatpush.bf16.msra.mxu0 %v1761
        %1781 = vmatpush.bf16.msra.mxu0 %v1760
        %1782 = vmatpush.bf16.msra.mxu0 %v1759
        %1783 = vmatmul.bf16.gmra.mxu0 %v1711
        %v1784 = vpop.f32.mrf.mxu0
        %v1785 = vadd.f32 0.0, %v1784
        %v1786 = vpop.f32.mrf.mxu0
        %v1787 = vadd.f32 0.0, %v1786
        %1788 = vmatmul.bf16.gmra.mxu0 %v1712
        %v1789 = vpop.f32.mrf.mxu0
        %v1790 = vadd.f32 0.0, %v1789
        %v1791 = vpop.f32.mrf.mxu0
        %v1792 = vadd.f32 0.0, %v1791
        %1793 = vmatmul.bf16.gmra.mxu0 %v1713
        %v1794 = vpop.f32.mrf.mxu0
        %v1795 = vadd.f32 0.0, %v1794
        %v1796 = vpop.f32.mrf.mxu0
        %v1797 = vadd.f32 0.0, %v1796
        %1798 = vmatmul.bf16.gmra.mxu0 %v1714
        %v1799 = vpop.f32.mrf.mxu0
        %v1800 = vadd.f32 0.0, %v1799
        %v1801 = vpop.f32.mrf.mxu0
        %v1802 = vadd.f32 0.0, %v1801
        %1803 = vmatmul.bf16.gmra.mxu0 %v1715
        %v1804 = vpop.f32.mrf.mxu0
        %v1805 = vadd.f32 0.0, %v1804
        %v1806 = vpop.f32.mrf.mxu0
        %v1807 = vadd.f32 0.0, %v1806
        %1808 = vmatmul.bf16.gmra.mxu0 %v1716
        %v1809 = vpop.f32.mrf.mxu0
        %v1810 = vadd.f32 0.0, %v1809
        %v1811 = vpop.f32.mrf.mxu0
        %v1812 = vadd.f32 0.0, %v1811
        %1813 = vmatmul.bf16.gmra.mxu0 %v1717
        %v1814 = vpop.f32.mrf.mxu0
        %v1815 = vadd.f32 0.0, %v1814
        %v1816 = vpop.f32.mrf.mxu0
        %v1817 = vadd.f32 0.0, %v1816
        %1818 = vmatmul.bf16.gmra.mxu0 %v1718
        %v1819 = vpop.f32.mrf.mxu0
        %v1820 = vadd.f32 0.0, %v1819
        %v1821 = vpop.f32.mrf.mxu0
        %v1822 = vadd.f32 0.0, %v1821
        %1823 = vdwg.mxu0
        %v1824 = vadd.f32 %v1571, %v1785
        %v1825 = vadd.f32 %v1572, %v1787
        %v1826 = vadd.f32 %v1573, %v1790
        %v1827 = vadd.f32 %v1574, %v1792
        %v1828 = vadd.f32 %v1575, %v1795
        %v1829 = vadd.f32 %v1576, %v1797
        %v1830 = vadd.f32 %v1577, %v1800
        %v1831 = vadd.f32 %v1578, %v1802
        %v1832 = vadd.f32 %v1579, %v1805
        %v1833 = vadd.f32 %v1580, %v1807
        %v1834 = vadd.f32 %v1581, %v1810
        %v1835 = vadd.f32 %v1582, %v1812
        %v1836 = vadd.f32 %v1583, %v1815
        %v1837 = vadd.f32 %v1584, %v1817
        %v1838 = vadd.f32 %v1585, %v1820
        %v1839 = vadd.f32 %v1586, %v1822
        %s1840 = sadd.s32 %s1006, 1
        %s1841 = smul.u32 %s1840, 4
        %s1842 = smul.addr %s1841, 4
        %s1843 = scalar_lea.vmem [#allocation2], %s1842
        %v1844 = vld [vmem:[%s1843] sm:$0xf]
        %v1845 = vld [vmem:[%s1843 + $0x4] sm:$0xf]
        %v1846 = vld [vmem:[%s1843 + $0x10] sm:$0xf]
        %v1847 = vld [vmem:[%s1843 + $0x14] sm:$0xf]
        %v1848 = vld [vmem:[%s1843 + $0x20] sm:$0xf]
        %v1849 = vld [vmem:[%s1843 + $0x24] sm:$0xf]
        %v1850 = vld [vmem:[%s1843 + $0x30] sm:$0xf]
        %v1851 = vld [vmem:[%s1843 + $0x34] sm:$0xf]
        %v1852 = vld [vmem:[%s1843 + $0x40] sm:$0xf]
        %v1853 = vld [vmem:[%s1843 + $0x44] sm:$0xf]
        %v1854 = vld [vmem:[%s1843 + $0x50] sm:$0xf]
        %v1855 = vld [vmem:[%s1843 + $0x54] sm:$0xf]
        %v1856 = vld [vmem:[%s1843 + $0x60] sm:$0xf]
        %v1857 = vld [vmem:[%s1843 + $0x64] sm:$0xf]
        %v1858 = vld [vmem:[%s1843 + $0x70] sm:$0xf]
        %v1859 = vld [vmem:[%s1843 + $0x74] sm:$0xf]
        %s1860 = scalar_lea.vmem %s3, 192
        %v1861 = vld [vmem:[%s1860] sm:$0xf]
        %v1862 = vld [vmem:[%s1860 + $0x4] sm:$0xf]
        %v1863 = vld [vmem:[%s1860 + $0x8] sm:$0xf]
        %v1864 = vld [vmem:[%s1860 + $0xc] sm:$0xf]
        %v1865 = vld [vmem:[%s1860 + $0x10] sm:$0xf]
        %v1866 = vld [vmem:[%s1860 + $0x14] sm:$0xf]
        %v1867 = vld [vmem:[%s1860 + $0x18] sm:$0xf]
        %v1868 = vld [vmem:[%s1860 + $0x1c] sm:$0xf]
        %v1869 = vld [vmem:[%s1860 + $0x20] sm:$0xf]
        %v1870 = vld [vmem:[%s1860 + $0x24] sm:$0xf]
        %v1871 = vld [vmem:[%s1860 + $0x28] sm:$0xf]
        %v1872 = vld [vmem:[%s1860 + $0x2c] sm:$0xf]
        %v1873 = vld [vmem:[%s1860 + $0x30] sm:$0xf]
        %v1874 = vld [vmem:[%s1860 + $0x34] sm:$0xf]
        %v1875 = vld [vmem:[%s1860 + $0x38] sm:$0xf]
        %v1876 = vld [vmem:[%s1860 + $0x3c] sm:$0xf]
        %v1893 = vunpack.c.l.b16 %v1844
        %v1894 = vunpack.c.l.b16 %v1845
        %v1895 = vunpack.c.l.b16 %v1846
        %v1896 = vunpack.c.l.b16 %v1847
        %v1897 = vunpack.c.l.b16 %v1848
        %v1898 = vunpack.c.l.b16 %v1849
        %v1899 = vunpack.c.l.b16 %v1850
        %v1900 = vunpack.c.l.b16 %v1851
        %v1901 = vunpack.c.l.b16 %v1852
        %v1902 = vunpack.c.l.b16 %v1853
        %v1903 = vunpack.c.l.b16 %v1854
        %v1904 = vunpack.c.l.b16 %v1855
        %v1905 = vunpack.c.l.b16 %v1856
        %v1906 = vunpack.c.l.b16 %v1857
        %v1907 = vunpack.c.l.b16 %v1858
        %v1908 = vunpack.c.l.b16 %v1859
        %v1909 = vpack.c.b16 %v1894, %v1893
        %v1910 = vpack.c.b16 %v1896, %v1895
        %v1911 = vpack.c.b16 %v1898, %v1897
        %v1912 = vpack.c.b16 %v1900, %v1899
        %v1913 = vpack.c.b16 %v1902, %v1901
        %v1914 = vpack.c.b16 %v1904, %v1903
        %v1915 = vpack.c.b16 %v1906, %v1905
        %v1916 = vpack.c.b16 %v1908, %v1907
        %v1941 = vunpack.c.l.b16 %v1861
        %v1942 = vunpack.c.l.b16 %v1862
        %v1943 = vunpack.c.l.b16 %v1863
        %v1944 = vunpack.c.l.b16 %v1864
        %v1945 = vunpack.c.l.b16 %v1865
        %v1946 = vunpack.c.l.b16 %v1866
        %v1947 = vunpack.c.l.b16 %v1867
        %v1948 = vunpack.c.l.b16 %v1868
        %v1949 = vunpack.c.l.b16 %v1869
        %v1950 = vunpack.c.l.b16 %v1870
        %v1951 = vunpack.c.l.b16 %v1871
        %v1952 = vunpack.c.l.b16 %v1872
        %v1953 = vunpack.c.l.b16 %v1873
        %v1954 = vunpack.c.l.b16 %v1874
        %v1955 = vunpack.c.l.b16 %v1875
        %v1956 = vunpack.c.l.b16 %v1876
        %v1957 = vpack.c.b16 %v1942, %v1941
        %v1958 = vpack.c.b16 %v1944, %v1943
        %v1959 = vpack.c.b16 %v1946, %v1945
        %v1960 = vpack.c.b16 %v1948, %v1947
        %v1961 = vpack.c.b16 %v1950, %v1949
        %v1962 = vpack.c.b16 %v1952, %v1951
        %v1963 = vpack.c.b16 %v1954, %v1953
        %v1964 = vpack.c.b16 %v1956, %v1955
        %1973 = vmatpush.bf16.msra.mxu0 %v1964
        %1974 = vmatpush.bf16.msra.mxu0 %v1963
        %1975 = vmatpush.bf16.msra.mxu0 %v1962
        %1976 = vmatpush.bf16.msra.mxu0 %v1961
        %1977 = vmatpush.bf16.msra.mxu0 %v1960
        %1978 = vmatpush.bf16.msra.mxu0 %v1959
        %1979 = vmatpush.bf16.msra.mxu0 %v1958
        %1980 = vmatpush.bf16.msra.mxu0 %v1957
        %1981 = vmatmul.bf16.gmra.mxu0 %v1909
        %v1982 = vpop.f32.mrf.mxu0
        %v1983 = vadd.f32 0.0, %v1982
        %v1984 = vpop.f32.mrf.mxu0
        %v1985 = vadd.f32 0.0, %v1984
        %1986 = vmatmul.bf16.gmra.mxu0 %v1910
        %v1987 = vpop.f32.mrf.mxu0
        %v1988 = vadd.f32 0.0, %v1987
        %v1989 = vpop.f32.mrf.mxu0
        %v1990 = vadd.f32 0.0, %v1989
        %1991 = vmatmul.bf16.gmra.mxu0 %v1911
        %v1992 = vpop.f32.mrf.mxu0
        %v1993 = vadd.f32 0.0, %v1992
        %v1994 = vpop.f32.mrf.mxu0
        %v1995 = vadd.f32 0.0, %v1994
        %1996 = vmatmul.bf16.gmra.mxu0 %v1912
        %v1997 = vpop.f32.mrf.mxu0
        %v1998 = vadd.f32 0.0, %v1997
        %v1999 = vpop.f32.mrf.mxu0
        %v2000 = vadd.f32 0.0, %v1999
        %2001 = vmatmul.bf16.gmra.mxu0 %v1913
        %v2002 = vpop.f32.mrf.mxu0
        %v2003 = vadd.f32 0.0, %v2002
        %v2004 = vpop.f32.mrf.mxu0
        %v2005 = vadd.f32 0.0, %v2004
        %2006 = vmatmul.bf16.gmra.mxu0 %v1914
        %v2007 = vpop.f32.mrf.mxu0
        %v2008 = vadd.f32 0.0, %v2007
        %v2009 = vpop.f32.mrf.mxu0
        %v2010 = vadd.f32 0.0, %v2009
        %2011 = vmatmul.bf16.gmra.mxu0 %v1915
        %v2012 = vpop.f32.mrf.mxu0
        %v2013 = vadd.f32 0.0, %v2012
        %v2014 = vpop.f32.mrf.mxu0
        %v2015 = vadd.f32 0.0, %v2014
        %2016 = vmatmul.bf16.gmra.mxu0 %v1916
        %v2017 = vpop.f32.mrf.mxu0
        %v2018 = vadd.f32 0.0, %v2017
        %v2019 = vpop.f32.mrf.mxu0
        %v2020 = vadd.f32 0.0, %v2019
        %2021 = vdwg.mxu0
        %v2022 = vadd.f32 %v1824, %v1983
        %v2023 = vadd.f32 %v1825, %v1985
        %v2024 = vadd.f32 %v1826, %v1988
        %v2025 = vadd.f32 %v1827, %v1990
        %v2026 = vadd.f32 %v1828, %v1993
        %v2027 = vadd.f32 %v1829, %v1995
        %v2028 = vadd.f32 %v1830, %v1998
        %v2029 = vadd.f32 %v1831, %v2000
        %v2030 = vadd.f32 %v1832, %v2003
        %v2031 = vadd.f32 %v1833, %v2005
        %v2032 = vadd.f32 %v1834, %v2008
        %v2033 = vadd.f32 %v1835, %v2010
        %v2034 = vadd.f32 %v1836, %v2013
        %v2035 = vadd.f32 %v1837, %v2015
        %v2036 = vadd.f32 %v1838, %v2018
        %v2037 = vadd.f32 %v1839, %v2020
        %v2038 = vld [vmem:[%s1843] sm:$0xf]
        %v2039 = vld [vmem:[%s1843 + $0x4] sm:$0xf]
        %v2040 = vld [vmem:[%s1843 + $0x8] sm:$0x1]
        %v2041 = vld [vmem:[%s1843 + $0x10] sm:$0xf]
        %v2042 = vld [vmem:[%s1843 + $0x14] sm:$0xf]
        %v2043 = vld [vmem:[%s1843 + $0x18] sm:$0x1]
        %v2044 = vld [vmem:[%s1843 + $0x20] sm:$0xf]
        %v2045 = vld [vmem:[%s1843 + $0x24] sm:$0xf]
        %v2046 = vld [vmem:[%s1843 + $0x28] sm:$0x1]
        %v2047 = vld [vmem:[%s1843 + $0x30] sm:$0xf]
        %v2048 = vld [vmem:[%s1843 + $0x34] sm:$0xf]
        %v2049 = vld [vmem:[%s1843 + $0x38] sm:$0x1]
        %v2050 = vld [vmem:[%s1843 + $0x40] sm:$0xf]
        %v2051 = vld [vmem:[%s1843 + $0x44] sm:$0xf]
        %v2052 = vld [vmem:[%s1843 + $0x48] sm:$0x1]
        %v2053 = vld [vmem:[%s1843 + $0x50] sm:$0xf]
        %v2054 = vld [vmem:[%s1843 + $0x54] sm:$0xf]
        %v2055 = vld [vmem:[%s1843 + $0x58] sm:$0x1]
        %v2056 = vld [vmem:[%s1843 + $0x60] sm:$0xf]
        %v2057 = vld [vmem:[%s1843 + $0x64] sm:$0xf]
        %v2058 = vld [vmem:[%s1843 + $0x68] sm:$0x1]
        %v2059 = vld [vmem:[%s1843 + $0x70] sm:$0xf]
        %v2060 = vld [vmem:[%s1843 + $0x74] sm:$0xf]
        %v2061 = vld [vmem:[%s1843 + $0x78] sm:$0x1]
        %v2063 = vshrl.u32 %v2038, 16
        %v2065 = vrot.slane %v2063, 4
        %v2066 = vshll.u32 %v2038, 16
        %v2068 = vrot.slane %v2066, 5
        %v2069 = vor.u32 %v2065, %v2068
        %v2070 = vrot.slane %v2069, 4
        %v2072 = vshll.u32 %v2039, 16
        %v2074 = vrot.slane %v2072, 5
        %v2075 = vsel %vm1232, %v2070, %v2074
        %v2076 = vshrl.u32 %v2039, 16
        %v2078 = vrot.slane %v2076, 4
        %v2079 = vor.u32 %v2078, %v2074
        %v2080 = vrot.slane %v2079, 4
        %v2082 = vshll.u32 %v2040, 16
        %v2084 = vrot.slane %v2082, 5
        %v2085 = vsel %vm1232, %v2080, %v2084
        %v2087 = vshrl.u32 %v2041, 16
        %v2089 = vrot.slane %v2087, 4
        %v2090 = vshll.u32 %v2041, 16
        %v2092 = vrot.slane %v2090, 5
        %v2093 = vor.u32 %v2089, %v2092
        %v2094 = vrot.slane %v2093, 4
        %v2096 = vshll.u32 %v2042, 16
        %v2098 = vrot.slane %v2096, 5
        %v2099 = vsel %vm1232, %v2094, %v2098
        %v2100 = vshrl.u32 %v2042, 16
        %v2102 = vrot.slane %v2100, 4
        %v2103 = vor.u32 %v2102, %v2098
        %v2104 = vrot.slane %v2103, 4
        %v2106 = vshll.u32 %v2043, 16
        %v2108 = vrot.slane %v2106, 5
        %v2109 = vsel %vm1232, %v2104, %v2108
        %v2111 = vshrl.u32 %v2044, 16
        %v2113 = vrot.slane %v2111, 4
        %v2114 = vshll.u32 %v2044, 16
        %v2116 = vrot.slane %v2114, 5
        %v2117 = vor.u32 %v2113, %v2116
        %v2118 = vrot.slane %v2117, 4
        %v2120 = vshll.u32 %v2045, 16
        %v2122 = vrot.slane %v2120, 5
        %v2123 = vsel %vm1232, %v2118, %v2122
        %v2124 = vshrl.u32 %v2045, 16
        %v2126 = vrot.slane %v2124, 4
        %v2127 = vor.u32 %v2126, %v2122
        %v2128 = vrot.slane %v2127, 4
        %v2130 = vshll.u32 %v2046, 16
        %v2132 = vrot.slane %v2130, 5
        %v2133 = vsel %vm1232, %v2128, %v2132
        %v2135 = vshrl.u32 %v2047, 16
        %v2137 = vrot.slane %v2135, 4
        %v2138 = vshll.u32 %v2047, 16
        %v2140 = vrot.slane %v2138, 5
        %v2141 = vor.u32 %v2137, %v2140
        %v2142 = vrot.slane %v2141, 4
        %v2144 = vshll.u32 %v2048, 16
        %v2146 = vrot.slane %v2144, 5
        %v2147 = vsel %vm1232, %v2142, %v2146
        %v2148 = vshrl.u32 %v2048, 16
        %v2150 = vrot.slane %v2148, 4
        %v2151 = vor.u32 %v2150, %v2146
        %v2152 = vrot.slane %v2151, 4
        %v2154 = vshll.u32 %v2049, 16
        %v2156 = vrot.slane %v2154, 5
        %v2157 = vsel %vm1232, %v2152, %v2156
        %v2159 = vshrl.u32 %v2050, 16
        %v2161 = vrot.slane %v2159, 4
        %v2162 = vshll.u32 %v2050, 16
        %v2164 = vrot.slane %v2162, 5
        %v2165 = vor.u32 %v2161, %v2164
        %v2166 = vrot.slane %v2165, 4
        %v2168 = vshll.u32 %v2051, 16
        %v2170 = vrot.slane %v2168, 5
        %v2171 = vsel %vm1232, %v2166, %v2170
        %v2172 = vshrl.u32 %v2051, 16
        %v2174 = vrot.slane %v2172, 4
        %v2175 = vor.u32 %v2174, %v2170
        %v2176 = vrot.slane %v2175, 4
        %v2178 = vshll.u32 %v2052, 16
        %v2180 = vrot.slane %v2178, 5
        %v2181 = vsel %vm1232, %v2176, %v2180
        %v2183 = vshrl.u32 %v2053, 16
        %v2185 = vrot.slane %v2183, 4
        %v2186 = vshll.u32 %v2053, 16
        %v2188 = vrot.slane %v2186, 5
        %v2189 = vor.u32 %v2185, %v2188
        %v2190 = vrot.slane %v2189, 4
        %v2192 = vshll.u32 %v2054, 16
        %v2194 = vrot.slane %v2192, 5
        %v2195 = vsel %vm1232, %v2190, %v2194
        %v2196 = vshrl.u32 %v2054, 16
        %v2198 = vrot.slane %v2196, 4
        %v2199 = vor.u32 %v2198, %v2194
        %v2200 = vrot.slane %v2199, 4
        %v2202 = vshll.u32 %v2055, 16
        %v2204 = vrot.slane %v2202, 5
        %v2205 = vsel %vm1232, %v2200, %v2204
        %v2207 = vshrl.u32 %v2056, 16
        %v2209 = vrot.slane %v2207, 4
        %v2210 = vshll.u32 %v2056, 16
        %v2212 = vrot.slane %v2210, 5
        %v2213 = vor.u32 %v2209, %v2212
        %v2214 = vrot.slane %v2213, 4
        %v2216 = vshll.u32 %v2057, 16
        %v2218 = vrot.slane %v2216, 5
        %v2219 = vsel %vm1232, %v2214, %v2218
        %v2220 = vshrl.u32 %v2057, 16
        %v2222 = vrot.slane %v2220, 4
        %v2223 = vor.u32 %v2222, %v2218
        %v2224 = vrot.slane %v2223, 4
        %v2226 = vshll.u32 %v2058, 16
        %v2228 = vrot.slane %v2226, 5
        %v2229 = vsel %vm1232, %v2224, %v2228
        %v2231 = vshrl.u32 %v2059, 16
        %v2233 = vrot.slane %v2231, 4
        %v2234 = vshll.u32 %v2059, 16
        %v2236 = vrot.slane %v2234, 5
        %v2237 = vor.u32 %v2233, %v2236
        %v2238 = vrot.slane %v2237, 4
        %v2240 = vshll.u32 %v2060, 16
        %v2242 = vrot.slane %v2240, 5
        %v2243 = vsel %vm1232, %v2238, %v2242
        %v2244 = vshrl.u32 %v2060, 16
        %v2246 = vrot.slane %v2244, 4
        %v2247 = vor.u32 %v2246, %v2242
        %v2248 = vrot.slane %v2247, 4
        %v2250 = vshll.u32 %v2061, 16
        %v2252 = vrot.slane %v2250, 5
        %v2253 = vsel %vm1232, %v2248, %v2252
        %s2254 = scalar_lea.vmem %s3, 256
        %v2255 = vld [vmem:[%s2254] sm:$0xf]
        %v2256 = vld [vmem:[%s2254 + $0x4] sm:$0xf]
        %v2257 = vld [vmem:[%s2254 + $0x8] sm:$0xf]
        %v2258 = vld [vmem:[%s2254 + $0xc] sm:$0xf]
        %v2259 = vld [vmem:[%s2254 + $0x10] sm:$0xf]
        %v2260 = vld [vmem:[%s2254 + $0x14] sm:$0xf]
        %v2261 = vld [vmem:[%s2254 + $0x18] sm:$0xf]
        %v2262 = vld [vmem:[%s2254 + $0x1c] sm:$0xf]
        %v2263 = vld [vmem:[%s2254 + $0x20] sm:$0xf]
        %v2264 = vld [vmem:[%s2254 + $0x24] sm:$0xf]
        %v2265 = vld [vmem:[%s2254 + $0x28] sm:$0xf]
        %v2266 = vld [vmem:[%s2254 + $0x2c] sm:$0xf]
        %v2267 = vld [vmem:[%s2254 + $0x30] sm:$0xf]
        %v2268 = vld [vmem:[%s2254 + $0x34] sm:$0xf]
        %v2269 = vld [vmem:[%s2254 + $0x38] sm:$0xf]
        %v2270 = vld [vmem:[%s2254 + $0x3c] sm:$0xf]
        %v2271 = vunpack.c.l.b16 %v2075
        %v2272 = vunpack.c.l.b16 %v2085
        %v2273 = vunpack.c.l.b16 %v2099
        %v2274 = vunpack.c.l.b16 %v2109
        %v2275 = vunpack.c.l.b16 %v2123
        %v2276 = vunpack.c.l.b16 %v2133
        %v2277 = vunpack.c.l.b16 %v2147
        %v2278 = vunpack.c.l.b16 %v2157
        %v2279 = vunpack.c.l.b16 %v2171
        %v2280 = vunpack.c.l.b16 %v2181
        %v2281 = vunpack.c.l.b16 %v2195
        %v2282 = vunpack.c.l.b16 %v2205
        %v2283 = vunpack.c.l.b16 %v2219
        %v2284 = vunpack.c.l.b16 %v2229
        %v2285 = vunpack.c.l.b16 %v2243
        %v2286 = vunpack.c.l.b16 %v2253
        %v2287 = vpack.c.b16 %v2272, %v2271
        %v2288 = vpack.c.b16 %v2274, %v2273
        %v2289 = vpack.c.b16 %v2276, %v2275
        %v2290 = vpack.c.b16 %v2278, %v2277
        %v2291 = vpack.c.b16 %v2280, %v2279
        %v2292 = vpack.c.b16 %v2282, %v2281
        %v2293 = vpack.c.b16 %v2284, %v2283
        %v2294 = vpack.c.b16 %v2286, %v2285
        %v2319 = vunpack.c.l.b16 %v2255
        %v2320 = vunpack.c.l.b16 %v2256
        %v2321 = vunpack.c.l.b16 %v2257
        %v2322 = vunpack.c.l.b16 %v2258
        %v2323 = vunpack.c.l.b16 %v2259
        %v2324 = vunpack.c.l.b16 %v2260
        %v2325 = vunpack.c.l.b16 %v2261
        %v2326 = vunpack.c.l.b16 %v2262
        %v2327 = vunpack.c.l.b16 %v2263
        %v2328 = vunpack.c.l.b16 %v2264
        %v2329 = vunpack.c.l.b16 %v2265
        %v2330 = vunpack.c.l.b16 %v2266
        %v2331 = vunpack.c.l.b16 %v2267
        %v2332 = vunpack.c.l.b16 %v2268
        %v2333 = vunpack.c.l.b16 %v2269
        %v2334 = vunpack.c.l.b16 %v2270
        %v2335 = vpack.c.b16 %v2320, %v2319
        %v2336 = vpack.c.b16 %v2322, %v2321
        %v2337 = vpack.c.b16 %v2324, %v2323
        %v2338 = vpack.c.b16 %v2326, %v2325
        %v2339 = vpack.c.b16 %v2328, %v2327
        %v2340 = vpack.c.b16 %v2330, %v2329
        %v2341 = vpack.c.b16 %v2332, %v2331
        %v2342 = vpack.c.b16 %v2334, %v2333
        %2351 = vmatpush.bf16.msra.mxu0 %v2342
        %2352 = vmatpush.bf16.msra.mxu0 %v2341
        %2353 = vmatpush.bf16.msra.mxu0 %v2340
        %2354 = vmatpush.bf16.msra.mxu0 %v2339
        %2355 = vmatpush.bf16.msra.mxu0 %v2338
        %2356 = vmatpush.bf16.msra.mxu0 %v2337
        %2357 = vmatpush.bf16.msra.mxu0 %v2336
        %2358 = vmatpush.bf16.msra.mxu0 %v2335
        %2359 = vmatmul.bf16.gmra.mxu0 %v2287
        %v2360 = vpop.f32.mrf.mxu0
        %v2361 = vadd.f32 0.0, %v2360
        %v2362 = vpop.f32.mrf.mxu0
        %v2363 = vadd.f32 0.0, %v2362
        %2364 = vmatmul.bf16.gmra.mxu0 %v2288
        %v2365 = vpop.f32.mrf.mxu0
        %v2366 = vadd.f32 0.0, %v2365
        %v2367 = vpop.f32.mrf.mxu0
        %v2368 = vadd.f32 0.0, %v2367
        %2369 = vmatmul.bf16.gmra.mxu0 %v2289
        %v2370 = vpop.f32.mrf.mxu0
        %v2371 = vadd.f32 0.0, %v2370
        %v2372 = vpop.f32.mrf.mxu0
        %v2373 = vadd.f32 0.0, %v2372
        %2374 = vmatmul.bf16.gmra.mxu0 %v2290
        %v2375 = vpop.f32.mrf.mxu0
        %v2376 = vadd.f32 0.0, %v2375
        %v2377 = vpop.f32.mrf.mxu0
        %v2378 = vadd.f32 0.0, %v2377
        %2379 = vmatmul.bf16.gmra.mxu0 %v2291
        %v2380 = vpop.f32.mrf.mxu0
        %v2381 = vadd.f32 0.0, %v2380
        %v2382 = vpop.f32.mrf.mxu0
        %v2383 = vadd.f32 0.0, %v2382
        %2384 = vmatmul.bf16.gmra.mxu0 %v2292
        %v2385 = vpop.f32.mrf.mxu0
        %v2386 = vadd.f32 0.0, %v2385
        %v2387 = vpop.f32.mrf.mxu0
        %v2388 = vadd.f32 0.0, %v2387
        %2389 = vmatmul.bf16.gmra.mxu0 %v2293
        %v2390 = vpop.f32.mrf.mxu0
        %v2391 = vadd.f32 0.0, %v2390
        %v2392 = vpop.f32.mrf.mxu0
        %v2393 = vadd.f32 0.0, %v2392
        %2394 = vmatmul.bf16.gmra.mxu0 %v2294
        %v2395 = vpop.f32.mrf.mxu0
        %v2396 = vadd.f32 0.0, %v2395
        %v2397 = vpop.f32.mrf.mxu0
        %v2398 = vadd.f32 0.0, %v2397
        %2399 = vdwg.mxu0
        %v2400 = vadd.f32 %v2022, %v2361
        %v2401 = vadd.f32 %v2023, %v2363
        %v2402 = vadd.f32 %v2024, %v2366
        %v2403 = vadd.f32 %v2025, %v2368
        %v2404 = vadd.f32 %v2026, %v2371
        %v2405 = vadd.f32 %v2027, %v2373
        %v2406 = vadd.f32 %v2028, %v2376
        %v2407 = vadd.f32 %v2029, %v2378
        %v2408 = vadd.f32 %v2030, %v2381
        %v2409 = vadd.f32 %v2031, %v2383
        %v2410 = vadd.f32 %v2032, %v2386
        %v2411 = vadd.f32 %v2033, %v2388
        %v2412 = vadd.f32 %v2034, %v2391
        %v2413 = vadd.f32 %v2035, %v2393
        %v2414 = vadd.f32 %v2036, %v2396
        %v2415 = vadd.f32 %v2037, %v2398
        %v2416 = vld [vmem:[%s1843] sm:$0xe]
        %v2417 = vld [vmem:[%s1843 + $0x10] sm:$0xe]
        %v2418 = vld [vmem:[%s1843 + $0x20] sm:$0xe]
        %v2419 = vld [vmem:[%s1843 + $0x30] sm:$0xe]
        %v2420 = vld [vmem:[%s1843 + $0x40] sm:$0xe]
        %v2421 = vld [vmem:[%s1843 + $0x50] sm:$0xe]
        %v2422 = vld [vmem:[%s1843 + $0x60] sm:$0xe]
        %v2423 = vld [vmem:[%s1843 + $0x70] sm:$0xe]
        %v2448 = vrot.slane %v2416, 5
        %v2449 = vrot.slane %v2448, 4
        %v2450 = vrot.slane %v2039, 5
        %v2451 = vsel %vm1621, %v2449, %v2450
        %v2452 = vrot.slane %v2450, 4
        %v2453 = vrot.slane %v2040, 5
        %v2454 = vsel %vm1621, %v2452, %v2453
        %v2455 = vrot.slane %v2417, 5
        %v2456 = vrot.slane %v2455, 4
        %v2457 = vrot.slane %v2042, 5
        %v2458 = vsel %vm1621, %v2456, %v2457
        %v2459 = vrot.slane %v2457, 4
        %v2460 = vrot.slane %v2043, 5
        %v2461 = vsel %vm1621, %v2459, %v2460
        %v2462 = vrot.slane %v2418, 5
        %v2463 = vrot.slane %v2462, 4
        %v2464 = vrot.slane %v2045, 5
        %v2465 = vsel %vm1621, %v2463, %v2464
        %v2466 = vrot.slane %v2464, 4
        %v2467 = vrot.slane %v2046, 5
        %v2468 = vsel %vm1621, %v2466, %v2467
        %v2469 = vrot.slane %v2419, 5
        %v2470 = vrot.slane %v2469, 4
        %v2471 = vrot.slane %v2048, 5
        %v2472 = vsel %vm1621, %v2470, %v2471
        %v2473 = vrot.slane %v2471, 4
        %v2474 = vrot.slane %v2049, 5
        %v2475 = vsel %vm1621, %v2473, %v2474
        %v2476 = vrot.slane %v2420, 5
        %v2477 = vrot.slane %v2476, 4
        %v2478 = vrot.slane %v2051, 5
        %v2479 = vsel %vm1621, %v2477, %v2478
        %v2480 = vrot.slane %v2478, 4
        %v2481 = vrot.slane %v2052, 5
        %v2482 = vsel %vm1621, %v2480, %v2481
        %v2483 = vrot.slane %v2421, 5
        %v2484 = vrot.slane %v2483, 4
        %v2485 = vrot.slane %v2054, 5
        %v2486 = vsel %vm1621, %v2484, %v2485
        %v2487 = vrot.slane %v2485, 4
        %v2488 = vrot.slane %v2055, 5
        %v2489 = vsel %vm1621, %v2487, %v2488
        %v2490 = vrot.slane %v2422, 5
        %v2491 = vrot.slane %v2490, 4
        %v2492 = vrot.slane %v2057, 5
        %v2493 = vsel %vm1621, %v2491, %v2492
        %v2494 = vrot.slane %v2492, 4
        %v2495 = vrot.slane %v2058, 5
        %v2496 = vsel %vm1621, %v2494, %v2495
        %v2497 = vrot.slane %v2423, 5
        %v2498 = vrot.slane %v2497, 4
        %v2499 = vrot.slane %v2060, 5
        %v2500 = vsel %vm1621, %v2498, %v2499
        %v2501 = vrot.slane %v2499, 4
        %v2502 = vrot.slane %v2061, 5
        %v2503 = vsel %vm1621, %v2501, %v2502
        %s2504 = scalar_lea.vmem %s3, 320
        %v2505 = vld [vmem:[%s2504] sm:$0xf]
        %v2506 = vld [vmem:[%s2504 + $0x4] sm:$0xf]
        %v2507 = vld [vmem:[%s2504 + $0x8] sm:$0xf]
        %v2508 = vld [vmem:[%s2504 + $0xc] sm:$0xf]
        %v2509 = vld [vmem:[%s2504 + $0x10] sm:$0xf]
        %v2510 = vld [vmem:[%s2504 + $0x14] sm:$0xf]
        %v2511 = vld [vmem:[%s2504 + $0x18] sm:$0xf]
        %v2512 = vld [vmem:[%s2504 + $0x1c] sm:$0xf]
        %v2513 = vld [vmem:[%s2504 + $0x20] sm:$0xf]
        %v2514 = vld [vmem:[%s2504 + $0x24] sm:$0xf]
        %v2515 = vld [vmem:[%s2504 + $0x28] sm:$0xf]
        %v2516 = vld [vmem:[%s2504 + $0x2c] sm:$0xf]
        %v2517 = vld [vmem:[%s2504 + $0x30] sm:$0xf]
        %v2518 = vld [vmem:[%s2504 + $0x34] sm:$0xf]
        %v2519 = vld [vmem:[%s2504 + $0x38] sm:$0xf]
        %v2520 = vld [vmem:[%s2504 + $0x3c] sm:$0xf]
        %v2521 = vunpack.c.l.b16 %v2451
        %v2522 = vunpack.c.l.b16 %v2454
        %v2523 = vunpack.c.l.b16 %v2458
        %v2524 = vunpack.c.l.b16 %v2461
        %v2525 = vunpack.c.l.b16 %v2465
        %v2526 = vunpack.c.l.b16 %v2468
        %v2527 = vunpack.c.l.b16 %v2472
        %v2528 = vunpack.c.l.b16 %v2475
        %v2529 = vunpack.c.l.b16 %v2479
        %v2530 = vunpack.c.l.b16 %v2482
        %v2531 = vunpack.c.l.b16 %v2486
        %v2532 = vunpack.c.l.b16 %v2489
        %v2533 = vunpack.c.l.b16 %v2493
        %v2534 = vunpack.c.l.b16 %v2496
        %v2535 = vunpack.c.l.b16 %v2500
        %v2536 = vunpack.c.l.b16 %v2503
        %v2537 = vpack.c.b16 %v2522, %v2521
        %v2538 = vpack.c.b16 %v2524, %v2523
        %v2539 = vpack.c.b16 %v2526, %v2525
        %v2540 = vpack.c.b16 %v2528, %v2527
        %v2541 = vpack.c.b16 %v2530, %v2529
        %v2542 = vpack.c.b16 %v2532, %v2531
        %v2543 = vpack.c.b16 %v2534, %v2533
        %v2544 = vpack.c.b16 %v2536, %v2535
        %v2569 = vunpack.c.l.b16 %v2505
        %v2570 = vunpack.c.l.b16 %v2506
        %v2571 = vunpack.c.l.b16 %v2507
        %v2572 = vunpack.c.l.b16 %v2508
        %v2573 = vunpack.c.l.b16 %v2509
        %v2574 = vunpack.c.l.b16 %v2510
        %v2575 = vunpack.c.l.b16 %v2511
        %v2576 = vunpack.c.l.b16 %v2512
        %v2577 = vunpack.c.l.b16 %v2513
        %v2578 = vunpack.c.l.b16 %v2514
        %v2579 = vunpack.c.l.b16 %v2515
        %v2580 = vunpack.c.l.b16 %v2516
        %v2581 = vunpack.c.l.b16 %v2517
        %v2582 = vunpack.c.l.b16 %v2518
        %v2583 = vunpack.c.l.b16 %v2519
        %v2584 = vunpack.c.l.b16 %v2520
        %v2585 = vpack.c.b16 %v2570, %v2569
        %v2586 = vpack.c.b16 %v2572, %v2571
        %v2587 = vpack.c.b16 %v2574, %v2573
        %v2588 = vpack.c.b16 %v2576, %v2575
        %v2589 = vpack.c.b16 %v2578, %v2577
        %v2590 = vpack.c.b16 %v2580, %v2579
        %v2591 = vpack.c.b16 %v2582, %v2581
        %v2592 = vpack.c.b16 %v2584, %v2583
        %2601 = vmatpush.bf16.msra.mxu0 %v2592
        %2602 = vmatpush.bf16.msra.mxu0 %v2591
        %2603 = vmatpush.bf16.msra.mxu0 %v2590
        %2604 = vmatpush.bf16.msra.mxu0 %v2589
        %2605 = vmatpush.bf16.msra.mxu0 %v2588
        %2606 = vmatpush.bf16.msra.mxu0 %v2587
        %2607 = vmatpush.bf16.msra.mxu0 %v2586
        %2608 = vmatpush.bf16.msra.mxu0 %v2585
        %2609 = vmatmul.bf16.gmra.mxu0 %v2537
        %v2610 = vpop.f32.mrf.mxu0
        %v2611 = vadd.f32 0.0, %v2610
        %v2612 = vpop.f32.mrf.mxu0
        %v2613 = vadd.f32 0.0, %v2612
        %2614 = vmatmul.bf16.gmra.mxu0 %v2538
        %v2615 = vpop.f32.mrf.mxu0
        %v2616 = vadd.f32 0.0, %v2615
        %v2617 = vpop.f32.mrf.mxu0
        %v2618 = vadd.f32 0.0, %v2617
        %2619 = vmatmul.bf16.gmra.mxu0 %v2539
        %v2620 = vpop.f32.mrf.mxu0
        %v2621 = vadd.f32 0.0, %v2620
        %v2622 = vpop.f32.mrf.mxu0
        %v2623 = vadd.f32 0.0, %v2622
        %2624 = vmatmul.bf16.gmra.mxu0 %v2540
        %v2625 = vpop.f32.mrf.mxu0
        %v2626 = vadd.f32 0.0, %v2625
        %v2627 = vpop.f32.mrf.mxu0
        %v2628 = vadd.f32 0.0, %v2627
        %2629 = vmatmul.bf16.gmra.mxu0 %v2541
        %v2630 = vpop.f32.mrf.mxu0
        %v2631 = vadd.f32 0.0, %v2630
        %v2632 = vpop.f32.mrf.mxu0
        %v2633 = vadd.f32 0.0, %v2632
        %2634 = vmatmul.bf16.gmra.mxu0 %v2542
        %v2635 = vpop.f32.mrf.mxu0
        %v2636 = vadd.f32 0.0, %v2635
        %v2637 = vpop.f32.mrf.mxu0
        %v2638 = vadd.f32 0.0, %v2637
        %2639 = vmatmul.bf16.gmra.mxu0 %v2543
        %v2640 = vpop.f32.mrf.mxu0
        %v2641 = vadd.f32 0.0, %v2640
        %v2642 = vpop.f32.mrf.mxu0
        %v2643 = vadd.f32 0.0, %v2642
        %2644 = vmatmul.bf16.gmra.mxu0 %v2544
        %v2645 = vpop.f32.mrf.mxu0
        %v2646 = vadd.f32 0.0, %v2645
        %v2647 = vpop.f32.mrf.mxu0
        %v2648 = vadd.f32 0.0, %v2647
        %2649 = vdwg.mxu0
        %v2650 = vadd.f32 %v2400, %v2611
        %v2651 = vadd.f32 %v2401, %v2613
        %v2652 = vadd.f32 %v2402, %v2616
        %v2653 = vadd.f32 %v2403, %v2618
        %v2654 = vadd.f32 %v2404, %v2621
        %v2655 = vadd.f32 %v2405, %v2623
        %v2656 = vadd.f32 %v2406, %v2626
        %v2657 = vadd.f32 %v2407, %v2628
        %v2658 = vadd.f32 %v2408, %v2631
        %v2659 = vadd.f32 %v2409, %v2633
        %v2660 = vadd.f32 %v2410, %v2636
        %v2661 = vadd.f32 %v2411, %v2638
        %v2662 = vadd.f32 %v2412, %v2641
        %v2663 = vadd.f32 %v2413, %v2643
        %v2664 = vadd.f32 %v2414, %v2646
        %v2665 = vadd.f32 %v2415, %v2648
        %s2666 = sadd.s32 %s1006, 2
        %s2667 = smul.u32 %s2666, 4
        %s2668 = smul.addr %s2667, 4
        %s2669 = scalar_lea.vmem [#allocation2], %s2668
        %v2670 = vld [vmem:[%s2669] sm:$0xf]
        %v2671 = vld [vmem:[%s2669 + $0x4] sm:$0xf]
        %v2672 = vld [vmem:[%s2669 + $0x10] sm:$0xf]
        %v2673 = vld [vmem:[%s2669 + $0x14] sm:$0xf]
        %v2674 = vld [vmem:[%s2669 + $0x20] sm:$0xf]
        %v2675 = vld [vmem:[%s2669 + $0x24] sm:$0xf]
        %v2676 = vld [vmem:[%s2669 + $0x30] sm:$0xf]
        %v2677 = vld [vmem:[%s2669 + $0x34] sm:$0xf]
        %v2678 = vld [vmem:[%s2669 + $0x40] sm:$0xf]
        %v2679 = vld [vmem:[%s2669 + $0x44] sm:$0xf]
        %v2680 = vld [vmem:[%s2669 + $0x50] sm:$0xf]
        %v2681 = vld [vmem:[%s2669 + $0x54] sm:$0xf]
        %v2682 = vld [vmem:[%s2669 + $0x60] sm:$0xf]
        %v2683 = vld [vmem:[%s2669 + $0x64] sm:$0xf]
        %v2684 = vld [vmem:[%s2669 + $0x70] sm:$0xf]
        %v2685 = vld [vmem:[%s2669 + $0x74] sm:$0xf]
        %s2686 = scalar_lea.vmem %s3, 384
        %v2687 = vld [vmem:[%s2686] sm:$0xf]
        %v2688 = vld [vmem:[%s2686 + $0x4] sm:$0xf]
        %v2689 = vld [vmem:[%s2686 + $0x8] sm:$0xf]
        %v2690 = vld [vmem:[%s2686 + $0xc] sm:$0xf]
        %v2691 = vld [vmem:[%s2686 + $0x10] sm:$0xf]
        %v2692 = vld [vmem:[%s2686 + $0x14] sm:$0xf]
        %v2693 = vld [vmem:[%s2686 + $0x18] sm:$0xf]
        %v2694 = vld [vmem:[%s2686 + $0x1c] sm:$0xf]
        %v2695 = vld [vmem:[%s2686 + $0x20] sm:$0xf]
        %v2696 = vld [vmem:[%s2686 + $0x24] sm:$0xf]
        %v2697 = vld [vmem:[%s2686 + $0x28] sm:$0xf]
        %v2698 = vld [vmem:[%s2686 + $0x2c] sm:$0xf]
        %v2699 = vld [vmem:[%s2686 + $0x30] sm:$0xf]
        %v2700 = vld [vmem:[%s2686 + $0x34] sm:$0xf]
        %v2701 = vld [vmem:[%s2686 + $0x38] sm:$0xf]
        %v2702 = vld [vmem:[%s2686 + $0x3c] sm:$0xf]
        %v2719 = vunpack.c.l.b16 %v2670
        %v2720 = vunpack.c.l.b16 %v2671
        %v2721 = vunpack.c.l.b16 %v2672
        %v2722 = vunpack.c.l.b16 %v2673
        %v2723 = vunpack.c.l.b16 %v2674
        %v2724 = vunpack.c.l.b16 %v2675
        %v2725 = vunpack.c.l.b16 %v2676
        %v2726 = vunpack.c.l.b16 %v2677
        %v2727 = vunpack.c.l.b16 %v2678
        %v2728 = vunpack.c.l.b16 %v2679
        %v2729 = vunpack.c.l.b16 %v2680
        %v2730 = vunpack.c.l.b16 %v2681
        %v2731 = vunpack.c.l.b16 %v2682
        %v2732 = vunpack.c.l.b16 %v2683
        %v2733 = vunpack.c.l.b16 %v2684
        %v2734 = vunpack.c.l.b16 %v2685
        %v2735 = vpack.c.b16 %v2720, %v2719
        %v2736 = vpack.c.b16 %v2722, %v2721
        %v2737 = vpack.c.b16 %v2724, %v2723
        %v2738 = vpack.c.b16 %v2726, %v2725
        %v2739 = vpack.c.b16 %v2728, %v2727
        %v2740 = vpack.c.b16 %v2730, %v2729
        %v2741 = vpack.c.b16 %v2732, %v2731
        %v2742 = vpack.c.b16 %v2734, %v2733
        %v2767 = vunpack.c.l.b16 %v2687
        %v2768 = vunpack.c.l.b16 %v2688
        %v2769 = vunpack.c.l.b16 %v2689
        %v2770 = vunpack.c.l.b16 %v2690
        %v2771 = vunpack.c.l.b16 %v2691
        %v2772 = vunpack.c.l.b16 %v2692
        %v2773 = vunpack.c.l.b16 %v2693
        %v2774 = vunpack.c.l.b16 %v2694
        %v2775 = vunpack.c.l.b16 %v2695
        %v2776 = vunpack.c.l.b16 %v2696
        %v2777 = vunpack.c.l.b16 %v2697
        %v2778 = vunpack.c.l.b16 %v2698
        %v2779 = vunpack.c.l.b16 %v2699
        %v2780 = vunpack.c.l.b16 %v2700
        %v2781 = vunpack.c.l.b16 %v2701
        %v2782 = vunpack.c.l.b16 %v2702
        %v2783 = vpack.c.b16 %v2768, %v2767
        %v2784 = vpack.c.b16 %v2770, %v2769
        %v2785 = vpack.c.b16 %v2772, %v2771
        %v2786 = vpack.c.b16 %v2774, %v2773
        %v2787 = vpack.c.b16 %v2776, %v2775
        %v2788 = vpack.c.b16 %v2778, %v2777
        %v2789 = vpack.c.b16 %v2780, %v2779
        %v2790 = vpack.c.b16 %v2782, %v2781
        %2799 = vmatpush.bf16.msra.mxu0 %v2790
        %2800 = vmatpush.bf16.msra.mxu0 %v2789
        %2801 = vmatpush.bf16.msra.mxu0 %v2788
        %2802 = vmatpush.bf16.msra.mxu0 %v2787
        %2803 = vmatpush.bf16.msra.mxu0 %v2786
        %2804 = vmatpush.bf16.msra.mxu0 %v2785
        %2805 = vmatpush.bf16.msra.mxu0 %v2784
        %2806 = vmatpush.bf16.msra.mxu0 %v2783
        %2807 = vmatmul.bf16.gmra.mxu0 %v2735
        %v2808 = vpop.f32.mrf.mxu0
        %v2809 = vadd.f32 0.0, %v2808
        %v2810 = vpop.f32.mrf.mxu0
        %v2811 = vadd.f32 0.0, %v2810
        %2812 = vmatmul.bf16.gmra.mxu0 %v2736
        %v2813 = vpop.f32.mrf.mxu0
        %v2814 = vadd.f32 0.0, %v2813
        %v2815 = vpop.f32.mrf.mxu0
        %v2816 = vadd.f32 0.0, %v2815
        %2817 = vmatmul.bf16.gmra.mxu0 %v2737
        %v2818 = vpop.f32.mrf.mxu0
        %v2819 = vadd.f32 0.0, %v2818
        %v2820 = vpop.f32.mrf.mxu0
        %v2821 = vadd.f32 0.0, %v2820
        %2822 = vmatmul.bf16.gmra.mxu0 %v2738
        %v2823 = vpop.f32.mrf.mxu0
        %v2824 = vadd.f32 0.0, %v2823
        %v2825 = vpop.f32.mrf.mxu0
        %v2826 = vadd.f32 0.0, %v2825
        %2827 = vmatmul.bf16.gmra.mxu0 %v2739
        %v2828 = vpop.f32.mrf.mxu0
        %v2829 = vadd.f32 0.0, %v2828
        %v2830 = vpop.f32.mrf.mxu0
        %v2831 = vadd.f32 0.0, %v2830
        %2832 = vmatmul.bf16.gmra.mxu0 %v2740
        %v2833 = vpop.f32.mrf.mxu0
        %v2834 = vadd.f32 0.0, %v2833
        %v2835 = vpop.f32.mrf.mxu0
        %v2836 = vadd.f32 0.0, %v2835
        %2837 = vmatmul.bf16.gmra.mxu0 %v2741
        %v2838 = vpop.f32.mrf.mxu0
        %v2839 = vadd.f32 0.0, %v2838
        %v2840 = vpop.f32.mrf.mxu0
        %v2841 = vadd.f32 0.0, %v2840
        %2842 = vmatmul.bf16.gmra.mxu0 %v2742
        %v2843 = vpop.f32.mrf.mxu0
        %v2844 = vadd.f32 0.0, %v2843
        %v2845 = vpop.f32.mrf.mxu0
        %v2846 = vadd.f32 0.0, %v2845
        %2847 = vdwg.mxu0
        %v2848 = vadd.f32 %v2650, %v2809
        %v2849 = vadd.f32 %v2651, %v2811
        %v2850 = vadd.f32 %v2652, %v2814
        %v2851 = vadd.f32 %v2653, %v2816
        %v2852 = vadd.f32 %v2654, %v2819
        %v2853 = vadd.f32 %v2655, %v2821
        %v2854 = vadd.f32 %v2656, %v2824
        %v2855 = vadd.f32 %v2657, %v2826
        %v2856 = vadd.f32 %v2658, %v2829
        %v2857 = vadd.f32 %v2659, %v2831
        %v2858 = vadd.f32 %v2660, %v2834
        %v2859 = vadd.f32 %v2661, %v2836
        %v2860 = vadd.f32 %v2662, %v2839
        %v2861 = vadd.f32 %v2663, %v2841
        %v2862 = vadd.f32 %v2664, %v2844
        %v2863 = vadd.f32 %v2665, %v2846
        %v2864 = vld [vmem:[%s2669] sm:$0xf]
        %v2865 = vld [vmem:[%s2669 + $0x4] sm:$0xf]
        %v2866 = vld [vmem:[%s2669 + $0x8] sm:$0x1]
        %v2867 = vld [vmem:[%s2669 + $0x10] sm:$0xf]
        %v2868 = vld [vmem:[%s2669 + $0x14] sm:$0xf]
        %v2869 = vld [vmem:[%s2669 + $0x18] sm:$0x1]
        %v2870 = vld [vmem:[%s2669 + $0x20] sm:$0xf]
        %v2871 = vld [vmem:[%s2669 + $0x24] sm:$0xf]
        %v2872 = vld [vmem:[%s2669 + $0x28] sm:$0x1]
        %v2873 = vld [vmem:[%s2669 + $0x30] sm:$0xf]
        %v2874 = vld [vmem:[%s2669 + $0x34] sm:$0xf]
        %v2875 = vld [vmem:[%s2669 + $0x38] sm:$0x1]
        %v2876 = vld [vmem:[%s2669 + $0x40] sm:$0xf]
        %v2877 = vld [vmem:[%s2669 + $0x44] sm:$0xf]
        %v2878 = vld [vmem:[%s2669 + $0x48] sm:$0x1]
        %v2879 = vld [vmem:[%s2669 + $0x50] sm:$0xf]
        %v2880 = vld [vmem:[%s2669 + $0x54] sm:$0xf]
        %v2881 = vld [vmem:[%s2669 + $0x58] sm:$0x1]
        %v2882 = vld [vmem:[%s2669 + $0x60] sm:$0xf]
        %v2883 = vld [vmem:[%s2669 + $0x64] sm:$0xf]
        %v2884 = vld [vmem:[%s2669 + $0x68] sm:$0x1]
        %v2885 = vld [vmem:[%s2669 + $0x70] sm:$0xf]
        %v2886 = vld [vmem:[%s2669 + $0x74] sm:$0xf]
        %v2887 = vld [vmem:[%s2669 + $0x78] sm:$0x1]
        %v2889 = vshrl.u32 %v2864, 16
        %v2891 = vrot.slane %v2889, 4
        %v2892 = vshll.u32 %v2864, 16
        %v2894 = vrot.slane %v2892, 5
        %v2895 = vor.u32 %v2891, %v2894
        %v2896 = vrot.slane %v2895, 4
        %v2898 = vshll.u32 %v2865, 16
        %v2900 = vrot.slane %v2898, 5
        %v2901 = vsel %vm1232, %v2896, %v2900
        %v2902 = vshrl.u32 %v2865, 16
        %v2904 = vrot.slane %v2902, 4
        %v2905 = vor.u32 %v2904, %v2900
        %v2906 = vrot.slane %v2905, 4
        %v2908 = vshll.u32 %v2866, 16
        %v2910 = vrot.slane %v2908, 5
        %v2911 = vsel %vm1232, %v2906, %v2910
        %v2913 = vshrl.u32 %v2867, 16
        %v2915 = vrot.slane %v2913, 4
        %v2916 = vshll.u32 %v2867, 16
        %v2918 = vrot.slane %v2916, 5
        %v2919 = vor.u32 %v2915, %v2918
        %v2920 = vrot.slane %v2919, 4
        %v2922 = vshll.u32 %v2868, 16
        %v2924 = vrot.slane %v2922, 5
        %v2925 = vsel %vm1232, %v2920, %v2924
        %v2926 = vshrl.u32 %v2868, 16
        %v2928 = vrot.slane %v2926, 4
        %v2929 = vor.u32 %v2928, %v2924
        %v2930 = vrot.slane %v2929, 4
        %v2932 = vshll.u32 %v2869, 16
        %v2934 = vrot.slane %v2932, 5
        %v2935 = vsel %vm1232, %v2930, %v2934
        %v2937 = vshrl.u32 %v2870, 16
        %v2939 = vrot.slane %v2937, 4
        %v2940 = vshll.u32 %v2870, 16
        %v2942 = vrot.slane %v2940, 5
        %v2943 = vor.u32 %v2939, %v2942
        %v2944 = vrot.slane %v2943, 4
        %v2946 = vshll.u32 %v2871, 16
        %v2948 = vrot.slane %v2946, 5
        %v2949 = vsel %vm1232, %v2944, %v2948
        %v2950 = vshrl.u32 %v2871, 16
        %v2952 = vrot.slane %v2950, 4
        %v2953 = vor.u32 %v2952, %v2948
        %v2954 = vrot.slane %v2953, 4
        %v2956 = vshll.u32 %v2872, 16
        %v2958 = vrot.slane %v2956, 5
        %v2959 = vsel %vm1232, %v2954, %v2958
        %v2961 = vshrl.u32 %v2873, 16
        %v2963 = vrot.slane %v2961, 4
        %v2964 = vshll.u32 %v2873, 16
        %v2966 = vrot.slane %v2964, 5
        %v2967 = vor.u32 %v2963, %v2966
        %v2968 = vrot.slane %v2967, 4
        %v2970 = vshll.u32 %v2874, 16
        %v2972 = vrot.slane %v2970, 5
        %v2973 = vsel %vm1232, %v2968, %v2972
        %v2974 = vshrl.u32 %v2874, 16
        %v2976 = vrot.slane %v2974, 4
        %v2977 = vor.u32 %v2976, %v2972
        %v2978 = vrot.slane %v2977, 4
        %v2980 = vshll.u32 %v2875, 16
        %v2982 = vrot.slane %v2980, 5
        %v2983 = vsel %vm1232, %v2978, %v2982
        %v2985 = vshrl.u32 %v2876, 16
        %v2987 = vrot.slane %v2985, 4
        %v2988 = vshll.u32 %v2876, 16
        %v2990 = vrot.slane %v2988, 5
        %v2991 = vor.u32 %v2987, %v2990
        %v2992 = vrot.slane %v2991, 4
        %v2994 = vshll.u32 %v2877, 16
        %v2996 = vrot.slane %v2994, 5
        %v2997 = vsel %vm1232, %v2992, %v2996
        %v2998 = vshrl.u32 %v2877, 16
        %v3000 = vrot.slane %v2998, 4
        %v3001 = vor.u32 %v3000, %v2996
        %v3002 = vrot.slane %v3001, 4
        %v3004 = vshll.u32 %v2878, 16
        %v3006 = vrot.slane %v3004, 5
        %v3007 = vsel %vm1232, %v3002, %v3006
        %v3009 = vshrl.u32 %v2879, 16
        %v3011 = vrot.slane %v3009, 4
        %v3012 = vshll.u32 %v2879, 16
        %v3014 = vrot.slane %v3012, 5
        %v3015 = vor.u32 %v3011, %v3014
        %v3016 = vrot.slane %v3015, 4
        %v3018 = vshll.u32 %v2880, 16
        %v3020 = vrot.slane %v3018, 5
        %v3021 = vsel %vm1232, %v3016, %v3020
        %v3022 = vshrl.u32 %v2880, 16
        %v3024 = vrot.slane %v3022, 4
        %v3025 = vor.u32 %v3024, %v3020
        %v3026 = vrot.slane %v3025, 4
        %v3028 = vshll.u32 %v2881, 16
        %v3030 = vrot.slane %v3028, 5
        %v3031 = vsel %vm1232, %v3026, %v3030
        %v3033 = vshrl.u32 %v2882, 16
        %v3035 = vrot.slane %v3033, 4
        %v3036 = vshll.u32 %v2882, 16
        %v3038 = vrot.slane %v3036, 5
        %v3039 = vor.u32 %v3035, %v3038
        %v3040 = vrot.slane %v3039, 4
        %v3042 = vshll.u32 %v2883, 16
        %v3044 = vrot.slane %v3042, 5
        %v3045 = vsel %vm1232, %v3040, %v3044
        %v3046 = vshrl.u32 %v2883, 16
        %v3048 = vrot.slane %v3046, 4
        %v3049 = vor.u32 %v3048, %v3044
        %v3050 = vrot.slane %v3049, 4
        %v3052 = vshll.u32 %v2884, 16
        %v3054 = vrot.slane %v3052, 5
        %v3055 = vsel %vm1232, %v3050, %v3054
        %v3057 = vshrl.u32 %v2885, 16
        %v3059 = vrot.slane %v3057, 4
        %v3060 = vshll.u32 %v2885, 16
        %v3062 = vrot.slane %v3060, 5
        %v3063 = vor.u32 %v3059, %v3062
        %v3064 = vrot.slane %v3063, 4
        %v3066 = vshll.u32 %v2886, 16
        %v3068 = vrot.slane %v3066, 5
        %v3069 = vsel %vm1232, %v3064, %v3068
        %v3070 = vshrl.u32 %v2886, 16
        %v3072 = vrot.slane %v3070, 4
        %v3073 = vor.u32 %v3072, %v3068
        %v3074 = vrot.slane %v3073, 4
        %v3076 = vshll.u32 %v2887, 16
        %v3078 = vrot.slane %v3076, 5
        %v3079 = vsel %vm1232, %v3074, %v3078
        %s3080 = scalar_lea.vmem %s3, 448
        %v3081 = vld [vmem:[%s3080] sm:$0xf]
        %v3082 = vld [vmem:[%s3080 + $0x4] sm:$0xf]
        %v3083 = vld [vmem:[%s3080 + $0x8] sm:$0xf]
        %v3084 = vld [vmem:[%s3080 + $0xc] sm:$0xf]
        %v3085 = vld [vmem:[%s3080 + $0x10] sm:$0xf]
        %v3086 = vld [vmem:[%s3080 + $0x14] sm:$0xf]
        %v3087 = vld [vmem:[%s3080 + $0x18] sm:$0xf]
        %v3088 = vld [vmem:[%s3080 + $0x1c] sm:$0xf]
        %v3089 = vld [vmem:[%s3080 + $0x20] sm:$0xf]
        %v3090 = vld [vmem:[%s3080 + $0x24] sm:$0xf]
        %v3091 = vld [vmem:[%s3080 + $0x28] sm:$0xf]
        %v3092 = vld [vmem:[%s3080 + $0x2c] sm:$0xf]
        %v3093 = vld [vmem:[%s3080 + $0x30] sm:$0xf]
        %v3094 = vld [vmem:[%s3080 + $0x34] sm:$0xf]
        %v3095 = vld [vmem:[%s3080 + $0x38] sm:$0xf]
        %v3096 = vld [vmem:[%s3080 + $0x3c] sm:$0xf]
        %v3097 = vunpack.c.l.b16 %v2901
        %v3098 = vunpack.c.l.b16 %v2911
        %v3099 = vunpack.c.l.b16 %v2925
        %v3100 = vunpack.c.l.b16 %v2935
        %v3101 = vunpack.c.l.b16 %v2949
        %v3102 = vunpack.c.l.b16 %v2959
        %v3103 = vunpack.c.l.b16 %v2973
        %v3104 = vunpack.c.l.b16 %v2983
        %v3105 = vunpack.c.l.b16 %v2997
        %v3106 = vunpack.c.l.b16 %v3007
        %v3107 = vunpack.c.l.b16 %v3021
        %v3108 = vunpack.c.l.b16 %v3031
        %v3109 = vunpack.c.l.b16 %v3045
        %v3110 = vunpack.c.l.b16 %v3055
        %v3111 = vunpack.c.l.b16 %v3069
        %v3112 = vunpack.c.l.b16 %v3079
        %v3113 = vpack.c.b16 %v3098, %v3097
        %v3114 = vpack.c.b16 %v3100, %v3099
        %v3115 = vpack.c.b16 %v3102, %v3101
        %v3116 = vpack.c.b16 %v3104, %v3103
        %v3117 = vpack.c.b16 %v3106, %v3105
        %v3118 = vpack.c.b16 %v3108, %v3107
        %v3119 = vpack.c.b16 %v3110, %v3109
        %v3120 = vpack.c.b16 %v3112, %v3111
        %v3145 = vunpack.c.l.b16 %v3081
        %v3146 = vunpack.c.l.b16 %v3082
        %v3147 = vunpack.c.l.b16 %v3083
        %v3148 = vunpack.c.l.b16 %v3084
        %v3149 = vunpack.c.l.b16 %v3085
        %v3150 = vunpack.c.l.b16 %v3086
        %v3151 = vunpack.c.l.b16 %v3087
        %v3152 = vunpack.c.l.b16 %v3088
        %v3153 = vunpack.c.l.b16 %v3089
        %v3154 = vunpack.c.l.b16 %v3090
        %v3155 = vunpack.c.l.b16 %v3091
        %v3156 = vunpack.c.l.b16 %v3092
        %v3157 = vunpack.c.l.b16 %v3093
        %v3158 = vunpack.c.l.b16 %v3094
        %v3159 = vunpack.c.l.b16 %v3095
        %v3160 = vunpack.c.l.b16 %v3096
        %v3161 = vpack.c.b16 %v3146, %v3145
        %v3162 = vpack.c.b16 %v3148, %v3147
        %v3163 = vpack.c.b16 %v3150, %v3149
        %v3164 = vpack.c.b16 %v3152, %v3151
        %v3165 = vpack.c.b16 %v3154, %v3153
        %v3166 = vpack.c.b16 %v3156, %v3155
        %v3167 = vpack.c.b16 %v3158, %v3157
        %v3168 = vpack.c.b16 %v3160, %v3159
        %3177 = vmatpush.bf16.msra.mxu0 %v3168
        %3178 = vmatpush.bf16.msra.mxu0 %v3167
        %3179 = vmatpush.bf16.msra.mxu0 %v3166
        %3180 = vmatpush.bf16.msra.mxu0 %v3165
        %3181 = vmatpush.bf16.msra.mxu0 %v3164
        %3182 = vmatpush.bf16.msra.mxu0 %v3163
        %3183 = vmatpush.bf16.msra.mxu0 %v3162
        %3184 = vmatpush.bf16.msra.mxu0 %v3161
        %3185 = vmatmul.bf16.gmra.mxu0 %v3113
        %v3186 = vpop.f32.mrf.mxu0
        %v3187 = vadd.f32 0.0, %v3186
        %v3188 = vpop.f32.mrf.mxu0
        %v3189 = vadd.f32 0.0, %v3188
        %3190 = vmatmul.bf16.gmra.mxu0 %v3114
        %v3191 = vpop.f32.mrf.mxu0
        %v3192 = vadd.f32 0.0, %v3191
        %v3193 = vpop.f32.mrf.mxu0
        %v3194 = vadd.f32 0.0, %v3193
        %3195 = vmatmul.bf16.gmra.mxu0 %v3115
        %v3196 = vpop.f32.mrf.mxu0
        %v3197 = vadd.f32 0.0, %v3196
        %v3198 = vpop.f32.mrf.mxu0
        %v3199 = vadd.f32 0.0, %v3198
        %3200 = vmatmul.bf16.gmra.mxu0 %v3116
        %v3201 = vpop.f32.mrf.mxu0
        %v3202 = vadd.f32 0.0, %v3201
        %v3203 = vpop.f32.mrf.mxu0
        %v3204 = vadd.f32 0.0, %v3203
        %3205 = vmatmul.bf16.gmra.mxu0 %v3117
        %v3206 = vpop.f32.mrf.mxu0
        %v3207 = vadd.f32 0.0, %v3206
        %v3208 = vpop.f32.mrf.mxu0
        %v3209 = vadd.f32 0.0, %v3208
        %3210 = vmatmul.bf16.gmra.mxu0 %v3118
        %v3211 = vpop.f32.mrf.mxu0
        %v3212 = vadd.f32 0.0, %v3211
        %v3213 = vpop.f32.mrf.mxu0
        %v3214 = vadd.f32 0.0, %v3213
        %3215 = vmatmul.bf16.gmra.mxu0 %v3119
        %v3216 = vpop.f32.mrf.mxu0
        %v3217 = vadd.f32 0.0, %v3216
        %v3218 = vpop.f32.mrf.mxu0
        %v3219 = vadd.f32 0.0, %v3218
        %3220 = vmatmul.bf16.gmra.mxu0 %v3120
        %v3221 = vpop.f32.mrf.mxu0
        %v3222 = vadd.f32 0.0, %v3221
        %v3223 = vpop.f32.mrf.mxu0
        %v3224 = vadd.f32 0.0, %v3223
        %3225 = vdwg.mxu0
        %v3226 = vadd.f32 %v2848, %v3187
        %v3227 = vadd.f32 %v2849, %v3189
        %v3228 = vadd.f32 %v2850, %v3192
        %v3229 = vadd.f32 %v2851, %v3194
        %v3230 = vadd.f32 %v2852, %v3197
        %v3231 = vadd.f32 %v2853, %v3199
        %v3232 = vadd.f32 %v2854, %v3202
        %v3233 = vadd.f32 %v2855, %v3204
        %v3234 = vadd.f32 %v2856, %v3207
        %v3235 = vadd.f32 %v2857, %v3209
        %v3236 = vadd.f32 %v2858, %v3212
        %v3237 = vadd.f32 %v2859, %v3214
        %v3238 = vadd.f32 %v2860, %v3217
        %v3239 = vadd.f32 %v2861, %v3219
        %v3240 = vadd.f32 %v2862, %v3222
        %v3241 = vadd.f32 %v2863, %v3224
        %v3242 = vld [vmem:[%s2669] sm:$0xe]
        %v3243 = vld [vmem:[%s2669 + $0x10] sm:$0xe]
        %v3244 = vld [vmem:[%s2669 + $0x20] sm:$0xe]
        %v3245 = vld [vmem:[%s2669 + $0x30] sm:$0xe]
        %v3246 = vld [vmem:[%s2669 + $0x40] sm:$0xe]
        %v3247 = vld [vmem:[%s2669 + $0x50] sm:$0xe]
        %v3248 = vld [vmem:[%s2669 + $0x60] sm:$0xe]
        %v3249 = vld [vmem:[%s2669 + $0x70] sm:$0xe]
        %v3274 = vrot.slane %v3242, 5
        %v3275 = vrot.slane %v3274, 4
        %v3276 = vrot.slane %v2865, 5
        %v3277 = vsel %vm1621, %v3275, %v3276
        %v3278 = vrot.slane %v3276, 4
        %v3279 = vrot.slane %v2866, 5
        %v3280 = vsel %vm1621, %v3278, %v3279
        %v3281 = vrot.slane %v3243, 5
        %v3282 = vrot.slane %v3281, 4
        %v3283 = vrot.slane %v2868, 5
        %v3284 = vsel %vm1621, %v3282, %v3283
        %v3285 = vrot.slane %v3283, 4
        %v3286 = vrot.slane %v2869, 5
        %v3287 = vsel %vm1621, %v3285, %v3286
        %v3288 = vrot.slane %v3244, 5
        %v3289 = vrot.slane %v3288, 4
        %v3290 = vrot.slane %v2871, 5
        %v3291 = vsel %vm1621, %v3289, %v3290
        %v3292 = vrot.slane %v3290, 4
        %v3293 = vrot.slane %v2872, 5
        %v3294 = vsel %vm1621, %v3292, %v3293
        %v3295 = vrot.slane %v3245, 5
        %v3296 = vrot.slane %v3295, 4
        %v3297 = vrot.slane %v2874, 5
        %v3298 = vsel %vm1621, %v3296, %v3297
        %v3299 = vrot.slane %v3297, 4
        %v3300 = vrot.slane %v2875, 5
        %v3301 = vsel %vm1621, %v3299, %v3300
        %v3302 = vrot.slane %v3246, 5
        %v3303 = vrot.slane %v3302, 4
        %v3304 = vrot.slane %v2877, 5
        %v3305 = vsel %vm1621, %v3303, %v3304
        %v3306 = vrot.slane %v3304, 4
        %v3307 = vrot.slane %v2878, 5
        %v3308 = vsel %vm1621, %v3306, %v3307
        %v3309 = vrot.slane %v3247, 5
        %v3310 = vrot.slane %v3309, 4
        %v3311 = vrot.slane %v2880, 5
        %v3312 = vsel %vm1621, %v3310, %v3311
        %v3313 = vrot.slane %v3311, 4
        %v3314 = vrot.slane %v2881, 5
        %v3315 = vsel %vm1621, %v3313, %v3314
        %v3316 = vrot.slane %v3248, 5
        %v3317 = vrot.slane %v3316, 4
        %v3318 = vrot.slane %v2883, 5
        %v3319 = vsel %vm1621, %v3317, %v3318
        %v3320 = vrot.slane %v3318, 4
        %v3321 = vrot.slane %v2884, 5
        %v3322 = vsel %vm1621, %v3320, %v3321
        %v3323 = vrot.slane %v3249, 5
        %v3324 = vrot.slane %v3323, 4
        %v3325 = vrot.slane %v2886, 5
        %v3326 = vsel %vm1621, %v3324, %v3325
        %v3327 = vrot.slane %v3325, 4
        %v3328 = vrot.slane %v2887, 5
        %v3329 = vsel %vm1621, %v3327, %v3328
        %s3330 = scalar_lea.vmem %s3, 512
        %v3331 = vld [vmem:[%s3330] sm:$0xf]
        %v3332 = vld [vmem:[%s3330 + $0x4] sm:$0xf]
        %v3333 = vld [vmem:[%s3330 + $0x8] sm:$0xf]
        %v3334 = vld [vmem:[%s3330 + $0xc] sm:$0xf]
        %v3335 = vld [vmem:[%s3330 + $0x10] sm:$0xf]
        %v3336 = vld [vmem:[%s3330 + $0x14] sm:$0xf]
        %v3337 = vld [vmem:[%s3330 + $0x18] sm:$0xf]
        %v3338 = vld [vmem:[%s3330 + $0x1c] sm:$0xf]
        %v3339 = vld [vmem:[%s3330 + $0x20] sm:$0xf]
        %v3340 = vld [vmem:[%s3330 + $0x24] sm:$0xf]
        %v3341 = vld [vmem:[%s3330 + $0x28] sm:$0xf]
        %v3342 = vld [vmem:[%s3330 + $0x2c] sm:$0xf]
        %v3343 = vld [vmem:[%s3330 + $0x30] sm:$0xf]
        %v3344 = vld [vmem:[%s3330 + $0x34] sm:$0xf]
        %v3345 = vld [vmem:[%s3330 + $0x38] sm:$0xf]
        %v3346 = vld [vmem:[%s3330 + $0x3c] sm:$0xf]
        %v3347 = vunpack.c.l.b16 %v3277
        %v3348 = vunpack.c.l.b16 %v3280
        %v3349 = vunpack.c.l.b16 %v3284
        %v3350 = vunpack.c.l.b16 %v3287
        %v3351 = vunpack.c.l.b16 %v3291
        %v3352 = vunpack.c.l.b16 %v3294
        %v3353 = vunpack.c.l.b16 %v3298
        %v3354 = vunpack.c.l.b16 %v3301
        %v3355 = vunpack.c.l.b16 %v3305
        %v3356 = vunpack.c.l.b16 %v3308
        %v3357 = vunpack.c.l.b16 %v3312
        %v3358 = vunpack.c.l.b16 %v3315
        %v3359 = vunpack.c.l.b16 %v3319
        %v3360 = vunpack.c.l.b16 %v3322
        %v3361 = vunpack.c.l.b16 %v3326
        %v3362 = vunpack.c.l.b16 %v3329
        %v3363 = vpack.c.b16 %v3348, %v3347
        %v3364 = vpack.c.b16 %v3350, %v3349
        %v3365 = vpack.c.b16 %v3352, %v3351
        %v3366 = vpack.c.b16 %v3354, %v3353
        %v3367 = vpack.c.b16 %v3356, %v3355
        %v3368 = vpack.c.b16 %v3358, %v3357
        %v3369 = vpack.c.b16 %v3360, %v3359
        %v3370 = vpack.c.b16 %v3362, %v3361
        %v3395 = vunpack.c.l.b16 %v3331
        %v3396 = vunpack.c.l.b16 %v3332
        %v3397 = vunpack.c.l.b16 %v3333
        %v3398 = vunpack.c.l.b16 %v3334
        %v3399 = vunpack.c.l.b16 %v3335
        %v3400 = vunpack.c.l.b16 %v3336
        %v3401 = vunpack.c.l.b16 %v3337
        %v3402 = vunpack.c.l.b16 %v3338
        %v3403 = vunpack.c.l.b16 %v3339
        %v3404 = vunpack.c.l.b16 %v3340
        %v3405 = vunpack.c.l.b16 %v3341
        %v3406 = vunpack.c.l.b16 %v3342
        %v3407 = vunpack.c.l.b16 %v3343
        %v3408 = vunpack.c.l.b16 %v3344
        %v3409 = vunpack.c.l.b16 %v3345
        %v3410 = vunpack.c.l.b16 %v3346
        %v3411 = vpack.c.b16 %v3396, %v3395
        %v3412 = vpack.c.b16 %v3398, %v3397
        %v3413 = vpack.c.b16 %v3400, %v3399
        %v3414 = vpack.c.b16 %v3402, %v3401
        %v3415 = vpack.c.b16 %v3404, %v3403
        %v3416 = vpack.c.b16 %v3406, %v3405
        %v3417 = vpack.c.b16 %v3408, %v3407
        %v3418 = vpack.c.b16 %v3410, %v3409
        %3427 = vmatpush.bf16.msra.mxu0 %v3418
        %3428 = vmatpush.bf16.msra.mxu0 %v3417
        %3429 = vmatpush.bf16.msra.mxu0 %v3416
        %3430 = vmatpush.bf16.msra.mxu0 %v3415
        %3431 = vmatpush.bf16.msra.mxu0 %v3414
        %3432 = vmatpush.bf16.msra.mxu0 %v3413
        %3433 = vmatpush.bf16.msra.mxu0 %v3412
        %3434 = vmatpush.bf16.msra.mxu0 %v3411
        %3435 = vmatmul.bf16.gmra.mxu0 %v3363
        %v3436 = vpop.f32.mrf.mxu0
        %v3437 = vadd.f32 0.0, %v3436
        %v3438 = vpop.f32.mrf.mxu0
        %v3439 = vadd.f32 0.0, %v3438
        %3440 = vmatmul.bf16.gmra.mxu0 %v3364
        %v3441 = vpop.f32.mrf.mxu0
        %v3442 = vadd.f32 0.0, %v3441
        %v3443 = vpop.f32.mrf.mxu0
        %v3444 = vadd.f32 0.0, %v3443
        %3445 = vmatmul.bf16.gmra.mxu0 %v3365
        %v3446 = vpop.f32.mrf.mxu0
        %v3447 = vadd.f32 0.0, %v3446
        %v3448 = vpop.f32.mrf.mxu0
        %v3449 = vadd.f32 0.0, %v3448
        %3450 = vmatmul.bf16.gmra.mxu0 %v3366
        %v3451 = vpop.f32.mrf.mxu0
        %v3452 = vadd.f32 0.0, %v3451
        %v3453 = vpop.f32.mrf.mxu0
        %v3454 = vadd.f32 0.0, %v3453
        %3455 = vmatmul.bf16.gmra.mxu0 %v3367
        %v3456 = vpop.f32.mrf.mxu0
        %v3457 = vadd.f32 0.0, %v3456
        %v3458 = vpop.f32.mrf.mxu0
        %v3459 = vadd.f32 0.0, %v3458
        %3460 = vmatmul.bf16.gmra.mxu0 %v3368
        %v3461 = vpop.f32.mrf.mxu0
        %v3462 = vadd.f32 0.0, %v3461
        %v3463 = vpop.f32.mrf.mxu0
        %v3464 = vadd.f32 0.0, %v3463
        %3465 = vmatmul.bf16.gmra.mxu0 %v3369
        %v3466 = vpop.f32.mrf.mxu0
        %v3467 = vadd.f32 0.0, %v3466
        %v3468 = vpop.f32.mrf.mxu0
        %v3469 = vadd.f32 0.0, %v3468
        %3470 = vmatmul.bf16.gmra.mxu0 %v3370
        %v3471 = vpop.f32.mrf.mxu0
        %v3472 = vadd.f32 0.0, %v3471
        %v3473 = vpop.f32.mrf.mxu0
        %v3474 = vadd.f32 0.0, %v3473
        %3475 = vdwg.mxu0
        %v3476 = vadd.f32 %v3226, %v3437
        %v3477 = vadd.f32 %v3227, %v3439
        %v3478 = vadd.f32 %v3228, %v3442
        %v3479 = vadd.f32 %v3229, %v3444
        %v3480 = vadd.f32 %v3230, %v3447
        %v3481 = vadd.f32 %v3231, %v3449
        %v3482 = vadd.f32 %v3232, %v3452
        %v3483 = vadd.f32 %v3233, %v3454
        %v3484 = vadd.f32 %v3234, %v3457
        %v3485 = vadd.f32 %v3235, %v3459
        %v3486 = vadd.f32 %v3236, %v3462
        %v3487 = vadd.f32 %v3237, %v3464
        %v3488 = vadd.f32 %v3238, %v3467
        %v3489 = vadd.f32 %v3239, %v3469
        %v3490 = vadd.f32 %v3240, %v3472
        %v3491 = vadd.f32 %v3241, %v3474
        %v3492 = vmax.f32 %v3476, 0.0
        %v3493 = vmax.f32 %v3477, 0.0
        %v3494 = vmax.f32 %v3478, 0.0
        %v3495 = vmax.f32 %v3479, 0.0
        %v3496 = vmax.f32 %v3480, 0.0
        %v3497 = vmax.f32 %v3481, 0.0
        %v3498 = vmax.f32 %v3482, 0.0
        %v3499 = vmax.f32 %v3483, 0.0
        %v3500 = vmax.f32 %v3484, 0.0
        %v3501 = vmax.f32 %v3485, 0.0
        %v3502 = vmax.f32 %v3486, 0.0
        %v3503 = vmax.f32 %v3487, 0.0
        %v3504 = vmax.f32 %v3488, 0.0
        %v3505 = vmax.f32 %v3489, 0.0
        %v3506 = vmax.f32 %v3490, 0.0
        %v3507 = vmax.f32 %v3491, 0.0
        %v3508 = vpack.c.bf16 %v3492, %v3492
        %v3509 = vpack.c.bf16 %v3493, %v3493
        %v3510 = vpack.c.bf16 %v3494, %v3494
        %v3511 = vpack.c.bf16 %v3495, %v3495
        %v3512 = vpack.c.bf16 %v3496, %v3496
        %v3513 = vpack.c.bf16 %v3497, %v3497
        %v3514 = vpack.c.bf16 %v3498, %v3498
        %v3515 = vpack.c.bf16 %v3499, %v3499
        %v3516 = vpack.c.bf16 %v3500, %v3500
        %v3517 = vpack.c.bf16 %v3501, %v3501
        %v3518 = vpack.c.bf16 %v3502, %v3502
        %v3519 = vpack.c.bf16 %v3503, %v3503
        %v3520 = vpack.c.bf16 %v3504, %v3504
        %v3521 = vpack.c.bf16 %v3505, %v3505
        %v3522 = vpack.c.bf16 %v3506, %v3506
        %v3523 = vpack.c.bf16 %v3507, %v3507
        %vm3524 = vsmask.f32 4368
        %vm3525 = vmor %vm318, %vm3524
        %v3527 = vshrl.u32 %v3508, 16
        %v3529 = vrot.slane %v3527, 7
        %v3530 = vshll.u32 %v3508, 16
        %v3532 = vor.u32 %v3529, %v3530
        %v3533 = vrot.slane %v3529, 4
        %v3535 = vshrl.u32 %v3509, 16
        %v3537 = vrot.slane %v3535, 7
        %v3538 = vshll.u32 %v3509, 16
        %v3540 = vor.u32 %v3537, %v3538
        %v3541 = vsel %vm3525, %v3533, %v3540
        %v3542 = vrot.slane %v3537, 4
        %v3544 = vshrl.u32 %v3510, 16
        %v3546 = vrot.slane %v3544, 7
        %v3547 = vshll.u32 %v3510, 16
        %v3549 = vor.u32 %v3546, %v3547
        %v3550 = vrot.slane %v3546, 4
        %v3552 = vshrl.u32 %v3511, 16
        %v3554 = vrot.slane %v3552, 7
        %v3555 = vshll.u32 %v3511, 16
        %v3557 = vor.u32 %v3554, %v3555
        %v3558 = vsel %vm3525, %v3550, %v3557
        %v3559 = vrot.slane %v3554, 4
        %v3561 = vshrl.u32 %v3512, 16
        %v3563 = vrot.slane %v3561, 7
        %v3564 = vshll.u32 %v3512, 16
        %v3566 = vor.u32 %v3563, %v3564
        %v3567 = vrot.slane %v3563, 4
        %v3569 = vshrl.u32 %v3513, 16
        %v3571 = vrot.slane %v3569, 7
        %v3572 = vshll.u32 %v3513, 16
        %v3574 = vor.u32 %v3571, %v3572
        %v3575 = vsel %vm3525, %v3567, %v3574
        %v3576 = vrot.slane %v3571, 4
        %v3578 = vshrl.u32 %v3514, 16
        %v3580 = vrot.slane %v3578, 7
        %v3581 = vshll.u32 %v3514, 16
        %v3583 = vor.u32 %v3580, %v3581
        %v3584 = vrot.slane %v3580, 4
        %v3586 = vshrl.u32 %v3515, 16
        %v3588 = vrot.slane %v3586, 7
        %v3589 = vshll.u32 %v3515, 16
        %v3591 = vor.u32 %v3588, %v3589
        %v3592 = vsel %vm3525, %v3584, %v3591
        %v3593 = vrot.slane %v3588, 4
        %v3595 = vshrl.u32 %v3516, 16
        %v3597 = vrot.slane %v3595, 7
        %v3598 = vshll.u32 %v3516, 16
        %v3600 = vor.u32 %v3597, %v3598
        %v3601 = vrot.slane %v3597, 4
        %v3603 = vshrl.u32 %v3517, 16
        %v3605 = vrot.slane %v3603, 7
        %v3606 = vshll.u32 %v3517, 16
        %v3608 = vor.u32 %v3605, %v3606
        %v3609 = vsel %vm3525, %v3601, %v3608
        %v3610 = vrot.slane %v3605, 4
        %v3612 = vshrl.u32 %v3518, 16
        %v3614 = vrot.slane %v3612, 7
        %v3615 = vshll.u32 %v3518, 16
        %v3617 = vor.u32 %v3614, %v3615
        %v3618 = vrot.slane %v3614, 4
        %v3620 = vshrl.u32 %v3519, 16
        %v3622 = vrot.slane %v3620, 7
        %v3623 = vshll.u32 %v3519, 16
        %v3625 = vor.u32 %v3622, %v3623
        %v3626 = vsel %vm3525, %v3618, %v3625
        %v3627 = vrot.slane %v3622, 4
        %v3629 = vshrl.u32 %v3520, 16
        %v3631 = vrot.slane %v3629, 7
        %v3632 = vshll.u32 %v3520, 16
        %v3634 = vor.u32 %v3631, %v3632
        %v3635 = vrot.slane %v3631, 4
        %v3637 = vshrl.u32 %v3521, 16
        %v3639 = vrot.slane %v3637, 7
        %v3640 = vshll.u32 %v3521, 16
        %v3642 = vor.u32 %v3639, %v3640
        %v3643 = vsel %vm3525, %v3635, %v3642
        %v3644 = vrot.slane %v3639, 4
        %v3646 = vshrl.u32 %v3522, 16
        %v3648 = vrot.slane %v3646, 7
        %v3649 = vshll.u32 %v3522, 16
        %v3651 = vor.u32 %v3648, %v3649
        %v3652 = vrot.slane %v3648, 4
        %v3654 = vshrl.u32 %v3523, 16
        %v3656 = vrot.slane %v3654, 7
        %v3657 = vshll.u32 %v3523, 16
        %v3659 = vor.u32 %v3656, %v3657
        %v3660 = vsel %vm3525, %v3652, %v3659
        %v3661 = vrot.slane %v3656, 4
        %s3686 = smul.addr %s1010, 4
        %s3687 = scalar_lea.vmem [#allocation3], %s3686
        %vm3688 = vcmask 1043456
        %vm3689 = vmand %vm3688, %vm380
        %v3690 = vld [vmem:[%s3687] sm:$0xf]
        %v3691 = vsel %vm3689, %v3532, %v3690
        %3692 = vst [vmem:[%s3687] sm:$0xf] %v3691
        %3693 = vst [vmem:[%s3687 + $0x4] sm:$0xf] %v3541
        %v3694 = vld [vmem:[%s3687 + $0x8] sm:$0x1]
        %v3695 = vsel %vm319, %v3542, %v3694
        %3696 = vst [vmem:[%s3687 + $0x8] sm:$0x1] %v3695
        %v3697 = vld [vmem:[%s3687 + $0x10] sm:$0xf]
        %v3698 = vsel %vm3689, %v3549, %v3697
        %3699 = vst [vmem:[%s3687 + $0x10] sm:$0xf] %v3698
        %3700 = vst [vmem:[%s3687 + $0x14] sm:$0xf] %v3558
        %v3701 = vld [vmem:[%s3687 + $0x18] sm:$0x1]
        %v3702 = vsel %vm319, %v3559, %v3701
        %3703 = vst [vmem:[%s3687 + $0x18] sm:$0x1] %v3702
        %v3704 = vld [vmem:[%s3687 + $0x20] sm:$0xf]
        %v3705 = vsel %vm3689, %v3566, %v3704
        %3706 = vst [vmem:[%s3687 + $0x20] sm:$0xf] %v3705
        %3707 = vst [vmem:[%s3687 + $0x24] sm:$0xf] %v3575
        %v3708 = vld [vmem:[%s3687 + $0x28] sm:$0x1]
        %v3709 = vsel %vm319, %v3576, %v3708
        %3710 = vst [vmem:[%s3687 + $0x28] sm:$0x1] %v3709
        %v3711 = vld [vmem:[%s3687 + $0x30] sm:$0xf]
        %v3712 = vsel %vm3689, %v3583, %v3711
        %3713 = vst [vmem:[%s3687 + $0x30] sm:$0xf] %v3712
        %3714 = vst [vmem:[%s3687 + $0x34] sm:$0xf] %v3592
        %v3715 = vld [vmem:[%s3687 + $0x38] sm:$0x1]
        %v3716 = vsel %vm319, %v3593, %v3715
        %3717 = vst [vmem:[%s3687 + $0x38] sm:$0x1] %v3716
        %v3718 = vld [vmem:[%s3687 + $0x40] sm:$0xf]
        %v3719 = vsel %vm3689, %v3600, %v3718
        %3720 = vst [vmem:[%s3687 + $0x40] sm:$0xf] %v3719
        %3721 = vst [vmem:[%s3687 + $0x44] sm:$0xf] %v3609
        %v3722 = vld [vmem:[%s3687 + $0x48] sm:$0x1]
        %v3723 = vsel %vm319, %v3610, %v3722
        %3724 = vst [vmem:[%s3687 + $0x48] sm:$0x1] %v3723
        %v3725 = vld [vmem:[%s3687 + $0x50] sm:$0xf]
        %v3726 = vsel %vm3689, %v3617, %v3725
        %3727 = vst [vmem:[%s3687 + $0x50] sm:$0xf] %v3726
        %3728 = vst [vmem:[%s3687 + $0x54] sm:$0xf] %v3626
        %v3729 = vld [vmem:[%s3687 + $0x58] sm:$0x1]
        %v3730 = vsel %vm319, %v3627, %v3729
        %3731 = vst [vmem:[%s3687 + $0x58] sm:$0x1] %v3730
        %v3732 = vld [vmem:[%s3687 + $0x60] sm:$0xf]
        %v3733 = vsel %vm3689, %v3634, %v3732
        %3734 = vst [vmem:[%s3687 + $0x60] sm:$0xf] %v3733
        %3735 = vst [vmem:[%s3687 + $0x64] sm:$0xf] %v3643
        %v3736 = vld [vmem:[%s3687 + $0x68] sm:$0x1]
        %v3737 = vsel %vm319, %v3644, %v3736
        %3738 = vst [vmem:[%s3687 + $0x68] sm:$0x1] %v3737
        %v3739 = vld [vmem:[%s3687 + $0x70] sm:$0xf]
        %v3740 = vsel %vm3689, %v3651, %v3739
        %3741 = vst [vmem:[%s3687 + $0x70] sm:$0xf] %v3740
        %3742 = vst [vmem:[%s3687 + $0x74] sm:$0xf] %v3660
        %v3743 = vld [vmem:[%s3687 + $0x78] sm:$0x1]
        %v3744 = vsel %vm319, %v3661, %v3743
        %3745 = vst [vmem:[%s3687 + $0x78] sm:$0x1] %v3744
      $region64: #{generator_forward.1} parent=47 // loop_footer
        %s1003 = sadd.s32 1, %s999
      $region65: #{generator_forward.1} parent=47 // loop_footer_branch
        %998 = sbr.rel target = $region61
      $region66: #{generator_forward.1} parent=47 // loop_exit
        _
      // Predicated region
      $region67: #{generator_forward.1} parent=47 // pred_check
        %p3746 = pneg %p983
      $region68: #{generator_forward.1} parent=47 // pred_check_branch
        %3748 = sbr.rel (%p3746) target = $region70
      $region69: #{generator_forward.1} parent=47 // pred_region
        %3749 = vst [vmem:[#allocation3] sm:$0xf] 0
        %3750 = vst [vmem:[#allocation3 + $0x4] sm:$0xf] 0
        %3751 = vst [vmem:[#allocation3 + $0x8] sm:$0xf] 0
        %3752 = vst [vmem:[#allocation3 + $0xc] sm:$0xf] 0
        %s3753 = scalar_lea.vmem [#allocation3], 272
        %3754 = vst [vmem:[%s3753] sm:$0xf] 0
        %3755 = vst [vmem:[%s3753 + $0x4] sm:$0xf] 0
        %3756 = vst [vmem:[%s3753 + $0x8] sm:$0xf] 0
        %3757 = vst [vmem:[%s3753 + $0xc] sm:$0xf] 0
      $region70: #{generator_forward.1} parent=47 // pred_fallthru
        _
      %v3758 = vld [vmem:[%s6] sm:$0x1]
      %v3760 = vperm.slane %v3758, 0
      %v3762 = vld [vmem:[#allocation3] sm:$0xf]
      %v3763 = vld [vmem:[#allocation3 + $0x4] sm:$0xf]
      %v3764 = vld [vmem:[#allocation3 + $0x10] sm:$0xf]
      %v3765 = vld [vmem:[#allocation3 + $0x14] sm:$0xf]
      %v3766 = vld [vmem:[#allocation3 + $0x20] sm:$0xf]
      %v3767 = vld [vmem:[#allocation3 + $0x24] sm:$0xf]
      %v3768 = vld [vmem:[#allocation3 + $0x30] sm:$0xf]
      %v3769 = vld [vmem:[#allocation3 + $0x34] sm:$0xf]
      %v3770 = vld [vmem:[#allocation3 + $0x40] sm:$0xf]
      %v3771 = vld [vmem:[#allocation3 + $0x44] sm:$0xf]
      %v3772 = vld [vmem:[#allocation3 + $0x50] sm:$0xf]
      %v3773 = vld [vmem:[#allocation3 + $0x54] sm:$0xf]
      %v3774 = vld [vmem:[#allocation3 + $0x60] sm:$0xf]
      %v3775 = vld [vmem:[#allocation3 + $0x64] sm:$0xf]
      %v3776 = vld [vmem:[#allocation3 + $0x70] sm:$0xf]
      %v3777 = vld [vmem:[#allocation3 + $0x74] sm:$0xf]
      %v3778 = vld [vmem:[%s5] sm:$0xf]
      %v3779 = vld [vmem:[%s5 + $0x4] sm:$0xf]
      %v3780 = vld [vmem:[%s5 + $0x8] sm:$0xf]
      %v3781 = vld [vmem:[%s5 + $0xc] sm:$0xf]
      %v3782 = vld [vmem:[%s5 + $0x10] sm:$0xf]
      %v3783 = vld [vmem:[%s5 + $0x14] sm:$0xf]
      %v3784 = vld [vmem:[%s5 + $0x18] sm:$0xf]
      %v3785 = vld [vmem:[%s5 + $0x1c] sm:$0xf]
      %v3786 = vld [vmem:[%s5 + $0x20] sm:$0xf]
      %v3787 = vld [vmem:[%s5 + $0x24] sm:$0xf]
      %v3788 = vld [vmem:[%s5 + $0x28] sm:$0xf]
      %v3789 = vld [vmem:[%s5 + $0x2c] sm:$0xf]
      %v3790 = vld [vmem:[%s5 + $0x30] sm:$0xf]
      %v3791 = vld [vmem:[%s5 + $0x34] sm:$0xf]
      %v3792 = vld [vmem:[%s5 + $0x38] sm:$0xf]
      %v3793 = vld [vmem:[%s5 + $0x3c] sm:$0xf]
      %v3810 = vunpack.c.l.b16 %v3762
      %v3811 = vunpack.c.l.b16 %v3763
      %v3812 = vunpack.c.l.b16 %v3764
      %v3813 = vunpack.c.l.b16 %v3765
      %v3814 = vunpack.c.l.b16 %v3766
      %v3815 = vunpack.c.l.b16 %v3767
      %v3816 = vunpack.c.l.b16 %v3768
      %v3817 = vunpack.c.l.b16 %v3769
      %v3818 = vunpack.c.l.b16 %v3770
      %v3819 = vunpack.c.l.b16 %v3771
      %v3820 = vunpack.c.l.b16 %v3772
      %v3821 = vunpack.c.l.b16 %v3773
      %v3822 = vunpack.c.l.b16 %v3774
      %v3823 = vunpack.c.l.b16 %v3775
      %v3824 = vunpack.c.l.b16 %v3776
      %v3825 = vunpack.c.l.b16 %v3777
      %v3826 = vpack.c.b16 %v3811, %v3810
      %v3827 = vpack.c.b16 %v3813, %v3812
      %v3828 = vpack.c.b16 %v3815, %v3814
      %v3829 = vpack.c.b16 %v3817, %v3816
      %v3830 = vpack.c.b16 %v3819, %v3818
      %v3831 = vpack.c.b16 %v3821, %v3820
      %v3832 = vpack.c.b16 %v3823, %v3822
      %v3833 = vpack.c.b16 %v3825, %v3824
      %v3858 = vunpack.c.l.b16 %v3778
      %v3859 = vunpack.c.l.b16 %v3779
      %v3860 = vunpack.c.l.b16 %v3780
      %v3861 = vunpack.c.l.b16 %v3781
      %v3862 = vunpack.c.l.b16 %v3782
      %v3863 = vunpack.c.l.b16 %v3783
      %v3864 = vunpack.c.l.b16 %v3784
      %v3865 = vunpack.c.l.b16 %v3785
      %v3866 = vunpack.c.l.b16 %v3786
      %v3867 = vunpack.c.l.b16 %v3787
      %v3868 = vunpack.c.l.b16 %v3788
      %v3869 = vunpack.c.l.b16 %v3789
      %v3870 = vunpack.c.l.b16 %v3790
      %v3871 = vunpack.c.l.b16 %v3791
      %v3872 = vunpack.c.l.b16 %v3792
      %v3873 = vunpack.c.l.b16 %v3793
      %v3874 = vpack.c.b16 %v3859, %v3858
      %v3875 = vpack.c.b16 %v3861, %v3860
      %v3876 = vpack.c.b16 %v3863, %v3862
      %v3877 = vpack.c.b16 %v3865, %v3864
      %v3878 = vpack.c.b16 %v3867, %v3866
      %v3879 = vpack.c.b16 %v3869, %v3868
      %v3880 = vpack.c.b16 %v3871, %v3870
      %v3881 = vpack.c.b16 %v3873, %v3872
      %3890 = vmatpush.bf16.msra.mxu0 %v3881
      %3891 = vmatpush.bf16.msra.mxu0 %v3880
      %3892 = vmatpush.bf16.msra.mxu0 %v3879
      %3893 = vmatpush.bf16.msra.mxu0 %v3878
      %3894 = vmatpush.bf16.msra.mxu0 %v3877
      %3895 = vmatpush.bf16.msra.mxu0 %v3876
      %3896 = vmatpush.bf16.msra.mxu0 %v3875
      %3897 = vmatpush.bf16.msra.mxu0 %v3874
      %3898 = vmatmul.bf16.gmra.mxu0 %v3826
      %v3899 = vpop.f32.mrf.mxu0
      %v3900 = vadd.f32 0.0, %v3899
      %v3901 = vpop.f32.mrf.mxu0
      %v3902 = vadd.f32 0.0, %v3901
      %3903 = vmatmul.bf16.gmra.mxu0 %v3827
      %v3904 = vpop.f32.mrf.mxu0
      %v3905 = vadd.f32 0.0, %v3904
      %v3906 = vpop.f32.mrf.mxu0
      %v3907 = vadd.f32 0.0, %v3906
      %3908 = vmatmul.bf16.gmra.mxu0 %v3828
      %v3909 = vpop.f32.mrf.mxu0
      %v3910 = vadd.f32 0.0, %v3909
      %v3911 = vpop.f32.mrf.mxu0
      %v3912 = vadd.f32 0.0, %v3911
      %3913 = vmatmul.bf16.gmra.mxu0 %v3829
      %v3914 = vpop.f32.mrf.mxu0
      %v3915 = vadd.f32 0.0, %v3914
      %v3916 = vpop.f32.mrf.mxu0
      %v3917 = vadd.f32 0.0, %v3916
      %3918 = vmatmul.bf16.gmra.mxu0 %v3830
      %v3919 = vpop.f32.mrf.mxu0
      %v3920 = vadd.f32 0.0, %v3919
      %v3921 = vpop.f32.mrf.mxu0
      %v3922 = vadd.f32 0.0, %v3921
      %3923 = vmatmul.bf16.gmra.mxu0 %v3831
      %v3924 = vpop.f32.mrf.mxu0
      %v3925 = vadd.f32 0.0, %v3924
      %v3926 = vpop.f32.mrf.mxu0
      %v3927 = vadd.f32 0.0, %v3926
      %3928 = vmatmul.bf16.gmra.mxu0 %v3832
      %v3929 = vpop.f32.mrf.mxu0
      %v3930 = vadd.f32 0.0, %v3929
      %v3931 = vpop.f32.mrf.mxu0
      %v3932 = vadd.f32 0.0, %v3931
      %3933 = vmatmul.bf16.gmra.mxu0 %v3833
      %v3934 = vpop.f32.mrf.mxu0
      %v3935 = vadd.f32 0.0, %v3934
      %v3936 = vpop.f32.mrf.mxu0
      %v3937 = vadd.f32 0.0, %v3936
      %3938 = vdwg.mxu0
      %v3939 = vadd.f32 %v3760, %v3900
      %v3940 = vadd.f32 %v3760, %v3902
      %v3941 = vadd.f32 %v3760, %v3905
      %v3942 = vadd.f32 %v3760, %v3907
      %v3943 = vadd.f32 %v3760, %v3910
      %v3944 = vadd.f32 %v3760, %v3912
      %v3945 = vadd.f32 %v3760, %v3915
      %v3946 = vadd.f32 %v3760, %v3917
      %v3947 = vadd.f32 %v3760, %v3920
      %v3948 = vadd.f32 %v3760, %v3922
      %v3949 = vadd.f32 %v3760, %v3925
      %v3950 = vadd.f32 %v3760, %v3927
      %v3951 = vadd.f32 %v3760, %v3930
      %v3952 = vadd.f32 %v3760, %v3932
      %v3953 = vadd.f32 %v3760, %v3935
      %v3954 = vadd.f32 %v3760, %v3937
      %v3955 = vld [vmem:[#allocation3] sm:$0xf]
      %v3956 = vld [vmem:[#allocation3 + $0x4] sm:$0xf]
      %v3957 = vld [vmem:[#allocation3 + $0x8] sm:$0x1]
      %v3958 = vld [vmem:[#allocation3 + $0x10] sm:$0xf]
      %v3959 = vld [vmem:[#allocation3 + $0x14] sm:$0xf]
      %v3960 = vld [vmem:[#allocation3 + $0x18] sm:$0x1]
      %v3961 = vld [vmem:[#allocation3 + $0x20] sm:$0xf]
      %v3962 = vld [vmem:[#allocation3 + $0x24] sm:$0xf]
      %v3963 = vld [vmem:[#allocation3 + $0x28] sm:$0x1]
      %v3964 = vld [vmem:[#allocation3 + $0x30] sm:$0xf]
      %v3965 = vld [vmem:[#allocation3 + $0x34] sm:$0xf]
      %v3966 = vld [vmem:[#allocation3 + $0x38] sm:$0x1]
      %v3967 = vld [vmem:[#allocation3 + $0x40] sm:$0xf]
      %v3968 = vld [vmem:[#allocation3 + $0x44] sm:$0xf]
      %v3969 = vld [vmem:[#allocation3 + $0x48] sm:$0x1]
      %v3970 = vld [vmem:[#allocation3 + $0x50] sm:$0xf]
      %v3971 = vld [vmem:[#allocation3 + $0x54] sm:$0xf]
      %v3972 = vld [vmem:[#allocation3 + $0x58] sm:$0x1]
      %v3973 = vld [vmem:[#allocation3 + $0x60] sm:$0xf]
      %v3974 = vld [vmem:[#allocation3 + $0x64] sm:$0xf]
      %v3975 = vld [vmem:[#allocation3 + $0x68] sm:$0x1]
      %v3976 = vld [vmem:[#allocation3 + $0x70] sm:$0xf]
      %v3977 = vld [vmem:[#allocation3 + $0x74] sm:$0xf]
      %v3978 = vld [vmem:[#allocation3 + $0x78] sm:$0x1]
      %vm3979 = vsmask.f32 3328
      %vm3980 = vsmask.f32 7440
      %vm3981 = vmor %vm3979, %vm3980
      %v3983 = vshrl.u32 %v3955, 16
      %v3985 = vrot.slane %v3983, 4
      %v3986 = vshll.u32 %v3955, 16
      %v3988 = vrot.slane %v3986, 5
      %v3989 = vor.u32 %v3985, %v3988
      %v3990 = vrot.slane %v3989, 4
      %v3992 = vshll.u32 %v3956, 16
      %v3994 = vrot.slane %v3992, 5
      %v3995 = vsel %vm3981, %v3990, %v3994
      %v3996 = vshrl.u32 %v3956, 16
      %v3998 = vrot.slane %v3996, 4
      %v3999 = vor.u32 %v3998, %v3994
      %v4000 = vrot.slane %v3999, 4
      %v4002 = vshll.u32 %v3957, 16
      %v4004 = vrot.slane %v4002, 5
      %v4005 = vsel %vm3981, %v4000, %v4004
      %v4007 = vshrl.u32 %v3958, 16
      %v4009 = vrot.slane %v4007, 4
      %v4010 = vshll.u32 %v3958, 16
      %v4012 = vrot.slane %v4010, 5
      %v4013 = vor.u32 %v4009, %v4012
      %v4014 = vrot.slane %v4013, 4
      %v4016 = vshll.u32 %v3959, 16
      %v4018 = vrot.slane %v4016, 5
      %v4019 = vsel %vm3981, %v4014, %v4018
      %v4020 = vshrl.u32 %v3959, 16
      %v4022 = vrot.slane %v4020, 4
      %v4023 = vor.u32 %v4022, %v4018
      %v4024 = vrot.slane %v4023, 4
      %v4026 = vshll.u32 %v3960, 16
      %v4028 = vrot.slane %v4026, 5
      %v4029 = vsel %vm3981, %v4024, %v4028
      %v4031 = vshrl.u32 %v3961, 16
      %v4033 = vrot.slane %v4031, 4
      %v4034 = vshll.u32 %v3961, 16
      %v4036 = vrot.slane %v4034, 5
      %v4037 = vor.u32 %v4033, %v4036
      %v4038 = vrot.slane %v4037, 4
      %v4040 = vshll.u32 %v3962, 16
      %v4042 = vrot.slane %v4040, 5
      %v4043 = vsel %vm3981, %v4038, %v4042
      %v4044 = vshrl.u32 %v3962, 16
      %v4046 = vrot.slane %v4044, 4
      %v4047 = vor.u32 %v4046, %v4042
      %v4048 = vrot.slane %v4047, 4
      %v4050 = vshll.u32 %v3963, 16
      %v4052 = vrot.slane %v4050, 5
      %v4053 = vsel %vm3981, %v4048, %v4052
      %v4055 = vshrl.u32 %v3964, 16
      %v4057 = vrot.slane %v4055, 4
      %v4058 = vshll.u32 %v3964, 16
      %v4060 = vrot.slane %v4058, 5
      %v4061 = vor.u32 %v4057, %v4060
      %v4062 = vrot.slane %v4061, 4
      %v4064 = vshll.u32 %v3965, 16
      %v4066 = vrot.slane %v4064, 5
      %v4067 = vsel %vm3981, %v4062, %v4066
      %v4068 = vshrl.u32 %v3965, 16
      %v4070 = vrot.slane %v4068, 4
      %v4071 = vor.u32 %v4070, %v4066
      %v4072 = vrot.slane %v4071, 4
      %v4074 = vshll.u32 %v3966, 16
      %v4076 = vrot.slane %v4074, 5
      %v4077 = vsel %vm3981, %v4072, %v4076
      %v4079 = vshrl.u32 %v3967, 16
      %v4081 = vrot.slane %v4079, 4
      %v4082 = vshll.u32 %v3967, 16
      %v4084 = vrot.slane %v4082, 5
      %v4085 = vor.u32 %v4081, %v4084
      %v4086 = vrot.slane %v4085, 4
      %v4088 = vshll.u32 %v3968, 16
      %v4090 = vrot.slane %v4088, 5
      %v4091 = vsel %vm3981, %v4086, %v4090
      %v4092 = vshrl.u32 %v3968, 16
      %v4094 = vrot.slane %v4092, 4
      %v4095 = vor.u32 %v4094, %v4090
      %v4096 = vrot.slane %v4095, 4
      %v4098 = vshll.u32 %v3969, 16
      %v4100 = vrot.slane %v4098, 5
      %v4101 = vsel %vm3981, %v4096, %v4100
      %v4103 = vshrl.u32 %v3970, 16
      %v4105 = vrot.slane %v4103, 4
      %v4106 = vshll.u32 %v3970, 16
      %v4108 = vrot.slane %v4106, 5
      %v4109 = vor.u32 %v4105, %v4108
      %v4110 = vrot.slane %v4109, 4
      %v4112 = vshll.u32 %v3971, 16
      %v4114 = vrot.slane %v4112, 5
      %v4115 = vsel %vm3981, %v4110, %v4114
      %v4116 = vshrl.u32 %v3971, 16
      %v4118 = vrot.slane %v4116, 4
      %v4119 = vor.u32 %v4118, %v4114
      %v4120 = vrot.slane %v4119, 4
      %v4122 = vshll.u32 %v3972, 16
      %v4124 = vrot.slane %v4122, 5
      %v4125 = vsel %vm3981, %v4120, %v4124
      %v4127 = vshrl.u32 %v3973, 16
      %v4129 = vrot.slane %v4127, 4
      %v4130 = vshll.u32 %v3973, 16
      %v4132 = vrot.slane %v4130, 5
      %v4133 = vor.u32 %v4129, %v4132
      %v4134 = vrot.slane %v4133, 4
      %v4136 = vshll.u32 %v3974, 16
      %v4138 = vrot.slane %v4136, 5
      %v4139 = vsel %vm3981, %v4134, %v4138
      %v4140 = vshrl.u32 %v3974, 16
      %v4142 = vrot.slane %v4140, 4
      %v4143 = vor.u32 %v4142, %v4138
      %v4144 = vrot.slane %v4143, 4
      %v4146 = vshll.u32 %v3975, 16
      %v4148 = vrot.slane %v4146, 5
      %v4149 = vsel %vm3981, %v4144, %v4148
      %v4151 = vshrl.u32 %v3976, 16
      %v4153 = vrot.slane %v4151, 4
      %v4154 = vshll.u32 %v3976, 16
      %v4156 = vrot.slane %v4154, 5
      %v4157 = vor.u32 %v4153, %v4156
      %v4158 = vrot.slane %v4157, 4
      %v4160 = vshll.u32 %v3977, 16
      %v4162 = vrot.slane %v4160, 5
      %v4163 = vsel %vm3981, %v4158, %v4162
      %v4164 = vshrl.u32 %v3977, 16
      %v4166 = vrot.slane %v4164, 4
      %v4167 = vor.u32 %v4166, %v4162
      %v4168 = vrot.slane %v4167, 4
      %v4170 = vshll.u32 %v3978, 16
      %v4172 = vrot.slane %v4170, 5
      %v4173 = vsel %vm3981, %v4168, %v4172
      %s4174 = scalar_lea.vmem %s5, 64
      %v4175 = vld [vmem:[%s4174] sm:$0xf]
      %v4176 = vld [vmem:[%s4174 + $0x4] sm:$0xf]
      %v4177 = vld [vmem:[%s4174 + $0x8] sm:$0xf]
      %v4178 = vld [vmem:[%s4174 + $0xc] sm:$0xf]
      %v4179 = vld [vmem:[%s4174 + $0x10] sm:$0xf]
      %v4180 = vld [vmem:[%s4174 + $0x14] sm:$0xf]
      %v4181 = vld [vmem:[%s4174 + $0x18] sm:$0xf]
      %v4182 = vld [vmem:[%s4174 + $0x1c] sm:$0xf]
      %v4183 = vld [vmem:[%s4174 + $0x20] sm:$0xf]
      %v4184 = vld [vmem:[%s4174 + $0x24] sm:$0xf]
      %v4185 = vld [vmem:[%s4174 + $0x28] sm:$0xf]
      %v4186 = vld [vmem:[%s4174 + $0x2c] sm:$0xf]
      %v4187 = vld [vmem:[%s4174 + $0x30] sm:$0xf]
      %v4188 = vld [vmem:[%s4174 + $0x34] sm:$0xf]
      %v4189 = vld [vmem:[%s4174 + $0x38] sm:$0xf]
      %v4190 = vld [vmem:[%s4174 + $0x3c] sm:$0xf]
      %v4191 = vunpack.c.l.b16 %v3995
      %v4192 = vunpack.c.l.b16 %v4005
      %v4193 = vunpack.c.l.b16 %v4019
      %v4194 = vunpack.c.l.b16 %v4029
      %v4195 = vunpack.c.l.b16 %v4043
      %v4196 = vunpack.c.l.b16 %v4053
      %v4197 = vunpack.c.l.b16 %v4067
      %v4198 = vunpack.c.l.b16 %v4077
      %v4199 = vunpack.c.l.b16 %v4091
      %v4200 = vunpack.c.l.b16 %v4101
      %v4201 = vunpack.c.l.b16 %v4115
      %v4202 = vunpack.c.l.b16 %v4125
      %v4203 = vunpack.c.l.b16 %v4139
      %v4204 = vunpack.c.l.b16 %v4149
      %v4205 = vunpack.c.l.b16 %v4163
      %v4206 = vunpack.c.l.b16 %v4173
      %v4207 = vpack.c.b16 %v4192, %v4191
      %v4208 = vpack.c.b16 %v4194, %v4193
      %v4209 = vpack.c.b16 %v4196, %v4195
      %v4210 = vpack.c.b16 %v4198, %v4197
      %v4211 = vpack.c.b16 %v4200, %v4199
      %v4212 = vpack.c.b16 %v4202, %v4201
      %v4213 = vpack.c.b16 %v4204, %v4203
      %v4214 = vpack.c.b16 %v4206, %v4205
      %v4239 = vunpack.c.l.b16 %v4175
      %v4240 = vunpack.c.l.b16 %v4176
      %v4241 = vunpack.c.l.b16 %v4177
      %v4242 = vunpack.c.l.b16 %v4178
      %v4243 = vunpack.c.l.b16 %v4179
      %v4244 = vunpack.c.l.b16 %v4180
      %v4245 = vunpack.c.l.b16 %v4181
      %v4246 = vunpack.c.l.b16 %v4182
      %v4247 = vunpack.c.l.b16 %v4183
      %v4248 = vunpack.c.l.b16 %v4184
      %v4249 = vunpack.c.l.b16 %v4185
      %v4250 = vunpack.c.l.b16 %v4186
      %v4251 = vunpack.c.l.b16 %v4187
      %v4252 = vunpack.c.l.b16 %v4188
      %v4253 = vunpack.c.l.b16 %v4189
      %v4254 = vunpack.c.l.b16 %v4190
      %v4255 = vpack.c.b16 %v4240, %v4239
      %v4256 = vpack.c.b16 %v4242, %v4241
      %v4257 = vpack.c.b16 %v4244, %v4243
      %v4258 = vpack.c.b16 %v4246, %v4245
      %v4259 = vpack.c.b16 %v4248, %v4247
      %v4260 = vpack.c.b16 %v4250, %v4249
      %v4261 = vpack.c.b16 %v4252, %v4251
      %v4262 = vpack.c.b16 %v4254, %v4253
      %4271 = vmatpush.bf16.msra.mxu0 %v4262
      %4272 = vmatpush.bf16.msra.mxu0 %v4261
      %4273 = vmatpush.bf16.msra.mxu0 %v4260
      %4274 = vmatpush.bf16.msra.mxu0 %v4259
      %4275 = vmatpush.bf16.msra.mxu0 %v4258
      %4276 = vmatpush.bf16.msra.mxu0 %v4257
      %4277 = vmatpush.bf16.msra.mxu0 %v4256
      %4278 = vmatpush.bf16.msra.mxu0 %v4255
      %4279 = vmatmul.bf16.gmra.mxu0 %v4207
      %v4280 = vpop.f32.mrf.mxu0
      %v4281 = vadd.f32 0.0, %v4280
      %v4282 = vpop.f32.mrf.mxu0
      %v4283 = vadd.f32 0.0, %v4282
      %4284 = vmatmul.bf16.gmra.mxu0 %v4208
      %v4285 = vpop.f32.mrf.mxu0
      %v4286 = vadd.f32 0.0, %v4285
      %v4287 = vpop.f32.mrf.mxu0
      %v4288 = vadd.f32 0.0, %v4287
      %4289 = vmatmul.bf16.gmra.mxu0 %v4209
      %v4290 = vpop.f32.mrf.mxu0
      %v4291 = vadd.f32 0.0, %v4290
      %v4292 = vpop.f32.mrf.mxu0
      %v4293 = vadd.f32 0.0, %v4292
      %4294 = vmatmul.bf16.gmra.mxu0 %v4210
      %v4295 = vpop.f32.mrf.mxu0
      %v4296 = vadd.f32 0.0, %v4295
      %v4297 = vpop.f32.mrf.mxu0
      %v4298 = vadd.f32 0.0, %v4297
      %4299 = vmatmul.bf16.gmra.mxu0 %v4211
      %v4300 = vpop.f32.mrf.mxu0
      %v4301 = vadd.f32 0.0, %v4300
      %v4302 = vpop.f32.mrf.mxu0
      %v4303 = vadd.f32 0.0, %v4302
      %4304 = vmatmul.bf16.gmra.mxu0 %v4212
      %v4305 = vpop.f32.mrf.mxu0
      %v4306 = vadd.f32 0.0, %v4305
      %v4307 = vpop.f32.mrf.mxu0
      %v4308 = vadd.f32 0.0, %v4307
      %4309 = vmatmul.bf16.gmra.mxu0 %v4213
      %v4310 = vpop.f32.mrf.mxu0
      %v4311 = vadd.f32 0.0, %v4310
      %v4312 = vpop.f32.mrf.mxu0
      %v4313 = vadd.f32 0.0, %v4312
      %4314 = vmatmul.bf16.gmra.mxu0 %v4214
      %v4315 = vpop.f32.mrf.mxu0
      %v4316 = vadd.f32 0.0, %v4315
      %v4317 = vpop.f32.mrf.mxu0
      %v4318 = vadd.f32 0.0, %v4317
      %4319 = vdwg.mxu0
      %v4320 = vadd.f32 %v3939, %v4281
      %v4321 = vadd.f32 %v3940, %v4283
      %v4322 = vadd.f32 %v3941, %v4286
      %v4323 = vadd.f32 %v3942, %v4288
      %v4324 = vadd.f32 %v3943, %v4291
      %v4325 = vadd.f32 %v3944, %v4293
      %v4326 = vadd.f32 %v3945, %v4296
      %v4327 = vadd.f32 %v3946, %v4298
      %v4328 = vadd.f32 %v3947, %v4301
      %v4329 = vadd.f32 %v3948, %v4303
      %v4330 = vadd.f32 %v3949, %v4306
      %v4331 = vadd.f32 %v3950, %v4308
      %v4332 = vadd.f32 %v3951, %v4311
      %v4333 = vadd.f32 %v3952, %v4313
      %v4334 = vadd.f32 %v3953, %v4316
      %v4335 = vadd.f32 %v3954, %v4318
      %v4336 = vld [vmem:[#allocation3] sm:$0xe]
      %v4337 = vld [vmem:[#allocation3 + $0x10] sm:$0xe]
      %v4338 = vld [vmem:[#allocation3 + $0x20] sm:$0xe]
      %v4339 = vld [vmem:[#allocation3 + $0x30] sm:$0xe]
      %v4340 = vld [vmem:[#allocation3 + $0x40] sm:$0xe]
      %v4341 = vld [vmem:[#allocation3 + $0x50] sm:$0xe]
      %v4342 = vld [vmem:[#allocation3 + $0x60] sm:$0xe]
      %v4343 = vld [vmem:[#allocation3 + $0x70] sm:$0xe]
      %vm4368 = vcmask 1042432
      %vm4369 = vcmask 1046532
      %vm4370 = vmor %vm4368, %vm4369
      %v4371 = vrot.slane %v4336, 5
      %v4372 = vrot.slane %v4371, 4
      %v4373 = vrot.slane %v3956, 5
      %v4374 = vsel %vm4370, %v4372, %v4373
      %v4375 = vrot.slane %v4373, 4
      %v4376 = vrot.slane %v3957, 5
      %v4377 = vsel %vm4370, %v4375, %v4376
      %v4378 = vrot.slane %v4337, 5
      %v4379 = vrot.slane %v4378, 4
      %v4380 = vrot.slane %v3959, 5
      %v4381 = vsel %vm4370, %v4379, %v4380
      %v4382 = vrot.slane %v4380, 4
      %v4383 = vrot.slane %v3960, 5
      %v4384 = vsel %vm4370, %v4382, %v4383
      %v4385 = vrot.slane %v4338, 5
      %v4386 = vrot.slane %v4385, 4
      %v4387 = vrot.slane %v3962, 5
      %v4388 = vsel %vm4370, %v4386, %v4387
      %v4389 = vrot.slane %v4387, 4
      %v4390 = vrot.slane %v3963, 5
      %v4391 = vsel %vm4370, %v4389, %v4390
      %v4392 = vrot.slane %v4339, 5
      %v4393 = vrot.slane %v4392, 4
      %v4394 = vrot.slane %v3965, 5
      %v4395 = vsel %vm4370, %v4393, %v4394
      %v4396 = vrot.slane %v4394, 4
      %v4397 = vrot.slane %v3966, 5
      %v4398 = vsel %vm4370, %v4396, %v4397
      %v4399 = vrot.slane %v4340, 5
      %v4400 = vrot.slane %v4399, 4
      %v4401 = vrot.slane %v3968, 5
      %v4402 = vsel %vm4370, %v4400, %v4401
      %v4403 = vrot.slane %v4401, 4
      %v4404 = vrot.slane %v3969, 5
      %v4405 = vsel %vm4370, %v4403, %v4404
      %v4406 = vrot.slane %v4341, 5
      %v4407 = vrot.slane %v4406, 4
      %v4408 = vrot.slane %v3971, 5
      %v4409 = vsel %vm4370, %v4407, %v4408
      %v4410 = vrot.slane %v4408, 4
      %v4411 = vrot.slane %v3972, 5
      %v4412 = vsel %vm4370, %v4410, %v4411
      %v4413 = vrot.slane %v4342, 5
      %v4414 = vrot.slane %v4413, 4
      %v4415 = vrot.slane %v3974, 5
      %v4416 = vsel %vm4370, %v4414, %v4415
      %v4417 = vrot.slane %v4415, 4
      %v4418 = vrot.slane %v3975, 5
      %v4419 = vsel %vm4370, %v4417, %v4418
      %v4420 = vrot.slane %v4343, 5
      %v4421 = vrot.slane %v4420, 4
      %v4422 = vrot.slane %v3977, 5
      %v4423 = vsel %vm4370, %v4421, %v4422
      %v4424 = vrot.slane %v4422, 4
      %v4425 = vrot.slane %v3978, 5
      %v4426 = vsel %vm4370, %v4424, %v4425
      %s4427 = scalar_lea.vmem %s5, 128
      %v4428 = vld [vmem:[%s4427] sm:$0xf]
      %v4429 = vld [vmem:[%s4427 + $0x4] sm:$0xf]
      %v4430 = vld [vmem:[%s4427 + $0x8] sm:$0xf]
      %v4431 = vld [vmem:[%s4427 + $0xc] sm:$0xf]
      %v4432 = vld [vmem:[%s4427 + $0x10] sm:$0xf]
      %v4433 = vld [vmem:[%s4427 + $0x14] sm:$0xf]
      %v4434 = vld [vmem:[%s4427 + $0x18] sm:$0xf]
      %v4435 = vld [vmem:[%s4427 + $0x1c] sm:$0xf]
      %v4436 = vld [vmem:[%s4427 + $0x20] sm:$0xf]
      %v4437 = vld [vmem:[%s4427 + $0x24] sm:$0xf]
      %v4438 = vld [vmem:[%s4427 + $0x28] sm:$0xf]
      %v4439 = vld [vmem:[%s4427 + $0x2c] sm:$0xf]
      %v4440 = vld [vmem:[%s4427 + $0x30] sm:$0xf]
      %v4441 = vld [vmem:[%s4427 + $0x34] sm:$0xf]
      %v4442 = vld [vmem:[%s4427 + $0x38] sm:$0xf]
      %v4443 = vld [vmem:[%s4427 + $0x3c] sm:$0xf]
      %v4444 = vunpack.c.l.b16 %v4374
      %v4445 = vunpack.c.l.b16 %v4377
      %v4446 = vunpack.c.l.b16 %v4381
      %v4447 = vunpack.c.l.b16 %v4384
      %v4448 = vunpack.c.l.b16 %v4388
      %v4449 = vunpack.c.l.b16 %v4391
      %v4450 = vunpack.c.l.b16 %v4395
      %v4451 = vunpack.c.l.b16 %v4398
      %v4452 = vunpack.c.l.b16 %v4402
      %v4453 = vunpack.c.l.b16 %v4405
      %v4454 = vunpack.c.l.b16 %v4409
      %v4455 = vunpack.c.l.b16 %v4412
      %v4456 = vunpack.c.l.b16 %v4416
      %v4457 = vunpack.c.l.b16 %v4419
      %v4458 = vunpack.c.l.b16 %v4423
      %v4459 = vunpack.c.l.b16 %v4426
      %v4460 = vpack.c.b16 %v4445, %v4444
      %v4461 = vpack.c.b16 %v4447, %v4446
      %v4462 = vpack.c.b16 %v4449, %v4448
      %v4463 = vpack.c.b16 %v4451, %v4450
      %v4464 = vpack.c.b16 %v4453, %v4452
      %v4465 = vpack.c.b16 %v4455, %v4454
      %v4466 = vpack.c.b16 %v4457, %v4456
      %v4467 = vpack.c.b16 %v4459, %v4458
      %v4492 = vunpack.c.l.b16 %v4428
      %v4493 = vunpack.c.l.b16 %v4429
      %v4494 = vunpack.c.l.b16 %v4430
      %v4495 = vunpack.c.l.b16 %v4431
      %v4496 = vunpack.c.l.b16 %v4432
      %v4497 = vunpack.c.l.b16 %v4433
      %v4498 = vunpack.c.l.b16 %v4434
      %v4499 = vunpack.c.l.b16 %v4435
      %v4500 = vunpack.c.l.b16 %v4436
      %v4501 = vunpack.c.l.b16 %v4437
      %v4502 = vunpack.c.l.b16 %v4438
      %v4503 = vunpack.c.l.b16 %v4439
      %v4504 = vunpack.c.l.b16 %v4440
      %v4505 = vunpack.c.l.b16 %v4441
      %v4506 = vunpack.c.l.b16 %v4442
      %v4507 = vunpack.c.l.b16 %v4443
      %v4508 = vpack.c.b16 %v4493, %v4492
      %v4509 = vpack.c.b16 %v4495, %v4494
      %v4510 = vpack.c.b16 %v4497, %v4496
      %v4511 = vpack.c.b16 %v4499, %v4498
      %v4512 = vpack.c.b16 %v4501, %v4500
      %v4513 = vpack.c.b16 %v4503, %v4502
      %v4514 = vpack.c.b16 %v4505, %v4504
      %v4515 = vpack.c.b16 %v4507, %v4506
      %4524 = vmatpush.bf16.msra.mxu0 %v4515
      %4525 = vmatpush.bf16.msra.mxu0 %v4514
      %4526 = vmatpush.bf16.msra.mxu0 %v4513
      %4527 = vmatpush.bf16.msra.mxu0 %v4512
      %4528 = vmatpush.bf16.msra.mxu0 %v4511
      %4529 = vmatpush.bf16.msra.mxu0 %v4510
      %4530 = vmatpush.bf16.msra.mxu0 %v4509
      %4531 = vmatpush.bf16.msra.mxu0 %v4508
      %4532 = vmatmul.bf16.gmra.mxu0 %v4460
      %v4533 = vpop.f32.mrf.mxu0
      %v4534 = vadd.f32 0.0, %v4533
      %v4535 = vpop.f32.mrf.mxu0
      %v4536 = vadd.f32 0.0, %v4535
      %4537 = vmatmul.bf16.gmra.mxu0 %v4461
      %v4538 = vpop.f32.mrf.mxu0
      %v4539 = vadd.f32 0.0, %v4538
      %v4540 = vpop.f32.mrf.mxu0
      %v4541 = vadd.f32 0.0, %v4540
      %4542 = vmatmul.bf16.gmra.mxu0 %v4462
      %v4543 = vpop.f32.mrf.mxu0
      %v4544 = vadd.f32 0.0, %v4543
      %v4545 = vpop.f32.mrf.mxu0
      %v4546 = vadd.f32 0.0, %v4545
      %4547 = vmatmul.bf16.gmra.mxu0 %v4463
      %v4548 = vpop.f32.mrf.mxu0
      %v4549 = vadd.f32 0.0, %v4548
      %v4550 = vpop.f32.mrf.mxu0
      %v4551 = vadd.f32 0.0, %v4550
      %4552 = vmatmul.bf16.gmra.mxu0 %v4464
      %v4553 = vpop.f32.mrf.mxu0
      %v4554 = vadd.f32 0.0, %v4553
      %v4555 = vpop.f32.mrf.mxu0
      %v4556 = vadd.f32 0.0, %v4555
      %4557 = vmatmul.bf16.gmra.mxu0 %v4465
      %v4558 = vpop.f32.mrf.mxu0
      %v4559 = vadd.f32 0.0, %v4558
      %v4560 = vpop.f32.mrf.mxu0
      %v4561 = vadd.f32 0.0, %v4560
      %4562 = vmatmul.bf16.gmra.mxu0 %v4466
      %v4563 = vpop.f32.mrf.mxu0
      %v4564 = vadd.f32 0.0, %v4563
      %v4565 = vpop.f32.mrf.mxu0
      %v4566 = vadd.f32 0.0, %v4565
      %4567 = vmatmul.bf16.gmra.mxu0 %v4467
      %v4568 = vpop.f32.mrf.mxu0
      %v4569 = vadd.f32 0.0, %v4568
      %v4570 = vpop.f32.mrf.mxu0
      %v4571 = vadd.f32 0.0, %v4570
      %4572 = vdwg.mxu0
      %v4573 = vadd.f32 %v4320, %v4534
      %v4574 = vadd.f32 %v4321, %v4536
      %v4575 = vadd.f32 %v4322, %v4539
      %v4576 = vadd.f32 %v4323, %v4541
      %v4577 = vadd.f32 %v4324, %v4544
      %v4578 = vadd.f32 %v4325, %v4546
      %v4579 = vadd.f32 %v4326, %v4549
      %v4580 = vadd.f32 %v4327, %v4551
      %v4581 = vadd.f32 %v4328, %v4554
      %v4582 = vadd.f32 %v4329, %v4556
      %v4583 = vadd.f32 %v4330, %v4559
      %v4584 = vadd.f32 %v4331, %v4561
      %v4585 = vadd.f32 %v4332, %v4564
      %v4586 = vadd.f32 %v4333, %v4566
      %v4587 = vadd.f32 %v4334, %v4569
      %v4588 = vadd.f32 %v4335, %v4571
      %s4589 = scalar_lea.vmem [#allocation3], 16
      %v4590 = vld [vmem:[%s4589] sm:$0xf]
      %v4591 = vld [vmem:[%s4589 + $0x4] sm:$0xf]
      %v4592 = vld [vmem:[%s4589 + $0x10] sm:$0xf]
      %v4593 = vld [vmem:[%s4589 + $0x14] sm:$0xf]
      %v4594 = vld [vmem:[%s4589 + $0x20] sm:$0xf]
      %v4595 = vld [vmem:[%s4589 + $0x24] sm:$0xf]
      %v4596 = vld [vmem:[%s4589 + $0x30] sm:$0xf]
      %v4597 = vld [vmem:[%s4589 + $0x34] sm:$0xf]
      %v4598 = vld [vmem:[%s4589 + $0x40] sm:$0xf]
      %v4599 = vld [vmem:[%s4589 + $0x44] sm:$0xf]
      %v4600 = vld [vmem:[%s4589 + $0x50] sm:$0xf]
      %v4601 = vld [vmem:[%s4589 + $0x54] sm:$0xf]
      %v4602 = vld [vmem:[%s4589 + $0x60] sm:$0xf]
      %v4603 = vld [vmem:[%s4589 + $0x64] sm:$0xf]
      %v4604 = vld [vmem:[%s4589 + $0x70] sm:$0xf]
      %v4605 = vld [vmem:[%s4589 + $0x74] sm:$0xf]
      %s4606 = scalar_lea.vmem %s5, 192
      %v4607 = vld [vmem:[%s4606] sm:$0xf]
      %v4608 = vld [vmem:[%s4606 + $0x4] sm:$0xf]
      %v4609 = vld [vmem:[%s4606 + $0x8] sm:$0xf]
      %v4610 = vld [vmem:[%s4606 + $0xc] sm:$0xf]
      %v4611 = vld [vmem:[%s4606 + $0x10] sm:$0xf]
      %v4612 = vld [vmem:[%s4606 + $0x14] sm:$0xf]
      %v4613 = vld [vmem:[%s4606 + $0x18] sm:$0xf]
      %v4614 = vld [vmem:[%s4606 + $0x1c] sm:$0xf]
      %v4615 = vld [vmem:[%s4606 + $0x20] sm:$0xf]
      %v4616 = vld [vmem:[%s4606 + $0x24] sm:$0xf]
      %v4617 = vld [vmem:[%s4606 + $0x28] sm:$0xf]
      %v4618 = vld [vmem:[%s4606 + $0x2c] sm:$0xf]
      %v4619 = vld [vmem:[%s4606 + $0x30] sm:$0xf]
      %v4620 = vld [vmem:[%s4606 + $0x34] sm:$0xf]
      %v4621 = vld [vmem:[%s4606 + $0x38] sm:$0xf]
      %v4622 = vld [vmem:[%s4606 + $0x3c] sm:$0xf]
      %v4639 = vunpack.c.l.b16 %v4590
      %v4640 = vunpack.c.l.b16 %v4591
      %v4641 = vunpack.c.l.b16 %v4592
      %v4642 = vunpack.c.l.b16 %v4593
      %v4643 = vunpack.c.l.b16 %v4594
      %v4644 = vunpack.c.l.b16 %v4595
      %v4645 = vunpack.c.l.b16 %v4596
      %v4646 = vunpack.c.l.b16 %v4597
      %v4647 = vunpack.c.l.b16 %v4598
      %v4648 = vunpack.c.l.b16 %v4599
      %v4649 = vunpack.c.l.b16 %v4600
      %v4650 = vunpack.c.l.b16 %v4601
      %v4651 = vunpack.c.l.b16 %v4602
      %v4652 = vunpack.c.l.b16 %v4603
      %v4653 = vunpack.c.l.b16 %v4604
      %v4654 = vunpack.c.l.b16 %v4605
      %v4655 = vpack.c.b16 %v4640, %v4639
      %v4656 = vpack.c.b16 %v4642, %v4641
      %v4657 = vpack.c.b16 %v4644, %v4643
      %v4658 = vpack.c.b16 %v4646, %v4645
      %v4659 = vpack.c.b16 %v4648, %v4647
      %v4660 = vpack.c.b16 %v4650, %v4649
      %v4661 = vpack.c.b16 %v4652, %v4651
      %v4662 = vpack.c.b16 %v4654, %v4653
      %v4687 = vunpack.c.l.b16 %v4607
      %v4688 = vunpack.c.l.b16 %v4608
      %v4689 = vunpack.c.l.b16 %v4609
      %v4690 = vunpack.c.l.b16 %v4610
      %v4691 = vunpack.c.l.b16 %v4611
      %v4692 = vunpack.c.l.b16 %v4612
      %v4693 = vunpack.c.l.b16 %v4613
      %v4694 = vunpack.c.l.b16 %v4614
      %v4695 = vunpack.c.l.b16 %v4615
      %v4696 = vunpack.c.l.b16 %v4616
      %v4697 = vunpack.c.l.b16 %v4617
      %v4698 = vunpack.c.l.b16 %v4618
      %v4699 = vunpack.c.l.b16 %v4619
      %v4700 = vunpack.c.l.b16 %v4620
      %v4701 = vunpack.c.l.b16 %v4621
      %v4702 = vunpack.c.l.b16 %v4622
      %v4703 = vpack.c.b16 %v4688, %v4687
      %v4704 = vpack.c.b16 %v4690, %v4689
      %v4705 = vpack.c.b16 %v4692, %v4691
      %v4706 = vpack.c.b16 %v4694, %v4693
      %v4707 = vpack.c.b16 %v4696, %v4695
      %v4708 = vpack.c.b16 %v4698, %v4697
      %v4709 = vpack.c.b16 %v4700, %v4699
      %v4710 = vpack.c.b16 %v4702, %v4701
      %4719 = vmatpush.bf16.msra.mxu0 %v4710
      %4720 = vmatpush.bf16.msra.mxu0 %v4709
      %4721 = vmatpush.bf16.msra.mxu0 %v4708
      %4722 = vmatpush.bf16.msra.mxu0 %v4707
      %4723 = vmatpush.bf16.msra.mxu0 %v4706
      %4724 = vmatpush.bf16.msra.mxu0 %v4705
      %4725 = vmatpush.bf16.msra.mxu0 %v4704
      %4726 = vmatpush.bf16.msra.mxu0 %v4703
      %4727 = vmatmul.bf16.gmra.mxu0 %v4655
      %v4728 = vpop.f32.mrf.mxu0
      %v4729 = vadd.f32 0.0, %v4728
      %v4730 = vpop.f32.mrf.mxu0
      %v4731 = vadd.f32 0.0, %v4730
      %4732 = vmatmul.bf16.gmra.mxu0 %v4656
      %v4733 = vpop.f32.mrf.mxu0
      %v4734 = vadd.f32 0.0, %v4733
      %v4735 = vpop.f32.mrf.mxu0
      %v4736 = vadd.f32 0.0, %v4735
      %4737 = vmatmul.bf16.gmra.mxu0 %v4657
      %v4738 = vpop.f32.mrf.mxu0
      %v4739 = vadd.f32 0.0, %v4738
      %v4740 = vpop.f32.mrf.mxu0
      %v4741 = vadd.f32 0.0, %v4740
      %4742 = vmatmul.bf16.gmra.mxu0 %v4658
      %v4743 = vpop.f32.mrf.mxu0
      %v4744 = vadd.f32 0.0, %v4743
      %v4745 = vpop.f32.mrf.mxu0
      %v4746 = vadd.f32 0.0, %v4745
      %4747 = vmatmul.bf16.gmra.mxu0 %v4659
      %v4748 = vpop.f32.mrf.mxu0
      %v4749 = vadd.f32 0.0, %v4748
      %v4750 = vpop.f32.mrf.mxu0
      %v4751 = vadd.f32 0.0, %v4750
      %4752 = vmatmul.bf16.gmra.mxu0 %v4660
      %v4753 = vpop.f32.mrf.mxu0
      %v4754 = vadd.f32 0.0, %v4753
      %v4755 = vpop.f32.mrf.mxu0
      %v4756 = vadd.f32 0.0, %v4755
      %4757 = vmatmul.bf16.gmra.mxu0 %v4661
      %v4758 = vpop.f32.mrf.mxu0
      %v4759 = vadd.f32 0.0, %v4758
      %v4760 = vpop.f32.mrf.mxu0
      %v4761 = vadd.f32 0.0, %v4760
      %4762 = vmatmul.bf16.gmra.mxu0 %v4662
      %v4763 = vpop.f32.mrf.mxu0
      %v4764 = vadd.f32 0.0, %v4763
      %v4765 = vpop.f32.mrf.mxu0
      %v4766 = vadd.f32 0.0, %v4765
      %4767 = vdwg.mxu0
      %v4768 = vadd.f32 %v4573, %v4729
      %v4769 = vadd.f32 %v4574, %v4731
      %v4770 = vadd.f32 %v4575, %v4734
      %v4771 = vadd.f32 %v4576, %v4736
      %v4772 = vadd.f32 %v4577, %v4739
      %v4773 = vadd.f32 %v4578, %v4741
      %v4774 = vadd.f32 %v4579, %v4744
      %v4775 = vadd.f32 %v4580, %v4746
      %v4776 = vadd.f32 %v4581, %v4749
      %v4777 = vadd.f32 %v4582, %v4751
      %v4778 = vadd.f32 %v4583, %v4754
      %v4779 = vadd.f32 %v4584, %v4756
      %v4780 = vadd.f32 %v4585, %v4759
      %v4781 = vadd.f32 %v4586, %v4761
      %v4782 = vadd.f32 %v4587, %v4764
      %v4783 = vadd.f32 %v4588, %v4766
      %v4784 = vld [vmem:[%s4589] sm:$0xf]
      %v4785 = vld [vmem:[%s4589 + $0x4] sm:$0xf]
      %v4786 = vld [vmem:[%s4589 + $0x8] sm:$0x1]
      %v4787 = vld [vmem:[%s4589 + $0x10] sm:$0xf]
      %v4788 = vld [vmem:[%s4589 + $0x14] sm:$0xf]
      %v4789 = vld [vmem:[%s4589 + $0x18] sm:$0x1]
      %v4790 = vld [vmem:[%s4589 + $0x20] sm:$0xf]
      %v4791 = vld [vmem:[%s4589 + $0x24] sm:$0xf]
      %v4792 = vld [vmem:[%s4589 + $0x28] sm:$0x1]
      %v4793 = vld [vmem:[%s4589 + $0x30] sm:$0xf]
      %v4794 = vld [vmem:[%s4589 + $0x34] sm:$0xf]
      %v4795 = vld [vmem:[%s4589 + $0x38] sm:$0x1]
      %v4796 = vld [vmem:[%s4589 + $0x40] sm:$0xf]
      %v4797 = vld [vmem:[%s4589 + $0x44] sm:$0xf]
      %v4798 = vld [vmem:[%s4589 + $0x48] sm:$0x1]
      %v4799 = vld [vmem:[%s4589 + $0x50] sm:$0xf]
      %v4800 = vld [vmem:[%s4589 + $0x54] sm:$0xf]
      %v4801 = vld [vmem:[%s4589 + $0x58] sm:$0x1]
      %v4802 = vld [vmem:[%s4589 + $0x60] sm:$0xf]
      %v4803 = vld [vmem:[%s4589 + $0x64] sm:$0xf]
      %v4804 = vld [vmem:[%s4589 + $0x68] sm:$0x1]
      %v4805 = vld [vmem:[%s4589 + $0x70] sm:$0xf]
      %v4806 = vld [vmem:[%s4589 + $0x74] sm:$0xf]
      %v4807 = vld [vmem:[%s4589 + $0x78] sm:$0x1]
      %v4809 = vshrl.u32 %v4784, 16
      %v4811 = vrot.slane %v4809, 4
      %v4812 = vshll.u32 %v4784, 16
      %v4814 = vrot.slane %v4812, 5
      %v4815 = vor.u32 %v4811, %v4814
      %v4816 = vrot.slane %v4815, 4
      %v4818 = vshll.u32 %v4785, 16
      %v4820 = vrot.slane %v4818, 5
      %v4821 = vsel %vm3981, %v4816, %v4820
      %v4822 = vshrl.u32 %v4785, 16
      %v4824 = vrot.slane %v4822, 4
      %v4825 = vor.u32 %v4824, %v4820
      %v4826 = vrot.slane %v4825, 4
      %v4828 = vshll.u32 %v4786, 16
      %v4830 = vrot.slane %v4828, 5
      %v4831 = vsel %vm3981, %v4826, %v4830
      %v4833 = vshrl.u32 %v4787, 16
      %v4835 = vrot.slane %v4833, 4
      %v4836 = vshll.u32 %v4787, 16
      %v4838 = vrot.slane %v4836, 5
      %v4839 = vor.u32 %v4835, %v4838
      %v4840 = vrot.slane %v4839, 4
      %v4842 = vshll.u32 %v4788, 16
      %v4844 = vrot.slane %v4842, 5
      %v4845 = vsel %vm3981, %v4840, %v4844
      %v4846 = vshrl.u32 %v4788, 16
      %v4848 = vrot.slane %v4846, 4
      %v4849 = vor.u32 %v4848, %v4844
      %v4850 = vrot.slane %v4849, 4
      %v4852 = vshll.u32 %v4789, 16
      %v4854 = vrot.slane %v4852, 5
      %v4855 = vsel %vm3981, %v4850, %v4854
      %v4857 = vshrl.u32 %v4790, 16
      %v4859 = vrot.slane %v4857, 4
      %v4860 = vshll.u32 %v4790, 16
      %v4862 = vrot.slane %v4860, 5
      %v4863 = vor.u32 %v4859, %v4862
      %v4864 = vrot.slane %v4863, 4
      %v4866 = vshll.u32 %v4791, 16
      %v4868 = vrot.slane %v4866, 5
      %v4869 = vsel %vm3981, %v4864, %v4868
      %v4870 = vshrl.u32 %v4791, 16
      %v4872 = vrot.slane %v4870, 4
      %v4873 = vor.u32 %v4872, %v4868
      %v4874 = vrot.slane %v4873, 4
      %v4876 = vshll.u32 %v4792, 16
      %v4878 = vrot.slane %v4876, 5
      %v4879 = vsel %vm3981, %v4874, %v4878
      %v4881 = vshrl.u32 %v4793, 16
      %v4883 = vrot.slane %v4881, 4
      %v4884 = vshll.u32 %v4793, 16
      %v4886 = vrot.slane %v4884, 5
      %v4887 = vor.u32 %v4883, %v4886
      %v4888 = vrot.slane %v4887, 4
      %v4890 = vshll.u32 %v4794, 16
      %v4892 = vrot.slane %v4890, 5
      %v4893 = vsel %vm3981, %v4888, %v4892
      %v4894 = vshrl.u32 %v4794, 16
      %v4896 = vrot.slane %v4894, 4
      %v4897 = vor.u32 %v4896, %v4892
      %v4898 = vrot.slane %v4897, 4
      %v4900 = vshll.u32 %v4795, 16
      %v4902 = vrot.slane %v4900, 5
      %v4903 = vsel %vm3981, %v4898, %v4902
      %v4905 = vshrl.u32 %v4796, 16
      %v4907 = vrot.slane %v4905, 4
      %v4908 = vshll.u32 %v4796, 16
      %v4910 = vrot.slane %v4908, 5
      %v4911 = vor.u32 %v4907, %v4910
      %v4912 = vrot.slane %v4911, 4
      %v4914 = vshll.u32 %v4797, 16
      %v4916 = vrot.slane %v4914, 5
      %v4917 = vsel %vm3981, %v4912, %v4916
      %v4918 = vshrl.u32 %v4797, 16
      %v4920 = vrot.slane %v4918, 4
      %v4921 = vor.u32 %v4920, %v4916
      %v4922 = vrot.slane %v4921, 4
      %v4924 = vshll.u32 %v4798, 16
      %v4926 = vrot.slane %v4924, 5
      %v4927 = vsel %vm3981, %v4922, %v4926
      %v4929 = vshrl.u32 %v4799, 16
      %v4931 = vrot.slane %v4929, 4
      %v4932 = vshll.u32 %v4799, 16
      %v4934 = vrot.slane %v4932, 5
      %v4935 = vor.u32 %v4931, %v4934
      %v4936 = vrot.slane %v4935, 4
      %v4938 = vshll.u32 %v4800, 16
      %v4940 = vrot.slane %v4938, 5
      %v4941 = vsel %vm3981, %v4936, %v4940
      %v4942 = vshrl.u32 %v4800, 16
      %v4944 = vrot.slane %v4942, 4
      %v4945 = vor.u32 %v4944, %v4940
      %v4946 = vrot.slane %v4945, 4
      %v4948 = vshll.u32 %v4801, 16
      %v4950 = vrot.slane %v4948, 5
      %v4951 = vsel %vm3981, %v4946, %v4950
      %v4953 = vshrl.u32 %v4802, 16
      %v4955 = vrot.slane %v4953, 4
      %v4956 = vshll.u32 %v4802, 16
      %v4958 = vrot.slane %v4956, 5
      %v4959 = vor.u32 %v4955, %v4958
      %v4960 = vrot.slane %v4959, 4
      %v4962 = vshll.u32 %v4803, 16
      %v4964 = vrot.slane %v4962, 5
      %v4965 = vsel %vm3981, %v4960, %v4964
      %v4966 = vshrl.u32 %v4803, 16
      %v4968 = vrot.slane %v4966, 4
      %v4969 = vor.u32 %v4968, %v4964
      %v4970 = vrot.slane %v4969, 4
      %v4972 = vshll.u32 %v4804, 16
      %v4974 = vrot.slane %v4972, 5
      %v4975 = vsel %vm3981, %v4970, %v4974
      %v4977 = vshrl.u32 %v4805, 16
      %v4979 = vrot.slane %v4977, 4
      %v4980 = vshll.u32 %v4805, 16
      %v4982 = vrot.slane %v4980, 5
      %v4983 = vor.u32 %v4979, %v4982
      %v4984 = vrot.slane %v4983, 4
      %v4986 = vshll.u32 %v4806, 16
      %v4988 = vrot.slane %v4986, 5
      %v4989 = vsel %vm3981, %v4984, %v4988
      %v4990 = vshrl.u32 %v4806, 16
      %v4992 = vrot.slane %v4990, 4
      %v4993 = vor.u32 %v4992, %v4988
      %v4994 = vrot.slane %v4993, 4
      %v4996 = vshll.u32 %v4807, 16
      %v4998 = vrot.slane %v4996, 5
      %v4999 = vsel %vm3981, %v4994, %v4998
      %s5000 = scalar_lea.vmem %s5, 256
      %v5001 = vld [vmem:[%s5000] sm:$0xf]
      %v5002 = vld [vmem:[%s5000 + $0x4] sm:$0xf]
      %v5003 = vld [vmem:[%s5000 + $0x8] sm:$0xf]
      %v5004 = vld [vmem:[%s5000 + $0xc] sm:$0xf]
      %v5005 = vld [vmem:[%s5000 + $0x10] sm:$0xf]
      %v5006 = vld [vmem:[%s5000 + $0x14] sm:$0xf]
      %v5007 = vld [vmem:[%s5000 + $0x18] sm:$0xf]
      %v5008 = vld [vmem:[%s5000 + $0x1c] sm:$0xf]
      %v5009 = vld [vmem:[%s5000 + $0x20] sm:$0xf]
      %v5010 = vld [vmem:[%s5000 + $0x24] sm:$0xf]
      %v5011 = vld [vmem:[%s5000 + $0x28] sm:$0xf]
      %v5012 = vld [vmem:[%s5000 + $0x2c] sm:$0xf]
      %v5013 = vld [vmem:[%s5000 + $0x30] sm:$0xf]
      %v5014 = vld [vmem:[%s5000 + $0x34] sm:$0xf]
      %v5015 = vld [vmem:[%s5000 + $0x38] sm:$0xf]
      %v5016 = vld [vmem:[%s5000 + $0x3c] sm:$0xf]
      %v5017 = vunpack.c.l.b16 %v4821
      %v5018 = vunpack.c.l.b16 %v4831
      %v5019 = vunpack.c.l.b16 %v4845
      %v5020 = vunpack.c.l.b16 %v4855
      %v5021 = vunpack.c.l.b16 %v4869
      %v5022 = vunpack.c.l.b16 %v4879
      %v5023 = vunpack.c.l.b16 %v4893
      %v5024 = vunpack.c.l.b16 %v4903
      %v5025 = vunpack.c.l.b16 %v4917
      %v5026 = vunpack.c.l.b16 %v4927
      %v5027 = vunpack.c.l.b16 %v4941
      %v5028 = vunpack.c.l.b16 %v4951
      %v5029 = vunpack.c.l.b16 %v4965
      %v5030 = vunpack.c.l.b16 %v4975
      %v5031 = vunpack.c.l.b16 %v4989
      %v5032 = vunpack.c.l.b16 %v4999
      %v5033 = vpack.c.b16 %v5018, %v5017
      %v5034 = vpack.c.b16 %v5020, %v5019
      %v5035 = vpack.c.b16 %v5022, %v5021
      %v5036 = vpack.c.b16 %v5024, %v5023
      %v5037 = vpack.c.b16 %v5026, %v5025
      %v5038 = vpack.c.b16 %v5028, %v5027
      %v5039 = vpack.c.b16 %v5030, %v5029
      %v5040 = vpack.c.b16 %v5032, %v5031
      %v5065 = vunpack.c.l.b16 %v5001
      %v5066 = vunpack.c.l.b16 %v5002
      %v5067 = vunpack.c.l.b16 %v5003
      %v5068 = vunpack.c.l.b16 %v5004
      %v5069 = vunpack.c.l.b16 %v5005
      %v5070 = vunpack.c.l.b16 %v5006
      %v5071 = vunpack.c.l.b16 %v5007
      %v5072 = vunpack.c.l.b16 %v5008
      %v5073 = vunpack.c.l.b16 %v5009
      %v5074 = vunpack.c.l.b16 %v5010
      %v5075 = vunpack.c.l.b16 %v5011
      %v5076 = vunpack.c.l.b16 %v5012
      %v5077 = vunpack.c.l.b16 %v5013
      %v5078 = vunpack.c.l.b16 %v5014
      %v5079 = vunpack.c.l.b16 %v5015
      %v5080 = vunpack.c.l.b16 %v5016
      %v5081 = vpack.c.b16 %v5066, %v5065
      %v5082 = vpack.c.b16 %v5068, %v5067
      %v5083 = vpack.c.b16 %v5070, %v5069
      %v5084 = vpack.c.b16 %v5072, %v5071
      %v5085 = vpack.c.b16 %v5074, %v5073
      %v5086 = vpack.c.b16 %v5076, %v5075
      %v5087 = vpack.c.b16 %v5078, %v5077
      %v5088 = vpack.c.b16 %v5080, %v5079
      %5097 = vmatpush.bf16.msra.mxu0 %v5088
      %5098 = vmatpush.bf16.msra.mxu0 %v5087
      %5099 = vmatpush.bf16.msra.mxu0 %v5086
      %5100 = vmatpush.bf16.msra.mxu0 %v5085
      %5101 = vmatpush.bf16.msra.mxu0 %v5084
      %5102 = vmatpush.bf16.msra.mxu0 %v5083
      %5103 = vmatpush.bf16.msra.mxu0 %v5082
      %5104 = vmatpush.bf16.msra.mxu0 %v5081
      %5105 = vmatmul.bf16.gmra.mxu0 %v5033
      %v5106 = vpop.f32.mrf.mxu0
      %v5107 = vadd.f32 0.0, %v5106
      %v5108 = vpop.f32.mrf.mxu0
      %v5109 = vadd.f32 0.0, %v5108
      %5110 = vmatmul.bf16.gmra.mxu0 %v5034
      %v5111 = vpop.f32.mrf.mxu0
      %v5112 = vadd.f32 0.0, %v5111
      %v5113 = vpop.f32.mrf.mxu0
      %v5114 = vadd.f32 0.0, %v5113
      %5115 = vmatmul.bf16.gmra.mxu0 %v5035
      %v5116 = vpop.f32.mrf.mxu0
      %v5117 = vadd.f32 0.0, %v5116
      %v5118 = vpop.f32.mrf.mxu0
      %v5119 = vadd.f32 0.0, %v5118
      %5120 = vmatmul.bf16.gmra.mxu0 %v5036
      %v5121 = vpop.f32.mrf.mxu0
      %v5122 = vadd.f32 0.0, %v5121
      %v5123 = vpop.f32.mrf.mxu0
      %v5124 = vadd.f32 0.0, %v5123
      %5125 = vmatmul.bf16.gmra.mxu0 %v5037
      %v5126 = vpop.f32.mrf.mxu0
      %v5127 = vadd.f32 0.0, %v5126
      %v5128 = vpop.f32.mrf.mxu0
      %v5129 = vadd.f32 0.0, %v5128
      %5130 = vmatmul.bf16.gmra.mxu0 %v5038
      %v5131 = vpop.f32.mrf.mxu0
      %v5132 = vadd.f32 0.0, %v5131
      %v5133 = vpop.f32.mrf.mxu0
      %v5134 = vadd.f32 0.0, %v5133
      %5135 = vmatmul.bf16.gmra.mxu0 %v5039
      %v5136 = vpop.f32.mrf.mxu0
      %v5137 = vadd.f32 0.0, %v5136
      %v5138 = vpop.f32.mrf.mxu0
      %v5139 = vadd.f32 0.0, %v5138
      %5140 = vmatmul.bf16.gmra.mxu0 %v5040
      %v5141 = vpop.f32.mrf.mxu0
      %v5142 = vadd.f32 0.0, %v5141
      %v5143 = vpop.f32.mrf.mxu0
      %v5144 = vadd.f32 0.0, %v5143
      %5145 = vdwg.mxu0
      %v5146 = vadd.f32 %v4768, %v5107
      %v5147 = vadd.f32 %v4769, %v5109
      %v5148 = vadd.f32 %v4770, %v5112
      %v5149 = vadd.f32 %v4771, %v5114
      %v5150 = vadd.f32 %v4772, %v5117
      %v5151 = vadd.f32 %v4773, %v5119
      %v5152 = vadd.f32 %v4774, %v5122
      %v5153 = vadd.f32 %v4775, %v5124
      %v5154 = vadd.f32 %v4776, %v5127
      %v5155 = vadd.f32 %v4777, %v5129
      %v5156 = vadd.f32 %v4778, %v5132
      %v5157 = vadd.f32 %v4779, %v5134
      %v5158 = vadd.f32 %v4780, %v5137
      %v5159 = vadd.f32 %v4781, %v5139
      %v5160 = vadd.f32 %v4782, %v5142
      %v5161 = vadd.f32 %v4783, %v5144
      %v5162 = vld [vmem:[%s4589] sm:$0xe]
      %v5163 = vld [vmem:[%s4589 + $0x10] sm:$0xe]
      %v5164 = vld [vmem:[%s4589 + $0x20] sm:$0xe]
      %v5165 = vld [vmem:[%s4589 + $0x30] sm:$0xe]
      %v5166 = vld [vmem:[%s4589 + $0x40] sm:$0xe]
      %v5167 = vld [vmem:[%s4589 + $0x50] sm:$0xe]
      %v5168 = vld [vmem:[%s4589 + $0x60] sm:$0xe]
      %v5169 = vld [vmem:[%s4589 + $0x70] sm:$0xe]
      %v5194 = vrot.slane %v5162, 5
      %v5195 = vrot.slane %v5194, 4
      %v5196 = vrot.slane %v4785, 5
      %v5197 = vsel %vm4370, %v5195, %v5196
      %v5198 = vrot.slane %v5196, 4
      %v5199 = vrot.slane %v4786, 5
      %v5200 = vsel %vm4370, %v5198, %v5199
      %v5201 = vrot.slane %v5163, 5
      %v5202 = vrot.slane %v5201, 4
      %v5203 = vrot.slane %v4788, 5
      %v5204 = vsel %vm4370, %v5202, %v5203
      %v5205 = vrot.slane %v5203, 4
      %v5206 = vrot.slane %v4789, 5
      %v5207 = vsel %vm4370, %v5205, %v5206
      %v5208 = vrot.slane %v5164, 5
      %v5209 = vrot.slane %v5208, 4
      %v5210 = vrot.slane %v4791, 5
      %v5211 = vsel %vm4370, %v5209, %v5210
      %v5212 = vrot.slane %v5210, 4
      %v5213 = vrot.slane %v4792, 5
      %v5214 = vsel %vm4370, %v5212, %v5213
      %v5215 = vrot.slane %v5165, 5
      %v5216 = vrot.slane %v5215, 4
      %v5217 = vrot.slane %v4794, 5
      %v5218 = vsel %vm4370, %v5216, %v5217
      %v5219 = vrot.slane %v5217, 4
      %v5220 = vrot.slane %v4795, 5
      %v5221 = vsel %vm4370, %v5219, %v5220
      %v5222 = vrot.slane %v5166, 5
      %v5223 = vrot.slane %v5222, 4
      %v5224 = vrot.slane %v4797, 5
      %v5225 = vsel %vm4370, %v5223, %v5224
      %v5226 = vrot.slane %v5224, 4
      %v5227 = vrot.slane %v4798, 5
      %v5228 = vsel %vm4370, %v5226, %v5227
      %v5229 = vrot.slane %v5167, 5
      %v5230 = vrot.slane %v5229, 4
      %v5231 = vrot.slane %v4800, 5
      %v5232 = vsel %vm4370, %v5230, %v5231
      %v5233 = vrot.slane %v5231, 4
      %v5234 = vrot.slane %v4801, 5
      %v5235 = vsel %vm4370, %v5233, %v5234
      %v5236 = vrot.slane %v5168, 5
      %v5237 = vrot.slane %v5236, 4
      %v5238 = vrot.slane %v4803, 5
      %v5239 = vsel %vm4370, %v5237, %v5238
      %v5240 = vrot.slane %v5238, 4
      %v5241 = vrot.slane %v4804, 5
      %v5242 = vsel %vm4370, %v5240, %v5241
      %v5243 = vrot.slane %v5169, 5
      %v5244 = vrot.slane %v5243, 4
      %v5245 = vrot.slane %v4806, 5
      %v5246 = vsel %vm4370, %v5244, %v5245
      %v5247 = vrot.slane %v5245, 4
      %v5248 = vrot.slane %v4807, 5
      %v5249 = vsel %vm4370, %v5247, %v5248
      %s5250 = scalar_lea.vmem %s5, 320
      %v5251 = vld [vmem:[%s5250] sm:$0xf]
      %v5252 = vld [vmem:[%s5250 + $0x4] sm:$0xf]
      %v5253 = vld [vmem:[%s5250 + $0x8] sm:$0xf]
      %v5254 = vld [vmem:[%s5250 + $0xc] sm:$0xf]
      %v5255 = vld [vmem:[%s5250 + $0x10] sm:$0xf]
      %v5256 = vld [vmem:[%s5250 + $0x14] sm:$0xf]
      %v5257 = vld [vmem:[%s5250 + $0x18] sm:$0xf]
      %v5258 = vld [vmem:[%s5250 + $0x1c] sm:$0xf]
      %v5259 = vld [vmem:[%s5250 + $0x20] sm:$0xf]
      %v5260 = vld [vmem:[%s5250 + $0x24] sm:$0xf]
      %v5261 = vld [vmem:[%s5250 + $0x28] sm:$0xf]
      %v5262 = vld [vmem:[%s5250 + $0x2c] sm:$0xf]
      %v5263 = vld [vmem:[%s5250 + $0x30] sm:$0xf]
      %v5264 = vld [vmem:[%s5250 + $0x34] sm:$0xf]
      %v5265 = vld [vmem:[%s5250 + $0x38] sm:$0xf]
      %v5266 = vld [vmem:[%s5250 + $0x3c] sm:$0xf]
      %v5267 = vunpack.c.l.b16 %v5197
      %v5268 = vunpack.c.l.b16 %v5200
      %v5269 = vunpack.c.l.b16 %v5204
      %v5270 = vunpack.c.l.b16 %v5207
      %v5271 = vunpack.c.l.b16 %v5211
      %v5272 = vunpack.c.l.b16 %v5214
      %v5273 = vunpack.c.l.b16 %v5218
      %v5274 = vunpack.c.l.b16 %v5221
      %v5275 = vunpack.c.l.b16 %v5225
      %v5276 = vunpack.c.l.b16 %v5228
      %v5277 = vunpack.c.l.b16 %v5232
      %v5278 = vunpack.c.l.b16 %v5235
      %v5279 = vunpack.c.l.b16 %v5239
      %v5280 = vunpack.c.l.b16 %v5242
      %v5281 = vunpack.c.l.b16 %v5246
      %v5282 = vunpack.c.l.b16 %v5249
      %v5283 = vpack.c.b16 %v5268, %v5267
      %v5284 = vpack.c.b16 %v5270, %v5269
      %v5285 = vpack.c.b16 %v5272, %v5271
      %v5286 = vpack.c.b16 %v5274, %v5273
      %v5287 = vpack.c.b16 %v5276, %v5275
      %v5288 = vpack.c.b16 %v5278, %v5277
      %v5289 = vpack.c.b16 %v5280, %v5279
      %v5290 = vpack.c.b16 %v5282, %v5281
      %v5315 = vunpack.c.l.b16 %v5251
      %v5316 = vunpack.c.l.b16 %v5252
      %v5317 = vunpack.c.l.b16 %v5253
      %v5318 = vunpack.c.l.b16 %v5254
      %v5319 = vunpack.c.l.b16 %v5255
      %v5320 = vunpack.c.l.b16 %v5256
      %v5321 = vunpack.c.l.b16 %v5257
      %v5322 = vunpack.c.l.b16 %v5258
      %v5323 = vunpack.c.l.b16 %v5259
      %v5324 = vunpack.c.l.b16 %v5260
      %v5325 = vunpack.c.l.b16 %v5261
      %v5326 = vunpack.c.l.b16 %v5262
      %v5327 = vunpack.c.l.b16 %v5263
      %v5328 = vunpack.c.l.b16 %v5264
      %v5329 = vunpack.c.l.b16 %v5265
      %v5330 = vunpack.c.l.b16 %v5266
      %v5331 = vpack.c.b16 %v5316, %v5315
      %v5332 = vpack.c.b16 %v5318, %v5317
      %v5333 = vpack.c.b16 %v5320, %v5319
      %v5334 = vpack.c.b16 %v5322, %v5321
      %v5335 = vpack.c.b16 %v5324, %v5323
      %v5336 = vpack.c.b16 %v5326, %v5325
      %v5337 = vpack.c.b16 %v5328, %v5327
      %v5338 = vpack.c.b16 %v5330, %v5329
      %5347 = vmatpush.bf16.msra.mxu0 %v5338
      %5348 = vmatpush.bf16.msra.mxu0 %v5337
      %5349 = vmatpush.bf16.msra.mxu0 %v5336
      %5350 = vmatpush.bf16.msra.mxu0 %v5335
      %5351 = vmatpush.bf16.msra.mxu0 %v5334
      %5352 = vmatpush.bf16.msra.mxu0 %v5333
      %5353 = vmatpush.bf16.msra.mxu0 %v5332
      %5354 = vmatpush.bf16.msra.mxu0 %v5331
      %5355 = vmatmul.bf16.gmra.mxu0 %v5283
      %v5356 = vpop.f32.mrf.mxu0
      %v5357 = vadd.f32 0.0, %v5356
      %v5358 = vpop.f32.mrf.mxu0
      %v5359 = vadd.f32 0.0, %v5358
      %5360 = vmatmul.bf16.gmra.mxu0 %v5284
      %v5361 = vpop.f32.mrf.mxu0
      %v5362 = vadd.f32 0.0, %v5361
      %v5363 = vpop.f32.mrf.mxu0
      %v5364 = vadd.f32 0.0, %v5363
      %5365 = vmatmul.bf16.gmra.mxu0 %v5285
      %v5366 = vpop.f32.mrf.mxu0
      %v5367 = vadd.f32 0.0, %v5366
      %v5368 = vpop.f32.mrf.mxu0
      %v5369 = vadd.f32 0.0, %v5368
      %5370 = vmatmul.bf16.gmra.mxu0 %v5286
      %v5371 = vpop.f32.mrf.mxu0
      %v5372 = vadd.f32 0.0, %v5371
      %v5373 = vpop.f32.mrf.mxu0
      %v5374 = vadd.f32 0.0, %v5373
      %5375 = vmatmul.bf16.gmra.mxu0 %v5287
      %v5376 = vpop.f32.mrf.mxu0
      %v5377 = vadd.f32 0.0, %v5376
      %v5378 = vpop.f32.mrf.mxu0
      %v5379 = vadd.f32 0.0, %v5378
      %5380 = vmatmul.bf16.gmra.mxu0 %v5288
      %v5381 = vpop.f32.mrf.mxu0
      %v5382 = vadd.f32 0.0, %v5381
      %v5383 = vpop.f32.mrf.mxu0
      %v5384 = vadd.f32 0.0, %v5383
      %5385 = vmatmul.bf16.gmra.mxu0 %v5289
      %v5386 = vpop.f32.mrf.mxu0
      %v5387 = vadd.f32 0.0, %v5386
      %v5388 = vpop.f32.mrf.mxu0
      %v5389 = vadd.f32 0.0, %v5388
      %5390 = vmatmul.bf16.gmra.mxu0 %v5290
      %v5391 = vpop.f32.mrf.mxu0
      %v5392 = vadd.f32 0.0, %v5391
      %v5393 = vpop.f32.mrf.mxu0
      %v5394 = vadd.f32 0.0, %v5393
      %5395 = vdwg.mxu0
      %v5396 = vadd.f32 %v5146, %v5357
      %v5397 = vadd.f32 %v5147, %v5359
      %v5398 = vadd.f32 %v5148, %v5362
      %v5399 = vadd.f32 %v5149, %v5364
      %v5400 = vadd.f32 %v5150, %v5367
      %v5401 = vadd.f32 %v5151, %v5369
      %v5402 = vadd.f32 %v5152, %v5372
      %v5403 = vadd.f32 %v5153, %v5374
      %v5404 = vadd.f32 %v5154, %v5377
      %v5405 = vadd.f32 %v5155, %v5379
      %v5406 = vadd.f32 %v5156, %v5382
      %v5407 = vadd.f32 %v5157, %v5384
      %v5408 = vadd.f32 %v5158, %v5387
      %v5409 = vadd.f32 %v5159, %v5389
      %v5410 = vadd.f32 %v5160, %v5392
      %v5411 = vadd.f32 %v5161, %v5394
      %s5412 = scalar_lea.vmem [#allocation3], 32
      %v5413 = vld [vmem:[%s5412] sm:$0xf]
      %v5414 = vld [vmem:[%s5412 + $0x4] sm:$0xf]
      %v5415 = vld [vmem:[%s5412 + $0x10] sm:$0xf]
      %v5416 = vld [vmem:[%s5412 + $0x14] sm:$0xf]
      %v5417 = vld [vmem:[%s5412 + $0x20] sm:$0xf]
      %v5418 = vld [vmem:[%s5412 + $0x24] sm:$0xf]
      %v5419 = vld [vmem:[%s5412 + $0x30] sm:$0xf]
      %v5420 = vld [vmem:[%s5412 + $0x34] sm:$0xf]
      %v5421 = vld [vmem:[%s5412 + $0x40] sm:$0xf]
      %v5422 = vld [vmem:[%s5412 + $0x44] sm:$0xf]
      %v5423 = vld [vmem:[%s5412 + $0x50] sm:$0xf]
      %v5424 = vld [vmem:[%s5412 + $0x54] sm:$0xf]
      %v5425 = vld [vmem:[%s5412 + $0x60] sm:$0xf]
      %v5426 = vld [vmem:[%s5412 + $0x64] sm:$0xf]
      %v5427 = vld [vmem:[%s5412 + $0x70] sm:$0xf]
      %v5428 = vld [vmem:[%s5412 + $0x74] sm:$0xf]
      %s5429 = scalar_lea.vmem %s5, 384
      %v5430 = vld [vmem:[%s5429] sm:$0xf]
      %v5431 = vld [vmem:[%s5429 + $0x4] sm:$0xf]
      %v5432 = vld [vmem:[%s5429 + $0x8] sm:$0xf]
      %v5433 = vld [vmem:[%s5429 + $0xc] sm:$0xf]
      %v5434 = vld [vmem:[%s5429 + $0x10] sm:$0xf]
      %v5435 = vld [vmem:[%s5429 + $0x14] sm:$0xf]
      %v5436 = vld [vmem:[%s5429 + $0x18] sm:$0xf]
      %v5437 = vld [vmem:[%s5429 + $0x1c] sm:$0xf]
      %v5438 = vld [vmem:[%s5429 + $0x20] sm:$0xf]
      %v5439 = vld [vmem:[%s5429 + $0x24] sm:$0xf]
      %v5440 = vld [vmem:[%s5429 + $0x28] sm:$0xf]
      %v5441 = vld [vmem:[%s5429 + $0x2c] sm:$0xf]
      %v5442 = vld [vmem:[%s5429 + $0x30] sm:$0xf]
      %v5443 = vld [vmem:[%s5429 + $0x34] sm:$0xf]
      %v5444 = vld [vmem:[%s5429 + $0x38] sm:$0xf]
      %v5445 = vld [vmem:[%s5429 + $0x3c] sm:$0xf]
      %v5462 = vunpack.c.l.b16 %v5413
      %v5463 = vunpack.c.l.b16 %v5414
      %v5464 = vunpack.c.l.b16 %v5415
      %v5465 = vunpack.c.l.b16 %v5416
      %v5466 = vunpack.c.l.b16 %v5417
      %v5467 = vunpack.c.l.b16 %v5418
      %v5468 = vunpack.c.l.b16 %v5419
      %v5469 = vunpack.c.l.b16 %v5420
      %v5470 = vunpack.c.l.b16 %v5421
      %v5471 = vunpack.c.l.b16 %v5422
      %v5472 = vunpack.c.l.b16 %v5423
      %v5473 = vunpack.c.l.b16 %v5424
      %v5474 = vunpack.c.l.b16 %v5425
      %v5475 = vunpack.c.l.b16 %v5426
      %v5476 = vunpack.c.l.b16 %v5427
      %v5477 = vunpack.c.l.b16 %v5428
      %v5478 = vpack.c.b16 %v5463, %v5462
      %v5479 = vpack.c.b16 %v5465, %v5464
      %v5480 = vpack.c.b16 %v5467, %v5466
      %v5481 = vpack.c.b16 %v5469, %v5468
      %v5482 = vpack.c.b16 %v5471, %v5470
      %v5483 = vpack.c.b16 %v5473, %v5472
      %v5484 = vpack.c.b16 %v5475, %v5474
      %v5485 = vpack.c.b16 %v5477, %v5476
      %v5510 = vunpack.c.l.b16 %v5430
      %v5511 = vunpack.c.l.b16 %v5431
      %v5512 = vunpack.c.l.b16 %v5432
      %v5513 = vunpack.c.l.b16 %v5433
      %v5514 = vunpack.c.l.b16 %v5434
      %v5515 = vunpack.c.l.b16 %v5435
      %v5516 = vunpack.c.l.b16 %v5436
      %v5517 = vunpack.c.l.b16 %v5437
      %v5518 = vunpack.c.l.b16 %v5438
      %v5519 = vunpack.c.l.b16 %v5439
      %v5520 = vunpack.c.l.b16 %v5440
      %v5521 = vunpack.c.l.b16 %v5441
      %v5522 = vunpack.c.l.b16 %v5442
      %v5523 = vunpack.c.l.b16 %v5443
      %v5524 = vunpack.c.l.b16 %v5444
      %v5525 = vunpack.c.l.b16 %v5445
      %v5526 = vpack.c.b16 %v5511, %v5510
      %v5527 = vpack.c.b16 %v5513, %v5512
      %v5528 = vpack.c.b16 %v5515, %v5514
      %v5529 = vpack.c.b16 %v5517, %v5516
      %v5530 = vpack.c.b16 %v5519, %v5518
      %v5531 = vpack.c.b16 %v5521, %v5520
      %v5532 = vpack.c.b16 %v5523, %v5522
      %v5533 = vpack.c.b16 %v5525, %v5524
      %5542 = vmatpush.bf16.msra.mxu0 %v5533
      %5543 = vmatpush.bf16.msra.mxu0 %v5532
      %5544 = vmatpush.bf16.msra.mxu0 %v5531
      %5545 = vmatpush.bf16.msra.mxu0 %v5530
      %5546 = vmatpush.bf16.msra.mxu0 %v5529
      %5547 = vmatpush.bf16.msra.mxu0 %v5528
      %5548 = vmatpush.bf16.msra.mxu0 %v5527
      %5549 = vmatpush.bf16.msra.mxu0 %v5526
      %5550 = vmatmul.bf16.gmra.mxu0 %v5478
      %v5551 = vpop.f32.mrf.mxu0
      %v5552 = vadd.f32 0.0, %v5551
      %v5553 = vpop.f32.mrf.mxu0
      %v5554 = vadd.f32 0.0, %v5553
      %5555 = vmatmul.bf16.gmra.mxu0 %v5479
      %v5556 = vpop.f32.mrf.mxu0
      %v5557 = vadd.f32 0.0, %v5556
      %v5558 = vpop.f32.mrf.mxu0
      %v5559 = vadd.f32 0.0, %v5558
      %5560 = vmatmul.bf16.gmra.mxu0 %v5480
      %v5561 = vpop.f32.mrf.mxu0
      %v5562 = vadd.f32 0.0, %v5561
      %v5563 = vpop.f32.mrf.mxu0
      %v5564 = vadd.f32 0.0, %v5563
      %5565 = vmatmul.bf16.gmra.mxu0 %v5481
      %v5566 = vpop.f32.mrf.mxu0
      %v5567 = vadd.f32 0.0, %v5566
      %v5568 = vpop.f32.mrf.mxu0
      %v5569 = vadd.f32 0.0, %v5568
      %5570 = vmatmul.bf16.gmra.mxu0 %v5482
      %v5571 = vpop.f32.mrf.mxu0
      %v5572 = vadd.f32 0.0, %v5571
      %v5573 = vpop.f32.mrf.mxu0
      %v5574 = vadd.f32 0.0, %v5573
      %5575 = vmatmul.bf16.gmra.mxu0 %v5483
      %v5576 = vpop.f32.mrf.mxu0
      %v5577 = vadd.f32 0.0, %v5576
      %v5578 = vpop.f32.mrf.mxu0
      %v5579 = vadd.f32 0.0, %v5578
      %5580 = vmatmul.bf16.gmra.mxu0 %v5484
      %v5581 = vpop.f32.mrf.mxu0
      %v5582 = vadd.f32 0.0, %v5581
      %v5583 = vpop.f32.mrf.mxu0
      %v5584 = vadd.f32 0.0, %v5583
      %5585 = vmatmul.bf16.gmra.mxu0 %v5485
      %v5586 = vpop.f32.mrf.mxu0
      %v5587 = vadd.f32 0.0, %v5586
      %v5588 = vpop.f32.mrf.mxu0
      %v5589 = vadd.f32 0.0, %v5588
      %5590 = vdwg.mxu0
      %v5591 = vadd.f32 %v5396, %v5552
      %v5592 = vadd.f32 %v5397, %v5554
      %v5593 = vadd.f32 %v5398, %v5557
      %v5594 = vadd.f32 %v5399, %v5559
      %v5595 = vadd.f32 %v5400, %v5562
      %v5596 = vadd.f32 %v5401, %v5564
      %v5597 = vadd.f32 %v5402, %v5567
      %v5598 = vadd.f32 %v5403, %v5569
      %v5599 = vadd.f32 %v5404, %v5572
      %v5600 = vadd.f32 %v5405, %v5574
      %v5601 = vadd.f32 %v5406, %v5577
      %v5602 = vadd.f32 %v5407, %v5579
      %v5603 = vadd.f32 %v5408, %v5582
      %v5604 = vadd.f32 %v5409, %v5584
      %v5605 = vadd.f32 %v5410, %v5587
      %v5606 = vadd.f32 %v5411, %v5589
      %v5607 = vld [vmem:[%s5412] sm:$0xf]
      %v5608 = vld [vmem:[%s5412 + $0x4] sm:$0xf]
      %v5609 = vld [vmem:[%s5412 + $0x8] sm:$0x1]
      %v5610 = vld [vmem:[%s5412 + $0x10] sm:$0xf]
      %v5611 = vld [vmem:[%s5412 + $0x14] sm:$0xf]
      %v5612 = vld [vmem:[%s5412 + $0x18] sm:$0x1]
      %v5613 = vld [vmem:[%s5412 + $0x20] sm:$0xf]
      %v5614 = vld [vmem:[%s5412 + $0x24] sm:$0xf]
      %v5615 = vld [vmem:[%s5412 + $0x28] sm:$0x1]
      %v5616 = vld [vmem:[%s5412 + $0x30] sm:$0xf]
      %v5617 = vld [vmem:[%s5412 + $0x34] sm:$0xf]
      %v5618 = vld [vmem:[%s5412 + $0x38] sm:$0x1]
      %v5619 = vld [vmem:[%s5412 + $0x40] sm:$0xf]
      %v5620 = vld [vmem:[%s5412 + $0x44] sm:$0xf]
      %v5621 = vld [vmem:[%s5412 + $0x48] sm:$0x1]
      %v5622 = vld [vmem:[%s5412 + $0x50] sm:$0xf]
      %v5623 = vld [vmem:[%s5412 + $0x54] sm:$0xf]
      %v5624 = vld [vmem:[%s5412 + $0x58] sm:$0x1]
      %v5625 = vld [vmem:[%s5412 + $0x60] sm:$0xf]
      %v5626 = vld [vmem:[%s5412 + $0x64] sm:$0xf]
      %v5627 = vld [vmem:[%s5412 + $0x68] sm:$0x1]
      %v5628 = vld [vmem:[%s5412 + $0x70] sm:$0xf]
      %v5629 = vld [vmem:[%s5412 + $0x74] sm:$0xf]
      %v5630 = vld [vmem:[%s5412 + $0x78] sm:$0x1]
      %v5632 = vshrl.u32 %v5607, 16
      %v5634 = vrot.slane %v5632, 4
      %v5635 = vshll.u32 %v5607, 16
      %v5637 = vrot.slane %v5635, 5
      %v5638 = vor.u32 %v5634, %v5637
      %v5639 = vrot.slane %v5638, 4
      %v5641 = vshll.u32 %v5608, 16
      %v5643 = vrot.slane %v5641, 5
      %v5644 = vsel %vm3981, %v5639, %v5643
      %v5645 = vshrl.u32 %v5608, 16
      %v5647 = vrot.slane %v5645, 4
      %v5648 = vor.u32 %v5647, %v5643
      %v5649 = vrot.slane %v5648, 4
      %v5651 = vshll.u32 %v5609, 16
      %v5653 = vrot.slane %v5651, 5
      %v5654 = vsel %vm3981, %v5649, %v5653
      %v5656 = vshrl.u32 %v5610, 16
      %v5658 = vrot.slane %v5656, 4
      %v5659 = vshll.u32 %v5610, 16
      %v5661 = vrot.slane %v5659, 5
      %v5662 = vor.u32 %v5658, %v5661
      %v5663 = vrot.slane %v5662, 4
      %v5665 = vshll.u32 %v5611, 16
      %v5667 = vrot.slane %v5665, 5
      %v5668 = vsel %vm3981, %v5663, %v5667
      %v5669 = vshrl.u32 %v5611, 16
      %v5671 = vrot.slane %v5669, 4
      %v5672 = vor.u32 %v5671, %v5667
      %v5673 = vrot.slane %v5672, 4
      %v5675 = vshll.u32 %v5612, 16
      %v5677 = vrot.slane %v5675, 5
      %v5678 = vsel %vm3981, %v5673, %v5677
      %v5680 = vshrl.u32 %v5613, 16
      %v5682 = vrot.slane %v5680, 4
      %v5683 = vshll.u32 %v5613, 16
      %v5685 = vrot.slane %v5683, 5
      %v5686 = vor.u32 %v5682, %v5685
      %v5687 = vrot.slane %v5686, 4
      %v5689 = vshll.u32 %v5614, 16
      %v5691 = vrot.slane %v5689, 5
      %v5692 = vsel %vm3981, %v5687, %v5691
      %v5693 = vshrl.u32 %v5614, 16
      %v5695 = vrot.slane %v5693, 4
      %v5696 = vor.u32 %v5695, %v5691
      %v5697 = vrot.slane %v5696, 4
      %v5699 = vshll.u32 %v5615, 16
      %v5701 = vrot.slane %v5699, 5
      %v5702 = vsel %vm3981, %v5697, %v5701
      %v5704 = vshrl.u32 %v5616, 16
      %v5706 = vrot.slane %v5704, 4
      %v5707 = vshll.u32 %v5616, 16
      %v5709 = vrot.slane %v5707, 5
      %v5710 = vor.u32 %v5706, %v5709
      %v5711 = vrot.slane %v5710, 4
      %v5713 = vshll.u32 %v5617, 16
      %v5715 = vrot.slane %v5713, 5
      %v5716 = vsel %vm3981, %v5711, %v5715
      %v5717 = vshrl.u32 %v5617, 16
      %v5719 = vrot.slane %v5717, 4
      %v5720 = vor.u32 %v5719, %v5715
      %v5721 = vrot.slane %v5720, 4
      %v5723 = vshll.u32 %v5618, 16
      %v5725 = vrot.slane %v5723, 5
      %v5726 = vsel %vm3981, %v5721, %v5725
      %v5728 = vshrl.u32 %v5619, 16
      %v5730 = vrot.slane %v5728, 4
      %v5731 = vshll.u32 %v5619, 16
      %v5733 = vrot.slane %v5731, 5
      %v5734 = vor.u32 %v5730, %v5733
      %v5735 = vrot.slane %v5734, 4
      %v5737 = vshll.u32 %v5620, 16
      %v5739 = vrot.slane %v5737, 5
      %v5740 = vsel %vm3981, %v5735, %v5739
      %v5741 = vshrl.u32 %v5620, 16
      %v5743 = vrot.slane %v5741, 4
      %v5744 = vor.u32 %v5743, %v5739
      %v5745 = vrot.slane %v5744, 4
      %v5747 = vshll.u32 %v5621, 16
      %v5749 = vrot.slane %v5747, 5
      %v5750 = vsel %vm3981, %v5745, %v5749
      %v5752 = vshrl.u32 %v5622, 16
      %v5754 = vrot.slane %v5752, 4
      %v5755 = vshll.u32 %v5622, 16
      %v5757 = vrot.slane %v5755, 5
      %v5758 = vor.u32 %v5754, %v5757
      %v5759 = vrot.slane %v5758, 4
      %v5761 = vshll.u32 %v5623, 16
      %v5763 = vrot.slane %v5761, 5
      %v5764 = vsel %vm3981, %v5759, %v5763
      %v5765 = vshrl.u32 %v5623, 16
      %v5767 = vrot.slane %v5765, 4
      %v5768 = vor.u32 %v5767, %v5763
      %v5769 = vrot.slane %v5768, 4
      %v5771 = vshll.u32 %v5624, 16
      %v5773 = vrot.slane %v5771, 5
      %v5774 = vsel %vm3981, %v5769, %v5773
      %v5776 = vshrl.u32 %v5625, 16
      %v5778 = vrot.slane %v5776, 4
      %v5779 = vshll.u32 %v5625, 16
      %v5781 = vrot.slane %v5779, 5
      %v5782 = vor.u32 %v5778, %v5781
      %v5783 = vrot.slane %v5782, 4
      %v5785 = vshll.u32 %v5626, 16
      %v5787 = vrot.slane %v5785, 5
      %v5788 = vsel %vm3981, %v5783, %v5787
      %v5789 = vshrl.u32 %v5626, 16
      %v5791 = vrot.slane %v5789, 4
      %v5792 = vor.u32 %v5791, %v5787
      %v5793 = vrot.slane %v5792, 4
      %v5795 = vshll.u32 %v5627, 16
      %v5797 = vrot.slane %v5795, 5
      %v5798 = vsel %vm3981, %v5793, %v5797
      %v5800 = vshrl.u32 %v5628, 16
      %v5802 = vrot.slane %v5800, 4
      %v5803 = vshll.u32 %v5628, 16
      %v5805 = vrot.slane %v5803, 5
      %v5806 = vor.u32 %v5802, %v5805
      %v5807 = vrot.slane %v5806, 4
      %v5809 = vshll.u32 %v5629, 16
      %v5811 = vrot.slane %v5809, 5
      %v5812 = vsel %vm3981, %v5807, %v5811
      %v5813 = vshrl.u32 %v5629, 16
      %v5815 = vrot.slane %v5813, 4
      %v5816 = vor.u32 %v5815, %v5811
      %v5817 = vrot.slane %v5816, 4
      %v5819 = vshll.u32 %v5630, 16
      %v5821 = vrot.slane %v5819, 5
      %v5822 = vsel %vm3981, %v5817, %v5821
      %s5823 = scalar_lea.vmem %s5, 448
      %v5824 = vld [vmem:[%s5823] sm:$0xf]
      %v5825 = vld [vmem:[%s5823 + $0x4] sm:$0xf]
      %v5826 = vld [vmem:[%s5823 + $0x8] sm:$0xf]
      %v5827 = vld [vmem:[%s5823 + $0xc] sm:$0xf]
      %v5828 = vld [vmem:[%s5823 + $0x10] sm:$0xf]
      %v5829 = vld [vmem:[%s5823 + $0x14] sm:$0xf]
      %v5830 = vld [vmem:[%s5823 + $0x18] sm:$0xf]
      %v5831 = vld [vmem:[%s5823 + $0x1c] sm:$0xf]
      %v5832 = vld [vmem:[%s5823 + $0x20] sm:$0xf]
      %v5833 = vld [vmem:[%s5823 + $0x24] sm:$0xf]
      %v5834 = vld [vmem:[%s5823 + $0x28] sm:$0xf]
      %v5835 = vld [vmem:[%s5823 + $0x2c] sm:$0xf]
      %v5836 = vld [vmem:[%s5823 + $0x30] sm:$0xf]
      %v5837 = vld [vmem:[%s5823 + $0x34] sm:$0xf]
      %v5838 = vld [vmem:[%s5823 + $0x38] sm:$0xf]
      %v5839 = vld [vmem:[%s5823 + $0x3c] sm:$0xf]
      %v5840 = vunpack.c.l.b16 %v5644
      %v5841 = vunpack.c.l.b16 %v5654
      %v5842 = vunpack.c.l.b16 %v5668
      %v5843 = vunpack.c.l.b16 %v5678
      %v5844 = vunpack.c.l.b16 %v5692
      %v5845 = vunpack.c.l.b16 %v5702
      %v5846 = vunpack.c.l.b16 %v5716
      %v5847 = vunpack.c.l.b16 %v5726
      %v5848 = vunpack.c.l.b16 %v5740
      %v5849 = vunpack.c.l.b16 %v5750
      %v5850 = vunpack.c.l.b16 %v5764
      %v5851 = vunpack.c.l.b16 %v5774
      %v5852 = vunpack.c.l.b16 %v5788
      %v5853 = vunpack.c.l.b16 %v5798
      %v5854 = vunpack.c.l.b16 %v5812
      %v5855 = vunpack.c.l.b16 %v5822
      %v5856 = vpack.c.b16 %v5841, %v5840
      %v5857 = vpack.c.b16 %v5843, %v5842
      %v5858 = vpack.c.b16 %v5845, %v5844
      %v5859 = vpack.c.b16 %v5847, %v5846
      %v5860 = vpack.c.b16 %v5849, %v5848
      %v5861 = vpack.c.b16 %v5851, %v5850
      %v5862 = vpack.c.b16 %v5853, %v5852
      %v5863 = vpack.c.b16 %v5855, %v5854
      %v5888 = vunpack.c.l.b16 %v5824
      %v5889 = vunpack.c.l.b16 %v5825
      %v5890 = vunpack.c.l.b16 %v5826
      %v5891 = vunpack.c.l.b16 %v5827
      %v5892 = vunpack.c.l.b16 %v5828
      %v5893 = vunpack.c.l.b16 %v5829
      %v5894 = vunpack.c.l.b16 %v5830
      %v5895 = vunpack.c.l.b16 %v5831
      %v5896 = vunpack.c.l.b16 %v5832
      %v5897 = vunpack.c.l.b16 %v5833
      %v5898 = vunpack.c.l.b16 %v5834
      %v5899 = vunpack.c.l.b16 %v5835
      %v5900 = vunpack.c.l.b16 %v5836
      %v5901 = vunpack.c.l.b16 %v5837
      %v5902 = vunpack.c.l.b16 %v5838
      %v5903 = vunpack.c.l.b16 %v5839
      %v5904 = vpack.c.b16 %v5889, %v5888
      %v5905 = vpack.c.b16 %v5891, %v5890
      %v5906 = vpack.c.b16 %v5893, %v5892
      %v5907 = vpack.c.b16 %v5895, %v5894
      %v5908 = vpack.c.b16 %v5897, %v5896
      %v5909 = vpack.c.b16 %v5899, %v5898
      %v5910 = vpack.c.b16 %v5901, %v5900
      %v5911 = vpack.c.b16 %v5903, %v5902
      %5920 = vmatpush.bf16.msra.mxu0 %v5911
      %5921 = vmatpush.bf16.msra.mxu0 %v5910
      %5922 = vmatpush.bf16.msra.mxu0 %v5909
      %5923 = vmatpush.bf16.msra.mxu0 %v5908
      %5924 = vmatpush.bf16.msra.mxu0 %v5907
      %5925 = vmatpush.bf16.msra.mxu0 %v5906
      %5926 = vmatpush.bf16.msra.mxu0 %v5905
      %5927 = vmatpush.bf16.msra.mxu0 %v5904
      %5928 = vmatmul.bf16.gmra.mxu0 %v5856
      %v5929 = vpop.f32.mrf.mxu0
      %v5930 = vadd.f32 0.0, %v5929
      %v5931 = vpop.f32.mrf.mxu0
      %v5932 = vadd.f32 0.0, %v5931
      %5933 = vmatmul.bf16.gmra.mxu0 %v5857
      %v5934 = vpop.f32.mrf.mxu0
      %v5935 = vadd.f32 0.0, %v5934
      %v5936 = vpop.f32.mrf.mxu0
      %v5937 = vadd.f32 0.0, %v5936
      %5938 = vmatmul.bf16.gmra.mxu0 %v5858
      %v5939 = vpop.f32.mrf.mxu0
      %v5940 = vadd.f32 0.0, %v5939
      %v5941 = vpop.f32.mrf.mxu0
      %v5942 = vadd.f32 0.0, %v5941
      %5943 = vmatmul.bf16.gmra.mxu0 %v5859
      %v5944 = vpop.f32.mrf.mxu0
      %v5945 = vadd.f32 0.0, %v5944
      %v5946 = vpop.f32.mrf.mxu0
      %v5947 = vadd.f32 0.0, %v5946
      %5948 = vmatmul.bf16.gmra.mxu0 %v5860
      %v5949 = vpop.f32.mrf.mxu0
      %v5950 = vadd.f32 0.0, %v5949
      %v5951 = vpop.f32.mrf.mxu0
      %v5952 = vadd.f32 0.0, %v5951
      %5953 = vmatmul.bf16.gmra.mxu0 %v5861
      %v5954 = vpop.f32.mrf.mxu0
      %v5955 = vadd.f32 0.0, %v5954
      %v5956 = vpop.f32.mrf.mxu0
      %v5957 = vadd.f32 0.0, %v5956
      %5958 = vmatmul.bf16.gmra.mxu0 %v5862
      %v5959 = vpop.f32.mrf.mxu0
      %v5960 = vadd.f32 0.0, %v5959
      %v5961 = vpop.f32.mrf.mxu0
      %v5962 = vadd.f32 0.0, %v5961
      %5963 = vmatmul.bf16.gmra.mxu0 %v5863
      %v5964 = vpop.f32.mrf.mxu0
      %v5965 = vadd.f32 0.0, %v5964
      %v5966 = vpop.f32.mrf.mxu0
      %v5967 = vadd.f32 0.0, %v5966
      %5968 = vdwg.mxu0
      %v5969 = vadd.f32 %v5591, %v5930
      %v5970 = vadd.f32 %v5592, %v5932
      %v5971 = vadd.f32 %v5593, %v5935
      %v5972 = vadd.f32 %v5594, %v5937
      %v5973 = vadd.f32 %v5595, %v5940
      %v5974 = vadd.f32 %v5596, %v5942
      %v5975 = vadd.f32 %v5597, %v5945
      %v5976 = vadd.f32 %v5598, %v5947
      %v5977 = vadd.f32 %v5599, %v5950
      %v5978 = vadd.f32 %v5600, %v5952
      %v5979 = vadd.f32 %v5601, %v5955
      %v5980 = vadd.f32 %v5602, %v5957
      %v5981 = vadd.f32 %v5603, %v5960
      %v5982 = vadd.f32 %v5604, %v5962
      %v5983 = vadd.f32 %v5605, %v5965
      %v5984 = vadd.f32 %v5606, %v5967
      %v5985 = vld [vmem:[%s5412] sm:$0xe]
      %v5986 = vld [vmem:[%s5412 + $0x10] sm:$0xe]
      %v5987 = vld [vmem:[%s5412 + $0x20] sm:$0xe]
      %v5988 = vld [vmem:[%s5412 + $0x30] sm:$0xe]
      %v5989 = vld [vmem:[%s5412 + $0x40] sm:$0xe]
      %v5990 = vld [vmem:[%s5412 + $0x50] sm:$0xe]
      %v5991 = vld [vmem:[%s5412 + $0x60] sm:$0xe]
      %v5992 = vld [vmem:[%s5412 + $0x70] sm:$0xe]
      %v6017 = vrot.slane %v5985, 5
      %v6018 = vrot.slane %v6017, 4
      %v6019 = vrot.slane %v5608, 5
      %v6020 = vsel %vm4370, %v6018, %v6019
      %v6021 = vrot.slane %v6019, 4
      %v6022 = vrot.slane %v5609, 5
      %v6023 = vsel %vm4370, %v6021, %v6022
      %v6024 = vrot.slane %v5986, 5
      %v6025 = vrot.slane %v6024, 4
      %v6026 = vrot.slane %v5611, 5
      %v6027 = vsel %vm4370, %v6025, %v6026
      %v6028 = vrot.slane %v6026, 4
      %v6029 = vrot.slane %v5612, 5
      %v6030 = vsel %vm4370, %v6028, %v6029
      %v6031 = vrot.slane %v5987, 5
      %v6032 = vrot.slane %v6031, 4
      %v6033 = vrot.slane %v5614, 5
      %v6034 = vsel %vm4370, %v6032, %v6033
      %v6035 = vrot.slane %v6033, 4
      %v6036 = vrot.slane %v5615, 5
      %v6037 = vsel %vm4370, %v6035, %v6036
      %v6038 = vrot.slane %v5988, 5
      %v6039 = vrot.slane %v6038, 4
      %v6040 = vrot.slane %v5617, 5
      %v6041 = vsel %vm4370, %v6039, %v6040
      %v6042 = vrot.slane %v6040, 4
      %v6043 = vrot.slane %v5618, 5
      %v6044 = vsel %vm4370, %v6042, %v6043
      %v6045 = vrot.slane %v5989, 5
      %v6046 = vrot.slane %v6045, 4
      %v6047 = vrot.slane %v5620, 5
      %v6048 = vsel %vm4370, %v6046, %v6047
      %v6049 = vrot.slane %v6047, 4
      %v6050 = vrot.slane %v5621, 5
      %v6051 = vsel %vm4370, %v6049, %v6050
      %v6052 = vrot.slane %v5990, 5
      %v6053 = vrot.slane %v6052, 4
      %v6054 = vrot.slane %v5623, 5
      %v6055 = vsel %vm4370, %v6053, %v6054
      %v6056 = vrot.slane %v6054, 4
      %v6057 = vrot.slane %v5624, 5
      %v6058 = vsel %vm4370, %v6056, %v6057
      %v6059 = vrot.slane %v5991, 5
      %v6060 = vrot.slane %v6059, 4
      %v6061 = vrot.slane %v5626, 5
      %v6062 = vsel %vm4370, %v6060, %v6061
      %v6063 = vrot.slane %v6061, 4
      %v6064 = vrot.slane %v5627, 5
      %v6065 = vsel %vm4370, %v6063, %v6064
      %v6066 = vrot.slane %v5992, 5
      %v6067 = vrot.slane %v6066, 4
      %v6068 = vrot.slane %v5629, 5
      %v6069 = vsel %vm4370, %v6067, %v6068
      %v6070 = vrot.slane %v6068, 4
      %v6071 = vrot.slane %v5630, 5
      %v6072 = vsel %vm4370, %v6070, %v6071
      %s6073 = scalar_lea.vmem %s5, 512
      %v6074 = vld [vmem:[%s6073] sm:$0xf]
      %v6075 = vld [vmem:[%s6073 + $0x4] sm:$0xf]
      %v6076 = vld [vmem:[%s6073 + $0x8] sm:$0xf]
      %v6077 = vld [vmem:[%s6073 + $0xc] sm:$0xf]
      %v6078 = vld [vmem:[%s6073 + $0x10] sm:$0xf]
      %v6079 = vld [vmem:[%s6073 + $0x14] sm:$0xf]
      %v6080 = vld [vmem:[%s6073 + $0x18] sm:$0xf]
      %v6081 = vld [vmem:[%s6073 + $0x1c] sm:$0xf]
      %v6082 = vld [vmem:[%s6073 + $0x20] sm:$0xf]
      %v6083 = vld [vmem:[%s6073 + $0x24] sm:$0xf]
      %v6084 = vld [vmem:[%s6073 + $0x28] sm:$0xf]
      %v6085 = vld [vmem:[%s6073 + $0x2c] sm:$0xf]
      %v6086 = vld [vmem:[%s6073 + $0x30] sm:$0xf]
      %v6087 = vld [vmem:[%s6073 + $0x34] sm:$0xf]
      %v6088 = vld [vmem:[%s6073 + $0x38] sm:$0xf]
      %v6089 = vld [vmem:[%s6073 + $0x3c] sm:$0xf]
      %v6090 = vunpack.c.l.b16 %v6020
      %v6091 = vunpack.c.l.b16 %v6023
      %v6092 = vunpack.c.l.b16 %v6027
      %v6093 = vunpack.c.l.b16 %v6030
      %v6094 = vunpack.c.l.b16 %v6034
      %v6095 = vunpack.c.l.b16 %v6037
      %v6096 = vunpack.c.l.b16 %v6041
      %v6097 = vunpack.c.l.b16 %v6044
      %v6098 = vunpack.c.l.b16 %v6048
      %v6099 = vunpack.c.l.b16 %v6051
      %v6100 = vunpack.c.l.b16 %v6055
      %v6101 = vunpack.c.l.b16 %v6058
      %v6102 = vunpack.c.l.b16 %v6062
      %v6103 = vunpack.c.l.b16 %v6065
      %v6104 = vunpack.c.l.b16 %v6069
      %v6105 = vunpack.c.l.b16 %v6072
      %v6106 = vpack.c.b16 %v6091, %v6090
      %v6107 = vpack.c.b16 %v6093, %v6092
      %v6108 = vpack.c.b16 %v6095, %v6094
      %v6109 = vpack.c.b16 %v6097, %v6096
      %v6110 = vpack.c.b16 %v6099, %v6098
      %v6111 = vpack.c.b16 %v6101, %v6100
      %v6112 = vpack.c.b16 %v6103, %v6102
      %v6113 = vpack.c.b16 %v6105, %v6104
      %v6138 = vunpack.c.l.b16 %v6074
      %v6139 = vunpack.c.l.b16 %v6075
      %v6140 = vunpack.c.l.b16 %v6076
      %v6141 = vunpack.c.l.b16 %v6077
      %v6142 = vunpack.c.l.b16 %v6078
      %v6143 = vunpack.c.l.b16 %v6079
      %v6144 = vunpack.c.l.b16 %v6080
      %v6145 = vunpack.c.l.b16 %v6081
      %v6146 = vunpack.c.l.b16 %v6082
      %v6147 = vunpack.c.l.b16 %v6083
      %v6148 = vunpack.c.l.b16 %v6084
      %v6149 = vunpack.c.l.b16 %v6085
      %v6150 = vunpack.c.l.b16 %v6086
      %v6151 = vunpack.c.l.b16 %v6087
      %v6152 = vunpack.c.l.b16 %v6088
      %v6153 = vunpack.c.l.b16 %v6089
      %v6154 = vpack.c.b16 %v6139, %v6138
      %v6155 = vpack.c.b16 %v6141, %v6140
      %v6156 = vpack.c.b16 %v6143, %v6142
      %v6157 = vpack.c.b16 %v6145, %v6144
      %v6158 = vpack.c.b16 %v6147, %v6146
      %v6159 = vpack.c.b16 %v6149, %v6148
      %v6160 = vpack.c.b16 %v6151, %v6150
      %v6161 = vpack.c.b16 %v6153, %v6152
      %6170 = vmatpush.bf16.msra.mxu0 %v6161
      %6171 = vmatpush.bf16.msra.mxu0 %v6160
      %6172 = vmatpush.bf16.msra.mxu0 %v6159
      %6173 = vmatpush.bf16.msra.mxu0 %v6158
      %6174 = vmatpush.bf16.msra.mxu0 %v6157
      %6175 = vmatpush.bf16.msra.mxu0 %v6156
      %6176 = vmatpush.bf16.msra.mxu0 %v6155
      %6177 = vmatpush.bf16.msra.mxu0 %v6154
      %6178 = vmatmul.bf16.gmra.mxu0 %v6106
      %v6179 = vpop.f32.mrf.mxu0
      %v6180 = vadd.f32 0.0, %v6179
      %v6181 = vpop.f32.mrf.mxu0
      %v6182 = vadd.f32 0.0, %v6181
      %6183 = vmatmul.bf16.gmra.mxu0 %v6107
      %v6184 = vpop.f32.mrf.mxu0
      %v6185 = vadd.f32 0.0, %v6184
      %v6186 = vpop.f32.mrf.mxu0
      %v6187 = vadd.f32 0.0, %v6186
      %6188 = vmatmul.bf16.gmra.mxu0 %v6108
      %v6189 = vpop.f32.mrf.mxu0
      %v6190 = vadd.f32 0.0, %v6189
      %v6191 = vpop.f32.mrf.mxu0
      %v6192 = vadd.f32 0.0, %v6191
      %6193 = vmatmul.bf16.gmra.mxu0 %v6109
      %v6194 = vpop.f32.mrf.mxu0
      %v6195 = vadd.f32 0.0, %v6194
      %v6196 = vpop.f32.mrf.mxu0
      %v6197 = vadd.f32 0.0, %v6196
      %6198 = vmatmul.bf16.gmra.mxu0 %v6110
      %v6199 = vpop.f32.mrf.mxu0
      %v6200 = vadd.f32 0.0, %v6199
      %v6201 = vpop.f32.mrf.mxu0
      %v6202 = vadd.f32 0.0, %v6201
      %6203 = vmatmul.bf16.gmra.mxu0 %v6111
      %v6204 = vpop.f32.mrf.mxu0
      %v6205 = vadd.f32 0.0, %v6204
      %v6206 = vpop.f32.mrf.mxu0
      %v6207 = vadd.f32 0.0, %v6206
      %6208 = vmatmul.bf16.gmra.mxu0 %v6112
      %v6209 = vpop.f32.mrf.mxu0
      %v6210 = vadd.f32 0.0, %v6209
      %v6211 = vpop.f32.mrf.mxu0
      %v6212 = vadd.f32 0.0, %v6211
      %6213 = vmatmul.bf16.gmra.mxu0 %v6113
      %v6214 = vpop.f32.mrf.mxu0
      %v6215 = vadd.f32 0.0, %v6214
      %v6216 = vpop.f32.mrf.mxu0
      %v6217 = vadd.f32 0.0, %v6216
      %6218 = vdwg.mxu0
      %v6219 = vadd.f32 %v5969, %v6180
      %v6220 = vadd.f32 %v5970, %v6182
      %v6221 = vadd.f32 %v5971, %v6185
      %v6222 = vadd.f32 %v5972, %v6187
      %v6223 = vadd.f32 %v5973, %v6190
      %v6224 = vadd.f32 %v5974, %v6192
      %v6225 = vadd.f32 %v5975, %v6195
      %v6226 = vadd.f32 %v5976, %v6197
      %v6227 = vadd.f32 %v5977, %v6200
      %v6228 = vadd.f32 %v5978, %v6202
      %v6229 = vadd.f32 %v5979, %v6205
      %v6230 = vadd.f32 %v5980, %v6207
      %v6231 = vadd.f32 %v5981, %v6210
      %v6232 = vadd.f32 %v5982, %v6212
      %v6233 = vadd.f32 %v5983, %v6215
      %v6234 = vadd.f32 %v5984, %v6217
      %6235 = vxpose.xlu0.b32.start [1/16] %v6219, 128
      %6236 = vxpose.xlu0.b32.cont [2/16] %v6220, 128
      %6237 = vxpose.xlu0.b32.cont [3/16] %v6221, 128
      %6238 = vxpose.xlu0.b32.cont [4/16] %v6222, 128
      %6239 = vxpose.xlu0.b32.cont [5/16] %v6223, 128
      %6240 = vxpose.xlu0.b32.cont [6/16] %v6224, 128
      %6241 = vxpose.xlu0.b32.cont [7/16] %v6225, 128
      %6242 = vxpose.xlu0.b32.cont [8/16] %v6226, 128
      %6243 = vxpose.xlu0.b32.cont [9/16] %v6227, 128
      %6244 = vxpose.xlu0.b32.cont [10/16] %v6228, 128
      %6245 = vxpose.xlu0.b32.cont [11/16] %v6229, 128
      %6246 = vxpose.xlu0.b32.cont [12/16] %v6230, 128
      %6247 = vxpose.xlu0.b32.cont [13/16] %v6231, 128
      %6248 = vxpose.xlu0.b32.cont [14/16] %v6232, 128
      %6249 = vxpose.xlu0.b32.cont [15/16] %v6233, 128
      %6250 = vxpose.xlu0.b32.end [16/16] %v6234, 128
      %v6251 = vpop.trf.xlu0
      %v6252 = vpop.trf.xlu0
      %v6253 = vpop.trf.xlu0
      %v6254 = vpop.trf.xlu0
      %v6255 = vpop.trf.xlu0
      %v6256 = vpop.trf.xlu0
      %v6257 = vpop.trf.xlu0
      %v6258 = vpop.trf.xlu0
      %v6259 = vpop.trf.xlu0
      %v6260 = vpop.trf.xlu0
      %v6261 = vpop.trf.xlu0
      %v6262 = vpop.trf.xlu0
      %v6263 = vpop.trf.xlu0
      %v6264 = vpop.trf.xlu0
      %v6265 = vpop.trf.xlu0
      %v6266 = vpop.trf.xlu0
      %v6267 = vxor.u32 %v6251, 2147483648
      %v6268 = vmul.f32 %v6267, 1.442695
      %v6269 = vpow.pop %v6268
      %v6270 = vadd.f32 %v6269, 1.0
      %v6271 = vrcp.pop %v6270
      %v6272 = vmul.f32 %v6270, %v6271
      %v6273 = vsub.f32 1.0, %v6272
      %v6274 = vmul.f32 %v6271, %v6273
      %v6275 = vadd.f32 %v6271, %v6274
      %vm6276 = vweird.f32 %v6270
      %vm6277 = vweird.f32 %v6271
      %vm6278 = vmor %vm6276, %vm6277
      %v6279 = vsel %vm6278, %v6271, %v6275
      %v6280 = vand.u32 2147483647, %v6270
      %vm6281 = vcmp.eq.f32.partialorder %v6280, 8.507059e+37
      %v6282 = vand.u32 %v6270, 2147483648
      %v6283 = vor.u32 1.1754944e-38, %v6282
      %v6284 = vsel %vm6281, %v6283, %v6279
      %v6285 = vmul.f32 1.0, %v6284
      %6286 = vst [vmem:[%s314] sm:$0xf] %v6285
      %s6287 = scalar_lea.vmem [#allocation3], 128
      %v6288 = vld [vmem:[%s6287] sm:$0xf]
      %v6289 = vld [vmem:[%s6287 + $0x4] sm:$0xf]
      %v6290 = vld [vmem:[%s6287 + $0x10] sm:$0xf]
      %v6291 = vld [vmem:[%s6287 + $0x14] sm:$0xf]
      %v6292 = vld [vmem:[%s6287 + $0x20] sm:$0xf]
      %v6293 = vld [vmem:[%s6287 + $0x24] sm:$0xf]
      %v6294 = vld [vmem:[%s6287 + $0x30] sm:$0xf]
      %v6295 = vld [vmem:[%s6287 + $0x34] sm:$0xf]
      %v6296 = vld [vmem:[%s6287 + $0x40] sm:$0xf]
      %v6297 = vld [vmem:[%s6287 + $0x44] sm:$0xf]
      %v6298 = vld [vmem:[%s6287 + $0x50] sm:$0xf]
      %v6299 = vld [vmem:[%s6287 + $0x54] sm:$0xf]
      %v6300 = vld [vmem:[%s6287 + $0x60] sm:$0xf]
      %v6301 = vld [vmem:[%s6287 + $0x64] sm:$0xf]
      %v6302 = vld [vmem:[%s6287 + $0x70] sm:$0xf]
      %v6303 = vld [vmem:[%s6287 + $0x74] sm:$0xf]
      %v6304 = vld [vmem:[%s5] sm:$0xf]
      %v6305 = vld [vmem:[%s5 + $0x4] sm:$0xf]
      %v6306 = vld [vmem:[%s5 + $0x8] sm:$0xf]
      %v6307 = vld [vmem:[%s5 + $0xc] sm:$0xf]
      %v6308 = vld [vmem:[%s5 + $0x10] sm:$0xf]
      %v6309 = vld [vmem:[%s5 + $0x14] sm:$0xf]
      %v6310 = vld [vmem:[%s5 + $0x18] sm:$0xf]
      %v6311 = vld [vmem:[%s5 + $0x1c] sm:$0xf]
      %v6312 = vld [vmem:[%s5 + $0x20] sm:$0xf]
      %v6313 = vld [vmem:[%s5 + $0x24] sm:$0xf]
      %v6314 = vld [vmem:[%s5 + $0x28] sm:$0xf]
      %v6315 = vld [vmem:[%s5 + $0x2c] sm:$0xf]
      %v6316 = vld [vmem:[%s5 + $0x30] sm:$0xf]
      %v6317 = vld [vmem:[%s5 + $0x34] sm:$0xf]
      %v6318 = vld [vmem:[%s5 + $0x38] sm:$0xf]
      %v6319 = vld [vmem:[%s5 + $0x3c] sm:$0xf]
      %v6336 = vunpack.c.l.b16 %v6288
      %v6337 = vunpack.c.l.b16 %v6289
      %v6338 = vunpack.c.l.b16 %v6290
      %v6339 = vunpack.c.l.b16 %v6291
      %v6340 = vunpack.c.l.b16 %v6292
      %v6341 = vunpack.c.l.b16 %v6293
      %v6342 = vunpack.c.l.b16 %v6294
      %v6343 = vunpack.c.l.b16 %v6295
      %v6344 = vunpack.c.l.b16 %v6296
      %v6345 = vunpack.c.l.b16 %v6297
      %v6346 = vunpack.c.l.b16 %v6298
      %v6347 = vunpack.c.l.b16 %v6299
      %v6348 = vunpack.c.l.b16 %v6300
      %v6349 = vunpack.c.l.b16 %v6301
      %v6350 = vunpack.c.l.b16 %v6302
      %v6351 = vunpack.c.l.b16 %v6303
      %v6352 = vpack.c.b16 %v6337, %v6336
      %v6353 = vpack.c.b16 %v6339, %v6338
      %v6354 = vpack.c.b16 %v6341, %v6340
      %v6355 = vpack.c.b16 %v6343, %v6342
      %v6356 = vpack.c.b16 %v6345, %v6344
      %v6357 = vpack.c.b16 %v6347, %v6346
      %v6358 = vpack.c.b16 %v6349, %v6348
      %v6359 = vpack.c.b16 %v6351, %v6350
      %v6384 = vunpack.c.l.b16 %v6304
      %v6385 = vunpack.c.l.b16 %v6305
      %v6386 = vunpack.c.l.b16 %v6306
      %v6387 = vunpack.c.l.b16 %v6307
      %v6388 = vunpack.c.l.b16 %v6308
      %v6389 = vunpack.c.l.b16 %v6309
      %v6390 = vunpack.c.l.b16 %v6310
      %v6391 = vunpack.c.l.b16 %v6311
      %v6392 = vunpack.c.l.b16 %v6312
      %v6393 = vunpack.c.l.b16 %v6313
      %v6394 = vunpack.c.l.b16 %v6314
      %v6395 = vunpack.c.l.b16 %v6315
      %v6396 = vunpack.c.l.b16 %v6316
      %v6397 = vunpack.c.l.b16 %v6317
      %v6398 = vunpack.c.l.b16 %v6318
      %v6399 = vunpack.c.l.b16 %v6319
      %v6400 = vpack.c.b16 %v6385, %v6384
      %v6401 = vpack.c.b16 %v6387, %v6386
      %v6402 = vpack.c.b16 %v6389, %v6388
      %v6403 = vpack.c.b16 %v6391, %v6390
      %v6404 = vpack.c.b16 %v6393, %v6392
      %v6405 = vpack.c.b16 %v6395, %v6394
      %v6406 = vpack.c.b16 %v6397, %v6396
      %v6407 = vpack.c.b16 %v6399, %v6398
      %6416 = vmatpush.bf16.msra.mxu0 %v6407
      %6417 = vmatpush.bf16.msra.mxu0 %v6406
      %6418 = vmatpush.bf16.msra.mxu0 %v6405
      %6419 = vmatpush.bf16.msra.mxu0 %v6404
      %6420 = vmatpush.bf16.msra.mxu0 %v6403
      %6421 = vmatpush.bf16.msra.mxu0 %v6402
      %6422 = vmatpush.bf16.msra.mxu0 %v6401
      %6423 = vmatpush.bf16.msra.mxu0 %v6400
      %6424 = vmatmul.bf16.gmra.mxu0 %v6352
      %v6425 = vpop.f32.mrf.mxu0
      %v6426 = vadd.f32 0.0, %v6425
      %v6427 = vpop.f32.mrf.mxu0
      %v6428 = vadd.f32 0.0, %v6427
      %6429 = vmatmul.bf16.gmra.mxu0 %v6353
      %v6430 = vpop.f32.mrf.mxu0
      %v6431 = vadd.f32 0.0, %v6430
      %v6432 = vpop.f32.mrf.mxu0
      %v6433 = vadd.f32 0.0, %v6432
      %6434 = vmatmul.bf16.gmra.mxu0 %v6354
      %v6435 = vpop.f32.mrf.mxu0
      %v6436 = vadd.f32 0.0, %v6435
      %v6437 = vpop.f32.mrf.mxu0
      %v6438 = vadd.f32 0.0, %v6437
      %6439 = vmatmul.bf16.gmra.mxu0 %v6355
      %v6440 = vpop.f32.mrf.mxu0
      %v6441 = vadd.f32 0.0, %v6440
      %v6442 = vpop.f32.mrf.mxu0
      %v6443 = vadd.f32 0.0, %v6442
      %6444 = vmatmul.bf16.gmra.mxu0 %v6356
      %v6445 = vpop.f32.mrf.mxu0
      %v6446 = vadd.f32 0.0, %v6445
      %v6447 = vpop.f32.mrf.mxu0
      %v6448 = vadd.f32 0.0, %v6447
      %6449 = vmatmul.bf16.gmra.mxu0 %v6357
      %v6450 = vpop.f32.mrf.mxu0
      %v6451 = vadd.f32 0.0, %v6450
      %v6452 = vpop.f32.mrf.mxu0
      %v6453 = vadd.f32 0.0, %v6452
      %6454 = vmatmul.bf16.gmra.mxu0 %v6358
      %v6455 = vpop.f32.mrf.mxu0
      %v6456 = vadd.f32 0.0, %v6455
      %v6457 = vpop.f32.mrf.mxu0
      %v6458 = vadd.f32 0.0, %v6457
      %6459 = vmatmul.bf16.gmra.mxu0 %v6359
      %v6460 = vpop.f32.mrf.mxu0
      %v6461 = vadd.f32 0.0, %v6460
      %v6462 = vpop.f32.mrf.mxu0
      %v6463 = vadd.f32 0.0, %v6462
      %6464 = vdwg.mxu0
      %v6465 = vadd.f32 %v3760, %v6426
      %v6466 = vadd.f32 %v3760, %v6428
      %v6467 = vadd.f32 %v3760, %v6431
      %v6468 = vadd.f32 %v3760, %v6433
      %v6469 = vadd.f32 %v3760, %v6436
      %v6470 = vadd.f32 %v3760, %v6438
      %v6471 = vadd.f32 %v3760, %v6441
      %v6472 = vadd.f32 %v3760, %v6443
      %v6473 = vadd.f32 %v3760, %v6446
      %v6474 = vadd.f32 %v3760, %v6448
      %v6475 = vadd.f32 %v3760, %v6451
      %v6476 = vadd.f32 %v3760, %v6453
      %v6477 = vadd.f32 %v3760, %v6456
      %v6478 = vadd.f32 %v3760, %v6458
      %v6479 = vadd.f32 %v3760, %v6461
      %v6480 = vadd.f32 %v3760, %v6463
      %v6481 = vld [vmem:[%s6287] sm:$0xf]
      %v6482 = vld [vmem:[%s6287 + $0x4] sm:$0xf]
      %v6483 = vld [vmem:[%s6287 + $0x8] sm:$0x1]
      %v6484 = vld [vmem:[%s6287 + $0x10] sm:$0xf]
      %v6485 = vld [vmem:[%s6287 + $0x14] sm:$0xf]
      %v6486 = vld [vmem:[%s6287 + $0x18] sm:$0x1]
      %v6487 = vld [vmem:[%s6287 + $0x20] sm:$0xf]
      %v6488 = vld [vmem:[%s6287 + $0x24] sm:$0xf]
      %v6489 = vld [vmem:[%s6287 + $0x28] sm:$0x1]
      %v6490 = vld [vmem:[%s6287 + $0x30] sm:$0xf]
      %v6491 = vld [vmem:[%s6287 + $0x34] sm:$0xf]
      %v6492 = vld [vmem:[%s6287 + $0x38] sm:$0x1]
      %v6493 = vld [vmem:[%s6287 + $0x40] sm:$0xf]
      %v6494 = vld [vmem:[%s6287 + $0x44] sm:$0xf]
      %v6495 = vld [vmem:[%s6287 + $0x48] sm:$0x1]
      %v6496 = vld [vmem:[%s6287 + $0x50] sm:$0xf]
      %v6497 = vld [vmem:[%s6287 + $0x54] sm:$0xf]
      %v6498 = vld [vmem:[%s6287 + $0x58] sm:$0x1]
      %v6499 = vld [vmem:[%s6287 + $0x60] sm:$0xf]
      %v6500 = vld [vmem:[%s6287 + $0x64] sm:$0xf]
      %v6501 = vld [vmem:[%s6287 + $0x68] sm:$0x1]
      %v6502 = vld [vmem:[%s6287 + $0x70] sm:$0xf]
      %v6503 = vld [vmem:[%s6287 + $0x74] sm:$0xf]
      %v6504 = vld [vmem:[%s6287 + $0x78] sm:$0x1]
      %v6506 = vshrl.u32 %v6481, 16
      %v6508 = vrot.slane %v6506, 4
      %v6509 = vshll.u32 %v6481, 16
      %v6511 = vrot.slane %v6509, 5
      %v6512 = vor.u32 %v6508, %v6511
      %v6513 = vrot.slane %v6512, 4
      %v6515 = vshll.u32 %v6482, 16
      %v6517 = vrot.slane %v6515, 5
      %v6518 = vsel %vm3981, %v6513, %v6517
      %v6519 = vshrl.u32 %v6482, 16
      %v6521 = vrot.slane %v6519, 4
      %v6522 = vor.u32 %v6521, %v6517
      %v6523 = vrot.slane %v6522, 4
      %v6525 = vshll.u32 %v6483, 16
      %v6527 = vrot.slane %v6525, 5
      %v6528 = vsel %vm3981, %v6523, %v6527
      %v6530 = vshrl.u32 %v6484, 16
      %v6532 = vrot.slane %v6530, 4
      %v6533 = vshll.u32 %v6484, 16
      %v6535 = vrot.slane %v6533, 5
      %v6536 = vor.u32 %v6532, %v6535
      %v6537 = vrot.slane %v6536, 4
      %v6539 = vshll.u32 %v6485, 16
      %v6541 = vrot.slane %v6539, 5
      %v6542 = vsel %vm3981, %v6537, %v6541
      %v6543 = vshrl.u32 %v6485, 16
      %v6545 = vrot.slane %v6543, 4
      %v6546 = vor.u32 %v6545, %v6541
      %v6547 = vrot.slane %v6546, 4
      %v6549 = vshll.u32 %v6486, 16
      %v6551 = vrot.slane %v6549, 5
      %v6552 = vsel %vm3981, %v6547, %v6551
      %v6554 = vshrl.u32 %v6487, 16
      %v6556 = vrot.slane %v6554, 4
      %v6557 = vshll.u32 %v6487, 16
      %v6559 = vrot.slane %v6557, 5
      %v6560 = vor.u32 %v6556, %v6559
      %v6561 = vrot.slane %v6560, 4
      %v6563 = vshll.u32 %v6488, 16
      %v6565 = vrot.slane %v6563, 5
      %v6566 = vsel %vm3981, %v6561, %v6565
      %v6567 = vshrl.u32 %v6488, 16
      %v6569 = vrot.slane %v6567, 4
      %v6570 = vor.u32 %v6569, %v6565
      %v6571 = vrot.slane %v6570, 4
      %v6573 = vshll.u32 %v6489, 16
      %v6575 = vrot.slane %v6573, 5
      %v6576 = vsel %vm3981, %v6571, %v6575
      %v6578 = vshrl.u32 %v6490, 16
      %v6580 = vrot.slane %v6578, 4
      %v6581 = vshll.u32 %v6490, 16
      %v6583 = vrot.slane %v6581, 5
      %v6584 = vor.u32 %v6580, %v6583
      %v6585 = vrot.slane %v6584, 4
      %v6587 = vshll.u32 %v6491, 16
      %v6589 = vrot.slane %v6587, 5
      %v6590 = vsel %vm3981, %v6585, %v6589
      %v6591 = vshrl.u32 %v6491, 16
      %v6593 = vrot.slane %v6591, 4
      %v6594 = vor.u32 %v6593, %v6589
      %v6595 = vrot.slane %v6594, 4
      %v6597 = vshll.u32 %v6492, 16
      %v6599 = vrot.slane %v6597, 5
      %v6600 = vsel %vm3981, %v6595, %v6599
      %v6602 = vshrl.u32 %v6493, 16
      %v6604 = vrot.slane %v6602, 4
      %v6605 = vshll.u32 %v6493, 16
      %v6607 = vrot.slane %v6605, 5
      %v6608 = vor.u32 %v6604, %v6607
      %v6609 = vrot.slane %v6608, 4
      %v6611 = vshll.u32 %v6494, 16
      %v6613 = vrot.slane %v6611, 5
      %v6614 = vsel %vm3981, %v6609, %v6613
      %v6615 = vshrl.u32 %v6494, 16
      %v6617 = vrot.slane %v6615, 4
      %v6618 = vor.u32 %v6617, %v6613
      %v6619 = vrot.slane %v6618, 4
      %v6621 = vshll.u32 %v6495, 16
      %v6623 = vrot.slane %v6621, 5
      %v6624 = vsel %vm3981, %v6619, %v6623
      %v6626 = vshrl.u32 %v6496, 16
      %v6628 = vrot.slane %v6626, 4
      %v6629 = vshll.u32 %v6496, 16
      %v6631 = vrot.slane %v6629, 5
      %v6632 = vor.u32 %v6628, %v6631
      %v6633 = vrot.slane %v6632, 4
      %v6635 = vshll.u32 %v6497, 16
      %v6637 = vrot.slane %v6635, 5
      %v6638 = vsel %vm3981, %v6633, %v6637
      %v6639 = vshrl.u32 %v6497, 16
      %v6641 = vrot.slane %v6639, 4
      %v6642 = vor.u32 %v6641, %v6637
      %v6643 = vrot.slane %v6642, 4
      %v6645 = vshll.u32 %v6498, 16
      %v6647 = vrot.slane %v6645, 5
      %v6648 = vsel %vm3981, %v6643, %v6647
      %v6650 = vshrl.u32 %v6499, 16
      %v6652 = vrot.slane %v6650, 4
      %v6653 = vshll.u32 %v6499, 16
      %v6655 = vrot.slane %v6653, 5
      %v6656 = vor.u32 %v6652, %v6655
      %v6657 = vrot.slane %v6656, 4
      %v6659 = vshll.u32 %v6500, 16
      %v6661 = vrot.slane %v6659, 5
      %v6662 = vsel %vm3981, %v6657, %v6661
      %v6663 = vshrl.u32 %v6500, 16
      %v6665 = vrot.slane %v6663, 4
      %v6666 = vor.u32 %v6665, %v6661
      %v6667 = vrot.slane %v6666, 4
      %v6669 = vshll.u32 %v6501, 16
      %v6671 = vrot.slane %v6669, 5
      %v6672 = vsel %vm3981, %v6667, %v6671
      %v6674 = vshrl.u32 %v6502, 16
      %v6676 = vrot.slane %v6674, 4
      %v6677 = vshll.u32 %v6502, 16
      %v6679 = vrot.slane %v6677, 5
      %v6680 = vor.u32 %v6676, %v6679
      %v6681 = vrot.slane %v6680, 4
      %v6683 = vshll.u32 %v6503, 16
      %v6685 = vrot.slane %v6683, 5
      %v6686 = vsel %vm3981, %v6681, %v6685
      %v6687 = vshrl.u32 %v6503, 16
      %v6689 = vrot.slane %v6687, 4
      %v6690 = vor.u32 %v6689, %v6685
      %v6691 = vrot.slane %v6690, 4
      %v6693 = vshll.u32 %v6504, 16
      %v6695 = vrot.slane %v6693, 5
      %v6696 = vsel %vm3981, %v6691, %v6695
      %v6697 = vld [vmem:[%s4174] sm:$0xf]
      %v6698 = vld [vmem:[%s4174 + $0x4] sm:$0xf]
      %v6699 = vld [vmem:[%s4174 + $0x8] sm:$0xf]
      %v6700 = vld [vmem:[%s4174 + $0xc] sm:$0xf]
      %v6701 = vld [vmem:[%s4174 + $0x10] sm:$0xf]
      %v6702 = vld [vmem:[%s4174 + $0x14] sm:$0xf]
      %v6703 = vld [vmem:[%s4174 + $0x18] sm:$0xf]
      %v6704 = vld [vmem:[%s4174 + $0x1c] sm:$0xf]
      %v6705 = vld [vmem:[%s4174 + $0x20] sm:$0xf]
      %v6706 = vld [vmem:[%s4174 + $0x24] sm:$0xf]
      %v6707 = vld [vmem:[%s4174 + $0x28] sm:$0xf]
      %v6708 = vld [vmem:[%s4174 + $0x2c] sm:$0xf]
      %v6709 = vld [vmem:[%s4174 + $0x30] sm:$0xf]
      %v6710 = vld [vmem:[%s4174 + $0x34] sm:$0xf]
      %v6711 = vld [vmem:[%s4174 + $0x38] sm:$0xf]
      %v6712 = vld [vmem:[%s4174 + $0x3c] sm:$0xf]
      %v6713 = vunpack.c.l.b16 %v6518
      %v6714 = vunpack.c.l.b16 %v6528
      %v6715 = vunpack.c.l.b16 %v6542
      %v6716 = vunpack.c.l.b16 %v6552
      %v6717 = vunpack.c.l.b16 %v6566
      %v6718 = vunpack.c.l.b16 %v6576
      %v6719 = vunpack.c.l.b16 %v6590
      %v6720 = vunpack.c.l.b16 %v6600
      %v6721 = vunpack.c.l.b16 %v6614
      %v6722 = vunpack.c.l.b16 %v6624
      %v6723 = vunpack.c.l.b16 %v6638
      %v6724 = vunpack.c.l.b16 %v6648
      %v6725 = vunpack.c.l.b16 %v6662
      %v6726 = vunpack.c.l.b16 %v6672
      %v6727 = vunpack.c.l.b16 %v6686
      %v6728 = vunpack.c.l.b16 %v6696
      %v6729 = vpack.c.b16 %v6714, %v6713
      %v6730 = vpack.c.b16 %v6716, %v6715
      %v6731 = vpack.c.b16 %v6718, %v6717
      %v6732 = vpack.c.b16 %v6720, %v6719
      %v6733 = vpack.c.b16 %v6722, %v6721
      %v6734 = vpack.c.b16 %v6724, %v6723
      %v6735 = vpack.c.b16 %v6726, %v6725
      %v6736 = vpack.c.b16 %v6728, %v6727
      %v6761 = vunpack.c.l.b16 %v6697
      %v6762 = vunpack.c.l.b16 %v6698
      %v6763 = vunpack.c.l.b16 %v6699
      %v6764 = vunpack.c.l.b16 %v6700
      %v6765 = vunpack.c.l.b16 %v6701
      %v6766 = vunpack.c.l.b16 %v6702
      %v6767 = vunpack.c.l.b16 %v6703
      %v6768 = vunpack.c.l.b16 %v6704
      %v6769 = vunpack.c.l.b16 %v6705
      %v6770 = vunpack.c.l.b16 %v6706
      %v6771 = vunpack.c.l.b16 %v6707
      %v6772 = vunpack.c.l.b16 %v6708
      %v6773 = vunpack.c.l.b16 %v6709
      %v6774 = vunpack.c.l.b16 %v6710
      %v6775 = vunpack.c.l.b16 %v6711
      %v6776 = vunpack.c.l.b16 %v6712
      %v6777 = vpack.c.b16 %v6762, %v6761
      %v6778 = vpack.c.b16 %v6764, %v6763
      %v6779 = vpack.c.b16 %v6766, %v6765
      %v6780 = vpack.c.b16 %v6768, %v6767
      %v6781 = vpack.c.b16 %v6770, %v6769
      %v6782 = vpack.c.b16 %v6772, %v6771
      %v6783 = vpack.c.b16 %v6774, %v6773
      %v6784 = vpack.c.b16 %v6776, %v6775
      %6793 = vmatpush.bf16.msra.mxu0 %v6784
      %6794 = vmatpush.bf16.msra.mxu0 %v6783
      %6795 = vmatpush.bf16.msra.mxu0 %v6782
      %6796 = vmatpush.bf16.msra.mxu0 %v6781
      %6797 = vmatpush.bf16.msra.mxu0 %v6780
      %6798 = vmatpush.bf16.msra.mxu0 %v6779
      %6799 = vmatpush.bf16.msra.mxu0 %v6778
      %6800 = vmatpush.bf16.msra.mxu0 %v6777
      %6801 = vmatmul.bf16.gmra.mxu0 %v6729
      %v6802 = vpop.f32.mrf.mxu0
      %v6803 = vadd.f32 0.0, %v6802
      %v6804 = vpop.f32.mrf.mxu0
      %v6805 = vadd.f32 0.0, %v6804
      %6806 = vmatmul.bf16.gmra.mxu0 %v6730
      %v6807 = vpop.f32.mrf.mxu0
      %v6808 = vadd.f32 0.0, %v6807
      %v6809 = vpop.f32.mrf.mxu0
      %v6810 = vadd.f32 0.0, %v6809
      %6811 = vmatmul.bf16.gmra.mxu0 %v6731
      %v6812 = vpop.f32.mrf.mxu0
      %v6813 = vadd.f32 0.0, %v6812
      %v6814 = vpop.f32.mrf.mxu0
      %v6815 = vadd.f32 0.0, %v6814
      %6816 = vmatmul.bf16.gmra.mxu0 %v6732
      %v6817 = vpop.f32.mrf.mxu0
      %v6818 = vadd.f32 0.0, %v6817
      %v6819 = vpop.f32.mrf.mxu0
      %v6820 = vadd.f32 0.0, %v6819
      %6821 = vmatmul.bf16.gmra.mxu0 %v6733
      %v6822 = vpop.f32.mrf.mxu0
      %v6823 = vadd.f32 0.0, %v6822
      %v6824 = vpop.f32.mrf.mxu0
      %v6825 = vadd.f32 0.0, %v6824
      %6826 = vmatmul.bf16.gmra.mxu0 %v6734
      %v6827 = vpop.f32.mrf.mxu0
      %v6828 = vadd.f32 0.0, %v6827
      %v6829 = vpop.f32.mrf.mxu0
      %v6830 = vadd.f32 0.0, %v6829
      %6831 = vmatmul.bf16.gmra.mxu0 %v6735
      %v6832 = vpop.f32.mrf.mxu0
      %v6833 = vadd.f32 0.0, %v6832
      %v6834 = vpop.f32.mrf.mxu0
      %v6835 = vadd.f32 0.0, %v6834
      %6836 = vmatmul.bf16.gmra.mxu0 %v6736
      %v6837 = vpop.f32.mrf.mxu0
      %v6838 = vadd.f32 0.0, %v6837
      %v6839 = vpop.f32.mrf.mxu0
      %v6840 = vadd.f32 0.0, %v6839
      %6841 = vdwg.mxu0
      %v6842 = vadd.f32 %v6465, %v6803
      %v6843 = vadd.f32 %v6466, %v6805
      %v6844 = vadd.f32 %v6467, %v6808
      %v6845 = vadd.f32 %v6468, %v6810
      %v6846 = vadd.f32 %v6469, %v6813
      %v6847 = vadd.f32 %v6470, %v6815
      %v6848 = vadd.f32 %v6471, %v6818
      %v6849 = vadd.f32 %v6472, %v6820
      %v6850 = vadd.f32 %v6473, %v6823
      %v6851 = vadd.f32 %v6474, %v6825
      %v6852 = vadd.f32 %v6475, %v6828
      %v6853 = vadd.f32 %v6476, %v6830
      %v6854 = vadd.f32 %v6477, %v6833
      %v6855 = vadd.f32 %v6478, %v6835
      %v6856 = vadd.f32 %v6479, %v6838
      %v6857 = vadd.f32 %v6480, %v6840
      %v6858 = vld [vmem:[%s6287] sm:$0xe]
      %v6859 = vld [vmem:[%s6287 + $0x10] sm:$0xe]
      %v6860 = vld [vmem:[%s6287 + $0x20] sm:$0xe]
      %v6861 = vld [vmem:[%s6287 + $0x30] sm:$0xe]
      %v6862 = vld [vmem:[%s6287 + $0x40] sm:$0xe]
      %v6863 = vld [vmem:[%s6287 + $0x50] sm:$0xe]
      %v6864 = vld [vmem:[%s6287 + $0x60] sm:$0xe]
      %v6865 = vld [vmem:[%s6287 + $0x70] sm:$0xe]
      %v6890 = vrot.slane %v6858, 5
      %v6891 = vrot.slane %v6890, 4
      %v6892 = vrot.slane %v6482, 5
      %v6893 = vsel %vm4370, %v6891, %v6892
      %v6894 = vrot.slane %v6892, 4
      %v6895 = vrot.slane %v6483, 5
      %v6896 = vsel %vm4370, %v6894, %v6895
      %v6897 = vrot.slane %v6859, 5
      %v6898 = vrot.slane %v6897, 4
      %v6899 = vrot.slane %v6485, 5
      %v6900 = vsel %vm4370, %v6898, %v6899
      %v6901 = vrot.slane %v6899, 4
      %v6902 = vrot.slane %v6486, 5
      %v6903 = vsel %vm4370, %v6901, %v6902
      %v6904 = vrot.slane %v6860, 5
      %v6905 = vrot.slane %v6904, 4
      %v6906 = vrot.slane %v6488, 5
      %v6907 = vsel %vm4370, %v6905, %v6906
      %v6908 = vrot.slane %v6906, 4
      %v6909 = vrot.slane %v6489, 5
      %v6910 = vsel %vm4370, %v6908, %v6909
      %v6911 = vrot.slane %v6861, 5
      %v6912 = vrot.slane %v6911, 4
      %v6913 = vrot.slane %v6491, 5
      %v6914 = vsel %vm4370, %v6912, %v6913
      %v6915 = vrot.slane %v6913, 4
      %v6916 = vrot.slane %v6492, 5
      %v6917 = vsel %vm4370, %v6915, %v6916
      %v6918 = vrot.slane %v6862, 5
      %v6919 = vrot.slane %v6918, 4
      %v6920 = vrot.slane %v6494, 5
      %v6921 = vsel %vm4370, %v6919, %v6920
      %v6922 = vrot.slane %v6920, 4
      %v6923 = vrot.slane %v6495, 5
      %v6924 = vsel %vm4370, %v6922, %v6923
      %v6925 = vrot.slane %v6863, 5
      %v6926 = vrot.slane %v6925, 4
      %v6927 = vrot.slane %v6497, 5
      %v6928 = vsel %vm4370, %v6926, %v6927
      %v6929 = vrot.slane %v6927, 4
      %v6930 = vrot.slane %v6498, 5
      %v6931 = vsel %vm4370, %v6929, %v6930
      %v6932 = vrot.slane %v6864, 5
      %v6933 = vrot.slane %v6932, 4
      %v6934 = vrot.slane %v6500, 5
      %v6935 = vsel %vm4370, %v6933, %v6934
      %v6936 = vrot.slane %v6934, 4
      %v6937 = vrot.slane %v6501, 5
      %v6938 = vsel %vm4370, %v6936, %v6937
      %v6939 = vrot.slane %v6865, 5
      %v6940 = vrot.slane %v6939, 4
      %v6941 = vrot.slane %v6503, 5
      %v6942 = vsel %vm4370, %v6940, %v6941
      %v6943 = vrot.slane %v6941, 4
      %v6944 = vrot.slane %v6504, 5
      %v6945 = vsel %vm4370, %v6943, %v6944
      %v6946 = vld [vmem:[%s4427] sm:$0xf]
      %v6947 = vld [vmem:[%s4427 + $0x4] sm:$0xf]
      %v6948 = vld [vmem:[%s4427 + $0x8] sm:$0xf]
      %v6949 = vld [vmem:[%s4427 + $0xc] sm:$0xf]
      %v6950 = vld [vmem:[%s4427 + $0x10] sm:$0xf]
      %v6951 = vld [vmem:[%s4427 + $0x14] sm:$0xf]
      %v6952 = vld [vmem:[%s4427 + $0x18] sm:$0xf]
      %v6953 = vld [vmem:[%s4427 + $0x1c] sm:$0xf]
      %v6954 = vld [vmem:[%s4427 + $0x20] sm:$0xf]
      %v6955 = vld [vmem:[%s4427 + $0x24] sm:$0xf]
      %v6956 = vld [vmem:[%s4427 + $0x28] sm:$0xf]
      %v6957 = vld [vmem:[%s4427 + $0x2c] sm:$0xf]
      %v6958 = vld [vmem:[%s4427 + $0x30] sm:$0xf]
      %v6959 = vld [vmem:[%s4427 + $0x34] sm:$0xf]
      %v6960 = vld [vmem:[%s4427 + $0x38] sm:$0xf]
      %v6961 = vld [vmem:[%s4427 + $0x3c] sm:$0xf]
      %v6962 = vunpack.c.l.b16 %v6893
      %v6963 = vunpack.c.l.b16 %v6896
      %v6964 = vunpack.c.l.b16 %v6900
      %v6965 = vunpack.c.l.b16 %v6903
      %v6966 = vunpack.c.l.b16 %v6907
      %v6967 = vunpack.c.l.b16 %v6910
      %v6968 = vunpack.c.l.b16 %v6914
      %v6969 = vunpack.c.l.b16 %v6917
      %v6970 = vunpack.c.l.b16 %v6921
      %v6971 = vunpack.c.l.b16 %v6924
      %v6972 = vunpack.c.l.b16 %v6928
      %v6973 = vunpack.c.l.b16 %v6931
      %v6974 = vunpack.c.l.b16 %v6935
      %v6975 = vunpack.c.l.b16 %v6938
      %v6976 = vunpack.c.l.b16 %v6942
      %v6977 = vunpack.c.l.b16 %v6945
      %v6978 = vpack.c.b16 %v6963, %v6962
      %v6979 = vpack.c.b16 %v6965, %v6964
      %v6980 = vpack.c.b16 %v6967, %v6966
      %v6981 = vpack.c.b16 %v6969, %v6968
      %v6982 = vpack.c.b16 %v6971, %v6970
      %v6983 = vpack.c.b16 %v6973, %v6972
      %v6984 = vpack.c.b16 %v6975, %v6974
      %v6985 = vpack.c.b16 %v6977, %v6976
      %v7010 = vunpack.c.l.b16 %v6946
      %v7011 = vunpack.c.l.b16 %v6947
      %v7012 = vunpack.c.l.b16 %v6948
      %v7013 = vunpack.c.l.b16 %v6949
      %v7014 = vunpack.c.l.b16 %v6950
      %v7015 = vunpack.c.l.b16 %v6951
      %v7016 = vunpack.c.l.b16 %v6952
      %v7017 = vunpack.c.l.b16 %v6953
      %v7018 = vunpack.c.l.b16 %v6954
      %v7019 = vunpack.c.l.b16 %v6955
      %v7020 = vunpack.c.l.b16 %v6956
      %v7021 = vunpack.c.l.b16 %v6957
      %v7022 = vunpack.c.l.b16 %v6958
      %v7023 = vunpack.c.l.b16 %v6959
      %v7024 = vunpack.c.l.b16 %v6960
      %v7025 = vunpack.c.l.b16 %v6961
      %v7026 = vpack.c.b16 %v7011, %v7010
      %v7027 = vpack.c.b16 %v7013, %v7012
      %v7028 = vpack.c.b16 %v7015, %v7014
      %v7029 = vpack.c.b16 %v7017, %v7016
      %v7030 = vpack.c.b16 %v7019, %v7018
      %v7031 = vpack.c.b16 %v7021, %v7020
      %v7032 = vpack.c.b16 %v7023, %v7022
      %v7033 = vpack.c.b16 %v7025, %v7024
      %7042 = vmatpush.bf16.msra.mxu0 %v7033
      %7043 = vmatpush.bf16.msra.mxu0 %v7032
      %7044 = vmatpush.bf16.msra.mxu0 %v7031
      %7045 = vmatpush.bf16.msra.mxu0 %v7030
      %7046 = vmatpush.bf16.msra.mxu0 %v7029
      %7047 = vmatpush.bf16.msra.mxu0 %v7028
      %7048 = vmatpush.bf16.msra.mxu0 %v7027
      %7049 = vmatpush.bf16.msra.mxu0 %v7026
      %7050 = vmatmul.bf16.gmra.mxu0 %v6978
      %v7051 = vpop.f32.mrf.mxu0
      %v7052 = vadd.f32 0.0, %v7051
      %v7053 = vpop.f32.mrf.mxu0
      %v7054 = vadd.f32 0.0, %v7053
      %7055 = vmatmul.bf16.gmra.mxu0 %v6979
      %v7056 = vpop.f32.mrf.mxu0
      %v7057 = vadd.f32 0.0, %v7056
      %v7058 = vpop.f32.mrf.mxu0
      %v7059 = vadd.f32 0.0, %v7058
      %7060 = vmatmul.bf16.gmra.mxu0 %v6980
      %v7061 = vpop.f32.mrf.mxu0
      %v7062 = vadd.f32 0.0, %v7061
      %v7063 = vpop.f32.mrf.mxu0
      %v7064 = vadd.f32 0.0, %v7063
      %7065 = vmatmul.bf16.gmra.mxu0 %v6981
      %v7066 = vpop.f32.mrf.mxu0
      %v7067 = vadd.f32 0.0, %v7066
      %v7068 = vpop.f32.mrf.mxu0
      %v7069 = vadd.f32 0.0, %v7068
      %7070 = vmatmul.bf16.gmra.mxu0 %v6982
      %v7071 = vpop.f32.mrf.mxu0
      %v7072 = vadd.f32 0.0, %v7071
      %v7073 = vpop.f32.mrf.mxu0
      %v7074 = vadd.f32 0.0, %v7073
      %7075 = vmatmul.bf16.gmra.mxu0 %v6983
      %v7076 = vpop.f32.mrf.mxu0
      %v7077 = vadd.f32 0.0, %v7076
      %v7078 = vpop.f32.mrf.mxu0
      %v7079 = vadd.f32 0.0, %v7078
      %7080 = vmatmul.bf16.gmra.mxu0 %v6984
      %v7081 = vpop.f32.mrf.mxu0
      %v7082 = vadd.f32 0.0, %v7081
      %v7083 = vpop.f32.mrf.mxu0
      %v7084 = vadd.f32 0.0, %v7083
      %7085 = vmatmul.bf16.gmra.mxu0 %v6985
      %v7086 = vpop.f32.mrf.mxu0
      %v7087 = vadd.f32 0.0, %v7086
      %v7088 = vpop.f32.mrf.mxu0
      %v7089 = vadd.f32 0.0, %v7088
      %7090 = vdwg.mxu0
      %v7091 = vadd.f32 %v6842, %v7052
      %v7092 = vadd.f32 %v6843, %v7054
      %v7093 = vadd.f32 %v6844, %v7057
      %v7094 = vadd.f32 %v6845, %v7059
      %v7095 = vadd.f32 %v6846, %v7062
      %v7096 = vadd.f32 %v6847, %v7064
      %v7097 = vadd.f32 %v6848, %v7067
      %v7098 = vadd.f32 %v6849, %v7069
      %v7099 = vadd.f32 %v6850, %v7072
      %v7100 = vadd.f32 %v6851, %v7074
      %v7101 = vadd.f32 %v6852, %v7077
      %v7102 = vadd.f32 %v6853, %v7079
      %v7103 = vadd.f32 %v6854, %v7082
      %v7104 = vadd.f32 %v6855, %v7084
      %v7105 = vadd.f32 %v6856, %v7087
      %v7106 = vadd.f32 %v6857, %v7089
      %s7107 = scalar_lea.vmem [#allocation3], 144
      %v7108 = vld [vmem:[%s7107] sm:$0xf]
      %v7109 = vld [vmem:[%s7107 + $0x4] sm:$0xf]
      %v7110 = vld [vmem:[%s7107 + $0x10] sm:$0xf]
      %v7111 = vld [vmem:[%s7107 + $0x14] sm:$0xf]
      %v7112 = vld [vmem:[%s7107 + $0x20] sm:$0xf]
      %v7113 = vld [vmem:[%s7107 + $0x24] sm:$0xf]
      %v7114 = vld [vmem:[%s7107 + $0x30] sm:$0xf]
      %v7115 = vld [vmem:[%s7107 + $0x34] sm:$0xf]
      %v7116 = vld [vmem:[%s7107 + $0x40] sm:$0xf]
      %v7117 = vld [vmem:[%s7107 + $0x44] sm:$0xf]
      %v7118 = vld [vmem:[%s7107 + $0x50] sm:$0xf]
      %v7119 = vld [vmem:[%s7107 + $0x54] sm:$0xf]
      %v7120 = vld [vmem:[%s7107 + $0x60] sm:$0xf]
      %v7121 = vld [vmem:[%s7107 + $0x64] sm:$0xf]
      %v7122 = vld [vmem:[%s7107 + $0x70] sm:$0xf]
      %v7123 = vld [vmem:[%s7107 + $0x74] sm:$0xf]
      %v7124 = vld [vmem:[%s4606] sm:$0xf]
      %v7125 = vld [vmem:[%s4606 + $0x4] sm:$0xf]
      %v7126 = vld [vmem:[%s4606 + $0x8] sm:$0xf]
      %v7127 = vld [vmem:[%s4606 + $0xc] sm:$0xf]
      %v7128 = vld [vmem:[%s4606 + $0x10] sm:$0xf]
      %v7129 = vld [vmem:[%s4606 + $0x14] sm:$0xf]
      %v7130 = vld [vmem:[%s4606 + $0x18] sm:$0xf]
      %v7131 = vld [vmem:[%s4606 + $0x1c] sm:$0xf]
      %v7132 = vld [vmem:[%s4606 + $0x20] sm:$0xf]
      %v7133 = vld [vmem:[%s4606 + $0x24] sm:$0xf]
      %v7134 = vld [vmem:[%s4606 + $0x28] sm:$0xf]
      %v7135 = vld [vmem:[%s4606 + $0x2c] sm:$0xf]
      %v7136 = vld [vmem:[%s4606 + $0x30] sm:$0xf]
      %v7137 = vld [vmem:[%s4606 + $0x34] sm:$0xf]
      %v7138 = vld [vmem:[%s4606 + $0x38] sm:$0xf]
      %v7139 = vld [vmem:[%s4606 + $0x3c] sm:$0xf]
      %v7156 = vunpack.c.l.b16 %v7108
      %v7157 = vunpack.c.l.b16 %v7109
      %v7158 = vunpack.c.l.b16 %v7110
      %v7159 = vunpack.c.l.b16 %v7111
      %v7160 = vunpack.c.l.b16 %v7112
      %v7161 = vunpack.c.l.b16 %v7113
      %v7162 = vunpack.c.l.b16 %v7114
      %v7163 = vunpack.c.l.b16 %v7115
      %v7164 = vunpack.c.l.b16 %v7116
      %v7165 = vunpack.c.l.b16 %v7117
      %v7166 = vunpack.c.l.b16 %v7118
      %v7167 = vunpack.c.l.b16 %v7119
      %v7168 = vunpack.c.l.b16 %v7120
      %v7169 = vunpack.c.l.b16 %v7121
      %v7170 = vunpack.c.l.b16 %v7122
      %v7171 = vunpack.c.l.b16 %v7123
      %v7172 = vpack.c.b16 %v7157, %v7156
      %v7173 = vpack.c.b16 %v7159, %v7158
      %v7174 = vpack.c.b16 %v7161, %v7160
      %v7175 = vpack.c.b16 %v7163, %v7162
      %v7176 = vpack.c.b16 %v7165, %v7164
      %v7177 = vpack.c.b16 %v7167, %v7166
      %v7178 = vpack.c.b16 %v7169, %v7168
      %v7179 = vpack.c.b16 %v7171, %v7170
      %v7204 = vunpack.c.l.b16 %v7124
      %v7205 = vunpack.c.l.b16 %v7125
      %v7206 = vunpack.c.l.b16 %v7126
      %v7207 = vunpack.c.l.b16 %v7127
      %v7208 = vunpack.c.l.b16 %v7128
      %v7209 = vunpack.c.l.b16 %v7129
      %v7210 = vunpack.c.l.b16 %v7130
      %v7211 = vunpack.c.l.b16 %v7131
      %v7212 = vunpack.c.l.b16 %v7132
      %v7213 = vunpack.c.l.b16 %v7133
      %v7214 = vunpack.c.l.b16 %v7134
      %v7215 = vunpack.c.l.b16 %v7135
      %v7216 = vunpack.c.l.b16 %v7136
      %v7217 = vunpack.c.l.b16 %v7137
      %v7218 = vunpack.c.l.b16 %v7138
      %v7219 = vunpack.c.l.b16 %v7139
      %v7220 = vpack.c.b16 %v7205, %v7204
      %v7221 = vpack.c.b16 %v7207, %v7206
      %v7222 = vpack.c.b16 %v7209, %v7208
      %v7223 = vpack.c.b16 %v7211, %v7210
      %v7224 = vpack.c.b16 %v7213, %v7212
      %v7225 = vpack.c.b16 %v7215, %v7214
      %v7226 = vpack.c.b16 %v7217, %v7216
      %v7227 = vpack.c.b16 %v7219, %v7218
      %7236 = vmatpush.bf16.msra.mxu0 %v7227
      %7237 = vmatpush.bf16.msra.mxu0 %v7226
      %7238 = vmatpush.bf16.msra.mxu0 %v7225
      %7239 = vmatpush.bf16.msra.mxu0 %v7224
      %7240 = vmatpush.bf16.msra.mxu0 %v7223
      %7241 = vmatpush.bf16.msra.mxu0 %v7222
      %7242 = vmatpush.bf16.msra.mxu0 %v7221
      %7243 = vmatpush.bf16.msra.mxu0 %v7220
      %7244 = vmatmul.bf16.gmra.mxu0 %v7172
      %v7245 = vpop.f32.mrf.mxu0
      %v7246 = vadd.f32 0.0, %v7245
      %v7247 = vpop.f32.mrf.mxu0
      %v7248 = vadd.f32 0.0, %v7247
      %7249 = vmatmul.bf16.gmra.mxu0 %v7173
      %v7250 = vpop.f32.mrf.mxu0
      %v7251 = vadd.f32 0.0, %v7250
      %v7252 = vpop.f32.mrf.mxu0
      %v7253 = vadd.f32 0.0, %v7252
      %7254 = vmatmul.bf16.gmra.mxu0 %v7174
      %v7255 = vpop.f32.mrf.mxu0
      %v7256 = vadd.f32 0.0, %v7255
      %v7257 = vpop.f32.mrf.mxu0
      %v7258 = vadd.f32 0.0, %v7257
      %7259 = vmatmul.bf16.gmra.mxu0 %v7175
      %v7260 = vpop.f32.mrf.mxu0
      %v7261 = vadd.f32 0.0, %v7260
      %v7262 = vpop.f32.mrf.mxu0
      %v7263 = vadd.f32 0.0, %v7262
      %7264 = vmatmul.bf16.gmra.mxu0 %v7176
      %v7265 = vpop.f32.mrf.mxu0
      %v7266 = vadd.f32 0.0, %v7265
      %v7267 = vpop.f32.mrf.mxu0
      %v7268 = vadd.f32 0.0, %v7267
      %7269 = vmatmul.bf16.gmra.mxu0 %v7177
      %v7270 = vpop.f32.mrf.mxu0
      %v7271 = vadd.f32 0.0, %v7270
      %v7272 = vpop.f32.mrf.mxu0
      %v7273 = vadd.f32 0.0, %v7272
      %7274 = vmatmul.bf16.gmra.mxu0 %v7178
      %v7275 = vpop.f32.mrf.mxu0
      %v7276 = vadd.f32 0.0, %v7275
      %v7277 = vpop.f32.mrf.mxu0
      %v7278 = vadd.f32 0.0, %v7277
      %7279 = vmatmul.bf16.gmra.mxu0 %v7179
      %v7280 = vpop.f32.mrf.mxu0
      %v7281 = vadd.f32 0.0, %v7280
      %v7282 = vpop.f32.mrf.mxu0
      %v7283 = vadd.f32 0.0, %v7282
      %7284 = vdwg.mxu0
      %v7285 = vadd.f32 %v7091, %v7246
      %v7286 = vadd.f32 %v7092, %v7248
      %v7287 = vadd.f32 %v7093, %v7251
      %v7288 = vadd.f32 %v7094, %v7253
      %v7289 = vadd.f32 %v7095, %v7256
      %v7290 = vadd.f32 %v7096, %v7258
      %v7291 = vadd.f32 %v7097, %v7261
      %v7292 = vadd.f32 %v7098, %v7263
      %v7293 = vadd.f32 %v7099, %v7266
      %v7294 = vadd.f32 %v7100, %v7268
      %v7295 = vadd.f32 %v7101, %v7271
      %v7296 = vadd.f32 %v7102, %v7273
      %v7297 = vadd.f32 %v7103, %v7276
      %v7298 = vadd.f32 %v7104, %v7278
      %v7299 = vadd.f32 %v7105, %v7281
      %v7300 = vadd.f32 %v7106, %v7283
      %v7301 = vld [vmem:[%s7107] sm:$0xf]
      %v7302 = vld [vmem:[%s7107 + $0x4] sm:$0xf]
      %v7303 = vld [vmem:[%s7107 + $0x8] sm:$0x1]
      %v7304 = vld [vmem:[%s7107 + $0x10] sm:$0xf]
      %v7305 = vld [vmem:[%s7107 + $0x14] sm:$0xf]
      %v7306 = vld [vmem:[%s7107 + $0x18] sm:$0x1]
      %v7307 = vld [vmem:[%s7107 + $0x20] sm:$0xf]
      %v7308 = vld [vmem:[%s7107 + $0x24] sm:$0xf]
      %v7309 = vld [vmem:[%s7107 + $0x28] sm:$0x1]
      %v7310 = vld [vmem:[%s7107 + $0x30] sm:$0xf]
      %v7311 = vld [vmem:[%s7107 + $0x34] sm:$0xf]
      %v7312 = vld [vmem:[%s7107 + $0x38] sm:$0x1]
      %v7313 = vld [vmem:[%s7107 + $0x40] sm:$0xf]
      %v7314 = vld [vmem:[%s7107 + $0x44] sm:$0xf]
      %v7315 = vld [vmem:[%s7107 + $0x48] sm:$0x1]
      %v7316 = vld [vmem:[%s7107 + $0x50] sm:$0xf]
      %v7317 = vld [vmem:[%s7107 + $0x54] sm:$0xf]
      %v7318 = vld [vmem:[%s7107 + $0x58] sm:$0x1]
      %v7319 = vld [vmem:[%s7107 + $0x60] sm:$0xf]
      %v7320 = vld [vmem:[%s7107 + $0x64] sm:$0xf]
      %v7321 = vld [vmem:[%s7107 + $0x68] sm:$0x1]
      %v7322 = vld [vmem:[%s7107 + $0x70] sm:$0xf]
      %v7323 = vld [vmem:[%s7107 + $0x74] sm:$0xf]
      %v7324 = vld [vmem:[%s7107 + $0x78] sm:$0x1]
      %v7326 = vshrl.u32 %v7301, 16
      %v7328 = vrot.slane %v7326, 4
      %v7329 = vshll.u32 %v7301, 16
      %v7331 = vrot.slane %v7329, 5
      %v7332 = vor.u32 %v7328, %v7331
      %v7333 = vrot.slane %v7332, 4
      %v7335 = vshll.u32 %v7302, 16
      %v7337 = vrot.slane %v7335, 5
      %v7338 = vsel %vm3981, %v7333, %v7337
      %v7339 = vshrl.u32 %v7302, 16
      %v7341 = vrot.slane %v7339, 4
      %v7342 = vor.u32 %v7341, %v7337
      %v7343 = vrot.slane %v7342, 4
      %v7345 = vshll.u32 %v7303, 16
      %v7347 = vrot.slane %v7345, 5
      %v7348 = vsel %vm3981, %v7343, %v7347
      %v7350 = vshrl.u32 %v7304, 16
      %v7352 = vrot.slane %v7350, 4
      %v7353 = vshll.u32 %v7304, 16
      %v7355 = vrot.slane %v7353, 5
      %v7356 = vor.u32 %v7352, %v7355
      %v7357 = vrot.slane %v7356, 4
      %v7359 = vshll.u32 %v7305, 16
      %v7361 = vrot.slane %v7359, 5
      %v7362 = vsel %vm3981, %v7357, %v7361
      %v7363 = vshrl.u32 %v7305, 16
      %v7365 = vrot.slane %v7363, 4
      %v7366 = vor.u32 %v7365, %v7361
      %v7367 = vrot.slane %v7366, 4
      %v7369 = vshll.u32 %v7306, 16
      %v7371 = vrot.slane %v7369, 5
      %v7372 = vsel %vm3981, %v7367, %v7371
      %v7374 = vshrl.u32 %v7307, 16
      %v7376 = vrot.slane %v7374, 4
      %v7377 = vshll.u32 %v7307, 16
      %v7379 = vrot.slane %v7377, 5
      %v7380 = vor.u32 %v7376, %v7379
      %v7381 = vrot.slane %v7380, 4
      %v7383 = vshll.u32 %v7308, 16
      %v7385 = vrot.slane %v7383, 5
      %v7386 = vsel %vm3981, %v7381, %v7385
      %v7387 = vshrl.u32 %v7308, 16
      %v7389 = vrot.slane %v7387, 4
      %v7390 = vor.u32 %v7389, %v7385
      %v7391 = vrot.slane %v7390, 4
      %v7393 = vshll.u32 %v7309, 16
      %v7395 = vrot.slane %v7393, 5
      %v7396 = vsel %vm3981, %v7391, %v7395
      %v7398 = vshrl.u32 %v7310, 16
      %v7400 = vrot.slane %v7398, 4
      %v7401 = vshll.u32 %v7310, 16
      %v7403 = vrot.slane %v7401, 5
      %v7404 = vor.u32 %v7400, %v7403
      %v7405 = vrot.slane %v7404, 4
      %v7407 = vshll.u32 %v7311, 16
      %v7409 = vrot.slane %v7407, 5
      %v7410 = vsel %vm3981, %v7405, %v7409
      %v7411 = vshrl.u32 %v7311, 16
      %v7413 = vrot.slane %v7411, 4
      %v7414 = vor.u32 %v7413, %v7409
      %v7415 = vrot.slane %v7414, 4
      %v7417 = vshll.u32 %v7312, 16
      %v7419 = vrot.slane %v7417, 5
      %v7420 = vsel %vm3981, %v7415, %v7419
      %v7422 = vshrl.u32 %v7313, 16
      %v7424 = vrot.slane %v7422, 4
      %v7425 = vshll.u32 %v7313, 16
      %v7427 = vrot.slane %v7425, 5
      %v7428 = vor.u32 %v7424, %v7427
      %v7429 = vrot.slane %v7428, 4
      %v7431 = vshll.u32 %v7314, 16
      %v7433 = vrot.slane %v7431, 5
      %v7434 = vsel %vm3981, %v7429, %v7433
      %v7435 = vshrl.u32 %v7314, 16
      %v7437 = vrot.slane %v7435, 4
      %v7438 = vor.u32 %v7437, %v7433
      %v7439 = vrot.slane %v7438, 4
      %v7441 = vshll.u32 %v7315, 16
      %v7443 = vrot.slane %v7441, 5
      %v7444 = vsel %vm3981, %v7439, %v7443
      %v7446 = vshrl.u32 %v7316, 16
      %v7448 = vrot.slane %v7446, 4
      %v7449 = vshll.u32 %v7316, 16
      %v7451 = vrot.slane %v7449, 5
      %v7452 = vor.u32 %v7448, %v7451
      %v7453 = vrot.slane %v7452, 4
      %v7455 = vshll.u32 %v7317, 16
      %v7457 = vrot.slane %v7455, 5
      %v7458 = vsel %vm3981, %v7453, %v7457
      %v7459 = vshrl.u32 %v7317, 16
      %v7461 = vrot.slane %v7459, 4
      %v7462 = vor.u32 %v7461, %v7457
      %v7463 = vrot.slane %v7462, 4
      %v7465 = vshll.u32 %v7318, 16
      %v7467 = vrot.slane %v7465, 5
      %v7468 = vsel %vm3981, %v7463, %v7467
      %v7470 = vshrl.u32 %v7319, 16
      %v7472 = vrot.slane %v7470, 4
      %v7473 = vshll.u32 %v7319, 16
      %v7475 = vrot.slane %v7473, 5
      %v7476 = vor.u32 %v7472, %v7475
      %v7477 = vrot.slane %v7476, 4
      %v7479 = vshll.u32 %v7320, 16
      %v7481 = vrot.slane %v7479, 5
      %v7482 = vsel %vm3981, %v7477, %v7481
      %v7483 = vshrl.u32 %v7320, 16
      %v7485 = vrot.slane %v7483, 4
      %v7486 = vor.u32 %v7485, %v7481
      %v7487 = vrot.slane %v7486, 4
      %v7489 = vshll.u32 %v7321, 16
      %v7491 = vrot.slane %v7489, 5
      %v7492 = vsel %vm3981, %v7487, %v7491
      %v7494 = vshrl.u32 %v7322, 16
      %v7496 = vrot.slane %v7494, 4
      %v7497 = vshll.u32 %v7322, 16
      %v7499 = vrot.slane %v7497, 5
      %v7500 = vor.u32 %v7496, %v7499
      %v7501 = vrot.slane %v7500, 4
      %v7503 = vshll.u32 %v7323, 16
      %v7505 = vrot.slane %v7503, 5
      %v7506 = vsel %vm3981, %v7501, %v7505
      %v7507 = vshrl.u32 %v7323, 16
      %v7509 = vrot.slane %v7507, 4
      %v7510 = vor.u32 %v7509, %v7505
      %v7511 = vrot.slane %v7510, 4
      %v7513 = vshll.u32 %v7324, 16
      %v7515 = vrot.slane %v7513, 5
      %v7516 = vsel %vm3981, %v7511, %v7515
      %v7517 = vld [vmem:[%s5000] sm:$0xf]
      %v7518 = vld [vmem:[%s5000 + $0x4] sm:$0xf]
      %v7519 = vld [vmem:[%s5000 + $0x8] sm:$0xf]
      %v7520 = vld [vmem:[%s5000 + $0xc] sm:$0xf]
      %v7521 = vld [vmem:[%s5000 + $0x10] sm:$0xf]
      %v7522 = vld [vmem:[%s5000 + $0x14] sm:$0xf]
      %v7523 = vld [vmem:[%s5000 + $0x18] sm:$0xf]
      %v7524 = vld [vmem:[%s5000 + $0x1c] sm:$0xf]
      %v7525 = vld [vmem:[%s5000 + $0x20] sm:$0xf]
      %v7526 = vld [vmem:[%s5000 + $0x24] sm:$0xf]
      %v7527 = vld [vmem:[%s5000 + $0x28] sm:$0xf]
      %v7528 = vld [vmem:[%s5000 + $0x2c] sm:$0xf]
      %v7529 = vld [vmem:[%s5000 + $0x30] sm:$0xf]
      %v7530 = vld [vmem:[%s5000 + $0x34] sm:$0xf]
      %v7531 = vld [vmem:[%s5000 + $0x38] sm:$0xf]
      %v7532 = vld [vmem:[%s5000 + $0x3c] sm:$0xf]
      %v7533 = vunpack.c.l.b16 %v7338
      %v7534 = vunpack.c.l.b16 %v7348
      %v7535 = vunpack.c.l.b16 %v7362
      %v7536 = vunpack.c.l.b16 %v7372
      %v7537 = vunpack.c.l.b16 %v7386
      %v7538 = vunpack.c.l.b16 %v7396
      %v7539 = vunpack.c.l.b16 %v7410
      %v7540 = vunpack.c.l.b16 %v7420
      %v7541 = vunpack.c.l.b16 %v7434
      %v7542 = vunpack.c.l.b16 %v7444
      %v7543 = vunpack.c.l.b16 %v7458
      %v7544 = vunpack.c.l.b16 %v7468
      %v7545 = vunpack.c.l.b16 %v7482
      %v7546 = vunpack.c.l.b16 %v7492
      %v7547 = vunpack.c.l.b16 %v7506
      %v7548 = vunpack.c.l.b16 %v7516
      %v7549 = vpack.c.b16 %v7534, %v7533
      %v7550 = vpack.c.b16 %v7536, %v7535
      %v7551 = vpack.c.b16 %v7538, %v7537
      %v7552 = vpack.c.b16 %v7540, %v7539
      %v7553 = vpack.c.b16 %v7542, %v7541
      %v7554 = vpack.c.b16 %v7544, %v7543
      %v7555 = vpack.c.b16 %v7546, %v7545
      %v7556 = vpack.c.b16 %v7548, %v7547
      %v7581 = vunpack.c.l.b16 %v7517
      %v7582 = vunpack.c.l.b16 %v7518
      %v7583 = vunpack.c.l.b16 %v7519
      %v7584 = vunpack.c.l.b16 %v7520
      %v7585 = vunpack.c.l.b16 %v7521
      %v7586 = vunpack.c.l.b16 %v7522
      %v7587 = vunpack.c.l.b16 %v7523
      %v7588 = vunpack.c.l.b16 %v7524
      %v7589 = vunpack.c.l.b16 %v7525
      %v7590 = vunpack.c.l.b16 %v7526
      %v7591 = vunpack.c.l.b16 %v7527
      %v7592 = vunpack.c.l.b16 %v7528
      %v7593 = vunpack.c.l.b16 %v7529
      %v7594 = vunpack.c.l.b16 %v7530
      %v7595 = vunpack.c.l.b16 %v7531
      %v7596 = vunpack.c.l.b16 %v7532
      %v7597 = vpack.c.b16 %v7582, %v7581
      %v7598 = vpack.c.b16 %v7584, %v7583
      %v7599 = vpack.c.b16 %v7586, %v7585
      %v7600 = vpack.c.b16 %v7588, %v7587
      %v7601 = vpack.c.b16 %v7590, %v7589
      %v7602 = vpack.c.b16 %v7592, %v7591
      %v7603 = vpack.c.b16 %v7594, %v7593
      %v7604 = vpack.c.b16 %v7596, %v7595
      %7613 = vmatpush.bf16.msra.mxu0 %v7604
      %7614 = vmatpush.bf16.msra.mxu0 %v7603
      %7615 = vmatpush.bf16.msra.mxu0 %v7602
      %7616 = vmatpush.bf16.msra.mxu0 %v7601
      %7617 = vmatpush.bf16.msra.mxu0 %v7600
      %7618 = vmatpush.bf16.msra.mxu0 %v7599
      %7619 = vmatpush.bf16.msra.mxu0 %v7598
      %7620 = vmatpush.bf16.msra.mxu0 %v7597
      %7621 = vmatmul.bf16.gmra.mxu0 %v7549
      %v7622 = vpop.f32.mrf.mxu0
      %v7623 = vadd.f32 0.0, %v7622
      %v7624 = vpop.f32.mrf.mxu0
      %v7625 = vadd.f32 0.0, %v7624
      %7626 = vmatmul.bf16.gmra.mxu0 %v7550
      %v7627 = vpop.f32.mrf.mxu0
      %v7628 = vadd.f32 0.0, %v7627
      %v7629 = vpop.f32.mrf.mxu0
      %v7630 = vadd.f32 0.0, %v7629
      %7631 = vmatmul.bf16.gmra.mxu0 %v7551
      %v7632 = vpop.f32.mrf.mxu0
      %v7633 = vadd.f32 0.0, %v7632
      %v7634 = vpop.f32.mrf.mxu0
      %v7635 = vadd.f32 0.0, %v7634
      %7636 = vmatmul.bf16.gmra.mxu0 %v7552
      %v7637 = vpop.f32.mrf.mxu0
      %v7638 = vadd.f32 0.0, %v7637
      %v7639 = vpop.f32.mrf.mxu0
      %v7640 = vadd.f32 0.0, %v7639
      %7641 = vmatmul.bf16.gmra.mxu0 %v7553
      %v7642 = vpop.f32.mrf.mxu0
      %v7643 = vadd.f32 0.0, %v7642
      %v7644 = vpop.f32.mrf.mxu0
      %v7645 = vadd.f32 0.0, %v7644
      %7646 = vmatmul.bf16.gmra.mxu0 %v7554
      %v7647 = vpop.f32.mrf.mxu0
      %v7648 = vadd.f32 0.0, %v7647
      %v7649 = vpop.f32.mrf.mxu0
      %v7650 = vadd.f32 0.0, %v7649
      %7651 = vmatmul.bf16.gmra.mxu0 %v7555
      %v7652 = vpop.f32.mrf.mxu0
      %v7653 = vadd.f32 0.0, %v7652
      %v7654 = vpop.f32.mrf.mxu0
      %v7655 = vadd.f32 0.0, %v7654
      %7656 = vmatmul.bf16.gmra.mxu0 %v7556
      %v7657 = vpop.f32.mrf.mxu0
      %v7658 = vadd.f32 0.0, %v7657
      %v7659 = vpop.f32.mrf.mxu0
      %v7660 = vadd.f32 0.0, %v7659
      %7661 = vdwg.mxu0
      %v7662 = vadd.f32 %v7285, %v7623
      %v7663 = vadd.f32 %v7286, %v7625
      %v7664 = vadd.f32 %v7287, %v7628
      %v7665 = vadd.f32 %v7288, %v7630
      %v7666 = vadd.f32 %v7289, %v7633
      %v7667 = vadd.f32 %v7290, %v7635
      %v7668 = vadd.f32 %v7291, %v7638
      %v7669 = vadd.f32 %v7292, %v7640
      %v7670 = vadd.f32 %v7293, %v7643
      %v7671 = vadd.f32 %v7294, %v7645
      %v7672 = vadd.f32 %v7295, %v7648
      %v7673 = vadd.f32 %v7296, %v7650
      %v7674 = vadd.f32 %v7297, %v7653
      %v7675 = vadd.f32 %v7298, %v7655
      %v7676 = vadd.f32 %v7299, %v7658
      %v7677 = vadd.f32 %v7300, %v7660
      %v7678 = vld [vmem:[%s7107] sm:$0xe]
      %v7679 = vld [vmem:[%s7107 + $0x10] sm:$0xe]
      %v7680 = vld [vmem:[%s7107 + $0x20] sm:$0xe]
      %v7681 = vld [vmem:[%s7107 + $0x30] sm:$0xe]
      %v7682 = vld [vmem:[%s7107 + $0x40] sm:$0xe]
      %v7683 = vld [vmem:[%s7107 + $0x50] sm:$0xe]
      %v7684 = vld [vmem:[%s7107 + $0x60] sm:$0xe]
      %v7685 = vld [vmem:[%s7107 + $0x70] sm:$0xe]
      %v7710 = vrot.slane %v7678, 5
      %v7711 = vrot.slane %v7710, 4
      %v7712 = vrot.slane %v7302, 5
      %v7713 = vsel %vm4370, %v7711, %v7712
      %v7714 = vrot.slane %v7712, 4
      %v7715 = vrot.slane %v7303, 5
      %v7716 = vsel %vm4370, %v7714, %v7715
      %v7717 = vrot.slane %v7679, 5
      %v7718 = vrot.slane %v7717, 4
      %v7719 = vrot.slane %v7305, 5
      %v7720 = vsel %vm4370, %v7718, %v7719
      %v7721 = vrot.slane %v7719, 4
      %v7722 = vrot.slane %v7306, 5
      %v7723 = vsel %vm4370, %v7721, %v7722
      %v7724 = vrot.slane %v7680, 5
      %v7725 = vrot.slane %v7724, 4
      %v7726 = vrot.slane %v7308, 5
      %v7727 = vsel %vm4370, %v7725, %v7726
      %v7728 = vrot.slane %v7726, 4
      %v7729 = vrot.slane %v7309, 5
      %v7730 = vsel %vm4370, %v7728, %v7729
      %v7731 = vrot.slane %v7681, 5
      %v7732 = vrot.slane %v7731, 4
      %v7733 = vrot.slane %v7311, 5
      %v7734 = vsel %vm4370, %v7732, %v7733
      %v7735 = vrot.slane %v7733, 4
      %v7736 = vrot.slane %v7312, 5
      %v7737 = vsel %vm4370, %v7735, %v7736
      %v7738 = vrot.slane %v7682, 5
      %v7739 = vrot.slane %v7738, 4
      %v7740 = vrot.slane %v7314, 5
      %v7741 = vsel %vm4370, %v7739, %v7740
      %v7742 = vrot.slane %v7740, 4
      %v7743 = vrot.slane %v7315, 5
      %v7744 = vsel %vm4370, %v7742, %v7743
      %v7745 = vrot.slane %v7683, 5
      %v7746 = vrot.slane %v7745, 4
      %v7747 = vrot.slane %v7317, 5
      %v7748 = vsel %vm4370, %v7746, %v7747
      %v7749 = vrot.slane %v7747, 4
      %v7750 = vrot.slane %v7318, 5
      %v7751 = vsel %vm4370, %v7749, %v7750
      %v7752 = vrot.slane %v7684, 5
      %v7753 = vrot.slane %v7752, 4
      %v7754 = vrot.slane %v7320, 5
      %v7755 = vsel %vm4370, %v7753, %v7754
      %v7756 = vrot.slane %v7754, 4
      %v7757 = vrot.slane %v7321, 5
      %v7758 = vsel %vm4370, %v7756, %v7757
      %v7759 = vrot.slane %v7685, 5
      %v7760 = vrot.slane %v7759, 4
      %v7761 = vrot.slane %v7323, 5
      %v7762 = vsel %vm4370, %v7760, %v7761
      %v7763 = vrot.slane %v7761, 4
      %v7764 = vrot.slane %v7324, 5
      %v7765 = vsel %vm4370, %v7763, %v7764
      %v7766 = vld [vmem:[%s5250] sm:$0xf]
      %v7767 = vld [vmem:[%s5250 + $0x4] sm:$0xf]
      %v7768 = vld [vmem:[%s5250 + $0x8] sm:$0xf]
      %v7769 = vld [vmem:[%s5250 + $0xc] sm:$0xf]
      %v7770 = vld [vmem:[%s5250 + $0x10] sm:$0xf]
      %v7771 = vld [vmem:[%s5250 + $0x14] sm:$0xf]
      %v7772 = vld [vmem:[%s5250 + $0x18] sm:$0xf]
      %v7773 = vld [vmem:[%s5250 + $0x1c] sm:$0xf]
      %v7774 = vld [vmem:[%s5250 + $0x20] sm:$0xf]
      %v7775 = vld [vmem:[%s5250 + $0x24] sm:$0xf]
      %v7776 = vld [vmem:[%s5250 + $0x28] sm:$0xf]
      %v7777 = vld [vmem:[%s5250 + $0x2c] sm:$0xf]
      %v7778 = vld [vmem:[%s5250 + $0x30] sm:$0xf]
      %v7779 = vld [vmem:[%s5250 + $0x34] sm:$0xf]
      %v7780 = vld [vmem:[%s5250 + $0x38] sm:$0xf]
      %v7781 = vld [vmem:[%s5250 + $0x3c] sm:$0xf]
      %v7782 = vunpack.c.l.b16 %v7713
      %v7783 = vunpack.c.l.b16 %v7716
      %v7784 = vunpack.c.l.b16 %v7720
      %v7785 = vunpack.c.l.b16 %v7723
      %v7786 = vunpack.c.l.b16 %v7727
      %v7787 = vunpack.c.l.b16 %v7730
      %v7788 = vunpack.c.l.b16 %v7734
      %v7789 = vunpack.c.l.b16 %v7737
      %v7790 = vunpack.c.l.b16 %v7741
      %v7791 = vunpack.c.l.b16 %v7744
      %v7792 = vunpack.c.l.b16 %v7748
      %v7793 = vunpack.c.l.b16 %v7751
      %v7794 = vunpack.c.l.b16 %v7755
      %v7795 = vunpack.c.l.b16 %v7758
      %v7796 = vunpack.c.l.b16 %v7762
      %v7797 = vunpack.c.l.b16 %v7765
      %v7798 = vpack.c.b16 %v7783, %v7782
      %v7799 = vpack.c.b16 %v7785, %v7784
      %v7800 = vpack.c.b16 %v7787, %v7786
      %v7801 = vpack.c.b16 %v7789, %v7788
      %v7802 = vpack.c.b16 %v7791, %v7790
      %v7803 = vpack.c.b16 %v7793, %v7792
      %v7804 = vpack.c.b16 %v7795, %v7794
      %v7805 = vpack.c.b16 %v7797, %v7796
      %v7830 = vunpack.c.l.b16 %v7766
      %v7831 = vunpack.c.l.b16 %v7767
      %v7832 = vunpack.c.l.b16 %v7768
      %v7833 = vunpack.c.l.b16 %v7769
      %v7834 = vunpack.c.l.b16 %v7770
      %v7835 = vunpack.c.l.b16 %v7771
      %v7836 = vunpack.c.l.b16 %v7772
      %v7837 = vunpack.c.l.b16 %v7773
      %v7838 = vunpack.c.l.b16 %v7774
      %v7839 = vunpack.c.l.b16 %v7775
      %v7840 = vunpack.c.l.b16 %v7776
      %v7841 = vunpack.c.l.b16 %v7777
      %v7842 = vunpack.c.l.b16 %v7778
      %v7843 = vunpack.c.l.b16 %v7779
      %v7844 = vunpack.c.l.b16 %v7780
      %v7845 = vunpack.c.l.b16 %v7781
      %v7846 = vpack.c.b16 %v7831, %v7830
      %v7847 = vpack.c.b16 %v7833, %v7832
      %v7848 = vpack.c.b16 %v7835, %v7834
      %v7849 = vpack.c.b16 %v7837, %v7836
      %v7850 = vpack.c.b16 %v7839, %v7838
      %v7851 = vpack.c.b16 %v7841, %v7840
      %v7852 = vpack.c.b16 %v7843, %v7842
      %v7853 = vpack.c.b16 %v7845, %v7844
      %7862 = vmatpush.bf16.msra.mxu0 %v7853
      %7863 = vmatpush.bf16.msra.mxu0 %v7852
      %7864 = vmatpush.bf16.msra.mxu0 %v7851
      %7865 = vmatpush.bf16.msra.mxu0 %v7850
      %7866 = vmatpush.bf16.msra.mxu0 %v7849
      %7867 = vmatpush.bf16.msra.mxu0 %v7848
      %7868 = vmatpush.bf16.msra.mxu0 %v7847
      %7869 = vmatpush.bf16.msra.mxu0 %v7846
      %7870 = vmatmul.bf16.gmra.mxu0 %v7798
      %v7871 = vpop.f32.mrf.mxu0
      %v7872 = vadd.f32 0.0, %v7871
      %v7873 = vpop.f32.mrf.mxu0
      %v7874 = vadd.f32 0.0, %v7873
      %7875 = vmatmul.bf16.gmra.mxu0 %v7799
      %v7876 = vpop.f32.mrf.mxu0
      %v7877 = vadd.f32 0.0, %v7876
      %v7878 = vpop.f32.mrf.mxu0
      %v7879 = vadd.f32 0.0, %v7878
      %7880 = vmatmul.bf16.gmra.mxu0 %v7800
      %v7881 = vpop.f32.mrf.mxu0
      %v7882 = vadd.f32 0.0, %v7881
      %v7883 = vpop.f32.mrf.mxu0
      %v7884 = vadd.f32 0.0, %v7883
      %7885 = vmatmul.bf16.gmra.mxu0 %v7801
      %v7886 = vpop.f32.mrf.mxu0
      %v7887 = vadd.f32 0.0, %v7886
      %v7888 = vpop.f32.mrf.mxu0
      %v7889 = vadd.f32 0.0, %v7888
      %7890 = vmatmul.bf16.gmra.mxu0 %v7802
      %v7891 = vpop.f32.mrf.mxu0
      %v7892 = vadd.f32 0.0, %v7891
      %v7893 = vpop.f32.mrf.mxu0
      %v7894 = vadd.f32 0.0, %v7893
      %7895 = vmatmul.bf16.gmra.mxu0 %v7803
      %v7896 = vpop.f32.mrf.mxu0
      %v7897 = vadd.f32 0.0, %v7896
      %v7898 = vpop.f32.mrf.mxu0
      %v7899 = vadd.f32 0.0, %v7898
      %7900 = vmatmul.bf16.gmra.mxu0 %v7804
      %v7901 = vpop.f32.mrf.mxu0
      %v7902 = vadd.f32 0.0, %v7901
      %v7903 = vpop.f32.mrf.mxu0
      %v7904 = vadd.f32 0.0, %v7903
      %7905 = vmatmul.bf16.gmra.mxu0 %v7805
      %v7906 = vpop.f32.mrf.mxu0
      %v7907 = vadd.f32 0.0, %v7906
      %v7908 = vpop.f32.mrf.mxu0
      %v7909 = vadd.f32 0.0, %v7908
      %7910 = vdwg.mxu0
      %v7911 = vadd.f32 %v7662, %v7872
      %v7912 = vadd.f32 %v7663, %v7874
      %v7913 = vadd.f32 %v7664, %v7877
      %v7914 = vadd.f32 %v7665, %v7879
      %v7915 = vadd.f32 %v7666, %v7882
      %v7916 = vadd.f32 %v7667, %v7884
      %v7917 = vadd.f32 %v7668, %v7887
      %v7918 = vadd.f32 %v7669, %v7889
      %v7919 = vadd.f32 %v7670, %v7892
      %v7920 = vadd.f32 %v7671, %v7894
      %v7921 = vadd.f32 %v7672, %v7897
      %v7922 = vadd.f32 %v7673, %v7899
      %v7923 = vadd.f32 %v7674, %v7902
      %v7924 = vadd.f32 %v7675, %v7904
      %v7925 = vadd.f32 %v7676, %v7907
      %v7926 = vadd.f32 %v7677, %v7909
      %s7927 = scalar_lea.vmem [#allocation3], 160
      %v7928 = vld [vmem:[%s7927] sm:$0xf]
      %v7929 = vld [vmem:[%s7927 + $0x4] sm:$0xf]
      %v7930 = vld [vmem:[%s7927 + $0x10] sm:$0xf]
      %v7931 = vld [vmem:[%s7927 + $0x14] sm:$0xf]
      %v7932 = vld [vmem:[%s7927 + $0x20] sm:$0xf]
      %v7933 = vld [vmem:[%s7927 + $0x24] sm:$0xf]
      %v7934 = vld [vmem:[%s7927 + $0x30] sm:$0xf]
      %v7935 = vld [vmem:[%s7927 + $0x34] sm:$0xf]
      %v7936 = vld [vmem:[%s7927 + $0x40] sm:$0xf]
      %v7937 = vld [vmem:[%s7927 + $0x44] sm:$0xf]
      %v7938 = vld [vmem:[%s7927 + $0x50] sm:$0xf]
      %v7939 = vld [vmem:[%s7927 + $0x54] sm:$0xf]
      %v7940 = vld [vmem:[%s7927 + $0x60] sm:$0xf]
      %v7941 = vld [vmem:[%s7927 + $0x64] sm:$0xf]
      %v7942 = vld [vmem:[%s7927 + $0x70] sm:$0xf]
      %v7943 = vld [vmem:[%s7927 + $0x74] sm:$0xf]
      %v7944 = vld [vmem:[%s5429] sm:$0xf]
      %v7945 = vld [vmem:[%s5429 + $0x4] sm:$0xf]
      %v7946 = vld [vmem:[%s5429 + $0x8] sm:$0xf]
      %v7947 = vld [vmem:[%s5429 + $0xc] sm:$0xf]
      %v7948 = vld [vmem:[%s5429 + $0x10] sm:$0xf]
      %v7949 = vld [vmem:[%s5429 + $0x14] sm:$0xf]
      %v7950 = vld [vmem:[%s5429 + $0x18] sm:$0xf]
      %v7951 = vld [vmem:[%s5429 + $0x1c] sm:$0xf]
      %v7952 = vld [vmem:[%s5429 + $0x20] sm:$0xf]
      %v7953 = vld [vmem:[%s5429 + $0x24] sm:$0xf]
      %v7954 = vld [vmem:[%s5429 + $0x28] sm:$0xf]
      %v7955 = vld [vmem:[%s5429 + $0x2c] sm:$0xf]
      %v7956 = vld [vmem:[%s5429 + $0x30] sm:$0xf]
      %v7957 = vld [vmem:[%s5429 + $0x34] sm:$0xf]
      %v7958 = vld [vmem:[%s5429 + $0x38] sm:$0xf]
      %v7959 = vld [vmem:[%s5429 + $0x3c] sm:$0xf]
      %v7976 = vunpack.c.l.b16 %v7928
      %v7977 = vunpack.c.l.b16 %v7929
      %v7978 = vunpack.c.l.b16 %v7930
      %v7979 = vunpack.c.l.b16 %v7931
      %v7980 = vunpack.c.l.b16 %v7932
      %v7981 = vunpack.c.l.b16 %v7933
      %v7982 = vunpack.c.l.b16 %v7934
      %v7983 = vunpack.c.l.b16 %v7935
      %v7984 = vunpack.c.l.b16 %v7936
      %v7985 = vunpack.c.l.b16 %v7937
      %v7986 = vunpack.c.l.b16 %v7938
      %v7987 = vunpack.c.l.b16 %v7939
      %v7988 = vunpack.c.l.b16 %v7940
      %v7989 = vunpack.c.l.b16 %v7941
      %v7990 = vunpack.c.l.b16 %v7942
      %v7991 = vunpack.c.l.b16 %v7943
      %v7992 = vpack.c.b16 %v7977, %v7976
      %v7993 = vpack.c.b16 %v7979, %v7978
      %v7994 = vpack.c.b16 %v7981, %v7980
      %v7995 = vpack.c.b16 %v7983, %v7982
      %v7996 = vpack.c.b16 %v7985, %v7984
      %v7997 = vpack.c.b16 %v7987, %v7986
      %v7998 = vpack.c.b16 %v7989, %v7988
      %v7999 = vpack.c.b16 %v7991, %v7990
      %v8024 = vunpack.c.l.b16 %v7944
      %v8025 = vunpack.c.l.b16 %v7945
      %v8026 = vunpack.c.l.b16 %v7946
      %v8027 = vunpack.c.l.b16 %v7947
      %v8028 = vunpack.c.l.b16 %v7948
      %v8029 = vunpack.c.l.b16 %v7949
      %v8030 = vunpack.c.l.b16 %v7950
      %v8031 = vunpack.c.l.b16 %v7951
      %v8032 = vunpack.c.l.b16 %v7952
      %v8033 = vunpack.c.l.b16 %v7953
      %v8034 = vunpack.c.l.b16 %v7954
      %v8035 = vunpack.c.l.b16 %v7955
      %v8036 = vunpack.c.l.b16 %v7956
      %v8037 = vunpack.c.l.b16 %v7957
      %v8038 = vunpack.c.l.b16 %v7958
      %v8039 = vunpack.c.l.b16 %v7959
      %v8040 = vpack.c.b16 %v8025, %v8024
      %v8041 = vpack.c.b16 %v8027, %v8026
      %v8042 = vpack.c.b16 %v8029, %v8028
      %v8043 = vpack.c.b16 %v8031, %v8030
      %v8044 = vpack.c.b16 %v8033, %v8032
      %v8045 = vpack.c.b16 %v8035, %v8034
      %v8046 = vpack.c.b16 %v8037, %v8036
      %v8047 = vpack.c.b16 %v8039, %v8038
      %8056 = vmatpush.bf16.msra.mxu0 %v8047
      %8057 = vmatpush.bf16.msra.mxu0 %v8046
      %8058 = vmatpush.bf16.msra.mxu0 %v8045
      %8059 = vmatpush.bf16.msra.mxu0 %v8044
      %8060 = vmatpush.bf16.msra.mxu0 %v8043
      %8061 = vmatpush.bf16.msra.mxu0 %v8042
      %8062 = vmatpush.bf16.msra.mxu0 %v8041
      %8063 = vmatpush.bf16.msra.mxu0 %v8040
      %8064 = vmatmul.bf16.gmra.mxu0 %v7992
      %v8065 = vpop.f32.mrf.mxu0
      %v8066 = vadd.f32 0.0, %v8065
      %v8067 = vpop.f32.mrf.mxu0
      %v8068 = vadd.f32 0.0, %v8067
      %8069 = vmatmul.bf16.gmra.mxu0 %v7993
      %v8070 = vpop.f32.mrf.mxu0
      %v8071 = vadd.f32 0.0, %v8070
      %v8072 = vpop.f32.mrf.mxu0
      %v8073 = vadd.f32 0.0, %v8072
      %8074 = vmatmul.bf16.gmra.mxu0 %v7994
      %v8075 = vpop.f32.mrf.mxu0
      %v8076 = vadd.f32 0.0, %v8075
      %v8077 = vpop.f32.mrf.mxu0
      %v8078 = vadd.f32 0.0, %v8077
      %8079 = vmatmul.bf16.gmra.mxu0 %v7995
      %v8080 = vpop.f32.mrf.mxu0
      %v8081 = vadd.f32 0.0, %v8080
      %v8082 = vpop.f32.mrf.mxu0
      %v8083 = vadd.f32 0.0, %v8082
      %8084 = vmatmul.bf16.gmra.mxu0 %v7996
      %v8085 = vpop.f32.mrf.mxu0
      %v8086 = vadd.f32 0.0, %v8085
      %v8087 = vpop.f32.mrf.mxu0
      %v8088 = vadd.f32 0.0, %v8087
      %8089 = vmatmul.bf16.gmra.mxu0 %v7997
      %v8090 = vpop.f32.mrf.mxu0
      %v8091 = vadd.f32 0.0, %v8090
      %v8092 = vpop.f32.mrf.mxu0
      %v8093 = vadd.f32 0.0, %v8092
      %8094 = vmatmul.bf16.gmra.mxu0 %v7998
      %v8095 = vpop.f32.mrf.mxu0
      %v8096 = vadd.f32 0.0, %v8095
      %v8097 = vpop.f32.mrf.mxu0
      %v8098 = vadd.f32 0.0, %v8097
      %8099 = vmatmul.bf16.gmra.mxu0 %v7999
      %v8100 = vpop.f32.mrf.mxu0
      %v8101 = vadd.f32 0.0, %v8100
      %v8102 = vpop.f32.mrf.mxu0
      %v8103 = vadd.f32 0.0, %v8102
      %8104 = vdwg.mxu0
      %v8105 = vadd.f32 %v7911, %v8066
      %v8106 = vadd.f32 %v7912, %v8068
      %v8107 = vadd.f32 %v7913, %v8071
      %v8108 = vadd.f32 %v7914, %v8073
      %v8109 = vadd.f32 %v7915, %v8076
      %v8110 = vadd.f32 %v7916, %v8078
      %v8111 = vadd.f32 %v7917, %v8081
      %v8112 = vadd.f32 %v7918, %v8083
      %v8113 = vadd.f32 %v7919, %v8086
      %v8114 = vadd.f32 %v7920, %v8088
      %v8115 = vadd.f32 %v7921, %v8091
      %v8116 = vadd.f32 %v7922, %v8093
      %v8117 = vadd.f32 %v7923, %v8096
      %v8118 = vadd.f32 %v7924, %v8098
      %v8119 = vadd.f32 %v7925, %v8101
      %v8120 = vadd.f32 %v7926, %v8103
      %v8121 = vld [vmem:[%s7927] sm:$0xf]
      %v8122 = vld [vmem:[%s7927 + $0x4] sm:$0xf]
      %v8123 = vld [vmem:[%s7927 + $0x8] sm:$0x1]
      %v8124 = vld [vmem:[%s7927 + $0x10] sm:$0xf]
      %v8125 = vld [vmem:[%s7927 + $0x14] sm:$0xf]
      %v8126 = vld [vmem:[%s7927 + $0x18] sm:$0x1]
      %v8127 = vld [vmem:[%s7927 + $0x20] sm:$0xf]
      %v8128 = vld [vmem:[%s7927 + $0x24] sm:$0xf]
      %v8129 = vld [vmem:[%s7927 + $0x28] sm:$0x1]
      %v8130 = vld [vmem:[%s7927 + $0x30] sm:$0xf]
      %v8131 = vld [vmem:[%s7927 + $0x34] sm:$0xf]
      %v8132 = vld [vmem:[%s7927 + $0x38] sm:$0x1]
      %v8133 = vld [vmem:[%s7927 + $0x40] sm:$0xf]
      %v8134 = vld [vmem:[%s7927 + $0x44] sm:$0xf]
      %v8135 = vld [vmem:[%s7927 + $0x48] sm:$0x1]
      %v8136 = vld [vmem:[%s7927 + $0x50] sm:$0xf]
      %v8137 = vld [vmem:[%s7927 + $0x54] sm:$0xf]
      %v8138 = vld [vmem:[%s7927 + $0x58] sm:$0x1]
      %v8139 = vld [vmem:[%s7927 + $0x60] sm:$0xf]
      %v8140 = vld [vmem:[%s7927 + $0x64] sm:$0xf]
      %v8141 = vld [vmem:[%s7927 + $0x68] sm:$0x1]
      %v8142 = vld [vmem:[%s7927 + $0x70] sm:$0xf]
      %v8143 = vld [vmem:[%s7927 + $0x74] sm:$0xf]
      %v8144 = vld [vmem:[%s7927 + $0x78] sm:$0x1]
      %v8146 = vshrl.u32 %v8121, 16
      %v8148 = vrot.slane %v8146, 4
      %v8149 = vshll.u32 %v8121, 16
      %v8151 = vrot.slane %v8149, 5
      %v8152 = vor.u32 %v8148, %v8151
      %v8153 = vrot.slane %v8152, 4
      %v8155 = vshll.u32 %v8122, 16
      %v8157 = vrot.slane %v8155, 5
      %v8158 = vsel %vm3981, %v8153, %v8157
      %v8159 = vshrl.u32 %v8122, 16
      %v8161 = vrot.slane %v8159, 4
      %v8162 = vor.u32 %v8161, %v8157
      %v8163 = vrot.slane %v8162, 4
      %v8165 = vshll.u32 %v8123, 16
      %v8167 = vrot.slane %v8165, 5
      %v8168 = vsel %vm3981, %v8163, %v8167
      %v8170 = vshrl.u32 %v8124, 16
      %v8172 = vrot.slane %v8170, 4
      %v8173 = vshll.u32 %v8124, 16
      %v8175 = vrot.slane %v8173, 5
      %v8176 = vor.u32 %v8172, %v8175
      %v8177 = vrot.slane %v8176, 4
      %v8179 = vshll.u32 %v8125, 16
      %v8181 = vrot.slane %v8179, 5
      %v8182 = vsel %vm3981, %v8177, %v8181
      %v8183 = vshrl.u32 %v8125, 16
      %v8185 = vrot.slane %v8183, 4
      %v8186 = vor.u32 %v8185, %v8181
      %v8187 = vrot.slane %v8186, 4
      %v8189 = vshll.u32 %v8126, 16
      %v8191 = vrot.slane %v8189, 5
      %v8192 = vsel %vm3981, %v8187, %v8191
      %v8194 = vshrl.u32 %v8127, 16
      %v8196 = vrot.slane %v8194, 4
      %v8197 = vshll.u32 %v8127, 16
      %v8199 = vrot.slane %v8197, 5
      %v8200 = vor.u32 %v8196, %v8199
      %v8201 = vrot.slane %v8200, 4
      %v8203 = vshll.u32 %v8128, 16
      %v8205 = vrot.slane %v8203, 5
      %v8206 = vsel %vm3981, %v8201, %v8205
      %v8207 = vshrl.u32 %v8128, 16
      %v8209 = vrot.slane %v8207, 4
      %v8210 = vor.u32 %v8209, %v8205
      %v8211 = vrot.slane %v8210, 4
      %v8213 = vshll.u32 %v8129, 16
      %v8215 = vrot.slane %v8213, 5
      %v8216 = vsel %vm3981, %v8211, %v8215
      %v8218 = vshrl.u32 %v8130, 16
      %v8220 = vrot.slane %v8218, 4
      %v8221 = vshll.u32 %v8130, 16
      %v8223 = vrot.slane %v8221, 5
      %v8224 = vor.u32 %v8220, %v8223
      %v8225 = vrot.slane %v8224, 4
      %v8227 = vshll.u32 %v8131, 16
      %v8229 = vrot.slane %v8227, 5
      %v8230 = vsel %vm3981, %v8225, %v8229
      %v8231 = vshrl.u32 %v8131, 16
      %v8233 = vrot.slane %v8231, 4
      %v8234 = vor.u32 %v8233, %v8229
      %v8235 = vrot.slane %v8234, 4
      %v8237 = vshll.u32 %v8132, 16
      %v8239 = vrot.slane %v8237, 5
      %v8240 = vsel %vm3981, %v8235, %v8239
      %v8242 = vshrl.u32 %v8133, 16
      %v8244 = vrot.slane %v8242, 4
      %v8245 = vshll.u32 %v8133, 16
      %v8247 = vrot.slane %v8245, 5
      %v8248 = vor.u32 %v8244, %v8247
      %v8249 = vrot.slane %v8248, 4
      %v8251 = vshll.u32 %v8134, 16
      %v8253 = vrot.slane %v8251, 5
      %v8254 = vsel %vm3981, %v8249, %v8253
      %v8255 = vshrl.u32 %v8134, 16
      %v8257 = vrot.slane %v8255, 4
      %v8258 = vor.u32 %v8257, %v8253
      %v8259 = vrot.slane %v8258, 4
      %v8261 = vshll.u32 %v8135, 16
      %v8263 = vrot.slane %v8261, 5
      %v8264 = vsel %vm3981, %v8259, %v8263
      %v8266 = vshrl.u32 %v8136, 16
      %v8268 = vrot.slane %v8266, 4
      %v8269 = vshll.u32 %v8136, 16
      %v8271 = vrot.slane %v8269, 5
      %v8272 = vor.u32 %v8268, %v8271
      %v8273 = vrot.slane %v8272, 4
      %v8275 = vshll.u32 %v8137, 16
      %v8277 = vrot.slane %v8275, 5
      %v8278 = vsel %vm3981, %v8273, %v8277
      %v8279 = vshrl.u32 %v8137, 16
      %v8281 = vrot.slane %v8279, 4
      %v8282 = vor.u32 %v8281, %v8277
      %v8283 = vrot.slane %v8282, 4
      %v8285 = vshll.u32 %v8138, 16
      %v8287 = vrot.slane %v8285, 5
      %v8288 = vsel %vm3981, %v8283, %v8287
      %v8290 = vshrl.u32 %v8139, 16
      %v8292 = vrot.slane %v8290, 4
      %v8293 = vshll.u32 %v8139, 16
      %v8295 = vrot.slane %v8293, 5
      %v8296 = vor.u32 %v8292, %v8295
      %v8297 = vrot.slane %v8296, 4
      %v8299 = vshll.u32 %v8140, 16
      %v8301 = vrot.slane %v8299, 5
      %v8302 = vsel %vm3981, %v8297, %v8301
      %v8303 = vshrl.u32 %v8140, 16
      %v8305 = vrot.slane %v8303, 4
      %v8306 = vor.u32 %v8305, %v8301
      %v8307 = vrot.slane %v8306, 4
      %v8309 = vshll.u32 %v8141, 16
      %v8311 = vrot.slane %v8309, 5
      %v8312 = vsel %vm3981, %v8307, %v8311
      %v8314 = vshrl.u32 %v8142, 16
      %v8316 = vrot.slane %v8314, 4
      %v8317 = vshll.u32 %v8142, 16
      %v8319 = vrot.slane %v8317, 5
      %v8320 = vor.u32 %v8316, %v8319
      %v8321 = vrot.slane %v8320, 4
      %v8323 = vshll.u32 %v8143, 16
      %v8325 = vrot.slane %v8323, 5
      %v8326 = vsel %vm3981, %v8321, %v8325
      %v8327 = vshrl.u32 %v8143, 16
      %v8329 = vrot.slane %v8327, 4
      %v8330 = vor.u32 %v8329, %v8325
      %v8331 = vrot.slane %v8330, 4
      %v8333 = vshll.u32 %v8144, 16
      %v8335 = vrot.slane %v8333, 5
      %v8336 = vsel %vm3981, %v8331, %v8335
      %v8337 = vld [vmem:[%s5823] sm:$0xf]
      %v8338 = vld [vmem:[%s5823 + $0x4] sm:$0xf]
      %v8339 = vld [vmem:[%s5823 + $0x8] sm:$0xf]
      %v8340 = vld [vmem:[%s5823 + $0xc] sm:$0xf]
      %v8341 = vld [vmem:[%s5823 + $0x10] sm:$0xf]
      %v8342 = vld [vmem:[%s5823 + $0x14] sm:$0xf]
      %v8343 = vld [vmem:[%s5823 + $0x18] sm:$0xf]
      %v8344 = vld [vmem:[%s5823 + $0x1c] sm:$0xf]
      %v8345 = vld [vmem:[%s5823 + $0x20] sm:$0xf]
      %v8346 = vld [vmem:[%s5823 + $0x24] sm:$0xf]
      %v8347 = vld [vmem:[%s5823 + $0x28] sm:$0xf]
      %v8348 = vld [vmem:[%s5823 + $0x2c] sm:$0xf]
      %v8349 = vld [vmem:[%s5823 + $0x30] sm:$0xf]
      %v8350 = vld [vmem:[%s5823 + $0x34] sm:$0xf]
      %v8351 = vld [vmem:[%s5823 + $0x38] sm:$0xf]
      %v8352 = vld [vmem:[%s5823 + $0x3c] sm:$0xf]
      %v8353 = vunpack.c.l.b16 %v8158
      %v8354 = vunpack.c.l.b16 %v8168
      %v8355 = vunpack.c.l.b16 %v8182
      %v8356 = vunpack.c.l.b16 %v8192
      %v8357 = vunpack.c.l.b16 %v8206
      %v8358 = vunpack.c.l.b16 %v8216
      %v8359 = vunpack.c.l.b16 %v8230
      %v8360 = vunpack.c.l.b16 %v8240
      %v8361 = vunpack.c.l.b16 %v8254
      %v8362 = vunpack.c.l.b16 %v8264
      %v8363 = vunpack.c.l.b16 %v8278
      %v8364 = vunpack.c.l.b16 %v8288
      %v8365 = vunpack.c.l.b16 %v8302
      %v8366 = vunpack.c.l.b16 %v8312
      %v8367 = vunpack.c.l.b16 %v8326
      %v8368 = vunpack.c.l.b16 %v8336
      %v8369 = vpack.c.b16 %v8354, %v8353
      %v8370 = vpack.c.b16 %v8356, %v8355
      %v8371 = vpack.c.b16 %v8358, %v8357
      %v8372 = vpack.c.b16 %v8360, %v8359
      %v8373 = vpack.c.b16 %v8362, %v8361
      %v8374 = vpack.c.b16 %v8364, %v8363
      %v8375 = vpack.c.b16 %v8366, %v8365
      %v8376 = vpack.c.b16 %v8368, %v8367
      %v8401 = vunpack.c.l.b16 %v8337
      %v8402 = vunpack.c.l.b16 %v8338
      %v8403 = vunpack.c.l.b16 %v8339
      %v8404 = vunpack.c.l.b16 %v8340
      %v8405 = vunpack.c.l.b16 %v8341
      %v8406 = vunpack.c.l.b16 %v8342
      %v8407 = vunpack.c.l.b16 %v8343
      %v8408 = vunpack.c.l.b16 %v8344
      %v8409 = vunpack.c.l.b16 %v8345
      %v8410 = vunpack.c.l.b16 %v8346
      %v8411 = vunpack.c.l.b16 %v8347
      %v8412 = vunpack.c.l.b16 %v8348
      %v8413 = vunpack.c.l.b16 %v8349
      %v8414 = vunpack.c.l.b16 %v8350
      %v8415 = vunpack.c.l.b16 %v8351
      %v8416 = vunpack.c.l.b16 %v8352
      %v8417 = vpack.c.b16 %v8402, %v8401
      %v8418 = vpack.c.b16 %v8404, %v8403
      %v8419 = vpack.c.b16 %v8406, %v8405
      %v8420 = vpack.c.b16 %v8408, %v8407
      %v8421 = vpack.c.b16 %v8410, %v8409
      %v8422 = vpack.c.b16 %v8412, %v8411
      %v8423 = vpack.c.b16 %v8414, %v8413
      %v8424 = vpack.c.b16 %v8416, %v8415
      %8433 = vmatpush.bf16.msra.mxu0 %v8424
      %8434 = vmatpush.bf16.msra.mxu0 %v8423
      %8435 = vmatpush.bf16.msra.mxu0 %v8422
      %8436 = vmatpush.bf16.msra.mxu0 %v8421
      %8437 = vmatpush.bf16.msra.mxu0 %v8420
      %8438 = vmatpush.bf16.msra.mxu0 %v8419
      %8439 = vmatpush.bf16.msra.mxu0 %v8418
      %8440 = vmatpush.bf16.msra.mxu0 %v8417
      %8441 = vmatmul.bf16.gmra.mxu0 %v8369
      %v8442 = vpop.f32.mrf.mxu0
      %v8443 = vadd.f32 0.0, %v8442
      %v8444 = vpop.f32.mrf.mxu0
      %v8445 = vadd.f32 0.0, %v8444
      %8446 = vmatmul.bf16.gmra.mxu0 %v8370
      %v8447 = vpop.f32.mrf.mxu0
      %v8448 = vadd.f32 0.0, %v8447
      %v8449 = vpop.f32.mrf.mxu0
      %v8450 = vadd.f32 0.0, %v8449
      %8451 = vmatmul.bf16.gmra.mxu0 %v8371
      %v8452 = vpop.f32.mrf.mxu0
      %v8453 = vadd.f32 0.0, %v8452
      %v8454 = vpop.f32.mrf.mxu0
      %v8455 = vadd.f32 0.0, %v8454
      %8456 = vmatmul.bf16.gmra.mxu0 %v8372
      %v8457 = vpop.f32.mrf.mxu0
      %v8458 = vadd.f32 0.0, %v8457
      %v8459 = vpop.f32.mrf.mxu0
      %v8460 = vadd.f32 0.0, %v8459
      %8461 = vmatmul.bf16.gmra.mxu0 %v8373
      %v8462 = vpop.f32.mrf.mxu0
      %v8463 = vadd.f32 0.0, %v8462
      %v8464 = vpop.f32.mrf.mxu0
      %v8465 = vadd.f32 0.0, %v8464
      %8466 = vmatmul.bf16.gmra.mxu0 %v8374
      %v8467 = vpop.f32.mrf.mxu0
      %v8468 = vadd.f32 0.0, %v8467
      %v8469 = vpop.f32.mrf.mxu0
      %v8470 = vadd.f32 0.0, %v8469
      %8471 = vmatmul.bf16.gmra.mxu0 %v8375
      %v8472 = vpop.f32.mrf.mxu0
      %v8473 = vadd.f32 0.0, %v8472
      %v8474 = vpop.f32.mrf.mxu0
      %v8475 = vadd.f32 0.0, %v8474
      %8476 = vmatmul.bf16.gmra.mxu0 %v8376
      %v8477 = vpop.f32.mrf.mxu0
      %v8478 = vadd.f32 0.0, %v8477
      %v8479 = vpop.f32.mrf.mxu0
      %v8480 = vadd.f32 0.0, %v8479
      %8481 = vdwg.mxu0
      %v8482 = vadd.f32 %v8105, %v8443
      %v8483 = vadd.f32 %v8106, %v8445
      %v8484 = vadd.f32 %v8107, %v8448
      %v8485 = vadd.f32 %v8108, %v8450
      %v8486 = vadd.f32 %v8109, %v8453
      %v8487 = vadd.f32 %v8110, %v8455
      %v8488 = vadd.f32 %v8111, %v8458
      %v8489 = vadd.f32 %v8112, %v8460
      %v8490 = vadd.f32 %v8113, %v8463
      %v8491 = vadd.f32 %v8114, %v8465
      %v8492 = vadd.f32 %v8115, %v8468
      %v8493 = vadd.f32 %v8116, %v8470
      %v8494 = vadd.f32 %v8117, %v8473
      %v8495 = vadd.f32 %v8118, %v8475
      %v8496 = vadd.f32 %v8119, %v8478
      %v8497 = vadd.f32 %v8120, %v8480
      %v8498 = vld [vmem:[%s7927] sm:$0xe]
      %v8499 = vld [vmem:[%s7927 + $0x10] sm:$0xe]
      %v8500 = vld [vmem:[%s7927 + $0x20] sm:$0xe]
      %v8501 = vld [vmem:[%s7927 + $0x30] sm:$0xe]
      %v8502 = vld [vmem:[%s7927 + $0x40] sm:$0xe]
      %v8503 = vld [vmem:[%s7927 + $0x50] sm:$0xe]
      %v8504 = vld [vmem:[%s7927 + $0x60] sm:$0xe]
      %v8505 = vld [vmem:[%s7927 + $0x70] sm:$0xe]
      %v8530 = vrot.slane %v8498, 5
      %v8531 = vrot.slane %v8530, 4
      %v8532 = vrot.slane %v8122, 5
      %v8533 = vsel %vm4370, %v8531, %v8532
      %v8534 = vrot.slane %v8532, 4
      %v8535 = vrot.slane %v8123, 5
      %v8536 = vsel %vm4370, %v8534, %v8535
      %v8537 = vrot.slane %v8499, 5
      %v8538 = vrot.slane %v8537, 4
      %v8539 = vrot.slane %v8125, 5
      %v8540 = vsel %vm4370, %v8538, %v8539
      %v8541 = vrot.slane %v8539, 4
      %v8542 = vrot.slane %v8126, 5
      %v8543 = vsel %vm4370, %v8541, %v8542
      %v8544 = vrot.slane %v8500, 5
      %v8545 = vrot.slane %v8544, 4
      %v8546 = vrot.slane %v8128, 5
      %v8547 = vsel %vm4370, %v8545, %v8546
      %v8548 = vrot.slane %v8546, 4
      %v8549 = vrot.slane %v8129, 5
      %v8550 = vsel %vm4370, %v8548, %v8549
      %v8551 = vrot.slane %v8501, 5
      %v8552 = vrot.slane %v8551, 4
      %v8553 = vrot.slane %v8131, 5
      %v8554 = vsel %vm4370, %v8552, %v8553
      %v8555 = vrot.slane %v8553, 4
      %v8556 = vrot.slane %v8132, 5
      %v8557 = vsel %vm4370, %v8555, %v8556
      %v8558 = vrot.slane %v8502, 5
      %v8559 = vrot.slane %v8558, 4
      %v8560 = vrot.slane %v8134, 5
      %v8561 = vsel %vm4370, %v8559, %v8560
      %v8562 = vrot.slane %v8560, 4
      %v8563 = vrot.slane %v8135, 5
      %v8564 = vsel %vm4370, %v8562, %v8563
      %v8565 = vrot.slane %v8503, 5
      %v8566 = vrot.slane %v8565, 4
      %v8567 = vrot.slane %v8137, 5
      %v8568 = vsel %vm4370, %v8566, %v8567
      %v8569 = vrot.slane %v8567, 4
      %v8570 = vrot.slane %v8138, 5
      %v8571 = vsel %vm4370, %v8569, %v8570
      %v8572 = vrot.slane %v8504, 5
      %v8573 = vrot.slane %v8572, 4
      %v8574 = vrot.slane %v8140, 5
      %v8575 = vsel %vm4370, %v8573, %v8574
      %v8576 = vrot.slane %v8574, 4
      %v8577 = vrot.slane %v8141, 5
      %v8578 = vsel %vm4370, %v8576, %v8577
      %v8579 = vrot.slane %v8505, 5
      %v8580 = vrot.slane %v8579, 4
      %v8581 = vrot.slane %v8143, 5
      %v8582 = vsel %vm4370, %v8580, %v8581
      %v8583 = vrot.slane %v8581, 4
      %v8584 = vrot.slane %v8144, 5
      %v8585 = vsel %vm4370, %v8583, %v8584
      %v8586 = vld [vmem:[%s6073] sm:$0xf]
      %v8587 = vld [vmem:[%s6073 + $0x4] sm:$0xf]
      %v8588 = vld [vmem:[%s6073 + $0x8] sm:$0xf]
      %v8589 = vld [vmem:[%s6073 + $0xc] sm:$0xf]
      %v8590 = vld [vmem:[%s6073 + $0x10] sm:$0xf]
      %v8591 = vld [vmem:[%s6073 + $0x14] sm:$0xf]
      %v8592 = vld [vmem:[%s6073 + $0x18] sm:$0xf]
      %v8593 = vld [vmem:[%s6073 + $0x1c] sm:$0xf]
      %v8594 = vld [vmem:[%s6073 + $0x20] sm:$0xf]
      %v8595 = vld [vmem:[%s6073 + $0x24] sm:$0xf]
      %v8596 = vld [vmem:[%s6073 + $0x28] sm:$0xf]
      %v8597 = vld [vmem:[%s6073 + $0x2c] sm:$0xf]
      %v8598 = vld [vmem:[%s6073 + $0x30] sm:$0xf]
      %v8599 = vld [vmem:[%s6073 + $0x34] sm:$0xf]
      %v8600 = vld [vmem:[%s6073 + $0x38] sm:$0xf]
      %v8601 = vld [vmem:[%s6073 + $0x3c] sm:$0xf]
      %v8602 = vunpack.c.l.b16 %v8533
      %v8603 = vunpack.c.l.b16 %v8536
      %v8604 = vunpack.c.l.b16 %v8540
      %v8605 = vunpack.c.l.b16 %v8543
      %v8606 = vunpack.c.l.b16 %v8547
      %v8607 = vunpack.c.l.b16 %v8550
      %v8608 = vunpack.c.l.b16 %v8554
      %v8609 = vunpack.c.l.b16 %v8557
      %v8610 = vunpack.c.l.b16 %v8561
      %v8611 = vunpack.c.l.b16 %v8564
      %v8612 = vunpack.c.l.b16 %v8568
      %v8613 = vunpack.c.l.b16 %v8571
      %v8614 = vunpack.c.l.b16 %v8575
      %v8615 = vunpack.c.l.b16 %v8578
      %v8616 = vunpack.c.l.b16 %v8582
      %v8617 = vunpack.c.l.b16 %v8585
      %v8618 = vpack.c.b16 %v8603, %v8602
      %v8619 = vpack.c.b16 %v8605, %v8604
      %v8620 = vpack.c.b16 %v8607, %v8606
      %v8621 = vpack.c.b16 %v8609, %v8608
      %v8622 = vpack.c.b16 %v8611, %v8610
      %v8623 = vpack.c.b16 %v8613, %v8612
      %v8624 = vpack.c.b16 %v8615, %v8614
      %v8625 = vpack.c.b16 %v8617, %v8616
      %v8650 = vunpack.c.l.b16 %v8586
      %v8651 = vunpack.c.l.b16 %v8587
      %v8652 = vunpack.c.l.b16 %v8588
      %v8653 = vunpack.c.l.b16 %v8589
      %v8654 = vunpack.c.l.b16 %v8590
      %v8655 = vunpack.c.l.b16 %v8591
      %v8656 = vunpack.c.l.b16 %v8592
      %v8657 = vunpack.c.l.b16 %v8593
      %v8658 = vunpack.c.l.b16 %v8594
      %v8659 = vunpack.c.l.b16 %v8595
      %v8660 = vunpack.c.l.b16 %v8596
      %v8661 = vunpack.c.l.b16 %v8597
      %v8662 = vunpack.c.l.b16 %v8598
      %v8663 = vunpack.c.l.b16 %v8599
      %v8664 = vunpack.c.l.b16 %v8600
      %v8665 = vunpack.c.l.b16 %v8601
      %v8666 = vpack.c.b16 %v8651, %v8650
      %v8667 = vpack.c.b16 %v8653, %v8652
      %v8668 = vpack.c.b16 %v8655, %v8654
      %v8669 = vpack.c.b16 %v8657, %v8656
      %v8670 = vpack.c.b16 %v8659, %v8658
      %v8671 = vpack.c.b16 %v8661, %v8660
      %v8672 = vpack.c.b16 %v8663, %v8662
      %v8673 = vpack.c.b16 %v8665, %v8664
      %8682 = vmatpush.bf16.msra.mxu0 %v8673
      %8683 = vmatpush.bf16.msra.mxu0 %v8672
      %8684 = vmatpush.bf16.msra.mxu0 %v8671
      %8685 = vmatpush.bf16.msra.mxu0 %v8670
      %8686 = vmatpush.bf16.msra.mxu0 %v8669
      %8687 = vmatpush.bf16.msra.mxu0 %v8668
      %8688 = vmatpush.bf16.msra.mxu0 %v8667
      %8689 = vmatpush.bf16.msra.mxu0 %v8666
      %8690 = vmatmul.bf16.gmra.mxu0 %v8618
      %v8691 = vpop.f32.mrf.mxu0
      %v8692 = vadd.f32 0.0, %v8691
      %v8693 = vpop.f32.mrf.mxu0
      %v8694 = vadd.f32 0.0, %v8693
      %8695 = vmatmul.bf16.gmra.mxu0 %v8619
      %v8696 = vpop.f32.mrf.mxu0
      %v8697 = vadd.f32 0.0, %v8696
      %v8698 = vpop.f32.mrf.mxu0
      %v8699 = vadd.f32 0.0, %v8698
      %8700 = vmatmul.bf16.gmra.mxu0 %v8620
      %v8701 = vpop.f32.mrf.mxu0
      %v8702 = vadd.f32 0.0, %v8701
      %v8703 = vpop.f32.mrf.mxu0
      %v8704 = vadd.f32 0.0, %v8703
      %8705 = vmatmul.bf16.gmra.mxu0 %v8621
      %v8706 = vpop.f32.mrf.mxu0
      %v8707 = vadd.f32 0.0, %v8706
      %v8708 = vpop.f32.mrf.mxu0
      %v8709 = vadd.f32 0.0, %v8708
      %8710 = vmatmul.bf16.gmra.mxu0 %v8622
      %v8711 = vpop.f32.mrf.mxu0
      %v8712 = vadd.f32 0.0, %v8711
      %v8713 = vpop.f32.mrf.mxu0
      %v8714 = vadd.f32 0.0, %v8713
      %8715 = vmatmul.bf16.gmra.mxu0 %v8623
      %v8716 = vpop.f32.mrf.mxu0
      %v8717 = vadd.f32 0.0, %v8716
      %v8718 = vpop.f32.mrf.mxu0
      %v8719 = vadd.f32 0.0, %v8718
      %8720 = vmatmul.bf16.gmra.mxu0 %v8624
      %v8721 = vpop.f32.mrf.mxu0
      %v8722 = vadd.f32 0.0, %v8721
      %v8723 = vpop.f32.mrf.mxu0
      %v8724 = vadd.f32 0.0, %v8723
      %8725 = vmatmul.bf16.gmra.mxu0 %v8625
      %v8726 = vpop.f32.mrf.mxu0
      %v8727 = vadd.f32 0.0, %v8726
      %v8728 = vpop.f32.mrf.mxu0
      %v8729 = vadd.f32 0.0, %v8728
      %8730 = vdwg.mxu0
      %v8731 = vadd.f32 %v8482, %v8692
      %v8732 = vadd.f32 %v8483, %v8694
      %v8733 = vadd.f32 %v8484, %v8697
      %v8734 = vadd.f32 %v8485, %v8699
      %v8735 = vadd.f32 %v8486, %v8702
      %v8736 = vadd.f32 %v8487, %v8704
      %v8737 = vadd.f32 %v8488, %v8707
      %v8738 = vadd.f32 %v8489, %v8709
      %v8739 = vadd.f32 %v8490, %v8712
      %v8740 = vadd.f32 %v8491, %v8714
      %v8741 = vadd.f32 %v8492, %v8717
      %v8742 = vadd.f32 %v8493, %v8719
      %v8743 = vadd.f32 %v8494, %v8722
      %v8744 = vadd.f32 %v8495, %v8724
      %v8745 = vadd.f32 %v8496, %v8727
      %v8746 = vadd.f32 %v8497, %v8729
      %8747 = vxpose.xlu0.b32.start [1/16] %v8731, 128
      %8748 = vxpose.xlu0.b32.cont [2/16] %v8732, 128
      %8749 = vxpose.xlu0.b32.cont [3/16] %v8733, 128
      %8750 = vxpose.xlu0.b32.cont [4/16] %v8734, 128
      %8751 = vxpose.xlu0.b32.cont [5/16] %v8735, 128
      %8752 = vxpose.xlu0.b32.cont [6/16] %v8736, 128
      %8753 = vxpose.xlu0.b32.cont [7/16] %v8737, 128
      %8754 = vxpose.xlu0.b32.cont [8/16] %v8738, 128
      %8755 = vxpose.xlu0.b32.cont [9/16] %v8739, 128
      %8756 = vxpose.xlu0.b32.cont [10/16] %v8740, 128
      %8757 = vxpose.xlu0.b32.cont [11/16] %v8741, 128
      %8758 = vxpose.xlu0.b32.cont [12/16] %v8742, 128
      %8759 = vxpose.xlu0.b32.cont [13/16] %v8743, 128
      %8760 = vxpose.xlu0.b32.cont [14/16] %v8744, 128
      %8761 = vxpose.xlu0.b32.cont [15/16] %v8745, 128
      %8762 = vxpose.xlu0.b32.end [16/16] %v8746, 128
      %v8763 = vpop.trf.xlu0
      %v8764 = vpop.trf.xlu0
      %v8765 = vpop.trf.xlu0
      %v8766 = vpop.trf.xlu0
      %v8767 = vpop.trf.xlu0
      %v8768 = vpop.trf.xlu0
      %v8769 = vpop.trf.xlu0
      %v8770 = vpop.trf.xlu0
      %v8771 = vpop.trf.xlu0
      %v8772 = vpop.trf.xlu0
      %v8773 = vpop.trf.xlu0
      %v8774 = vpop.trf.xlu0
      %v8775 = vpop.trf.xlu0
      %v8776 = vpop.trf.xlu0
      %v8777 = vpop.trf.xlu0
      %v8778 = vpop.trf.xlu0
      %v8779 = vxor.u32 %v8763, 2147483648
      %v8780 = vmul.f32 %v8779, 1.442695
      %v8781 = vpow.pop %v8780
      %v8782 = vadd.f32 %v8781, 1.0
      %v8783 = vrcp.pop %v8782
      %v8784 = vmul.f32 %v8782, %v8783
      %v8785 = vsub.f32 1.0, %v8784
      %v8786 = vmul.f32 %v8783, %v8785
      %v8787 = vadd.f32 %v8783, %v8786
      %vm8788 = vweird.f32 %v8782
      %vm8789 = vweird.f32 %v8783
      %vm8790 = vmor %vm8788, %vm8789
      %v8791 = vsel %vm8790, %v8783, %v8787
      %v8792 = vand.u32 2147483647, %v8782
      %vm8793 = vcmp.eq.f32.partialorder %v8792, 8.507059e+37
      %v8794 = vand.u32 %v8782, 2147483648
      %v8795 = vor.u32 1.1754944e-38, %v8794
      %v8796 = vsel %vm8793, %v8795, %v8791
      %v8797 = vmul.f32 1.0, %v8796
      %8798 = vst [vmem:[%s314 + $0x4] sm:$0xf] %v8797
      %s8799 = smul.u32 2, %s23
      %p8800 = scmp.lt.s32.totalorder %s22, 1
      %s8801 = scalar_select %p8800, %s22, 1
      %p8802 = scmp.lt.s32.totalorder %s8799, 1
      %s8803 = scalar_select %p8802, %s8799, 1
      %s8804 = smul.addr %s8801, 2
      %s8805 = sadd.s32 %s8803, %s8804
      %s8806 = smul.addr %s8805, 4
      %s8807 = scalar_lea.vmem %s7, %s8806
      // Predicated region
      $region71: #{generator_forward.1} parent=47 // pred_check
        %p8808 = pneg %p204
      $region72: #{generator_forward.1} parent=47 // pred_check_branch
        %8810 = sbr.rel (%p8808) target = $region74
      $region73: #{generator_forward.1} parent=47 // pred_region
        %s8811 = smul.u32 2, %s23
      $region74: #{generator_forward.1} parent=47 // pred_fallthru
        _
    $region48: #{generator_forward.1} parent=5 // pred_fallthru
      _
    %p8812 = scmp.le.s32.totalorder 2, %s13
    // Predicated region
    $region75: #{generator_forward.1} parent=5 // pred_check
      %p8813 = pneg %p8812
    $region76: #{generator_forward.1} parent=5 // pred_check_branch
      %8815 = sbr.rel (%p8813) target = $region78
    $region77: #{generator_forward.1} parent=5 // pred_region
      %s8816 = ssub.s32 %s13, 2
      // Predicated region
      $region79: #{generator_forward.1} parent=77 // pred_check
        %p8817 = pneg %p210
      $region80: #{generator_forward.1} parent=77 // pred_check_branch
        %8819 = sbr.rel (%p8817) target = $region82
      $region81: #{generator_forward.1} parent=77 // pred_region
        %s8820 = smul.u32 2, %s25
        %p8821 = scmp.lt.s32.totalorder %s24, 1
        %s8822 = scalar_select %p8821, %s24, 1
        %p8823 = scmp.lt.s32.totalorder %s8820, 1
        %s8824 = scalar_select %p8823, %s8820, 1
        %s8825 = smul.addr %s8822, 2
        %s8826 = sadd.s32 %s8824, %s8825
        %s8827 = smul.addr %s8826, 4
        %s8828 = scalar_lea.vmem %s7, %s8827
      $region82: #{generator_forward.1} parent=77 // pred_fallthru
        _
    $region78: #{generator_forward.1} parent=5 // pred_fallthru
      _
  $region6: #{generator_forward.1} parent=0 // loop_footer
    %s17 = sadd.s32 1, %s13
  $region7: #{generator_forward.1} parent=0 // loop_footer_branch
    %12 = sbr.rel target = $region3
  $region8: #{generator_forward.1} parent=0 // loop_exit
    _

</llo_original>
